<compile_context>
chip_gen: v7x
topology: tpu7x:2x2x1
jax: 0.10.0
libtpu: 0.0.40
codegen_flags: <defaults>
</compile_context>

<pallas_src>
import functools

import numpy as np

import jax
import jax.numpy as jnp
from jax import lax
from jax.experimental import pallas as pl
from jax.experimental.pallas import tpu as pltpu


# (Cin, Cout, K, stride, activation) for each ConvTranspose2d layer.
LAYERS = [
    (74, 64, 3, 2, "tanh"),
    (64, 128, 4, 1, "tanh"),
    (128, 64, 3, 2, "tanh"),
    (64, 1, 4, 2, "relu"),
]


def _geometry():
    """Static per-layer, per-sample geometry for the flattened transposed-conv."""
    geoms = []
    h = w = 1
    for (cin, cout, k, s, act) in LAYERS:
        ho = (h - 1) * s + k
        wo = (w - 1) * s + k
        hp = ho + k - 1            # dilated + fully padded input height
        wp = wo + k - 1            # dilated + fully padded input width
        hpwp = hp * wp
        # number of flat positions evaluated so every valid output pixel
        # (i < ho, j < wo) is covered (plus a few harmless garbage columns
        # that the next layer's 0/1 scatter matrix zeroes out).
        L = (ho - 1) * wp + wo     # note: max tap offset + L == hpwp exactly
        geoms.append(dict(cin=cin, cout=cout, k=k, s=s, act=act,
                          ho=ho, wo=wo, hp=hp, wp=wp, hpwp=hpwp, L=L))
        h, w = ho, wo
    return geoms


# ---------------------------------------------------------------------------
# Parameters
# ---------------------------------------------------------------------------
def init_params(key):
    """Raw parameters in the PyTorch ConvTranspose2d layout (Cin, Cout, K, K)."""
    params = []
    for i, (cin, cout, k, _s, _act) in enumerate(LAYERS):
        kw_key, kb_key = jax.random.split(jax.random.fold_in(key, i))
        bound = 1.0 / float(cin * k * k) ** 0.5
        w = jax.random.uniform(kw_key, (cin, cout, k, k), jnp.float32, -bound, bound)
        b = jax.random.uniform(kb_key, (cout,), jnp.float32, -bound, bound)
        params.append((w, b))
    return params


def prepare_kernel_params(params):
    """One-time transform: stacked bf16 weights + per-sample 0/1 scatter matrices."""
    geoms = _geometry()

    wts, bs = [], []
    for (w, b), g in zip(params, geoms):
        k, cin, cout = g["k"], g["cin"], g["cout"]
        wf = jnp.flip(w, axis=(2, 3))                               # (Cin, Cout, K, K)
        wt = jnp.transpose(wf, (2, 3, 1, 0)).reshape(k * k, cout, cin)
        # Stacked weight: (Cout, K*K*Cin) so each layer is ONE matmul with a
        # 576-2048-deep contraction (fills the MXU instead of 64/128-deep taps).
        w_stack = jnp.transpose(wt, (1, 0, 2)).reshape(cout, k * k * cin)
        wts.append(w_stack.astype(jnp.bfloat16))
        bs.append(b.reshape(cout, 1).astype(jnp.float32))           # bias kept f32

    # Per-sample scatter matrix G_l: places layer-l's valid output pixels into
    # layer-(l+1)'s padded/dilated plane (zero-insertion + padding as one 0/1
    # matmul).  Exactly representable in bf16; each column has <= 1 nonzero.
    gs = []
    for l in range(len(LAYERS) - 1):
        cur, nxt = geoms[l], geoms[l + 1]
        gmat = np.zeros((cur["L"], nxt["hpwp"]), np.float32)
        for i in range(cur["ho"]):
            for j in range(cur["wo"]):
                m = i * cur["wp"] + j
                r = ((nxt["k"] - 1 + i * nxt["s"]) * nxt["wp"]
                     + (nxt["k"] - 1 + j * nxt["s"]))
                gmat[m, r] = 1.0
        gs.append(jnp.asarray(gmat, dtype=jnp.bfloat16))

    return dict(wts=wts, bs=bs, gs=gs), geoms


# ---------------------------------------------------------------------------
# Fused Pallas kernel: the whole generator, one grid step per sample
# ---------------------------------------------------------------------------
def _generator_kernel(xp1_ref,
                      w1_ref, b1_ref, g1_ref,
                      w2_ref, b2_ref, g2_ref,
                      w3_ref, b3_ref, g3_ref,
                      w4_ref, b4_ref,
                      out_ref,
                      xp2_ref, xp3_ref, xp4_ref,
                      s1_ref, s2_ref, s3_ref, s4_ref,
                      *, geoms):
    xp_refs = [xp1_ref, xp2_ref, xp3_ref, xp4_ref]   # padded/dilated planes (Cin, HpWp)
    s_refs = [s1_ref, s2_ref, s3_ref, s4_ref]        # stacked windows (K*K*Cin, L)
    w_refs = [w1_ref, w2_ref, w3_ref, w4_ref]
    b_refs = [b1_ref, b2_ref, b3_ref, b4_ref]
    g_refs = [g1_ref, g2_ref, g3_ref, None]

    n_layers = len(geoms)
    for l, g in enumerate(geoms):
        k, wp, L, cin = g["k"], g["wp"], g["L"], g["cin"]

        # Stacked window matrix: K*K static lane-shifted copies of the plane.
        # (off + L == HpWp for the largest offset, so no OOB; garbage columns
        # stay finite and are killed by all-zero rows of the next G.)
        for u in range(k):
            for v in range(k):
                t = u * k + v
                off = u * wp + v
                s_refs[l][t * cin:(t + 1) * cin, :] = xp_refs[l][:, off:off + L]

        # One big-contraction MXU matmul per layer, f32 accumulation.
        acc = jnp.dot(w_refs[l][...], s_refs[l][...],
                      preferred_element_type=jnp.float32)
        acc = acc + b_refs[l][...]                     # (Cout, 1) bias broadcast
        y = jnp.tanh(acc) if g["act"] == "tanh" else jnp.maximum(acc, 0.0)

        if l + 1 < n_layers:
            # Zero-insertion + padding for the next layer: one 0/1 scatter
            # matmul (exact: each output column picks at most one y element).
            xp_refs[l + 1][...] = jnp.dot(
                y.astype(jnp.bfloat16), g_refs[l][...],
                preferred_element_type=jnp.float32).astype(jnp.bfloat16)
        else:
            # Final layer (Cout=1): single lane-dense (1, L) store; the valid
            # 28x28 pixels are extracted by a reshape/slice in the wrapper.
            out_ref[...] = y


def generator_forward(kparams, geoms, x):
    batch = x.shape[0]
    c0 = LAYERS[0][0]
    assert x.shape == (batch, c0, 1, 1), x.shape
    g1, g_last = geoms[0], geoms[-1]
    ho, wo, wp_last, L_last = (g_last["ho"], g_last["wo"],
                               g_last["wp"], g_last["L"])

    # Place the 1x1-spatial latent into layer 1's padded/dilated plane
    # (tiny, pure layout plumbing done once in XLA).
    center = (g1["k"] - 1) * g1["wp"] + (g1["k"] - 1)
    xp1 = jnp.zeros((batch, c0, g1["hpwp"]), jnp.bfloat16)
    xp1 = xp1.at[:, :, center].set(x.reshape(batch, c0).astype(jnp.bfloat16))

    wts, bs, gs = kparams["wts"], kparams["bs"], kparams["gs"]
    inputs = [xp1,
              wts[0], bs[0], gs[0],
              wts[1], bs[1], gs[1],
              wts[2], bs[2], gs[2],
              wts[3], bs[3]]

    # Sample b gets block b of the latent plane / output; weights, biases and
    # scatter matrices use constant block indices so they stay VMEM-resident
    # across grid steps (no re-DMA).
    in_specs = [pl.BlockSpec((None, c0, g1["hpwp"]), lambda b: (b, 0, 0))]
    for arr in inputs[1:]:
        in_specs.append(
            pl.BlockSpec(arr.shape, lambda b, nd=arr.ndim: (0,) * nd))

    scratch = ([pltpu.VMEM((g["cin"], g["hpwp"]), jnp.bfloat16)
                for g in geoms[1:]]                                   # xp planes 2..4
               + [pltpu.VMEM((g["k"] * g["k"] * g["cin"], g["L"]), jnp.bfloat16)
                  for g in geoms])                                    # stacked windows

    out3 = pl.pallas_call(
        functools.partial(_generator_kernel, geoms=geoms),
        grid=(batch,),
        out_shape=jax.ShapeDtypeStruct((batch, 1, L_last), jnp.float32),
        in_specs=in_specs,
        out_specs=pl.BlockSpec((None, 1, L_last), lambda b: (b, 0, 0)),
        scratch_shapes=scratch,
        compiler_params=pltpu.CompilerParams(
            dimension_semantics=("parallel",)),
    )(*inputs)

    # Lane-dense slab -> image: pad to Ho*Wp, reshape, drop the Wp-Wo tail.
    flat = out3.reshape(batch, L_last)
    flat = jnp.pad(flat, ((0, 0), (0, ho * wp_last - L_last)))
    img = flat.reshape(batch, ho, wp_last)[:, :, :wo]
    return img.reshape(batch, 1, ho, wo)


# ---------------------------------------------------------------------------
# Pure-JAX reference (XLA conv) for correctness check
# ---------------------------------------------------------------------------
def conv_transpose2d_ref(x, w, b, stride):
    Cin, Cout, K, _ = w.shape
    rhs = jnp.transpose(jnp.flip(w, axis=(2, 3)), (1, 0, 2, 3))   # (Cout, Cin, K, K)
    y = lax.conv_general_dilated(
        x, rhs,
        window_strides=(1, 1),
        padding=[(K - 1, K - 1), (K - 1, K - 1)],
        lhs_dilation=(stride, stride),
        dimension_numbers=("NCHW", "OIHW", "NCHW"),
        precision=lax.Precision.HIGHEST,
    )
    return y + b.reshape(1, Cout, 1, 1)


def generator_ref(params, x):
    for (w, b), (_cin, _cout, _k, s, act) in zip(params, LAYERS):
        x = conv_transpose2d_ref(x, w, b, s)
        x = jnp.tanh(x) if act == "tanh" else jnp.maximum(x, 0.0)
    return x


if __name__ == "__main__":
    key = jax.random.PRNGKey(0)
    pkey, xkey = jax.random.split(key)
    params = init_params(pkey)

    # InfoGAN-style latent: (batch, 74, 1, 1) -> (batch, 1, 28, 28)
    batch = 2
    x = jax.random.normal(xkey, (batch, 74, 1, 1), dtype=jnp.float32)

    kparams, geoms = prepare_kernel_params(params)
    fwd = jax.jit(lambda kp, xx: generator_forward(kp, geoms, xx))

    out = jax.block_until_ready(fwd(kparams, x))
    assert out.shape == (batch, 1, 28, 28), out.shape

    ref = jax.block_until_ready(generator_ref(params, x))
    # Kernel uses bf16 weights/activations with f32 accumulation; observed
    # end-to-end error is O(1e-3), well inside this tolerance.
    assert jnp.allclose(out, ref, atol=2e-2, rtol=2e-2), float(
        jnp.max(jnp.abs(out - ref)))

    print("KERNEL_OK")
</pallas_src>

<mosaic_0001>
module attributes {stable_mosaic.version = 11 : i64} {
  func.func @_generator_kernel(%arg0: i32, %arg1: memref<1x74x25xbf16, #tpu.memory_space<vmem>>, %arg2: memref<64x666xbf16, #tpu.memory_space<vmem>>, %arg3: memref<64x1xf32, #tpu.memory_space<vmem>>, %arg4: memref<13x81xbf16, #tpu.memory_space<vmem>>, %arg5: memref<128x1024xbf16, #tpu.memory_space<vmem>>, %arg6: memref<128x1xf32, #tpu.memory_space<vmem>>, %arg7: memref<51x225xbf16, #tpu.memory_space<vmem>>, %arg8: memref<64x1152xbf16, #tpu.memory_space<vmem>>, %arg9: memref<64x1xf32, #tpu.memory_space<vmem>>, %arg10: memref<193x961xbf16, #tpu.memory_space<vmem>>, %arg11: memref<1x1024xbf16, #tpu.memory_space<vmem>>, %arg12: memref<1x1xf32, #tpu.memory_space<vmem>>, %arg13: memref<1x1x865xf32, #tpu.memory_space<vmem>>, %arg14: memref<64x81xbf16, #tpu.memory_space<vmem>>, %arg15: memref<128x225xbf16, #tpu.memory_space<vmem>>, %arg16: memref<64x961xbf16, #tpu.memory_space<vmem>>, %arg17: memref<666x13xbf16, #tpu.memory_space<vmem>>, %arg18: memref<1024x51xbf16, #tpu.memory_space<vmem>>, %arg19: memref<1152x193xbf16, #tpu.memory_space<vmem>>, %arg20: memref<1024x865xbf16, #tpu.memory_space<vmem>>) attributes {dimension_semantics = [#tpu.dimension_semantics<parallel>], iteration_bounds = array<i64: 2>, scalar_prefetch = 0 : i64, scratch_operands = 7 : i64, tpu.core_type = #tpu.core_type<tc>, window_params = [{transform_indices = @transform_0, window_bounds = array<i64: 1, 74, 25>}, {pipeline_mode = #tpu.pipeline_mode<synchronous>, transform_indices = @transform_1, window_bounds = array<i64: 64, 666>}, {pipeline_mode = #tpu.pipeline_mode<synchronous>, transform_indices = @transform_2, window_bounds = array<i64: 64, 1>}, {pipeline_mode = #tpu.pipeline_mode<synchronous>, transform_indices = @transform_3, window_bounds = array<i64: 13, 81>}, {pipeline_mode = #tpu.pipeline_mode<synchronous>, transform_indices = @transform_4, window_bounds = array<i64: 128, 1024>}, {pipeline_mode = #tpu.pipeline_mode<synchronous>, transform_indices = @transform_5, window_bounds = array<i64: 128, 1>}, {pipeline_mode = #tpu.pipeline_mode<synchronous>, transform_indices = @transform_6, window_bounds = array<i64: 51, 225>}, {pipeline_mode = #tpu.pipeline_mode<synchronous>, transform_indices = @transform_7, window_bounds = array<i64: 64, 1152>}, {pipeline_mode = #tpu.pipeline_mode<synchronous>, transform_indices = @transform_8, window_bounds = array<i64: 64, 1>}, {pipeline_mode = #tpu.pipeline_mode<synchronous>, transform_indices = @transform_9, window_bounds = array<i64: 193, 961>}, {pipeline_mode = #tpu.pipeline_mode<synchronous>, transform_indices = @transform_10, window_bounds = array<i64: 1, 1024>}, {pipeline_mode = #tpu.pipeline_mode<synchronous>, transform_indices = @transform_11, window_bounds = array<i64: 1, 1>}, {transform_indices = @transform_12, window_bounds = array<i64: 1, 1, 865>}]} {
    %c0 = arith.constant 0 : index
    %c0_0 = arith.constant 0 : index
    %c0_1 = arith.constant 0 : index
    %0 = vector.load %arg1[%c0, %c0_0, %c0_1] : memref<1x74x25xbf16, #tpu.memory_space<vmem>>, vector<1x74x13xbf16>
    %1 = vector.shape_cast %0 : vector<1x74x13xbf16> to vector<74x13xbf16>
    %c0_2 = arith.constant 0 : index
    %c0_3 = arith.constant 0 : index
    %2 = vector.load %arg17[%c0_2, %c0_3] : memref<666x13xbf16, #tpu.memory_space<vmem>>, vector<74x13xbf16>
    tpu.vector_store %arg17[%c0_2, %c0_3], %1 {strides = array<i32>} : memref<666x13xbf16, #tpu.memory_space<vmem>>, vector<74x13xbf16>,
    %c0_4 = arith.constant 0 : index
    %c0_5 = arith.constant 0 : index
    %c1 = arith.constant 1 : index
    %3 = vector.load %arg1[%c0_4, %c0_5, %c1] : memref<1x74x25xbf16, #tpu.memory_space<vmem>>, vector<1x74x13xbf16>
    %4 = vector.shape_cast %3 : vector<1x74x13xbf16> to vector<74x13xbf16>
    %c74 = arith.constant 74 : index
    %c0_6 = arith.constant 0 : index
    %5 = vector.load %arg17[%c74, %c0_6] : memref<666x13xbf16, #tpu.memory_space<vmem>>, vector<74x13xbf16>
    tpu.vector_store %arg17[%c74, %c0_6], %4 {strides = array<i32>} : memref<666x13xbf16, #tpu.memory_space<vmem>>, vector<74x13xbf16>,
    %c0_7 = arith.constant 0 : index
    %c0_8 = arith.constant 0 : index
    %c2 = arith.constant 2 : index
    %6 = vector.load %arg1[%c0_7, %c0_8, %c2] : memref<1x74x25xbf16, #tpu.memory_space<vmem>>, vector<1x74x13xbf16>
    %7 = vector.shape_cast %6 : vector<1x74x13xbf16> to vector<74x13xbf16>
    %c148 = arith.constant 148 : index
    %c0_9 = arith.constant 0 : index
    %8 = vector.load %arg17[%c148, %c0_9] : memref<666x13xbf16, #tpu.memory_space<vmem>>, vector<74x13xbf16>
    tpu.vector_store %arg17[%c148, %c0_9], %7 {strides = array<i32>} : memref<666x13xbf16, #tpu.memory_space<vmem>>, vector<74x13xbf16>,
    %c0_10 = arith.constant 0 : index
    %c0_11 = arith.constant 0 : index
    %c5 = arith.constant 5 : index
    %9 = vector.load %arg1[%c0_10, %c0_11, %c5] : memref<1x74x25xbf16, #tpu.memory_space<vmem>>, vector<1x74x13xbf16>
    %10 = vector.shape_cast %9 : vector<1x74x13xbf16> to vector<74x13xbf16>
    %c222 = arith.constant 222 : index
    %c0_12 = arith.constant 0 : index
    %11 = vector.load %arg17[%c222, %c0_12] : memref<666x13xbf16, #tpu.memory_space<vmem>>, vector<74x13xbf16>
    tpu.vector_store %arg17[%c222, %c0_12], %10 {strides = array<i32>} : memref<666x13xbf16, #tpu.memory_space<vmem>>, vector<74x13xbf16>,
    %c0_13 = arith.constant 0 : index
    %c0_14 = arith.constant 0 : index
    %c6 = arith.constant 6 : index
    %12 = vector.load %arg1[%c0_13, %c0_14, %c6] : memref<1x74x25xbf16, #tpu.memory_space<vmem>>, vector<1x74x13xbf16>
    %13 = vector.shape_cast %12 : vector<1x74x13xbf16> to vector<74x13xbf16>
    %c296 = arith.constant 296 : index
    %c0_15 = arith.constant 0 : index
    %14 = vector.load %arg17[%c296, %c0_15] : memref<666x13xbf16, #tpu.memory_space<vmem>>, vector<74x13xbf16>
    tpu.vector_store %arg17[%c296, %c0_15], %13 {strides = array<i32>} : memref<666x13xbf16, #tpu.memory_space<vmem>>, vector<74x13xbf16>,
    %c0_16 = arith.constant 0 : index
    %c0_17 = arith.constant 0 : index
    %c7 = arith.constant 7 : index
    %15 = vector.load %arg1[%c0_16, %c0_17, %c7] : memref<1x74x25xbf16, #tpu.memory_space<vmem>>, vector<1x74x13xbf16>
    %16 = vector.shape_cast %15 : vector<1x74x13xbf16> to vector<74x13xbf16>
    %c370 = arith.constant 370 : index
    %c0_18 = arith.constant 0 : index
    %17 = vector.load %arg17[%c370, %c0_18] : memref<666x13xbf16, #tpu.memory_space<vmem>>, vector<74x13xbf16>
    tpu.vector_store %arg17[%c370, %c0_18], %16 {strides = array<i32>} : memref<666x13xbf16, #tpu.memory_space<vmem>>, vector<74x13xbf16>,
    %c0_19 = arith.constant 0 : index
    %c0_20 = arith.constant 0 : index
    %c10 = arith.constant 10 : index
    %18 = vector.load %arg1[%c0_19, %c0_20, %c10] : memref<1x74x25xbf16, #tpu.memory_space<vmem>>, vector<1x74x13xbf16>
    %19 = vector.shape_cast %18 : vector<1x74x13xbf16> to vector<74x13xbf16>
    %c444 = arith.constant 444 : index
    %c0_21 = arith.constant 0 : index
    %20 = vector.load %arg17[%c444, %c0_21] : memref<666x13xbf16, #tpu.memory_space<vmem>>, vector<74x13xbf16>
    tpu.vector_store %arg17[%c444, %c0_21], %19 {strides = array<i32>} : memref<666x13xbf16, #tpu.memory_space<vmem>>, vector<74x13xbf16>,
    %c0_22 = arith.constant 0 : index
    %c0_23 = arith.constant 0 : index
    %c11 = arith.constant 11 : index
    %21 = vector.load %arg1[%c0_22, %c0_23, %c11] : memref<1x74x25xbf16, #tpu.memory_space<vmem>>, vector<1x74x13xbf16>
    %22 = vector.shape_cast %21 : vector<1x74x13xbf16> to vector<74x13xbf16>
    %c518 = arith.constant 518 : index
    %c0_24 = arith.constant 0 : index
    %23 = vector.load %arg17[%c518, %c0_24] : memref<666x13xbf16, #tpu.memory_space<vmem>>, vector<74x13xbf16>
    tpu.vector_store %arg17[%c518, %c0_24], %22 {strides = array<i32>} : memref<666x13xbf16, #tpu.memory_space<vmem>>, vector<74x13xbf16>,
    %c0_25 = arith.constant 0 : index
    %c0_26 = arith.constant 0 : index
    %c12 = arith.constant 12 : index
    %24 = vector.load %arg1[%c0_25, %c0_26, %c12] : memref<1x74x25xbf16, #tpu.memory_space<vmem>>, vector<1x74x13xbf16>
    %25 = vector.shape_cast %24 : vector<1x74x13xbf16> to vector<74x13xbf16>
    %c592 = arith.constant 592 : index
    %c0_27 = arith.constant 0 : index
    %26 = vector.load %arg17[%c592, %c0_27] : memref<666x13xbf16, #tpu.memory_space<vmem>>, vector<74x13xbf16>
    tpu.vector_store %arg17[%c592, %c0_27], %25 {strides = array<i32>} : memref<666x13xbf16, #tpu.memory_space<vmem>>, vector<74x13xbf16>,
    %c0_28 = arith.constant 0 : index
    %c0_29 = arith.constant 0 : index
    %27 = vector.load %arg2[%c0_28, %c0_29] : memref<64x666xbf16, #tpu.memory_space<vmem>>, vector<64x666xbf16>
    %c0_30 = arith.constant 0 : index
    %c0_31 = arith.constant 0 : index
    %28 = vector.load %arg17[%c0_30, %c0_31] : memref<666x13xbf16, #tpu.memory_space<vmem>>, vector<666x13xbf16>
    %cst = arith.constant dense<0.000000e+00> : vector<64x13xf32>
    %29 = tpu.matmul %27, %28, %cst {dimension_numbers = #tpu.dot_dimension_numbers<[1], [0], [0], [1], [0, 0, 1, 1], [], []>} : vector<64x666xbf16>, vector<666x13xbf16>, vector<64x13xf32> -> vector<64x13xf32>
    %c0_32 = arith.constant 0 : index
    %c0_33 = arith.constant 0 : index
    %30 = vector.load %arg3[%c0_32, %c0_33] : memref<64x1xf32, #tpu.memory_space<vmem>>, vector<64x1xf32>
    %31 = vector.broadcast %30 : vector<64x1xf32> to vector<64x13xf32>
    %32 = arith.addf %29, %31 : vector<64x13xf32>
    %33 = math.tanh %32 : vector<64x13xf32>
    %34 = arith.truncf %33 : vector<64x13xf32> to vector<64x13xbf16>
    %c0_34 = arith.constant 0 : index
    %c0_35 = arith.constant 0 : index
    %35 = vector.load %arg4[%c0_34, %c0_35] : memref<13x81xbf16, #tpu.memory_space<vmem>>, vector<13x81xbf16>
    %cst_36 = arith.constant dense<0.000000e+00> : vector<64x81xf32>
    %36 = tpu.matmul %34, %35, %cst_36 {dimension_numbers = #tpu.dot_dimension_numbers<[1], [0], [0], [1], [0, 0, 1, 1], [], []>} : vector<64x13xbf16>, vector<13x81xbf16>, vector<64x81xf32> -> vector<64x81xf32>
    %37 = arith.truncf %36 : vector<64x81xf32> to vector<64x81xbf16>
    %c0_37 = arith.constant 0 : index
    %c0_38 = arith.constant 0 : index
    %38 = vector.load %arg14[%c0_37, %c0_38] : memref<64x81xbf16, #tpu.memory_space<vmem>>, vector<64x81xbf16>
    tpu.vector_store %arg14[%c0_37, %c0_38], %37 {strides = array<i32>} : memref<64x81xbf16, #tpu.memory_space<vmem>>, vector<64x81xbf16>,
    %c0_39 = arith.constant 0 : index
    %c0_40 = arith.constant 0 : index
    %39 = vector.load %arg14[%c0_39, %c0_40] : memref<64x81xbf16, #tpu.memory_space<vmem>>, vector<64x51xbf16>
    %c0_41 = arith.constant 0 : index
    %c0_42 = arith.constant 0 : index
    %40 = vector.load %arg18[%c0_41, %c0_42] : memref<1024x51xbf16, #tpu.memory_space<vmem>>, vector<64x51xbf16>
    tpu.vector_store %arg18[%c0_41, %c0_42], %39 {strides = array<i32>} : memref<1024x51xbf16, #tpu.memory_space<vmem>>, vector<64x51xbf16>,
    %c0_43 = arith.constant 0 : index
    %c1_44 = arith.constant 1 : index
    %41 = vector.load %arg14[%c0_43, %c1_44] : memref<64x81xbf16, #tpu.memory_space<vmem>>, vector<64x51xbf16>
    %c64 = arith.constant 64 : index
    %c0_45 = arith.constant 0 : index
    %42 = vector.load %arg18[%c64, %c0_45] : memref<1024x51xbf16, #tpu.memory_space<vmem>>, vector<64x51xbf16>
    tpu.vector_store %arg18[%c64, %c0_45], %41 {strides = array<i32>} : memref<1024x51xbf16, #tpu.memory_space<vmem>>, vector<64x51xbf16>,
    %c0_46 = arith.constant 0 : index
    %c2_47 = arith.constant 2 : index
    %43 = vector.load %arg14[%c0_46, %c2_47] : memref<64x81xbf16, #tpu.memory_space<vmem>>, vector<64x51xbf16>
    %c128 = arith.constant 128 : index
    %c0_48 = arith.constant 0 : index
    %44 = vector.load %arg18[%c128, %c0_48] : memref<1024x51xbf16, #tpu.memory_space<vmem>>, vector<64x51xbf16>
    tpu.vector_store %arg18[%c128, %c0_48], %43 {strides = array<i32>} : memref<1024x51xbf16, #tpu.memory_space<vmem>>, vector<64x51xbf16>,
    %c0_49 = arith.constant 0 : index
    %c3 = arith.constant 3 : index
    %45 = vector.load %arg14[%c0_49, %c3] : memref<64x81xbf16, #tpu.memory_space<vmem>>, vector<64x51xbf16>
    %c192 = arith.constant 192 : index
    %c0_50 = arith.constant 0 : index
    %46 = vector.load %arg18[%c192, %c0_50] : memref<1024x51xbf16, #tpu.memory_space<vmem>>, vector<64x51xbf16>
    tpu.vector_store %arg18[%c192, %c0_50], %45 {strides = array<i32>} : memref<1024x51xbf16, #tpu.memory_space<vmem>>, vector<64x51xbf16>,
    %c0_51 = arith.constant 0 : index
    %c9 = arith.constant 9 : index
    %47 = vector.load %arg14[%c0_51, %c9] : memref<64x81xbf16, #tpu.memory_space<vmem>>, vector<64x51xbf16>
    %c256 = arith.constant 256 : index
    %c0_52 = arith.constant 0 : index
    %48 = vector.load %arg18[%c256, %c0_52] : memref<1024x51xbf16, #tpu.memory_space<vmem>>, vector<64x51xbf16>
    tpu.vector_store %arg18[%c256, %c0_52], %47 {strides = array<i32>} : memref<1024x51xbf16, #tpu.memory_space<vmem>>, vector<64x51xbf16>,
    %c0_53 = arith.constant 0 : index
    %c10_54 = arith.constant 10 : index
    %49 = vector.load %arg14[%c0_53, %c10_54] : memref<64x81xbf16, #tpu.memory_space<vmem>>, vector<64x51xbf16>
    %c320 = arith.constant 320 : index
    %c0_55 = arith.constant 0 : index
    %50 = vector.load %arg18[%c320, %c0_55] : memref<1024x51xbf16, #tpu.memory_space<vmem>>, vector<64x51xbf16>
    tpu.vector_store %arg18[%c320, %c0_55], %49 {strides = array<i32>} : memref<1024x51xbf16, #tpu.memory_space<vmem>>, vector<64x51xbf16>,
    %c0_56 = arith.constant 0 : index
    %c11_57 = arith.constant 11 : index
    %51 = vector.load %arg14[%c0_56, %c11_57] : memref<64x81xbf16, #tpu.memory_space<vmem>>, vector<64x51xbf16>
    %c384 = arith.constant 384 : index
    %c0_58 = arith.constant 0 : index
    %52 = vector.load %arg18[%c384, %c0_58] : memref<1024x51xbf16, #tpu.memory_space<vmem>>, vector<64x51xbf16>
    tpu.vector_store %arg18[%c384, %c0_58], %51 {strides = array<i32>} : memref<1024x51xbf16, #tpu.memory_space<vmem>>, vector<64x51xbf16>,
    %c0_59 = arith.constant 0 : index
    %c12_60 = arith.constant 12 : index
    %53 = vector.load %arg14[%c0_59, %c12_60] : memref<64x81xbf16, #tpu.memory_space<vmem>>, vector<64x51xbf16>
    %c448 = arith.constant 448 : index
    %c0_61 = arith.constant 0 : index
    %54 = vector.load %arg18[%c448, %c0_61] : memref<1024x51xbf16, #tpu.memory_space<vmem>>, vector<64x51xbf16>
    tpu.vector_store %arg18[%c448, %c0_61], %53 {strides = array<i32>} : memref<1024x51xbf16, #tpu.memory_space<vmem>>, vector<64x51xbf16>,
    %c0_62 = arith.constant 0 : index
    %c18 = arith.constant 18 : index
    %55 = vector.load %arg14[%c0_62, %c18] : memref<64x81xbf16, #tpu.memory_space<vmem>>, vector<64x51xbf16>
    %c512 = arith.constant 512 : index
    %c0_63 = arith.constant 0 : index
    %56 = vector.load %arg18[%c512, %c0_63] : memref<1024x51xbf16, #tpu.memory_space<vmem>>, vector<64x51xbf16>
    tpu.vector_store %arg18[%c512, %c0_63], %55 {strides = array<i32>} : memref<1024x51xbf16, #tpu.memory_space<vmem>>, vector<64x51xbf16>,
    %c0_64 = arith.constant 0 : index
    %c19 = arith.constant 19 : index
    %57 = vector.load %arg14[%c0_64, %c19] : memref<64x81xbf16, #tpu.memory_space<vmem>>, vector<64x51xbf16>
    %c576 = arith.constant 576 : index
    %c0_65 = arith.constant 0 : index
    %58 = vector.load %arg18[%c576, %c0_65] : memref<1024x51xbf16, #tpu.memory_space<vmem>>, vector<64x51xbf16>
    tpu.vector_store %arg18[%c576, %c0_65], %57 {strides = array<i32>} : memref<1024x51xbf16, #tpu.memory_space<vmem>>, vector<64x51xbf16>,
    %c0_66 = arith.constant 0 : index
    %c20 = arith.constant 20 : index
    %59 = vector.load %arg14[%c0_66, %c20] : memref<64x81xbf16, #tpu.memory_space<vmem>>, vector<64x51xbf16>
    %c640 = arith.constant 640 : index
    %c0_67 = arith.constant 0 : index
    %60 = vector.load %arg18[%c640, %c0_67] : memref<1024x51xbf16, #tpu.memory_space<vmem>>, vector<64x51xbf16>
    tpu.vector_store %arg18[%c640, %c0_67], %59 {strides = array<i32>} : memref<1024x51xbf16, #tpu.memory_space<vmem>>, vector<64x51xbf16>,
    %c0_68 = arith.constant 0 : index
    %c21 = arith.constant 21 : index
    %61 = vector.load %arg14[%c0_68, %c21] : memref<64x81xbf16, #tpu.memory_space<vmem>>, vector<64x51xbf16>
    %c704 = arith.constant 704 : index
    %c0_69 = arith.constant 0 : index
    %62 = vector.load %arg18[%c704, %c0_69] : memref<1024x51xbf16, #tpu.memory_space<vmem>>, vector<64x51xbf16>
    tpu.vector_store %arg18[%c704, %c0_69], %61 {strides = array<i32>} : memref<1024x51xbf16, #tpu.memory_space<vmem>>, vector<64x51xbf16>,
    %c0_70 = arith.constant 0 : index
    %c27 = arith.constant 27 : index
    %63 = vector.load %arg14[%c0_70, %c27] : memref<64x81xbf16, #tpu.memory_space<vmem>>, vector<64x51xbf16>
    %c768 = arith.constant 768 : index
    %c0_71 = arith.constant 0 : index
    %64 = vector.load %arg18[%c768, %c0_71] : memref<1024x51xbf16, #tpu.memory_space<vmem>>, vector<64x51xbf16>
    tpu.vector_store %arg18[%c768, %c0_71], %63 {strides = array<i32>} : memref<1024x51xbf16, #tpu.memory_space<vmem>>, vector<64x51xbf16>,
    %c0_72 = arith.constant 0 : index
    %c28 = arith.constant 28 : index
    %65 = vector.load %arg14[%c0_72, %c28] : memref<64x81xbf16, #tpu.memory_space<vmem>>, vector<64x51xbf16>
    %c832 = arith.constant 832 : index
    %c0_73 = arith.constant 0 : index
    %66 = vector.load %arg18[%c832, %c0_73] : memref<1024x51xbf16, #tpu.memory_space<vmem>>, vector<64x51xbf16>
    tpu.vector_store %arg18[%c832, %c0_73], %65 {strides = array<i32>} : memref<1024x51xbf16, #tpu.memory_space<vmem>>, vector<64x51xbf16>,
    %c0_74 = arith.constant 0 : index
    %c29 = arith.constant 29 : index
    %67 = vector.load %arg14[%c0_74, %c29] : memref<64x81xbf16, #tpu.memory_space<vmem>>, vector<64x51xbf16>
    %c896 = arith.constant 896 : index
    %c0_75 = arith.constant 0 : index
    %68 = vector.load %arg18[%c896, %c0_75] : memref<1024x51xbf16, #tpu.memory_space<vmem>>, vector<64x51xbf16>
    tpu.vector_store %arg18[%c896, %c0_75], %67 {strides = array<i32>} : memref<1024x51xbf16, #tpu.memory_space<vmem>>, vector<64x51xbf16>,
    %c0_76 = arith.constant 0 : index
    %c30 = arith.constant 30 : index
    %69 = vector.load %arg14[%c0_76, %c30] : memref<64x81xbf16, #tpu.memory_space<vmem>>, vector<64x51xbf16>
    %c960 = arith.constant 960 : index
    %c0_77 = arith.constant 0 : index
    %70 = vector.load %arg18[%c960, %c0_77] : memref<1024x51xbf16, #tpu.memory_space<vmem>>, vector<64x51xbf16>
    tpu.vector_store %arg18[%c960, %c0_77], %69 {strides = array<i32>} : memref<1024x51xbf16, #tpu.memory_space<vmem>>, vector<64x51xbf16>,
    %c0_78 = arith.constant 0 : index
    %c0_79 = arith.constant 0 : index
    %71 = vector.load %arg5[%c0_78, %c0_79] : memref<128x1024xbf16, #tpu.memory_space<vmem>>, vector<128x1024xbf16>
    %c0_80 = arith.constant 0 : index
    %c0_81 = arith.constant 0 : index
    %72 = vector.load %arg18[%c0_80, %c0_81] : memref<1024x51xbf16, #tpu.memory_space<vmem>>, vector<1024x51xbf16>
    %cst_82 = arith.constant dense<0.000000e+00> : vector<128x51xf32>
    %73 = tpu.matmul %71, %72, %cst_82 {dimension_numbers = #tpu.dot_dimension_numbers<[1], [0], [0], [1], [0, 0, 1, 1], [], []>} : vector<128x1024xbf16>, vector<1024x51xbf16>, vector<128x51xf32> -> vector<128x51xf32>
    %c0_83 = arith.constant 0 : index
    %c0_84 = arith.constant 0 : index
    %74 = vector.load %arg6[%c0_83, %c0_84] : memref<128x1xf32, #tpu.memory_space<vmem>>, vector<128x1xf32>
    %75 = vector.broadcast %74 : vector<128x1xf32> to vector<128x51xf32>
    %76 = arith.addf %73, %75 : vector<128x51xf32>
    %77 = math.tanh %76 : vector<128x51xf32>
    %78 = arith.truncf %77 : vector<128x51xf32> to vector<128x51xbf16>
    %c0_85 = arith.constant 0 : index
    %c0_86 = arith.constant 0 : index
    %79 = vector.load %arg7[%c0_85, %c0_86] : memref<51x225xbf16, #tpu.memory_space<vmem>>, vector<51x225xbf16>
    %cst_87 = arith.constant dense<0.000000e+00> : vector<128x225xf32>
    %80 = tpu.matmul %78, %79, %cst_87 {dimension_numbers = #tpu.dot_dimension_numbers<[1], [0], [0], [1], [0, 0, 1, 1], [], []>} : vector<128x51xbf16>, vector<51x225xbf16>, vector<128x225xf32> -> vector<128x225xf32>
    %81 = arith.truncf %80 : vector<128x225xf32> to vector<128x225xbf16>
    %c0_88 = arith.constant 0 : index
    %c0_89 = arith.constant 0 : index
    %82 = vector.load %arg15[%c0_88, %c0_89] : memref<128x225xbf16, #tpu.memory_space<vmem>>, vector<128x225xbf16>
    tpu.vector_store %arg15[%c0_88, %c0_89], %81 {strides = array<i32>} : memref<128x225xbf16, #tpu.memory_space<vmem>>, vector<128x225xbf16>,
    %c0_90 = arith.constant 0 : index
    %c0_91 = arith.constant 0 : index
    %83 = vector.load %arg15[%c0_90, %c0_91] : memref<128x225xbf16, #tpu.memory_space<vmem>>, vector<128x193xbf16>
    %c0_92 = arith.constant 0 : index
    %c0_93 = arith.constant 0 : index
    %84 = vector.load %arg19[%c0_92, %c0_93] : memref<1152x193xbf16, #tpu.memory_space<vmem>>, vector<128x193xbf16>
    tpu.vector_store %arg19[%c0_92, %c0_93], %83 {strides = array<i32>} : memref<1152x193xbf16, #tpu.memory_space<vmem>>, vector<128x193xbf16>,
    %c0_94 = arith.constant 0 : index
    %c1_95 = arith.constant 1 : index
    %85 = vector.load %arg15[%c0_94, %c1_95] : memref<128x225xbf16, #tpu.memory_space<vmem>>, vector<128x193xbf16>
    %c128_96 = arith.constant 128 : index
    %c0_97 = arith.constant 0 : index
    %86 = vector.load %arg19[%c128_96, %c0_97] : memref<1152x193xbf16, #tpu.memory_space<vmem>>, vector<128x193xbf16>
    tpu.vector_store %arg19[%c128_96, %c0_97], %85 {strides = array<i32>} : memref<1152x193xbf16, #tpu.memory_space<vmem>>, vector<128x193xbf16>,
    %c0_98 = arith.constant 0 : index
    %c2_99 = arith.constant 2 : index
    %87 = vector.load %arg15[%c0_98, %c2_99] : memref<128x225xbf16, #tpu.memory_space<vmem>>, vector<128x193xbf16>
    %c256_100 = arith.constant 256 : index
    %c0_101 = arith.constant 0 : index
    %88 = vector.load %arg19[%c256_100, %c0_101] : memref<1152x193xbf16, #tpu.memory_space<vmem>>, vector<128x193xbf16>
    tpu.vector_store %arg19[%c256_100, %c0_101], %87 {strides = array<i32>} : memref<1152x193xbf16, #tpu.memory_space<vmem>>, vector<128x193xbf16>,
    %c0_102 = arith.constant 0 : index
    %c15 = arith.constant 15 : index
    %89 = vector.load %arg15[%c0_102, %c15] : memref<128x225xbf16, #tpu.memory_space<vmem>>, vector<128x193xbf16>
    %c384_103 = arith.constant 384 : index
    %c0_104 = arith.constant 0 : index
    %90 = vector.load %arg19[%c384_103, %c0_104] : memref<1152x193xbf16, #tpu.memory_space<vmem>>, vector<128x193xbf16>
    tpu.vector_store %arg19[%c384_103, %c0_104], %89 {strides = array<i32>} : memref<1152x193xbf16, #tpu.memory_space<vmem>>, vector<128x193xbf16>,
    %c0_105 = arith.constant 0 : index
    %c16 = arith.constant 16 : index
    %91 = vector.load %arg15[%c0_105, %c16] : memref<128x225xbf16, #tpu.memory_space<vmem>>, vector<128x193xbf16>
    %c512_106 = arith.constant 512 : index
    %c0_107 = arith.constant 0 : index
    %92 = vector.load %arg19[%c512_106, %c0_107] : memref<1152x193xbf16, #tpu.memory_space<vmem>>, vector<128x193xbf16>
    tpu.vector_store %arg19[%c512_106, %c0_107], %91 {strides = array<i32>} : memref<1152x193xbf16, #tpu.memory_space<vmem>>, vector<128x193xbf16>,
    %c0_108 = arith.constant 0 : index
    %c17 = arith.constant 17 : index
    %93 = vector.load %arg15[%c0_108, %c17] : memref<128x225xbf16, #tpu.memory_space<vmem>>, vector<128x193xbf16>
    %c640_109 = arith.constant 640 : index
    %c0_110 = arith.constant 0 : index
    %94 = vector.load %arg19[%c640_109, %c0_110] : memref<1152x193xbf16, #tpu.memory_space<vmem>>, vector<128x193xbf16>
    tpu.vector_store %arg19[%c640_109, %c0_110], %93 {strides = array<i32>} : memref<1152x193xbf16, #tpu.memory_space<vmem>>, vector<128x193xbf16>,
    %c0_111 = arith.constant 0 : index
    %c30_112 = arith.constant 30 : index
    %95 = vector.load %arg15[%c0_111, %c30_112] : memref<128x225xbf16, #tpu.memory_space<vmem>>, vector<128x193xbf16>
    %c768_113 = arith.constant 768 : index
    %c0_114 = arith.constant 0 : index
    %96 = vector.load %arg19[%c768_113, %c0_114] : memref<1152x193xbf16, #tpu.memory_space<vmem>>, vector<128x193xbf16>
    tpu.vector_store %arg19[%c768_113, %c0_114], %95 {strides = array<i32>} : memref<1152x193xbf16, #tpu.memory_space<vmem>>, vector<128x193xbf16>,
    %c0_115 = arith.constant 0 : index
    %c31 = arith.constant 31 : index
    %97 = vector.load %arg15[%c0_115, %c31] : memref<128x225xbf16, #tpu.memory_space<vmem>>, vector<128x193xbf16>
    %c896_116 = arith.constant 896 : index
    %c0_117 = arith.constant 0 : index
    %98 = vector.load %arg19[%c896_116, %c0_117] : memref<1152x193xbf16, #tpu.memory_space<vmem>>, vector<128x193xbf16>
    tpu.vector_store %arg19[%c896_116, %c0_117], %97 {strides = array<i32>} : memref<1152x193xbf16, #tpu.memory_space<vmem>>, vector<128x193xbf16>,
    %c0_118 = arith.constant 0 : index
    %c32 = arith.constant 32 : index
    %99 = vector.load %arg15[%c0_118, %c32] : memref<128x225xbf16, #tpu.memory_space<vmem>>, vector<128x193xbf16>
    %c1024 = arith.constant 1024 : index
    %c0_119 = arith.constant 0 : index
    %100 = vector.load %arg19[%c1024, %c0_119] : memref<1152x193xbf16, #tpu.memory_space<vmem>>, vector<128x193xbf16>
    tpu.vector_store %arg19[%c1024, %c0_119], %99 {strides = array<i32>} : memref<1152x193xbf16, #tpu.memory_space<vmem>>, vector<128x193xbf16>,
    %c0_120 = arith.constant 0 : index
    %c0_121 = arith.constant 0 : index
    %101 = vector.load %arg8[%c0_120, %c0_121] : memref<64x1152xbf16, #tpu.memory_space<vmem>>, vector<64x1152xbf16>
    %c0_122 = arith.constant 0 : index
    %c0_123 = arith.constant 0 : index
    %102 = vector.load %arg19[%c0_122, %c0_123] : memref<1152x193xbf16, #tpu.memory_space<vmem>>, vector<1152x193xbf16>
    %cst_124 = arith.constant dense<0.000000e+00> : vector<64x193xf32>
    %103 = tpu.matmul %101, %102, %cst_124 {dimension_numbers = #tpu.dot_dimension_numbers<[1], [0], [0], [1], [0, 0, 1, 1], [], []>} : vector<64x1152xbf16>, vector<1152x193xbf16>, vector<64x193xf32> -> vector<64x193xf32>
    %c0_125 = arith.constant 0 : index
    %c0_126 = arith.constant 0 : index
    %104 = vector.load %arg9[%c0_125, %c0_126] : memref<64x1xf32, #tpu.memory_space<vmem>>, vector<64x1xf32>
    %105 = vector.broadcast %104 : vector<64x1xf32> to vector<64x193xf32>
    %106 = arith.addf %103, %105 : vector<64x193xf32>
    %107 = math.tanh %106 : vector<64x193xf32>
    %108 = arith.truncf %107 : vector<64x193xf32> to vector<64x193xbf16>
    %c0_127 = arith.constant 0 : index
    %c0_128 = arith.constant 0 : index
    %109 = vector.load %arg10[%c0_127, %c0_128] : memref<193x961xbf16, #tpu.memory_space<vmem>>, vector<193x961xbf16>
    %cst_129 = arith.constant dense<0.000000e+00> : vector<64x961xf32>
    %110 = tpu.matmul %108, %109, %cst_129 {dimension_numbers = #tpu.dot_dimension_numbers<[1], [0], [0], [1], [0, 0, 1, 1], [], []>} : vector<64x193xbf16>, vector<193x961xbf16>, vector<64x961xf32> -> vector<64x961xf32>
    %111 = arith.truncf %110 : vector<64x961xf32> to vector<64x961xbf16>
    %c0_130 = arith.constant 0 : index
    %c0_131 = arith.constant 0 : index
    %112 = vector.load %arg16[%c0_130, %c0_131] : memref<64x961xbf16, #tpu.memory_space<vmem>>, vector<64x961xbf16>
    tpu.vector_store %arg16[%c0_130, %c0_131], %111 {strides = array<i32>} : memref<64x961xbf16, #tpu.memory_space<vmem>>, vector<64x961xbf16>,
    %c0_132 = arith.constant 0 : index
    %c0_133 = arith.constant 0 : index
    %113 = vector.load %arg16[%c0_132, %c0_133] : memref<64x961xbf16, #tpu.memory_space<vmem>>, vector<64x865xbf16>
    %c0_134 = arith.constant 0 : index
    %c0_135 = arith.constant 0 : index
    %114 = vector.load %arg20[%c0_134, %c0_135] : memref<1024x865xbf16, #tpu.memory_space<vmem>>, vector<64x865xbf16>
    tpu.vector_store %arg20[%c0_134, %c0_135], %113 {strides = array<i32>} : memref<1024x865xbf16, #tpu.memory_space<vmem>>, vector<64x865xbf16>,
    %c0_136 = arith.constant 0 : index
    %c1_137 = arith.constant 1 : index
    %115 = vector.load %arg16[%c0_136, %c1_137] : memref<64x961xbf16, #tpu.memory_space<vmem>>, vector<64x865xbf16>
    %c64_138 = arith.constant 64 : index
    %c0_139 = arith.constant 0 : index
    %116 = vector.load %arg20[%c64_138, %c0_139] : memref<1024x865xbf16, #tpu.memory_space<vmem>>, vector<64x865xbf16>
    tpu.vector_store %arg20[%c64_138, %c0_139], %115 {strides = array<i32>} : memref<1024x865xbf16, #tpu.memory_space<vmem>>, vector<64x865xbf16>,
    %c0_140 = arith.constant 0 : index
    %c2_141 = arith.constant 2 : index
    %117 = vector.load %arg16[%c0_140, %c2_141] : memref<64x961xbf16, #tpu.memory_space<vmem>>, vector<64x865xbf16>
    %c128_142 = arith.constant 128 : index
    %c0_143 = arith.constant 0 : index
    %118 = vector.load %arg20[%c128_142, %c0_143] : memref<1024x865xbf16, #tpu.memory_space<vmem>>, vector<64x865xbf16>
    tpu.vector_store %arg20[%c128_142, %c0_143], %117 {strides = array<i32>} : memref<1024x865xbf16, #tpu.memory_space<vmem>>, vector<64x865xbf16>,
    %c0_144 = arith.constant 0 : index
    %c3_145 = arith.constant 3 : index
    %119 = vector.load %arg16[%c0_144, %c3_145] : memref<64x961xbf16, #tpu.memory_space<vmem>>, vector<64x865xbf16>
    %c192_146 = arith.constant 192 : index
    %c0_147 = arith.constant 0 : index
    %120 = vector.load %arg20[%c192_146, %c0_147] : memref<1024x865xbf16, #tpu.memory_space<vmem>>, vector<64x865xbf16>
    tpu.vector_store %arg20[%c192_146, %c0_147], %119 {strides = array<i32>} : memref<1024x865xbf16, #tpu.memory_space<vmem>>, vector<64x865xbf16>,
    %c0_148 = arith.constant 0 : index
    %c31_149 = arith.constant 31 : index
    %121 = vector.load %arg16[%c0_148, %c31_149] : memref<64x961xbf16, #tpu.memory_space<vmem>>, vector<64x865xbf16>
    %c256_150 = arith.constant 256 : index
    %c0_151 = arith.constant 0 : index
    %122 = vector.load %arg20[%c256_150, %c0_151] : memref<1024x865xbf16, #tpu.memory_space<vmem>>, vector<64x865xbf16>
    tpu.vector_store %arg20[%c256_150, %c0_151], %121 {strides = array<i32>} : memref<1024x865xbf16, #tpu.memory_space<vmem>>, vector<64x865xbf16>,
    %c0_152 = arith.constant 0 : index
    %c32_153 = arith.constant 32 : index
    %123 = vector.load %arg16[%c0_152, %c32_153] : memref<64x961xbf16, #tpu.memory_space<vmem>>, vector<64x865xbf16>
    %c320_154 = arith.constant 320 : index
    %c0_155 = arith.constant 0 : index
    %124 = vector.load %arg20[%c320_154, %c0_155] : memref<1024x865xbf16, #tpu.memory_space<vmem>>, vector<64x865xbf16>
    tpu.vector_store %arg20[%c320_154, %c0_155], %123 {strides = array<i32>} : memref<1024x865xbf16, #tpu.memory_space<vmem>>, vector<64x865xbf16>,
    %c0_156 = arith.constant 0 : index
    %c33 = arith.constant 33 : index
    %125 = vector.load %arg16[%c0_156, %c33] : memref<64x961xbf16, #tpu.memory_space<vmem>>, vector<64x865xbf16>
    %c384_157 = arith.constant 384 : index
    %c0_158 = arith.constant 0 : index
    %126 = vector.load %arg20[%c384_157, %c0_158] : memref<1024x865xbf16, #tpu.memory_space<vmem>>, vector<64x865xbf16>
    tpu.vector_store %arg20[%c384_157, %c0_158], %125 {strides = array<i32>} : memref<1024x865xbf16, #tpu.memory_space<vmem>>, vector<64x865xbf16>,
    %c0_159 = arith.constant 0 : index
    %c34 = arith.constant 34 : index
    %127 = vector.load %arg16[%c0_159, %c34] : memref<64x961xbf16, #tpu.memory_space<vmem>>, vector<64x865xbf16>
    %c448_160 = arith.constant 448 : index
    %c0_161 = arith.constant 0 : index
    %128 = vector.load %arg20[%c448_160, %c0_161] : memref<1024x865xbf16, #tpu.memory_space<vmem>>, vector<64x865xbf16>
    tpu.vector_store %arg20[%c448_160, %c0_161], %127 {strides = array<i32>} : memref<1024x865xbf16, #tpu.memory_space<vmem>>, vector<64x865xbf16>,
    %c0_162 = arith.constant 0 : index
    %c62 = arith.constant 62 : index
    %129 = vector.load %arg16[%c0_162, %c62] : memref<64x961xbf16, #tpu.memory_space<vmem>>, vector<64x865xbf16>
    %c512_163 = arith.constant 512 : index
    %c0_164 = arith.constant 0 : index
    %130 = vector.load %arg20[%c512_163, %c0_164] : memref<1024x865xbf16, #tpu.memory_space<vmem>>, vector<64x865xbf16>
    tpu.vector_store %arg20[%c512_163, %c0_164], %129 {strides = array<i32>} : memref<1024x865xbf16, #tpu.memory_space<vmem>>, vector<64x865xbf16>,
    %c0_165 = arith.constant 0 : index
    %c63 = arith.constant 63 : index
    %131 = vector.load %arg16[%c0_165, %c63] : memref<64x961xbf16, #tpu.memory_space<vmem>>, vector<64x865xbf16>
    %c576_166 = arith.constant 576 : index
    %c0_167 = arith.constant 0 : index
    %132 = vector.load %arg20[%c576_166, %c0_167] : memref<1024x865xbf16, #tpu.memory_space<vmem>>, vector<64x865xbf16>
    tpu.vector_store %arg20[%c576_166, %c0_167], %131 {strides = array<i32>} : memref<1024x865xbf16, #tpu.memory_space<vmem>>, vector<64x865xbf16>,
    %c0_168 = arith.constant 0 : index
    %c64_169 = arith.constant 64 : index
    %133 = vector.load %arg16[%c0_168, %c64_169] : memref<64x961xbf16, #tpu.memory_space<vmem>>, vector<64x865xbf16>
    %c640_170 = arith.constant 640 : index
    %c0_171 = arith.constant 0 : index
    %134 = vector.load %arg20[%c640_170, %c0_171] : memref<1024x865xbf16, #tpu.memory_space<vmem>>, vector<64x865xbf16>
    tpu.vector_store %arg20[%c640_170, %c0_171], %133 {strides = array<i32>} : memref<1024x865xbf16, #tpu.memory_space<vmem>>, vector<64x865xbf16>,
    %c0_172 = arith.constant 0 : index
    %c65 = arith.constant 65 : index
    %135 = vector.load %arg16[%c0_172, %c65] : memref<64x961xbf16, #tpu.memory_space<vmem>>, vector<64x865xbf16>
    %c704_173 = arith.constant 704 : index
    %c0_174 = arith.constant 0 : index
    %136 = vector.load %arg20[%c704_173, %c0_174] : memref<1024x865xbf16, #tpu.memory_space<vmem>>, vector<64x865xbf16>
    tpu.vector_store %arg20[%c704_173, %c0_174], %135 {strides = array<i32>} : memref<1024x865xbf16, #tpu.memory_space<vmem>>, vector<64x865xbf16>,
    %c0_175 = arith.constant 0 : index
    %c93 = arith.constant 93 : index
    %137 = vector.load %arg16[%c0_175, %c93] : memref<64x961xbf16, #tpu.memory_space<vmem>>, vector<64x865xbf16>
    %c768_176 = arith.constant 768 : index
    %c0_177 = arith.constant 0 : index
    %138 = vector.load %arg20[%c768_176, %c0_177] : memref<1024x865xbf16, #tpu.memory_space<vmem>>, vector<64x865xbf16>
    tpu.vector_store %arg20[%c768_176, %c0_177], %137 {strides = array<i32>} : memref<1024x865xbf16, #tpu.memory_space<vmem>>, vector<64x865xbf16>,
    %c0_178 = arith.constant 0 : index
    %c94 = arith.constant 94 : index
    %139 = vector.load %arg16[%c0_178, %c94] : memref<64x961xbf16, #tpu.memory_space<vmem>>, vector<64x865xbf16>
    %c832_179 = arith.constant 832 : index
    %c0_180 = arith.constant 0 : index
    %140 = vector.load %arg20[%c832_179, %c0_180] : memref<1024x865xbf16, #tpu.memory_space<vmem>>, vector<64x865xbf16>
    tpu.vector_store %arg20[%c832_179, %c0_180], %139 {strides = array<i32>} : memref<1024x865xbf16, #tpu.memory_space<vmem>>, vector<64x865xbf16>,
    %c0_181 = arith.constant 0 : index
    %c95 = arith.constant 95 : index
    %141 = vector.load %arg16[%c0_181, %c95] : memref<64x961xbf16, #tpu.memory_space<vmem>>, vector<64x865xbf16>
    %c896_182 = arith.constant 896 : index
    %c0_183 = arith.constant 0 : index
    %142 = vector.load %arg20[%c896_182, %c0_183] : memref<1024x865xbf16, #tpu.memory_space<vmem>>, vector<64x865xbf16>
    tpu.vector_store %arg20[%c896_182, %c0_183], %141 {strides = array<i32>} : memref<1024x865xbf16, #tpu.memory_space<vmem>>, vector<64x865xbf16>,
    %c0_184 = arith.constant 0 : index
    %c96 = arith.constant 96 : index
    %143 = vector.load %arg16[%c0_184, %c96] : memref<64x961xbf16, #tpu.memory_space<vmem>>, vector<64x865xbf16>
    %c960_185 = arith.constant 960 : index
    %c0_186 = arith.constant 0 : index
    %144 = vector.load %arg20[%c960_185, %c0_186] : memref<1024x865xbf16, #tpu.memory_space<vmem>>, vector<64x865xbf16>
    tpu.vector_store %arg20[%c960_185, %c0_186], %143 {strides = array<i32>} : memref<1024x865xbf16, #tpu.memory_space<vmem>>, vector<64x865xbf16>,
    %c0_187 = arith.constant 0 : index
    %c0_188 = arith.constant 0 : index
    %145 = vector.load %arg11[%c0_187, %c0_188] : memref<1x1024xbf16, #tpu.memory_space<vmem>>, vector<1x1024xbf16>
    %c0_189 = arith.constant 0 : index
    %c0_190 = arith.constant 0 : index
    %146 = vector.load %arg20[%c0_189, %c0_190] : memref<1024x865xbf16, #tpu.memory_space<vmem>>, vector<1024x865xbf16>
    %cst_191 = arith.constant dense<0.000000e+00> : vector<1x865xf32>
    %147 = tpu.matmul %145, %146, %cst_191 {dimension_numbers = #tpu.dot_dimension_numbers<[1], [0], [0], [1], [0, 0, 1, 1], [], []>} : vector<1x1024xbf16>, vector<1024x865xbf16>, vector<1x865xf32> -> vector<1x865xf32>
    %c0_192 = arith.constant 0 : index
    %c0_193 = arith.constant 0 : index
    %148 = vector.load %arg12[%c0_192, %c0_193] : memref<1x1xf32, #tpu.memory_space<vmem>>, vector<1x1xf32>
    %149 = vector.broadcast %148 : vector<1x1xf32> to vector<1x865xf32>
    %150 = arith.addf %147, %149 : vector<1x865xf32>
    %cst_194 = arith.constant 0.000000e+00 : f32
    %151 = vector.broadcast %cst_194 : f32 to vector<1x865xf32>
    %152 = arith.maximumf %150, %151 : vector<1x865xf32>
    %c0_195 = arith.constant 0 : index
    %c0_196 = arith.constant 0 : index
    %c0_197 = arith.constant 0 : index
    %153 = vector.load %arg13[%c0_195, %c0_196, %c0_197] : memref<1x1x865xf32, #tpu.memory_space<vmem>>, vector<1x1x865xf32>
    %154 = vector.shape_cast %153 : vector<1x1x865xf32> to vector<1x865xf32>
    %155 = vector.shape_cast %152 : vector<1x865xf32> to vector<1x1x865xf32>
    tpu.vector_store %arg13[%c0_195, %c0_196, %c0_197], %155 {strides = array<i32>} : memref<1x1x865xf32, #tpu.memory_space<vmem>>, vector<1x1x865xf32>,
    return
  }
  func.func @transform_0(%arg0: i32) -> (i32, i32, i32) {
    %c0_i32 = arith.constant 0 : i32
    %c0_i32_0 = arith.constant 0 : i32
    %c0_i32_1 = arith.constant 0 : i32
    return %arg0, %c0_i32, %c0_i32_0 : i32, i32, i32
  }
  func.func @transform_1(%arg0: i32) -> (i32, i32) {
    %c0_i32 = arith.constant 0 : i32
    %c0_i32_0 = arith.constant 0 : i32
    %c0_i32_1 = arith.constant 0 : i32
    return %c0_i32, %c0_i32_0 : i32, i32
  }
  func.func @transform_2(%arg0: i32) -> (i32, i32) {
    %c0_i32 = arith.constant 0 : i32
    %c0_i32_0 = arith.constant 0 : i32
    %c0_i32_1 = arith.constant 0 : i32
    return %c0_i32, %c0_i32_0 : i32, i32
  }
  func.func @transform_3(%arg0: i32) -> (i32, i32) {
    %c0_i32 = arith.constant 0 : i32
    %c0_i32_0 = arith.constant 0 : i32
    %c0_i32_1 = arith.constant 0 : i32
    return %c0_i32, %c0_i32_0 : i32, i32
  }
  func.func @transform_4(%arg0: i32) -> (i32, i32) {
    %c0_i32 = arith.constant 0 : i32
    %c0_i32_0 = arith.constant 0 : i32
    %c0_i32_1 = arith.constant 0 : i32
    return %c0_i32, %c0_i32_0 : i32, i32
  }
  func.func @transform_5(%arg0: i32) -> (i32, i32) {
    %c0_i32 = arith.constant 0 : i32
    %c0_i32_0 = arith.constant 0 : i32
    %c0_i32_1 = arith.constant 0 : i32
    return %c0_i32, %c0_i32_0 : i32, i32
  }
  func.func @transform_6(%arg0: i32) -> (i32, i32) {
    %c0_i32 = arith.constant 0 : i32
    %c0_i32_0 = arith.constant 0 : i32
    %c0_i32_1 = arith.constant 0 : i32
    return %c0_i32, %c0_i32_0 : i32, i32
  }
  func.func @transform_7(%arg0: i32) -> (i32, i32) {
    %c0_i32 = arith.constant 0 : i32
    %c0_i32_0 = arith.constant 0 : i32
    %c0_i32_1 = arith.constant 0 : i32
    return %c0_i32, %c0_i32_0 : i32, i32
  }
  func.func @transform_8(%arg0: i32) -> (i32, i32) {
    %c0_i32 = arith.constant 0 : i32
    %c0_i32_0 = arith.constant 0 : i32
    %c0_i32_1 = arith.constant 0 : i32
    return %c0_i32, %c0_i32_0 : i32, i32
  }
  func.func @transform_9(%arg0: i32) -> (i32, i32) {
    %c0_i32 = arith.constant 0 : i32
    %c0_i32_0 = arith.constant 0 : i32
    %c0_i32_1 = arith.constant 0 : i32
    return %c0_i32, %c0_i32_0 : i32, i32
  }
  func.func @transform_10(%arg0: i32) -> (i32, i32) {
    %c0_i32 = arith.constant 0 : i32
    %c0_i32_0 = arith.constant 0 : i32
    %c0_i32_1 = arith.constant 0 : i32
    return %c0_i32, %c0_i32_0 : i32, i32
  }
  func.func @transform_11(%arg0: i32) -> (i32, i32) {
    %c0_i32 = arith.constant 0 : i32
    %c0_i32_0 = arith.constant 0 : i32
    %c0_i32_1 = arith.constant 0 : i32
    return %c0_i32, %c0_i32_0 : i32, i32
  }
  func.func @transform_12(%arg0: i32) -> (i32, i32, i32) {
    %c0_i32 = arith.constant 0 : i32
    %c0_i32_0 = arith.constant 0 : i32
    %c0_i32_1 = arith.constant 0 : i32
    return %arg0, %c0_i32, %c0_i32_0 : i32, i32, i32
  }
}

</mosaic_0001>

<llo_original>
// kernel: _lambda_.1
$region0: #{_lambda_.1}
  #allocation0 [shape = 'u32[]', space=smem, size = 0x4, offset = 0x4, fixed_abs, tag = 'smem constant byte address 0x4 - core index']
  #allocation1 [shape = 'u32[144,128]{1,0:T(1,128)}', space=vmem, size = 0x12000, scoped, tag = 'internal scratch']
  #allocation2 [shape = 'bf16[64,81]{1,0:T(16,128)(2,1)}', space=vmem, size = 0x4000, scoped, tag = 'scratch operand']
  #allocation3 [shape = 'bf16[128,225]{1,0:T(16,128)(2,1)}', space=vmem, size = 0x10000, scoped, tag = 'scratch operand']
  #allocation4 [shape = 'bf16[64,961]{1,0:T(16,128)(2,1)}', space=vmem, size = 0x20000, scoped, tag = 'scratch operand']
  #allocation5 [shape = 'bf16[666,13]{1,0:T(8,128)(2,1)}', space=vmem, size = 0x2a000, scoped, tag = 'scratch operand']
  #allocation6 [shape = 'bf16[1024,51]{1,0:T(16,128)(2,1)}', space=vmem, size = 0x40000, scoped, tag = 'scratch operand']
  #allocation7 [shape = 'bf16[1152,193]{1,0:T(16,128)(2,1)}', space=vmem, size = 0x90000, scoped, tag = 'scratch operand']
  #allocation8 [shape = 'bf16[1024,865]{1,0:T(16,128)(2,1)}', space=vmem, size = 0x1c0000, scoped, tag = 'scratch operand']
  #allocation9 [shape = 'f32[1,1]{1,0:T(1,128)S(1)}', space=vmem, size = 0x200, scoped, tag = 'scoped memory for _lambda_.1']
  %s0 = inlined_call_operand.vmem [shape: bf16[2,74,25], index: 0, kind: input, shape index: {}]
  %s1 = inlined_call_operand.hbm [shape: bf16[64,666], index: 1, kind: input, shape index: {}]
  %s2 = inlined_call_operand.vmem [shape: f32[64,1], index: 2, kind: input, shape index: {}]
  %s3 = inlined_call_operand.vmem [shape: bf16[13,81], index: 3, kind: input, shape index: {}]
  %s4 = inlined_call_operand.vmem [shape: bf16[128,1024], index: 4, kind: input, shape index: {}]
  %s5 = inlined_call_operand.vmem [shape: f32[128,1], index: 5, kind: input, shape index: {}]
  %s6 = inlined_call_operand.hbm [shape: bf16[51,225], index: 6, kind: input, shape index: {}]
  %s7 = inlined_call_operand.hbm [shape: bf16[64,1152], index: 7, kind: input, shape index: {}]
  %s8 = inlined_call_operand.vmem [shape: f32[64,1], index: 8, kind: input, shape index: {}]
  %s9 = inlined_call_operand.hbm [shape: bf16[193,961], index: 9, kind: input, shape index: {}]
  %s10 = inlined_call_operand.vmem [shape: bf16[1,1024], index: 10, kind: input, shape index: {}]
  %s11 = inlined_call_operand.<no memory space> [shape: f32[1,1], index: 11, kind: input, shape index: {}]
  %s12 = inlined_call_operand.vmem [shape: f32[2,1,865], index: 12, kind: output, shape index: {}]
  %s13 = sld [smem:[#allocation0]]
  $region97: #{_lambda_.1} parent=0
    _
  %s15 = ssub.s32 1, %s13
  %s16 = scalar_select 0, %s15, %s13
  %v17 = vstv %s11
  %18 = vst [vmem:[#allocation9] sm:$0x1] %v17
  $region1: #{_lambda_.1} parent=0
    #allocation10 [shape = 'u8[98304]{0}', space=vmem, size = 0x18000, scoped, tag = 'input window, operand 1, single buffered']
    #allocation11 [shape = 's32[2]{0}', space=sflag, size = 0x8, scoped, tag = 'scoped memory for _lambda_.1']
    #allocation12 [shape = 'u8[28672]{0}', space=vmem, size = 0x7000, scoped, tag = 'input window, operand 6, single buffered']
    #allocation13 [shape = 's32[1]{0}', space=sflag, size = 0x4, scoped, tag = 'scoped memory for _lambda_.1']
    #allocation14 [shape = 'u8[147456]{0}', space=vmem, size = 0x24000, scoped, tag = 'input window, operand 7, single buffered']
    #allocation15 [shape = 'u8[409600]{0}', space=vmem, size = 0x64000, scoped, tag = 'input window, operand 9, single buffered']
    #allocation16 [shape = 's32[1]{0}', space=sflag, size = 0x4, scoped, tag = 'scoped memory for _lambda_.1']
    %19 = vsyncpa [#allocation11], 0
    %20 = vsyncpa [#allocation13], 0
    %21 = vsyncpa [#allocation16], 0
    loop: start=0, step=1, limit=4
    $region2: #{_lambda_.1} parent=1 // loop_pre_header
      _
    $region3: #{_lambda_.1} parent=1 // loop_header
      %s23 = sphi 0, %s27
      %p24 = scmp.ge.s32.totalorder %s23, 4
      %s33 = sphi 0, %s35
      %s36 = sphi 0, %s33
      %s37 = sphi 0, %s36
      %s53 = sphi 0, %s37
      %s57 = sphi 0, %s57
      %s59 = sphi 0, %s57
      %s60 = sphi 0, %s59
      %s74 = sphi 0, %s60
      %s78 = sphi 0, %s78
      %s80 = sphi 0, %s78
      %s81 = sphi 0, %s80
      %s95 = sphi 0, %s81
      %s99 = sphi 0, %s99
      %s101 = sphi 0, %s99
      %s102 = sphi 0, %s101
      %s116 = sphi 0, %s102
      %s120 = sphi 0, %s120
      %s122 = sphi 0, %s120
      %s123 = sphi 0, %s122
      %s137 = sphi 0, %s123
      %s141 = sphi 0, %s141
      %s143 = sphi 0, %s141
      %s144 = sphi 0, %s143
      %s158 = sphi 0, %s144
      %s162 = sphi 0, %s162
      %s164 = sphi 0, %s162
      %s165 = sphi 0, %s164
      %s179 = sphi 0, %s165
      %s183 = sphi 0, %s183
      %s185 = sphi 0, %s183
      %s186 = sphi 0, %s185
      %s200 = sphi 0, %s186
      %s204 = sphi 0, %s204
      %s206 = sphi 0, %s204
      %s207 = sphi 0, %s206
      %s221 = sphi 0, %s207
      %s225 = sphi 0, %s225
      %s227 = sphi 0, %s225
      %s228 = sphi 0, %s227
      %s242 = sphi 0, %s228
      %s246 = sphi 0, %s246
      %s248 = sphi 0, %s246
      %s249 = sphi 0, %s248
      %s263 = sphi 0, %s249
      %s267 = sphi 0, %s267
      %s269 = sphi 0, %s267
      %s270 = sphi 0, %s269
      %s284 = sphi 0, %s270
      %s290 = sphi 0, %s292
      %s293 = sphi 0, %s290
      %s294 = sphi 0, %s293
      %s310 = sphi 0, %s294
    $region4: #{_lambda_.1} parent=1 // loop_header_branch
      %26 = sbr.rel (%p24) target = $region8
    $region5: #{_lambda_.1} parent=1 // loop_body
      %s28 = ssub.s32 %s23, 1
      %s29 = ssub.s32 %s23, 2
      %s30 = sadd.s32 %s23, 1
      %s31 = ssub.s32 %s23, %s30
      %p32 = scmp.eq.s32.totalorder %s31, 0
      %s34 = sadd.s32 %s33, 1
      %s35 = scalar_select %p32, %s33, %s34
      %p38 = pneg %p32
      %p39 = scmp.eq.s32.totalorder %s23, 1
      %p40 = por %p38, %p39
      %p41 = scmp.ne.s32.totalorder %s33, %s36
      %p42 = scmp.eq.s32.totalorder %s23, 0
      %p43 = por %p41, %p42
      %p44 = scmp.ne.s32.totalorder %s33, %s36
      %p45 = scmp.eq.s32.totalorder %s28, 1
      %p46 = por %p44, %p45
      %p47 = scmp.ne.s32.totalorder %s36, %s37
      %p48 = scmp.eq.s32.totalorder %s28, 0
      %p49 = por %p47, %p48
      %p50 = scmp.ne.s32.totalorder %s36, %s37
      %p51 = scmp.eq.s32.totalorder %s29, 1
      %p52 = por %p50, %p51
      %p54 = scmp.ne.s32.totalorder %s37, %s53
      %p55 = scmp.eq.s32.totalorder %s29, 0
      %p56 = por %p54, %p55
      %s58 = sadd.s32 %s57, 1
      %p61 = scmp.eq.s32.totalorder %s23, 1
      %p62 = scmp.ne.s32.totalorder %s57, %s59
      %p63 = scmp.eq.s32.totalorder %s23, 0
      %p64 = por %p62, %p63
      %p65 = scmp.ne.s32.totalorder %s57, %s59
      %p66 = scmp.eq.s32.totalorder %s28, 1
      %p67 = por %p65, %p66
      %p68 = scmp.ne.s32.totalorder %s59, %s60
      %p69 = scmp.eq.s32.totalorder %s28, 0
      %p70 = por %p68, %p69
      %p71 = scmp.ne.s32.totalorder %s59, %s60
      %p72 = scmp.eq.s32.totalorder %s29, 1
      %p73 = por %p71, %p72
      %p75 = scmp.ne.s32.totalorder %s60, %s74
      %p76 = scmp.eq.s32.totalorder %s29, 0
      %p77 = por %p75, %p76
      %s79 = sadd.s32 %s78, 1
      %p82 = scmp.eq.s32.totalorder %s23, 1
      %p83 = scmp.ne.s32.totalorder %s78, %s80
      %p84 = scmp.eq.s32.totalorder %s23, 0
      %p85 = por %p83, %p84
      %p86 = scmp.ne.s32.totalorder %s78, %s80
      %p87 = scmp.eq.s32.totalorder %s28, 1
      %p88 = por %p86, %p87
      %p89 = scmp.ne.s32.totalorder %s80, %s81
      %p90 = scmp.eq.s32.totalorder %s28, 0
      %p91 = por %p89, %p90
      %p92 = scmp.ne.s32.totalorder %s80, %s81
      %p93 = scmp.eq.s32.totalorder %s29, 1
      %p94 = por %p92, %p93
      %p96 = scmp.ne.s32.totalorder %s81, %s95
      %p97 = scmp.eq.s32.totalorder %s29, 0
      %p98 = por %p96, %p97
      %s100 = sadd.s32 %s99, 1
      %p103 = scmp.eq.s32.totalorder %s23, 1
      %p104 = scmp.ne.s32.totalorder %s99, %s101
      %p105 = scmp.eq.s32.totalorder %s23, 0
      %p106 = por %p104, %p105
      %p107 = scmp.ne.s32.totalorder %s99, %s101
      %p108 = scmp.eq.s32.totalorder %s28, 1
      %p109 = por %p107, %p108
      %p110 = scmp.ne.s32.totalorder %s101, %s102
      %p111 = scmp.eq.s32.totalorder %s28, 0
      %p112 = por %p110, %p111
      %p113 = scmp.ne.s32.totalorder %s101, %s102
      %p114 = scmp.eq.s32.totalorder %s29, 1
      %p115 = por %p113, %p114
      %p117 = scmp.ne.s32.totalorder %s102, %s116
      %p118 = scmp.eq.s32.totalorder %s29, 0
      %p119 = por %p117, %p118
      %s121 = sadd.s32 %s120, 1
      %p124 = scmp.eq.s32.totalorder %s23, 1
      %p125 = scmp.ne.s32.totalorder %s120, %s122
      %p126 = scmp.eq.s32.totalorder %s23, 0
      %p127 = por %p125, %p126
      %p128 = scmp.ne.s32.totalorder %s120, %s122
      %p129 = scmp.eq.s32.totalorder %s28, 1
      %p130 = por %p128, %p129
      %p131 = scmp.ne.s32.totalorder %s122, %s123
      %p132 = scmp.eq.s32.totalorder %s28, 0
      %p133 = por %p131, %p132
      %p134 = scmp.ne.s32.totalorder %s122, %s123
      %p135 = scmp.eq.s32.totalorder %s29, 1
      %p136 = por %p134, %p135
      %p138 = scmp.ne.s32.totalorder %s123, %s137
      %p139 = scmp.eq.s32.totalorder %s29, 0
      %p140 = por %p138, %p139
      %s142 = sadd.s32 %s141, 1
      %p145 = scmp.eq.s32.totalorder %s23, 1
      %p146 = scmp.ne.s32.totalorder %s141, %s143
      %p147 = scmp.eq.s32.totalorder %s23, 0
      %p148 = por %p146, %p147
      %p149 = scmp.ne.s32.totalorder %s141, %s143
      %p150 = scmp.eq.s32.totalorder %s28, 1
      %p151 = por %p149, %p150
      %p152 = scmp.ne.s32.totalorder %s143, %s144
      %p153 = scmp.eq.s32.totalorder %s28, 0
      %p154 = por %p152, %p153
      %p155 = scmp.ne.s32.totalorder %s143, %s144
      %p156 = scmp.eq.s32.totalorder %s29, 1
      %p157 = por %p155, %p156
      %p159 = scmp.ne.s32.totalorder %s144, %s158
      %p160 = scmp.eq.s32.totalorder %s29, 0
      %p161 = por %p159, %p160
      %s163 = sadd.s32 %s162, 1
      %p166 = scmp.eq.s32.totalorder %s23, 1
      %p167 = scmp.ne.s32.totalorder %s162, %s164
      %p168 = scmp.eq.s32.totalorder %s23, 0
      %p169 = por %p167, %p168
      %p170 = scmp.ne.s32.totalorder %s162, %s164
      %p171 = scmp.eq.s32.totalorder %s28, 1
      %p172 = por %p170, %p171
      %p173 = scmp.ne.s32.totalorder %s164, %s165
      %p174 = scmp.eq.s32.totalorder %s28, 0
      %p175 = por %p173, %p174
      %p176 = scmp.ne.s32.totalorder %s164, %s165
      %p177 = scmp.eq.s32.totalorder %s29, 1
      %p178 = por %p176, %p177
      %p180 = scmp.ne.s32.totalorder %s165, %s179
      %p181 = scmp.eq.s32.totalorder %s29, 0
      %p182 = por %p180, %p181
      %s184 = sadd.s32 %s183, 1
      %p187 = scmp.eq.s32.totalorder %s23, 1
      %p188 = scmp.ne.s32.totalorder %s183, %s185
      %p189 = scmp.eq.s32.totalorder %s23, 0
      %p190 = por %p188, %p189
      %p191 = scmp.ne.s32.totalorder %s183, %s185
      %p192 = scmp.eq.s32.totalorder %s28, 1
      %p193 = por %p191, %p192
      %p194 = scmp.ne.s32.totalorder %s185, %s186
      %p195 = scmp.eq.s32.totalorder %s28, 0
      %p196 = por %p194, %p195
      %p197 = scmp.ne.s32.totalorder %s185, %s186
      %p198 = scmp.eq.s32.totalorder %s29, 1
      %p199 = por %p197, %p198
      %p201 = scmp.ne.s32.totalorder %s186, %s200
      %p202 = scmp.eq.s32.totalorder %s29, 0
      %p203 = por %p201, %p202
      %s205 = sadd.s32 %s204, 1
      %p208 = scmp.eq.s32.totalorder %s23, 1
      %p209 = scmp.ne.s32.totalorder %s204, %s206
      %p210 = scmp.eq.s32.totalorder %s23, 0
      %p211 = por %p209, %p210
      %p212 = scmp.ne.s32.totalorder %s204, %s206
      %p213 = scmp.eq.s32.totalorder %s28, 1
      %p214 = por %p212, %p213
      %p215 = scmp.ne.s32.totalorder %s206, %s207
      %p216 = scmp.eq.s32.totalorder %s28, 0
      %p217 = por %p215, %p216
      %p218 = scmp.ne.s32.totalorder %s206, %s207
      %p219 = scmp.eq.s32.totalorder %s29, 1
      %p220 = por %p218, %p219
      %p222 = scmp.ne.s32.totalorder %s207, %s221
      %p223 = scmp.eq.s32.totalorder %s29, 0
      %p224 = por %p222, %p223
      %s226 = sadd.s32 %s225, 1
      %p229 = scmp.eq.s32.totalorder %s23, 1
      %p230 = scmp.ne.s32.totalorder %s225, %s227
      %p231 = scmp.eq.s32.totalorder %s23, 0
      %p232 = por %p230, %p231
      %p233 = scmp.ne.s32.totalorder %s225, %s227
      %p234 = scmp.eq.s32.totalorder %s28, 1
      %p235 = por %p233, %p234
      %p236 = scmp.ne.s32.totalorder %s227, %s228
      %p237 = scmp.eq.s32.totalorder %s28, 0
      %p238 = por %p236, %p237
      %p239 = scmp.ne.s32.totalorder %s227, %s228
      %p240 = scmp.eq.s32.totalorder %s29, 1
      %p241 = por %p239, %p240
      %p243 = scmp.ne.s32.totalorder %s228, %s242
      %p244 = scmp.eq.s32.totalorder %s29, 0
      %p245 = por %p243, %p244
      %s247 = sadd.s32 %s246, 1
      %p250 = scmp.eq.s32.totalorder %s23, 1
      %p251 = scmp.ne.s32.totalorder %s246, %s248
      %p252 = scmp.eq.s32.totalorder %s23, 0
      %p253 = por %p251, %p252
      %p254 = scmp.ne.s32.totalorder %s246, %s248
      %p255 = scmp.eq.s32.totalorder %s28, 1
      %p256 = por %p254, %p255
      %p257 = scmp.ne.s32.totalorder %s248, %s249
      %p258 = scmp.eq.s32.totalorder %s28, 0
      %p259 = por %p257, %p258
      %p260 = scmp.ne.s32.totalorder %s248, %s249
      %p261 = scmp.eq.s32.totalorder %s29, 1
      %p262 = por %p260, %p261
      %p264 = scmp.ne.s32.totalorder %s249, %s263
      %p265 = scmp.eq.s32.totalorder %s29, 0
      %p266 = por %p264, %p265
      %s268 = sadd.s32 %s267, 1
      %p271 = scmp.eq.s32.totalorder %s23, 1
      %p272 = scmp.ne.s32.totalorder %s267, %s269
      %p273 = scmp.eq.s32.totalorder %s23, 0
      %p274 = por %p272, %p273
      %p275 = scmp.ne.s32.totalorder %s267, %s269
      %p276 = scmp.eq.s32.totalorder %s28, 1
      %p277 = por %p275, %p276
      %p278 = scmp.ne.s32.totalorder %s269, %s270
      %p279 = scmp.eq.s32.totalorder %s28, 0
      %p280 = por %p278, %p279
      %p281 = scmp.ne.s32.totalorder %s269, %s270
      %p282 = scmp.eq.s32.totalorder %s29, 1
      %p283 = por %p281, %p282
      %p285 = scmp.ne.s32.totalorder %s270, %s284
      %p286 = scmp.eq.s32.totalorder %s29, 0
      %p287 = por %p285, %p286
      %s288 = ssub.s32 %s23, %s30
      %p289 = scmp.eq.s32.totalorder %s288, 0
      %s291 = sadd.s32 %s290, 1
      %s292 = scalar_select %p289, %s290, %s291
      %p295 = pneg %p289
      %p296 = scmp.eq.s32.totalorder %s23, 1
      %p297 = por %p295, %p296
      %p298 = scmp.ne.s32.totalorder %s290, %s293
      %p299 = scmp.eq.s32.totalorder %s23, 0
      %p300 = por %p298, %p299
      %p301 = scmp.ne.s32.totalorder %s290, %s293
      %p302 = scmp.eq.s32.totalorder %s28, 1
      %p303 = por %p301, %p302
      %p304 = scmp.ne.s32.totalorder %s293, %s294
      %p305 = scmp.eq.s32.totalorder %s28, 0
      %p306 = por %p304, %p305
      %p307 = scmp.ne.s32.totalorder %s293, %s294
      %p308 = scmp.eq.s32.totalorder %s29, 1
      %p309 = por %p307, %p308
      %p311 = scmp.ne.s32.totalorder %s294, %s310
      %p312 = scmp.eq.s32.totalorder %s29, 0
      %p313 = por %p311, %p312
      %p314 = scmp.le.s32.totalorder 1, %s23
      %p315 = scmp.lt.s32.totalorder %s23, 3
      %p316 = pnand %p314, %p315
      %p317 = pneg %p316
      // Predicated region
      $region9: #{_lambda_.1} parent=5 // pred_check
        _
      $region10: #{_lambda_.1} parent=5 // pred_check_branch
        %319 = sbr.rel (%p316) target = $region12
      $region11: #{_lambda_.1} parent=5 // pred_region
        %s320 = ssub.s32 %s23, 1
        // Predicated region
        $region13: #{_lambda_.1} parent=11 // pred_check
          %p321 = pneg %p70
        $region14: #{_lambda_.1} parent=11 // pred_check_branch
          %323 = sbr.rel (%p321) target = $region16
        $region15: #{_lambda_.1} parent=11 // pred_region
          %s325 = ssub.s32 3072, 3072
          %326 = vsyncadd [#allocation11], %s325
          %s327 = sshll.u32 [#allocation10], 4
          %s328 = int_to_ptr.vmem [resolvable:$true] %s327
          %333 = dma.hbm_to_vmem [thread:$0]  %s1, 3072, %s328, [#allocation11], 384, 384, 24
        $region16: #{_lambda_.1} parent=11 // pred_fallthru
          _
        // Predicated region
        $region17: #{_lambda_.1} parent=11 // pred_check
          %p334 = pneg %p91
        $region18: #{_lambda_.1} parent=11 // pred_check_branch
          %336 = sbr.rel (%p334) target = $region20
        $region19: #{_lambda_.1} parent=11 // pred_region
          _
        $region20: #{_lambda_.1} parent=11 // pred_fallthru
          _
        // Predicated region
        $region21: #{_lambda_.1} parent=11 // pred_check
          %p337 = pneg %p112
        $region22: #{_lambda_.1} parent=11 // pred_check_branch
          %339 = sbr.rel (%p337) target = $region24
        $region23: #{_lambda_.1} parent=11 // pred_region
          _
        $region24: #{_lambda_.1} parent=11 // pred_fallthru
          _
        // Predicated region
        $region25: #{_lambda_.1} parent=11 // pred_check
          %p340 = pneg %p133
        $region26: #{_lambda_.1} parent=11 // pred_check_branch
          %342 = sbr.rel (%p340) target = $region28
        $region27: #{_lambda_.1} parent=11 // pred_region
          _
        $region28: #{_lambda_.1} parent=11 // pred_fallthru
          _
        // Predicated region
        $region29: #{_lambda_.1} parent=11 // pred_check
          %p343 = pneg %p154
        $region30: #{_lambda_.1} parent=11 // pred_check_branch
          %345 = sbr.rel (%p343) target = $region32
        $region31: #{_lambda_.1} parent=11 // pred_region
          _
        $region32: #{_lambda_.1} parent=11 // pred_fallthru
          _
        // Predicated region
        $region33: #{_lambda_.1} parent=11 // pred_check
          %p346 = pneg %p175
        $region34: #{_lambda_.1} parent=11 // pred_check_branch
          %348 = sbr.rel (%p346) target = $region36
        $region35: #{_lambda_.1} parent=11 // pred_region
          %s350 = ssub.s32 896, 896
          %351 = vsyncadd [#allocation13], %s350
          %s352 = sshll.u32 [#allocation12], 4
          %s353 = int_to_ptr.vmem [resolvable:$true] %s352
          %358 = dma.hbm_to_vmem [thread:$0]  %s6, 896, %s353, [#allocation13], 128, 128, 8
        $region36: #{_lambda_.1} parent=11 // pred_fallthru
          _
        // Predicated region
        $region37: #{_lambda_.1} parent=11 // pred_check
          %p359 = pneg %p196
        $region38: #{_lambda_.1} parent=11 // pred_check_branch
          %361 = sbr.rel (%p359) target = $region40
        $region39: #{_lambda_.1} parent=11 // pred_region
          %s363 = ssub.s32 4608, 4608
          %364 = vsyncadd [#allocation13], %s363
          %s365 = sshll.u32 [#allocation14], 4
          %s366 = int_to_ptr.vmem [resolvable:$true] %s365
          %371 = dma.hbm_to_vmem [thread:$0]  %s7, 4608, %s366, [#allocation13], 576, 576, 36
        $region40: #{_lambda_.1} parent=11 // pred_fallthru
          _
        // Predicated region
        $region41: #{_lambda_.1} parent=11 // pred_check
          %p372 = pneg %p217
        $region42: #{_lambda_.1} parent=11 // pred_check_branch
          %374 = sbr.rel (%p372) target = $region44
        $region43: #{_lambda_.1} parent=11 // pred_region
          _
        $region44: #{_lambda_.1} parent=11 // pred_fallthru
          _
        // Predicated region
        $region45: #{_lambda_.1} parent=11 // pred_check
          %p375 = pneg %p238
        $region46: #{_lambda_.1} parent=11 // pred_check_branch
          %377 = sbr.rel (%p375) target = $region48
        $region47: #{_lambda_.1} parent=11 // pred_region
          %s379 = ssub.s32 12800, 12800
          %380 = vsyncadd [#allocation16], %s379
          %s381 = sshll.u32 [#allocation15], 4
          %s382 = int_to_ptr.vmem [resolvable:$true] %s381
          %387 = dma.hbm_to_vmem [thread:$0]  %s9, 12800, %s382, [#allocation16], 512, 512, 32
        $region48: #{_lambda_.1} parent=11 // pred_fallthru
          _
        // Predicated region
        $region49: #{_lambda_.1} parent=11 // pred_check
          %p388 = pneg %p259
        $region50: #{_lambda_.1} parent=11 // pred_check_branch
          %390 = sbr.rel (%p388) target = $region52
        $region51: #{_lambda_.1} parent=11 // pred_region
          _
        $region52: #{_lambda_.1} parent=11 // pred_fallthru
          _
        // Predicated region
        $region53: #{_lambda_.1} parent=11 // pred_check
          %p391 = pneg %p280
        $region54: #{_lambda_.1} parent=11 // pred_check_branch
          %393 = sbr.rel (%p391) target = $region56
        $region55: #{_lambda_.1} parent=11 // pred_region
          _
        $region56: #{_lambda_.1} parent=11 // pred_fallthru
          _
      $region12: #{_lambda_.1} parent=5 // pred_fallthru
        _
      %p394 = scmp.lt.s32.totalorder %s23, 2
      // Predicated region
      $region57: #{_lambda_.1} parent=5 // pred_check
        %p395 = pneg %p394
      $region58: #{_lambda_.1} parent=5 // pred_check_branch
        %397 = sbr.rel (%p395) target = $region60
      $region59: #{_lambda_.1} parent=5 // pred_region
        // Predicated region
        $region61: #{_lambda_.1} parent=59 // pred_check
          %p398 = pneg %p43
        $region62: #{_lambda_.1} parent=59 // pred_check_branch
          %400 = sbr.rel (%p398) target = $region64
        $region63: #{_lambda_.1} parent=59 // pred_region
          %p401 = scmp.lt.s32.totalorder %s23, 1
          %s402 = scalar_select %p401, %s23, 1
          %s403 = smul.addr %s402, 10
          %s404 = smul.addr %s403, 4
          %s405 = scalar_lea.vmem %s0, %s404
        $region64: #{_lambda_.1} parent=59 // pred_fallthru
          _
      $region60: #{_lambda_.1} parent=5 // pred_fallthru
        _
      %p406 = scmp.le.s32.totalorder 1, %s23
      %p407 = scmp.lt.s32.totalorder %s23, 3
      %p408 = pnand %p406, %p407
      %p409 = pneg %p408
      // Predicated region
      $region65: #{_lambda_.1} parent=5 // pred_check
        _
      $region66: #{_lambda_.1} parent=5 // pred_check_branch
        %411 = sbr.rel (%p408) target = $region68
      $region67: #{_lambda_.1} parent=5 // pred_region
        %s412 = ssub.s32 %s23, 1
        // Predicated region
        $region69: #{_lambda_.1} parent=67 // pred_check
          %p413 = pneg %p70
        $region70: #{_lambda_.1} parent=67 // pred_check_branch
          %415 = sbr.rel (%p413) target = $region72
        $region71: #{_lambda_.1} parent=67 // pred_region
          %416 = dma.done [#allocation11], 3072
        $region72: #{_lambda_.1} parent=67 // pred_fallthru
          _
        // Predicated region
        $region73: #{_lambda_.1} parent=67 // pred_check
          %p417 = pneg %p175
        $region74: #{_lambda_.1} parent=67 // pred_check_branch
          %419 = sbr.rel (%p417) target = $region76
        $region75: #{_lambda_.1} parent=67 // pred_region
          %420 = dma.done [#allocation13], 896
        $region76: #{_lambda_.1} parent=67 // pred_fallthru
          _
        // Predicated region
        $region77: #{_lambda_.1} parent=67 // pred_check
          %p421 = pneg %p196
        $region78: #{_lambda_.1} parent=67 // pred_check_branch
          %423 = sbr.rel (%p421) target = $region80
        $region79: #{_lambda_.1} parent=67 // pred_region
          %424 = dma.done [#allocation13], 4608
        $region80: #{_lambda_.1} parent=67 // pred_fallthru
          _
        // Predicated region
        $region81: #{_lambda_.1} parent=67 // pred_check
          %p425 = pneg %p238
        $region82: #{_lambda_.1} parent=67 // pred_check_branch
          %427 = sbr.rel (%p425) target = $region84
        $region83: #{_lambda_.1} parent=67 // pred_region
          %428 = dma.done [#allocation16], 12800
        $region84: #{_lambda_.1} parent=67 // pred_fallthru
          _
        %p429 = scmp.lt.s32.totalorder %s28, 1
        %s430 = scalar_select %p429, %s28, 1
        %s431 = smul.addr %s430, 10
        %s432 = smul.addr %s431, 4
        %s433 = scalar_lea.vmem %s0, %s432
        %p434 = pneg %p49
        %p435 = pneg %p46
        %p436 = pneg %p70
        %p437 = pneg %p67
        %p438 = pneg %p91
        %p439 = pneg %p88
        %p440 = pneg %p112
        %p441 = pneg %p109
        %p442 = pneg %p133
        %p443 = pneg %p130
        %p444 = pneg %p154
        %p445 = pneg %p151
        %p446 = pneg %p175
        %p447 = pneg %p172
        %p448 = pneg %p196
        %p449 = pneg %p193
        %p450 = pneg %p217
        %p451 = pneg %p214
        %p452 = pneg %p238
        %p453 = pneg %p235
        %p454 = pneg %p259
        %p455 = pneg %p256
        %p456 = pneg %p280
        %p457 = pneg %p277
        %p458 = pneg %p306
        %p459 = pneg %p303
        %p460 = scmp.lt.s32.totalorder %s28, 1
        %s461 = scalar_select %p460, %s28, 1
        %s462 = smul.addr %s461, 7
        %s463 = scalar_lea.vmem %s12, %s462
        %p464 = scmp.lt.s32.totalorder %s28, 1
        %s465 = scalar_select %p464, %s28, 1
        %s466 = smul.addr %s465, 10
        %s467 = smul.addr %s466, 4
        %s468 = scalar_lea.vmem %s0, %s467
        %p469 = scmp.lt.s32.totalorder %s28, 1
        %s470 = scalar_select %p469, %s28, 1
        %s471 = smul.addr %s470, 7
        %s472 = scalar_lea.vmem %s12, %s471
        %v474 = vld [vmem:[%s468] sm:$0xf]
        %v475 = vld [vmem:[%s468 + $0x4] sm:$0xf]
        %v476 = vld [vmem:[%s468 + $0x8] sm:$0xf]
        %v477 = vld [vmem:[%s468 + $0xc] sm:$0xf]
        %v478 = vld [vmem:[%s468 + $0x10] sm:$0xf]
        %v479 = vld [vmem:[%s468 + $0x14] sm:$0xf]
        %v480 = vld [vmem:[%s468 + $0x18] sm:$0xf]
        %v481 = vld [vmem:[%s468 + $0x1c] sm:$0xf]
        %v482 = vld [vmem:[%s468 + $0x20] sm:$0xf]
        %v483 = vld [vmem:[%s468 + $0x24] sm:$0x1]
        %vm484 = vcmask 101376
        %485 = vst.msk [vmem:[#allocation5] sm:$0xf] %vm484, %v474
        %486 = vst.msk [vmem:[#allocation5 + $0x4] sm:$0xf] %vm484, %v475
        %487 = vst.msk [vmem:[#allocation5 + $0x8] sm:$0xf] %vm484, %v476
        %488 = vst.msk [vmem:[#allocation5 + $0xc] sm:$0xf] %vm484, %v477
        %489 = vst.msk [vmem:[#allocation5 + $0x10] sm:$0xf] %vm484, %v478
        %490 = vst.msk [vmem:[#allocation5 + $0x14] sm:$0xf] %vm484, %v479
        %491 = vst.msk [vmem:[#allocation5 + $0x18] sm:$0xf] %vm484, %v480
        %492 = vst.msk [vmem:[#allocation5 + $0x1c] sm:$0xf] %vm484, %v481
        %493 = vst.msk [vmem:[#allocation5 + $0x20] sm:$0xf] %vm484, %v482
        %vm494 = vcmask 98304
        %495 = vst.msk [vmem:[#allocation5 + $0x24] sm:$0x1] %vm494, %v483
        %v496 = vld [vmem:[%s468] sm:$0xf]
        %v497 = vld [vmem:[%s468 + $0x4] sm:$0xf]
        %v498 = vld [vmem:[%s468 + $0x8] sm:$0xf]
        %v499 = vld [vmem:[%s468 + $0xc] sm:$0xf]
        %v500 = vld [vmem:[%s468 + $0x10] sm:$0xf]
        %v501 = vld [vmem:[%s468 + $0x14] sm:$0xf]
        %v502 = vld [vmem:[%s468 + $0x18] sm:$0xf]
        %v503 = vld [vmem:[%s468 + $0x1c] sm:$0xf]
        %v504 = vld [vmem:[%s468 + $0x20] sm:$0xf]
        %v505 = vld [vmem:[%s468 + $0x24] sm:$0x1]
        %vm516 = vcmask 1040384
        %vm517 = vcmask 1044484
        %vm518 = vmor %vm516, %vm517
        %v519 = vrot.slane %v496, 7
        %v520 = vrot.slane %v519, 4
        %v521 = vrot.slane %v497, 7
        %v522 = vsel %vm518, %v520, %v521
        %v523 = vrot.slane %v521, 4
        %v524 = vrot.slane %v498, 7
        %v525 = vsel %vm518, %v523, %v524
        %v526 = vrot.slane %v524, 4
        %v527 = vrot.slane %v499, 7
        %v528 = vsel %vm518, %v526, %v527
        %v529 = vrot.slane %v527, 4
        %v530 = vrot.slane %v500, 7
        %v531 = vsel %vm518, %v529, %v530
        %v532 = vrot.slane %v530, 4
        %v533 = vrot.slane %v501, 7
        %v534 = vsel %vm518, %v532, %v533
        %v535 = vrot.slane %v533, 4
        %v536 = vrot.slane %v502, 7
        %v537 = vsel %vm518, %v535, %v536
        %v538 = vrot.slane %v536, 4
        %v539 = vrot.slane %v503, 7
        %v540 = vsel %vm518, %v538, %v539
        %v541 = vrot.slane %v539, 4
        %v542 = vrot.slane %v504, 7
        %v543 = vsel %vm518, %v541, %v542
        %v544 = vrot.slane %v542, 4
        %v545 = vrot.slane %v505, 7
        %v546 = vsel %vm518, %v544, %v545
        %547 = vrot.lane.b32.xlu0 %v519, 127
        %v548 = vpop.permute.xlu0 %547
        %549 = vrot.lane.b32.xlu0 %v522, 127
        %v550 = vpop.permute.xlu0 %549
        %551 = vrot.lane.b32.xlu0 %v525, 127
        %v552 = vpop.permute.xlu0 %551
        %553 = vrot.lane.b32.xlu0 %v528, 127
        %v554 = vpop.permute.xlu0 %553
        %555 = vrot.lane.b32.xlu0 %v531, 127
        %v556 = vpop.permute.xlu0 %555
        %557 = vrot.lane.b32.xlu0 %v534, 127
        %v558 = vpop.permute.xlu0 %557
        %559 = vrot.lane.b32.xlu0 %v537, 127
        %v560 = vpop.permute.xlu0 %559
        %561 = vrot.lane.b32.xlu0 %v540, 127
        %v562 = vpop.permute.xlu0 %561
        %563 = vrot.lane.b32.xlu0 %v543, 127
        %v564 = vpop.permute.xlu0 %563
        %565 = vrot.lane.b32.xlu0 %v546, 127
        %v566 = vpop.permute.xlu0 %565
        %vm577 = vcmask 101377
        %578 = vst.msk [vmem:[#allocation5 + $0x24] sm:$0xe] %vm577, %v548
        %579 = vst.msk [vmem:[#allocation5 + $0x28] sm:$0xf] %vm484, %v550
        %580 = vst.msk [vmem:[#allocation5 + $0x2c] sm:$0xf] %vm484, %v552
        %581 = vst.msk [vmem:[#allocation5 + $0x30] sm:$0xf] %vm484, %v554
        %582 = vst.msk [vmem:[#allocation5 + $0x34] sm:$0xf] %vm484, %v556
        %583 = vst.msk [vmem:[#allocation5 + $0x38] sm:$0xf] %vm484, %v558
        %584 = vst.msk [vmem:[#allocation5 + $0x3c] sm:$0xf] %vm484, %v560
        %585 = vst.msk [vmem:[#allocation5 + $0x40] sm:$0xf] %vm484, %v562
        %586 = vst.msk [vmem:[#allocation5 + $0x44] sm:$0xf] %vm484, %v564
        %vm587 = vcmask 99328
        %588 = vst.msk [vmem:[#allocation5 + $0x48] sm:$0x3] %vm587, %v566
        %v589 = vld [vmem:[%s468] sm:$0xf]
        %v590 = vld [vmem:[%s468 + $0x4] sm:$0xf]
        %v591 = vld [vmem:[%s468 + $0x8] sm:$0xf]
        %v592 = vld [vmem:[%s468 + $0xc] sm:$0xf]
        %v593 = vld [vmem:[%s468 + $0x10] sm:$0xf]
        %v594 = vld [vmem:[%s468 + $0x14] sm:$0xf]
        %v595 = vld [vmem:[%s468 + $0x18] sm:$0xf]
        %v596 = vld [vmem:[%s468 + $0x1c] sm:$0xf]
        %v597 = vld [vmem:[%s468 + $0x20] sm:$0xf]
        %v598 = vld [vmem:[%s468 + $0x24] sm:$0x1]
        %vm609 = vcmask 1041408
        %vm610 = vcmask 1045508
        %vm611 = vmor %vm609, %vm610
        %v612 = vrot.slane %v589, 6
        %v613 = vrot.slane %v612, 4
        %v614 = vrot.slane %v590, 6
        %v615 = vsel %vm611, %v613, %v614
        %v616 = vrot.slane %v614, 4
        %v617 = vrot.slane %v591, 6
        %v618 = vsel %vm611, %v616, %v617
        %v619 = vrot.slane %v617, 4
        %v620 = vrot.slane %v592, 6
        %v621 = vsel %vm611, %v619, %v620
        %v622 = vrot.slane %v620, 4
        %v623 = vrot.slane %v593, 6
        %v624 = vsel %vm611, %v622, %v623
        %v625 = vrot.slane %v623, 4
        %v626 = vrot.slane %v594, 6
        %v627 = vsel %vm611, %v625, %v626
        %v628 = vrot.slane %v626, 4
        %v629 = vrot.slane %v595, 6
        %v630 = vsel %vm611, %v628, %v629
        %v631 = vrot.slane %v629, 4
        %v632 = vrot.slane %v596, 6
        %v633 = vsel %vm611, %v631, %v632
        %v634 = vrot.slane %v632, 4
        %v635 = vrot.slane %v597, 6
        %v636 = vsel %vm611, %v634, %v635
        %v637 = vrot.slane %v635, 4
        %v638 = vrot.slane %v598, 6
        %v639 = vsel %vm611, %v637, %v638
        %640 = vrot.lane.b32.xlu0 %v612, 126
        %v641 = vpop.permute.xlu0 %640
        %642 = vrot.lane.b32.xlu0 %v615, 126
        %v643 = vpop.permute.xlu0 %642
        %644 = vrot.lane.b32.xlu0 %v618, 126
        %v645 = vpop.permute.xlu0 %644
        %646 = vrot.lane.b32.xlu0 %v621, 126
        %v647 = vpop.permute.xlu0 %646
        %648 = vrot.lane.b32.xlu0 %v624, 126
        %v649 = vpop.permute.xlu0 %648
        %650 = vrot.lane.b32.xlu0 %v627, 126
        %v651 = vpop.permute.xlu0 %650
        %652 = vrot.lane.b32.xlu0 %v630, 126
        %v653 = vpop.permute.xlu0 %652
        %654 = vrot.lane.b32.xlu0 %v633, 126
        %v655 = vpop.permute.xlu0 %654
        %656 = vrot.lane.b32.xlu0 %v636, 126
        %v657 = vpop.permute.xlu0 %656
        %658 = vrot.lane.b32.xlu0 %v639, 126
        %v659 = vpop.permute.xlu0 %658
        %vm670 = vcmask 101378
        %671 = vst.msk [vmem:[#allocation5 + $0x48] sm:$0xc] %vm670, %v641
        %672 = vst.msk [vmem:[#allocation5 + $0x4c] sm:$0xf] %vm484, %v643
        %673 = vst.msk [vmem:[#allocation5 + $0x50] sm:$0xf] %vm484, %v645
        %674 = vst.msk [vmem:[#allocation5 + $0x54] sm:$0xf] %vm484, %v647
        %675 = vst.msk [vmem:[#allocation5 + $0x58] sm:$0xf] %vm484, %v649
        %676 = vst.msk [vmem:[#allocation5 + $0x5c] sm:$0xf] %vm484, %v651
        %677 = vst.msk [vmem:[#allocation5 + $0x60] sm:$0xf] %vm484, %v653
        %678 = vst.msk [vmem:[#allocation5 + $0x64] sm:$0xf] %vm484, %v655
        %679 = vst.msk [vmem:[#allocation5 + $0x68] sm:$0xf] %vm484, %v657
        %vm680 = vcmask 100352
        %681 = vst.msk [vmem:[#allocation5 + $0x6c] sm:$0x7] %vm680, %v659
        %v682 = vld [vmem:[%s468] sm:$0xf]
        %v683 = vld [vmem:[%s468 + $0x4] sm:$0xf]
        %v684 = vld [vmem:[%s468 + $0x8] sm:$0xf]
        %v685 = vld [vmem:[%s468 + $0xc] sm:$0xf]
        %v686 = vld [vmem:[%s468 + $0x10] sm:$0xf]
        %v687 = vld [vmem:[%s468 + $0x14] sm:$0xf]
        %v688 = vld [vmem:[%s468 + $0x18] sm:$0xf]
        %v689 = vld [vmem:[%s468 + $0x1c] sm:$0xf]
        %v690 = vld [vmem:[%s468 + $0x20] sm:$0xf]
        %v691 = vld [vmem:[%s468 + $0x24] sm:$0x1]
        %vm702 = vcmask 1042432
        %vm703 = vcmask 1046532
        %vm704 = vmor %vm702, %vm703
        %v705 = vrot.slane %v682, 5
        %v706 = vrot.slane %v705, 4
        %v707 = vrot.slane %v683, 5
        %v708 = vsel %vm704, %v706, %v707
        %v709 = vrot.slane %v707, 4
        %v710 = vrot.slane %v684, 5
        %v711 = vsel %vm704, %v709, %v710
        %v712 = vrot.slane %v710, 4
        %v713 = vrot.slane %v685, 5
        %v714 = vsel %vm704, %v712, %v713
        %v715 = vrot.slane %v713, 4
        %v716 = vrot.slane %v686, 5
        %v717 = vsel %vm704, %v715, %v716
        %v718 = vrot.slane %v716, 4
        %v719 = vrot.slane %v687, 5
        %v720 = vsel %vm704, %v718, %v719
        %v721 = vrot.slane %v719, 4
        %v722 = vrot.slane %v688, 5
        %v723 = vsel %vm704, %v721, %v722
        %v724 = vrot.slane %v722, 4
        %v725 = vrot.slane %v689, 5
        %v726 = vsel %vm704, %v724, %v725
        %v727 = vrot.slane %v725, 4
        %v728 = vrot.slane %v690, 5
        %v729 = vsel %vm704, %v727, %v728
        %v730 = vrot.slane %v728, 4
        %v731 = vrot.slane %v691, 5
        %v732 = vsel %vm704, %v730, %v731
        %733 = vrot.lane.b32.xlu0 %v705, 123
        %v734 = vpop.permute.xlu0 %733
        %735 = vrot.lane.b32.xlu0 %v708, 123
        %v736 = vpop.permute.xlu0 %735
        %737 = vrot.lane.b32.xlu0 %v711, 123
        %v738 = vpop.permute.xlu0 %737
        %739 = vrot.lane.b32.xlu0 %v714, 123
        %v740 = vpop.permute.xlu0 %739
        %741 = vrot.lane.b32.xlu0 %v717, 123
        %v742 = vpop.permute.xlu0 %741
        %743 = vrot.lane.b32.xlu0 %v720, 123
        %v744 = vpop.permute.xlu0 %743
        %745 = vrot.lane.b32.xlu0 %v723, 123
        %v746 = vpop.permute.xlu0 %745
        %747 = vrot.lane.b32.xlu0 %v726, 123
        %v748 = vpop.permute.xlu0 %747
        %749 = vrot.lane.b32.xlu0 %v729, 123
        %v750 = vpop.permute.xlu0 %749
        %751 = vrot.lane.b32.xlu0 %v732, 123
        %v752 = vpop.permute.xlu0 %751
        %vm763 = vcmask 101379
        %764 = vst.msk [vmem:[#allocation5 + $0x6c] sm:$0x8] %vm763, %v734
        %765 = vst.msk [vmem:[#allocation5 + $0x70] sm:$0xf] %vm484, %v736
        %766 = vst.msk [vmem:[#allocation5 + $0x74] sm:$0xf] %vm484, %v738
        %767 = vst.msk [vmem:[#allocation5 + $0x78] sm:$0xf] %vm484, %v740
        %768 = vst.msk [vmem:[#allocation5 + $0x7c] sm:$0xf] %vm484, %v742
        %769 = vst.msk [vmem:[#allocation5 + $0x80] sm:$0xf] %vm484, %v744
        %770 = vst.msk [vmem:[#allocation5 + $0x84] sm:$0xf] %vm484, %v746
        %771 = vst.msk [vmem:[#allocation5 + $0x88] sm:$0xf] %vm484, %v748
        %772 = vst.msk [vmem:[#allocation5 + $0x8c] sm:$0xf] %vm484, %v750
        %773 = vst.msk [vmem:[#allocation5 + $0x90] sm:$0xf] %vm484, %v752
        %v774 = vld [vmem:[%s468] sm:$0xf]
        %v775 = vld [vmem:[%s468 + $0x4] sm:$0xf]
        %v776 = vld [vmem:[%s468 + $0x8] sm:$0xf]
        %v777 = vld [vmem:[%s468 + $0xc] sm:$0xf]
        %v778 = vld [vmem:[%s468 + $0x10] sm:$0xf]
        %v779 = vld [vmem:[%s468 + $0x14] sm:$0xf]
        %v780 = vld [vmem:[%s468 + $0x18] sm:$0xf]
        %v781 = vld [vmem:[%s468 + $0x1c] sm:$0xf]
        %v782 = vld [vmem:[%s468 + $0x20] sm:$0xf]
        %v783 = vld [vmem:[%s468 + $0x24] sm:$0x1]
        %794 = vrot.lane.b32.xlu0 %v774, 122
        %v795 = vpop.permute.xlu0 %794
        %796 = vrot.lane.b32.xlu0 %v775, 122
        %v797 = vpop.permute.xlu0 %796
        %798 = vrot.lane.b32.xlu0 %v776, 122
        %v799 = vpop.permute.xlu0 %798
        %800 = vrot.lane.b32.xlu0 %v777, 122
        %v801 = vpop.permute.xlu0 %800
        %802 = vrot.lane.b32.xlu0 %v778, 122
        %v803 = vpop.permute.xlu0 %802
        %804 = vrot.lane.b32.xlu0 %v779, 122
        %v805 = vpop.permute.xlu0 %804
        %806 = vrot.lane.b32.xlu0 %v780, 122
        %v807 = vpop.permute.xlu0 %806
        %808 = vrot.lane.b32.xlu0 %v781, 122
        %v809 = vpop.permute.xlu0 %808
        %810 = vrot.lane.b32.xlu0 %v782, 122
        %v811 = vpop.permute.xlu0 %810
        %812 = vrot.lane.b32.xlu0 %v783, 122
        %v813 = vpop.permute.xlu0 %812
        %824 = vst.msk [vmem:[#allocation5 + $0x94] sm:$0xf] %vm484, %v795
        %825 = vst.msk [vmem:[#allocation5 + $0x98] sm:$0xf] %vm484, %v797
        %826 = vst.msk [vmem:[#allocation5 + $0x9c] sm:$0xf] %vm484, %v799
        %827 = vst.msk [vmem:[#allocation5 + $0xa0] sm:$0xf] %vm484, %v801
        %828 = vst.msk [vmem:[#allocation5 + $0xa4] sm:$0xf] %vm484, %v803
        %829 = vst.msk [vmem:[#allocation5 + $0xa8] sm:$0xf] %vm484, %v805
        %830 = vst.msk [vmem:[#allocation5 + $0xac] sm:$0xf] %vm484, %v807
        %831 = vst.msk [vmem:[#allocation5 + $0xb0] sm:$0xf] %vm484, %v809
        %832 = vst.msk [vmem:[#allocation5 + $0xb4] sm:$0xf] %vm484, %v811
        %833 = vst.msk [vmem:[#allocation5 + $0xb8] sm:$0x1] %vm494, %v813
        %v834 = vld [vmem:[%s468] sm:$0xf]
        %v835 = vld [vmem:[%s468 + $0x4] sm:$0xf]
        %v836 = vld [vmem:[%s468 + $0x8] sm:$0xf]
        %v837 = vld [vmem:[%s468 + $0xc] sm:$0xf]
        %v838 = vld [vmem:[%s468 + $0x10] sm:$0xf]
        %v839 = vld [vmem:[%s468 + $0x14] sm:$0xf]
        %v840 = vld [vmem:[%s468 + $0x18] sm:$0xf]
        %v841 = vld [vmem:[%s468 + $0x1c] sm:$0xf]
        %v842 = vld [vmem:[%s468 + $0x20] sm:$0xf]
        %v843 = vld [vmem:[%s468 + $0x24] sm:$0x1]
        %v854 = vrot.slane %v834, 7
        %v855 = vrot.slane %v854, 4
        %v856 = vrot.slane %v835, 7
        %v857 = vsel %vm518, %v855, %v856
        %v858 = vrot.slane %v856, 4
        %v859 = vrot.slane %v836, 7
        %v860 = vsel %vm518, %v858, %v859
        %v861 = vrot.slane %v859, 4
        %v862 = vrot.slane %v837, 7
        %v863 = vsel %vm518, %v861, %v862
        %v864 = vrot.slane %v862, 4
        %v865 = vrot.slane %v838, 7
        %v866 = vsel %vm518, %v864, %v865
        %v867 = vrot.slane %v865, 4
        %v868 = vrot.slane %v839, 7
        %v869 = vsel %vm518, %v867, %v868
        %v870 = vrot.slane %v868, 4
        %v871 = vrot.slane %v840, 7
        %v872 = vsel %vm518, %v870, %v871
        %v873 = vrot.slane %v871, 4
        %v874 = vrot.slane %v841, 7
        %v875 = vsel %vm518, %v873, %v874
        %v876 = vrot.slane %v874, 4
        %v877 = vrot.slane %v842, 7
        %v878 = vsel %vm518, %v876, %v877
        %v879 = vrot.slane %v877, 4
        %v880 = vrot.slane %v843, 7
        %v881 = vsel %vm518, %v879, %v880
        %882 = vrot.lane.b32.xlu0 %v854, 121
        %v883 = vpop.permute.xlu0 %882
        %884 = vrot.lane.b32.xlu0 %v857, 121
        %v885 = vpop.permute.xlu0 %884
        %886 = vrot.lane.b32.xlu0 %v860, 121
        %v887 = vpop.permute.xlu0 %886
        %888 = vrot.lane.b32.xlu0 %v863, 121
        %v889 = vpop.permute.xlu0 %888
        %890 = vrot.lane.b32.xlu0 %v866, 121
        %v891 = vpop.permute.xlu0 %890
        %892 = vrot.lane.b32.xlu0 %v869, 121
        %v893 = vpop.permute.xlu0 %892
        %894 = vrot.lane.b32.xlu0 %v872, 121
        %v895 = vpop.permute.xlu0 %894
        %896 = vrot.lane.b32.xlu0 %v875, 121
        %v897 = vpop.permute.xlu0 %896
        %898 = vrot.lane.b32.xlu0 %v878, 121
        %v899 = vpop.permute.xlu0 %898
        %900 = vrot.lane.b32.xlu0 %v881, 121
        %v901 = vpop.permute.xlu0 %900
        %912 = vst.msk [vmem:[#allocation5 + $0xb8] sm:$0xe] %vm577, %v883
        %913 = vst.msk [vmem:[#allocation5 + $0xbc] sm:$0xf] %vm484, %v885
        %914 = vst.msk [vmem:[#allocation5 + $0xc0] sm:$0xf] %vm484, %v887
        %915 = vst.msk [vmem:[#allocation5 + $0xc4] sm:$0xf] %vm484, %v889
        %916 = vst.msk [vmem:[#allocation5 + $0xc8] sm:$0xf] %vm484, %v891
        %917 = vst.msk [vmem:[#allocation5 + $0xcc] sm:$0xf] %vm484, %v893
        %918 = vst.msk [vmem:[#allocation5 + $0xd0] sm:$0xf] %vm484, %v895
        %919 = vst.msk [vmem:[#allocation5 + $0xd4] sm:$0xf] %vm484, %v897
        %920 = vst.msk [vmem:[#allocation5 + $0xd8] sm:$0xf] %vm484, %v899
        %921 = vst.msk [vmem:[#allocation5 + $0xdc] sm:$0x3] %vm587, %v901
        %v922 = vld [vmem:[%s468] sm:$0xf]
        %v923 = vld [vmem:[%s468 + $0x4] sm:$0xf]
        %v924 = vld [vmem:[%s468 + $0x8] sm:$0xf]
        %v925 = vld [vmem:[%s468 + $0xc] sm:$0xf]
        %v926 = vld [vmem:[%s468 + $0x10] sm:$0xf]
        %v927 = vld [vmem:[%s468 + $0x14] sm:$0xf]
        %v928 = vld [vmem:[%s468 + $0x18] sm:$0xf]
        %v929 = vld [vmem:[%s468 + $0x1c] sm:$0xf]
        %v930 = vld [vmem:[%s468 + $0x20] sm:$0xf]
        %v931 = vld [vmem:[%s468 + $0x24] sm:$0x1]
        %v942 = vrot.slane %v922, 6
        %v943 = vrot.slane %v942, 4
        %v944 = vrot.slane %v923, 6
        %v945 = vsel %vm611, %v943, %v944
        %v946 = vrot.slane %v944, 4
        %v947 = vrot.slane %v924, 6
        %v948 = vsel %vm611, %v946, %v947
        %v949 = vrot.slane %v947, 4
        %v950 = vrot.slane %v925, 6
        %v951 = vsel %vm611, %v949, %v950
        %v952 = vrot.slane %v950, 4
        %v953 = vrot.slane %v926, 6
        %v954 = vsel %vm611, %v952, %v953
        %v955 = vrot.slane %v953, 4
        %v956 = vrot.slane %v927, 6
        %v957 = vsel %vm611, %v955, %v956
        %v958 = vrot.slane %v956, 4
        %v959 = vrot.slane %v928, 6
        %v960 = vsel %vm611, %v958, %v959
        %v961 = vrot.slane %v959, 4
        %v962 = vrot.slane %v929, 6
        %v963 = vsel %vm611, %v961, %v962
        %v964 = vrot.slane %v962, 4
        %v965 = vrot.slane %v930, 6
        %v966 = vsel %vm611, %v964, %v965
        %v967 = vrot.slane %v965, 4
        %v968 = vrot.slane %v931, 6
        %v969 = vsel %vm611, %v967, %v968
        %970 = vrot.lane.b32.xlu0 %v942, 118
        %v971 = vpop.permute.xlu0 %970
        %972 = vrot.lane.b32.xlu0 %v945, 118
        %v973 = vpop.permute.xlu0 %972
        %974 = vrot.lane.b32.xlu0 %v948, 118
        %v975 = vpop.permute.xlu0 %974
        %976 = vrot.lane.b32.xlu0 %v951, 118
        %v977 = vpop.permute.xlu0 %976
        %978 = vrot.lane.b32.xlu0 %v954, 118
        %v979 = vpop.permute.xlu0 %978
        %980 = vrot.lane.b32.xlu0 %v957, 118
        %v981 = vpop.permute.xlu0 %980
        %982 = vrot.lane.b32.xlu0 %v960, 118
        %v983 = vpop.permute.xlu0 %982
        %984 = vrot.lane.b32.xlu0 %v963, 118
        %v985 = vpop.permute.xlu0 %984
        %986 = vrot.lane.b32.xlu0 %v966, 118
        %v987 = vpop.permute.xlu0 %986
        %988 = vrot.lane.b32.xlu0 %v969, 118
        %v989 = vpop.permute.xlu0 %988
        %1000 = vst.msk [vmem:[#allocation5 + $0xdc] sm:$0xc] %vm670, %v971
        %1001 = vst.msk [vmem:[#allocation5 + $0xe0] sm:$0xf] %vm484, %v973
        %1002 = vst.msk [vmem:[#allocation5 + $0xe4] sm:$0xf] %vm484, %v975
        %1003 = vst.msk [vmem:[#allocation5 + $0xe8] sm:$0xf] %vm484, %v977
        %1004 = vst.msk [vmem:[#allocation5 + $0xec] sm:$0xf] %vm484, %v979
        %1005 = vst.msk [vmem:[#allocation5 + $0xf0] sm:$0xf] %vm484, %v981
        %1006 = vst.msk [vmem:[#allocation5 + $0xf4] sm:$0xf] %vm484, %v983
        %1007 = vst.msk [vmem:[#allocation5 + $0xf8] sm:$0xf] %vm484, %v985
        %1008 = vst.msk [vmem:[#allocation5 + $0xfc] sm:$0xf] %vm484, %v987
        %1009 = vst.msk [vmem:[#allocation5 + $0x100] sm:$0x7] %vm680, %v989
        %v1010 = vld [vmem:[%s468] sm:$0xf]
        %v1011 = vld [vmem:[%s468 + $0x4] sm:$0xf]
        %v1012 = vld [vmem:[%s468 + $0x8] sm:$0xf]
        %v1013 = vld [vmem:[%s468 + $0xc] sm:$0xf]
        %v1014 = vld [vmem:[%s468 + $0x10] sm:$0xf]
        %v1015 = vld [vmem:[%s468 + $0x14] sm:$0xf]
        %v1016 = vld [vmem:[%s468 + $0x18] sm:$0xf]
        %v1017 = vld [vmem:[%s468 + $0x1c] sm:$0xf]
        %v1018 = vld [vmem:[%s468 + $0x20] sm:$0xf]
        %v1019 = vld [vmem:[%s468 + $0x24] sm:$0x1]
        %v1030 = vrot.slane %v1010, 5
        %v1031 = vrot.slane %v1030, 4
        %v1032 = vrot.slane %v1011, 5
        %v1033 = vsel %vm704, %v1031, %v1032
        %v1034 = vrot.slane %v1032, 4
        %v1035 = vrot.slane %v1012, 5
        %v1036 = vsel %vm704, %v1034, %v1035
        %v1037 = vrot.slane %v1035, 4
        %v1038 = vrot.slane %v1013, 5
        %v1039 = vsel %vm704, %v1037, %v1038
        %v1040 = vrot.slane %v1038, 4
        %v1041 = vrot.slane %v1014, 5
        %v1042 = vsel %vm704, %v1040, %v1041
        %v1043 = vrot.slane %v1041, 4
        %v1044 = vrot.slane %v1015, 5
        %v1045 = vsel %vm704, %v1043, %v1044
        %v1046 = vrot.slane %v1044, 4
        %v1047 = vrot.slane %v1016, 5
        %v1048 = vsel %vm704, %v1046, %v1047
        %v1049 = vrot.slane %v1047, 4
        %v1050 = vrot.slane %v1017, 5
        %v1051 = vsel %vm704, %v1049, %v1050
        %v1052 = vrot.slane %v1050, 4
        %v1053 = vrot.slane %v1018, 5
        %v1054 = vsel %vm704, %v1052, %v1053
        %v1055 = vrot.slane %v1053, 4
        %v1056 = vrot.slane %v1019, 5
        %v1057 = vsel %vm704, %v1055, %v1056
        %1058 = vrot.lane.b32.xlu0 %v1030, 117
        %v1059 = vpop.permute.xlu0 %1058
        %1060 = vrot.lane.b32.xlu0 %v1033, 117
        %v1061 = vpop.permute.xlu0 %1060
        %1062 = vrot.lane.b32.xlu0 %v1036, 117
        %v1063 = vpop.permute.xlu0 %1062
        %1064 = vrot.lane.b32.xlu0 %v1039, 117
        %v1065 = vpop.permute.xlu0 %1064
        %1066 = vrot.lane.b32.xlu0 %v1042, 117
        %v1067 = vpop.permute.xlu0 %1066
        %1068 = vrot.lane.b32.xlu0 %v1045, 117
        %v1069 = vpop.permute.xlu0 %1068
        %1070 = vrot.lane.b32.xlu0 %v1048, 117
        %v1071 = vpop.permute.xlu0 %1070
        %1072 = vrot.lane.b32.xlu0 %v1051, 117
        %v1073 = vpop.permute.xlu0 %1072
        %1074 = vrot.lane.b32.xlu0 %v1054, 117
        %v1075 = vpop.permute.xlu0 %1074
        %1076 = vrot.lane.b32.xlu0 %v1057, 117
        %v1077 = vpop.permute.xlu0 %1076
        %1088 = vst.msk [vmem:[#allocation5 + $0x100] sm:$0x8] %vm763, %v1059
        %1089 = vst.msk [vmem:[#allocation5 + $0x104] sm:$0xf] %vm484, %v1061
        %1090 = vst.msk [vmem:[#allocation5 + $0x108] sm:$0xf] %vm484, %v1063
        %1091 = vst.msk [vmem:[#allocation5 + $0x10c] sm:$0xf] %vm484, %v1065
        %1092 = vst.msk [vmem:[#allocation5 + $0x110] sm:$0xf] %vm484, %v1067
        %1093 = vst.msk [vmem:[#allocation5 + $0x114] sm:$0xf] %vm484, %v1069
        %1094 = vst.msk [vmem:[#allocation5 + $0x118] sm:$0xf] %vm484, %v1071
        %1095 = vst.msk [vmem:[#allocation5 + $0x11c] sm:$0xf] %vm484, %v1073
        %1096 = vst.msk [vmem:[#allocation5 + $0x120] sm:$0xf] %vm484, %v1075
        %1097 = vst.msk [vmem:[#allocation5 + $0x124] sm:$0xf] %vm484, %v1077
        %v1098 = vld [vmem:[%s468] sm:$0xf]
        %v1099 = vld [vmem:[%s468 + $0x4] sm:$0xf]
        %v1100 = vld [vmem:[%s468 + $0x8] sm:$0xf]
        %v1101 = vld [vmem:[%s468 + $0xc] sm:$0xf]
        %v1102 = vld [vmem:[%s468 + $0x10] sm:$0xf]
        %v1103 = vld [vmem:[%s468 + $0x14] sm:$0xf]
        %v1104 = vld [vmem:[%s468 + $0x18] sm:$0xf]
        %v1105 = vld [vmem:[%s468 + $0x1c] sm:$0xf]
        %v1106 = vld [vmem:[%s468 + $0x20] sm:$0xf]
        %v1107 = vld [vmem:[%s468 + $0x24] sm:$0x1]
        %1118 = vrot.lane.b32.xlu0 %v1098, 116
        %v1119 = vpop.permute.xlu0 %1118
        %1120 = vrot.lane.b32.xlu0 %v1099, 116
        %v1121 = vpop.permute.xlu0 %1120
        %1122 = vrot.lane.b32.xlu0 %v1100, 116
        %v1123 = vpop.permute.xlu0 %1122
        %1124 = vrot.lane.b32.xlu0 %v1101, 116
        %v1125 = vpop.permute.xlu0 %1124
        %1126 = vrot.lane.b32.xlu0 %v1102, 116
        %v1127 = vpop.permute.xlu0 %1126
        %1128 = vrot.lane.b32.xlu0 %v1103, 116
        %v1129 = vpop.permute.xlu0 %1128
        %1130 = vrot.lane.b32.xlu0 %v1104, 116
        %v1131 = vpop.permute.xlu0 %1130
        %1132 = vrot.lane.b32.xlu0 %v1105, 116
        %v1133 = vpop.permute.xlu0 %1132
        %1134 = vrot.lane.b32.xlu0 %v1106, 116
        %v1135 = vpop.permute.xlu0 %1134
        %1136 = vrot.lane.b32.xlu0 %v1107, 116
        %v1137 = vpop.permute.xlu0 %1136
        %1148 = vst.msk [vmem:[#allocation5 + $0x128] sm:$0xf] %vm484, %v1119
        %1149 = vst.msk [vmem:[#allocation5 + $0x12c] sm:$0xf] %vm484, %v1121
        %1150 = vst.msk [vmem:[#allocation5 + $0x130] sm:$0xf] %vm484, %v1123
        %1151 = vst.msk [vmem:[#allocation5 + $0x134] sm:$0xf] %vm484, %v1125
        %1152 = vst.msk [vmem:[#allocation5 + $0x138] sm:$0xf] %vm484, %v1127
        %1153 = vst.msk [vmem:[#allocation5 + $0x13c] sm:$0xf] %vm484, %v1129
        %1154 = vst.msk [vmem:[#allocation5 + $0x140] sm:$0xf] %vm484, %v1131
        %1155 = vst.msk [vmem:[#allocation5 + $0x144] sm:$0xf] %vm484, %v1133
        %1156 = vst.msk [vmem:[#allocation5 + $0x148] sm:$0xf] %vm484, %v1135
        %1157 = vst.msk [vmem:[#allocation5 + $0x14c] sm:$0x1] %vm494, %v1137
        %v1158 = vld [vmem:[#allocation10] sm:$0xff]
        %v1159 = vld [vmem:[#allocation10 + $0x8] sm:$0xff]
        %v1160 = vld [vmem:[#allocation10 + $0x10] sm:$0xff]
        %v1161 = vld [vmem:[#allocation10 + $0x18] sm:$0xff]
        %v1162 = vld [vmem:[#allocation10 + $0x20] sm:$0xff]
        %v1163 = vld [vmem:[#allocation10 + $0x28] sm:$0xff]
        %v1164 = vld [vmem:[#allocation10 + $0x30] sm:$0xff]
        %v1165 = vld [vmem:[#allocation10 + $0x38] sm:$0xff]
        %v1166 = vld [vmem:[#allocation10 + $0x40] sm:$0xff]
        %v1167 = vld [vmem:[#allocation10 + $0x48] sm:$0xff]
        %v1168 = vld [vmem:[#allocation10 + $0x50] sm:$0xff]
        %v1169 = vld [vmem:[#allocation10 + $0x58] sm:$0xff]
        %v1170 = vld [vmem:[#allocation10 + $0x60] sm:$0xff]
        %v1171 = vld [vmem:[#allocation10 + $0x68] sm:$0xff]
        %v1172 = vld [vmem:[#allocation10 + $0x70] sm:$0xff]
        %v1173 = vld [vmem:[#allocation10 + $0x78] sm:$0xff]
        %v1174 = vld [vmem:[#allocation10 + $0x80] sm:$0xff]
        %v1175 = vld [vmem:[#allocation10 + $0x88] sm:$0xff]
        %v1176 = vld [vmem:[#allocation10 + $0x90] sm:$0xff]
        %v1177 = vld [vmem:[#allocation10 + $0x98] sm:$0xff]
        %v1178 = vld [vmem:[#allocation10 + $0xa0] sm:$0xff]
        %v1179 = vld [vmem:[#allocation10 + $0xa8] sm:$0xff]
        %v1180 = vld [vmem:[#allocation10 + $0xb0] sm:$0xff]
        %v1181 = vld [vmem:[#allocation10 + $0xb8] sm:$0xff]
        %v1182 = vld [vmem:[#allocation5] sm:$0xf]
        %v1183 = vld [vmem:[#allocation5 + $0x4] sm:$0xf]
        %v1184 = vld [vmem:[#allocation5 + $0x8] sm:$0xf]
        %v1185 = vld [vmem:[#allocation5 + $0xc] sm:$0xf]
        %v1186 = vld [vmem:[#allocation5 + $0x10] sm:$0xf]
        %v1187 = vld [vmem:[#allocation5 + $0x14] sm:$0xf]
        %v1188 = vld [vmem:[#allocation5 + $0x18] sm:$0xf]
        %v1189 = vld [vmem:[#allocation5 + $0x1c] sm:$0xf]
        %v1190 = vld [vmem:[#allocation5 + $0x20] sm:$0xf]
        %v1191 = vld [vmem:[#allocation5 + $0x24] sm:$0xf]
        %v1192 = vld [vmem:[#allocation5 + $0x28] sm:$0xf]
        %v1193 = vld [vmem:[#allocation5 + $0x2c] sm:$0xf]
        %v1194 = vld [vmem:[#allocation5 + $0x30] sm:$0xf]
        %v1195 = vld [vmem:[#allocation5 + $0x34] sm:$0xf]
        %v1196 = vld [vmem:[#allocation5 + $0x38] sm:$0xf]
        %v1197 = vld [vmem:[#allocation5 + $0x3c] sm:$0xf]
        %v1198 = vld [vmem:[#allocation5 + $0x40] sm:$0xf]
        %v1199 = vld [vmem:[#allocation5 + $0x44] sm:$0xf]
        %v1200 = vld [vmem:[#allocation5 + $0x48] sm:$0xf]
        %v1201 = vld [vmem:[#allocation5 + $0x4c] sm:$0xf]
        %v1202 = vld [vmem:[#allocation5 + $0x50] sm:$0xf]
        %v1203 = vld [vmem:[#allocation5 + $0x54] sm:$0xf]
        %v1204 = vld [vmem:[#allocation5 + $0x58] sm:$0xf]
        %v1205 = vld [vmem:[#allocation5 + $0x5c] sm:$0xf]
        %v1206 = vld [vmem:[#allocation5 + $0x60] sm:$0xf]
        %v1207 = vld [vmem:[#allocation5 + $0x64] sm:$0xf]
        %v1208 = vld [vmem:[#allocation5 + $0x68] sm:$0xf]
        %v1209 = vld [vmem:[#allocation5 + $0x6c] sm:$0xf]
        %v1210 = vld [vmem:[#allocation5 + $0x70] sm:$0xf]
        %v1211 = vld [vmem:[#allocation5 + $0x74] sm:$0xf]
        %v1212 = vld [vmem:[#allocation5 + $0x78] sm:$0xf]
        %v1213 = vld [vmem:[#allocation5 + $0x7c] sm:$0xf]
        %v1214 = vld [vmem:[#allocation5 + $0x80] sm:$0xf]
        %v1215 = vld [vmem:[#allocation5 + $0x84] sm:$0xf]
        %v1216 = vld [vmem:[#allocation5 + $0x88] sm:$0xf]
        %v1217 = vld [vmem:[#allocation5 + $0x8c] sm:$0xf]
        %v1218 = vld [vmem:[#allocation5 + $0x90] sm:$0xf]
        %v1219 = vld [vmem:[#allocation5 + $0x94] sm:$0xf]
        %v1220 = vld [vmem:[#allocation5 + $0x98] sm:$0xf]
        %v1221 = vld [vmem:[#allocation5 + $0x9c] sm:$0xf]
        %v1222 = vld [vmem:[#allocation5 + $0xa0] sm:$0xf]
        %v1223 = vld [vmem:[#allocation5 + $0xa4] sm:$0xf]
        %v1224 = vld [vmem:[#allocation5 + $0xa8] sm:$0xf]
        %v1225 = vld [vmem:[#allocation5 + $0xac] sm:$0xf]
        %v1226 = vld [vmem:[#allocation5 + $0xb0] sm:$0xf]
        %v1227 = vld [vmem:[#allocation5 + $0xb4] sm:$0xf]
        %v1228 = vld [vmem:[#allocation5 + $0xb8] sm:$0xf]
        %v1229 = vld [vmem:[#allocation5 + $0xbc] sm:$0xf]
        %v1230 = vld [vmem:[#allocation5 + $0xc0] sm:$0xf]
        %v1231 = vld [vmem:[#allocation5 + $0xc4] sm:$0xf]
        %v1232 = vld [vmem:[#allocation5 + $0xc8] sm:$0xf]
        %v1233 = vld [vmem:[#allocation5 + $0xcc] sm:$0xf]
        %v1234 = vld [vmem:[#allocation5 + $0xd0] sm:$0xf]
        %v1235 = vld [vmem:[#allocation5 + $0xd4] sm:$0xf]
        %v1236 = vld [vmem:[#allocation5 + $0xd8] sm:$0xf]
        %v1237 = vld [vmem:[#allocation5 + $0xdc] sm:$0xf]
        %v1238 = vld [vmem:[#allocation5 + $0xe0] sm:$0xf]
        %v1239 = vld [vmem:[#allocation5 + $0xe4] sm:$0xf]
        %v1240 = vld [vmem:[#allocation5 + $0xe8] sm:$0xf]
        %v1241 = vld [vmem:[#allocation5 + $0xec] sm:$0xf]
        %v1242 = vld [vmem:[#allocation5 + $0xf0] sm:$0xf]
        %v1243 = vld [vmem:[#allocation5 + $0xf4] sm:$0xf]
        %v1244 = vld [vmem:[#allocation5 + $0xf8] sm:$0xf]
        %v1245 = vld [vmem:[#allocation5 + $0xfc] sm:$0xf]
        %v1246 = vld [vmem:[#allocation5 + $0x100] sm:$0xf]
        %v1247 = vld [vmem:[#allocation5 + $0x104] sm:$0xf]
        %v1248 = vld [vmem:[#allocation5 + $0x108] sm:$0xf]
        %v1249 = vld [vmem:[#allocation5 + $0x10c] sm:$0xf]
        %v1250 = vld [vmem:[#allocation5 + $0x110] sm:$0xf]
        %v1251 = vld [vmem:[#allocation5 + $0x114] sm:$0xf]
        %v1252 = vld [vmem:[#allocation5 + $0x118] sm:$0xf]
        %v1253 = vld [vmem:[#allocation5 + $0x11c] sm:$0xf]
        %v1254 = vld [vmem:[#allocation5 + $0x120] sm:$0xf]
        %v1255 = vld [vmem:[#allocation5 + $0x124] sm:$0xf]
        %v1256 = vld [vmem:[#allocation5 + $0x128] sm:$0xf]
        %v1257 = vld [vmem:[#allocation5 + $0x12c] sm:$0xf]
        %v1258 = vld [vmem:[#allocation5 + $0x130] sm:$0xf]
        %v1259 = vld [vmem:[#allocation5 + $0x134] sm:$0xf]
        %v1260 = vld [vmem:[#allocation5 + $0x138] sm:$0xf]
        %v1261 = vld [vmem:[#allocation5 + $0x13c] sm:$0xf]
        %v1262 = vld [vmem:[#allocation5 + $0x140] sm:$0xf]
        %v1263 = vld [vmem:[#allocation5 + $0x144] sm:$0xf]
        %v1264 = vld [vmem:[#allocation5 + $0x148] sm:$0xf]
        %v1265 = vld [vmem:[#allocation5 + $0x14c] sm:$0x1]
        %v1266 = vld [vmem:[%s2] sm:$0xff]
        %v1267 = vld [vmem:[%s2 + $0x8] sm:$0xff]
        %v1268 = vld [vmem:[%s2 + $0x10] sm:$0xff]
        %v1269 = vld [vmem:[%s2 + $0x18] sm:$0xff]
        %v1270 = vld [vmem:[%s2 + $0x20] sm:$0xff]
        %v1271 = vld [vmem:[%s2 + $0x28] sm:$0xff]
        %v1272 = vld [vmem:[%s2 + $0x30] sm:$0xff]
        %v1273 = vld [vmem:[%s2 + $0x38] sm:$0xff]
        %1275 = vset.pattern.permute.xlu0 0
        %1276 = vperm.xlu0 %1275, %v1266
        %v1277 = vpop.permute.xlu0 %1276
        %1280 = vset.pattern.permute.xlu0 0
        %1281 = vperm.xlu0 %1280, %v1267
        %v1282 = vpop.permute.xlu0 %1281
        %1285 = vset.pattern.permute.xlu0 0
        %1286 = vperm.xlu0 %1285, %v1268
        %v1287 = vpop.permute.xlu0 %1286
        %1290 = vset.pattern.permute.xlu0 0
        %1291 = vperm.xlu0 %1290, %v1269
        %v1292 = vpop.permute.xlu0 %1291
        %1295 = vset.pattern.permute.xlu0 0
        %1296 = vperm.xlu0 %1295, %v1270
        %v1297 = vpop.permute.xlu0 %1296
        %1300 = vset.pattern.permute.xlu0 0
        %1301 = vperm.xlu0 %1300, %v1271
        %v1302 = vpop.permute.xlu0 %1301
        %1305 = vset.pattern.permute.xlu0 0
        %1306 = vperm.xlu0 %1305, %v1272
        %v1307 = vpop.permute.xlu0 %1306
        %1310 = vset.pattern.permute.xlu0 0
        %1311 = vperm.xlu0 %1310, %v1273
        %v1312 = vpop.permute.xlu0 %1311
        %v1338 = vunpack.c.l.b16 %v1158
        %v1339 = vunpack.c.h.b16 %v1158
        %v1340 = vunpack.c.l.b16 %v1159
        %v1341 = vunpack.c.h.b16 %v1159
        %v1342 = vunpack.c.l.b16 %v1160
        %v1343 = vunpack.c.h.b16 %v1160
        %v1344 = vunpack.c.l.b16 %v1161
        %v1345 = vunpack.c.h.b16 %v1161
        %v1346 = vunpack.c.l.b16 %v1162
        %v1347 = vunpack.c.h.b16 %v1162
        %v1348 = vunpack.c.l.b16 %v1163
        %v1349 = vunpack.c.h.b16 %v1163
        %v1350 = vunpack.c.l.b16 %v1164
        %v1351 = vunpack.c.h.b16 %v1164
        %v1352 = vunpack.c.l.b16 %v1165
        %v1353 = vunpack.c.h.b16 %v1165
        %v1354 = vunpack.c.l.b16 %v1166
        %v1355 = vunpack.c.h.b16 %v1166
        %v1356 = vunpack.c.l.b16 %v1167
        %v1357 = vunpack.c.h.b16 %v1167
        %v1358 = vunpack.c.l.b16 %v1168
        %v1359 = vunpack.c.h.b16 %v1168
        %v1360 = vunpack.c.l.b16 %v1169
        %v1361 = vunpack.c.h.b16 %v1169
        %v1362 = vunpack.c.l.b16 %v1170
        %v1363 = vunpack.c.h.b16 %v1170
        %v1364 = vunpack.c.l.b16 %v1171
        %v1365 = vunpack.c.h.b16 %v1171
        %v1366 = vunpack.c.l.b16 %v1172
        %v1367 = vunpack.c.h.b16 %v1172
        %v1368 = vunpack.c.l.b16 %v1173
        %v1369 = vunpack.c.h.b16 %v1173
        %v1370 = vunpack.c.l.b16 %v1174
        %v1371 = vunpack.c.h.b16 %v1174
        %v1372 = vunpack.c.l.b16 %v1175
        %v1373 = vunpack.c.h.b16 %v1175
        %v1374 = vunpack.c.l.b16 %v1176
        %v1375 = vunpack.c.h.b16 %v1176
        %v1376 = vunpack.c.l.b16 %v1177
        %v1377 = vunpack.c.h.b16 %v1177
        %v1378 = vunpack.c.l.b16 %v1178
        %v1379 = vunpack.c.h.b16 %v1178
        %v1380 = vunpack.c.l.b16 %v1179
        %v1381 = vunpack.c.h.b16 %v1179
        %v1382 = vunpack.c.l.b16 %v1180
        %v1383 = vunpack.c.h.b16 %v1180
        %v1384 = vunpack.c.l.b16 %v1181
        %v1385 = vunpack.c.h.b16 %v1181
        %v1386 = vpack.c.b16 %v1344, %v1338
        %v1387 = vpack.c.b16 %v1345, %v1339
        %v1388 = vpack.c.b16 %v1346, %v1340
        %v1389 = vpack.c.b16 %v1347, %v1341
        %v1390 = vpack.c.b16 %v1348, %v1342
        %v1391 = vpack.c.b16 %v1349, %v1343
        %v1392 = vpack.c.b16 %v1356, %v1350
        %v1393 = vpack.c.b16 %v1357, %v1351
        %v1394 = vpack.c.b16 %v1358, %v1352
        %v1395 = vpack.c.b16 %v1359, %v1353
        %v1396 = vpack.c.b16 %v1360, %v1354
        %v1397 = vpack.c.b16 %v1361, %v1355
        %v1398 = vpack.c.b16 %v1368, %v1362
        %v1399 = vpack.c.b16 %v1369, %v1363
        %v1400 = vpack.c.b16 %v1370, %v1364
        %v1401 = vpack.c.b16 %v1371, %v1365
        %v1402 = vpack.c.b16 %v1372, %v1366
        %v1403 = vpack.c.b16 %v1373, %v1367
        %v1404 = vpack.c.b16 %v1380, %v1374
        %v1405 = vpack.c.b16 %v1381, %v1375
        %v1406 = vpack.c.b16 %v1382, %v1376
        %v1407 = vpack.c.b16 %v1383, %v1377
        %v1408 = vpack.c.b16 %v1384, %v1378
        %v1409 = vpack.c.b16 %v1385, %v1379
        %v1514 = vunpack.c.l.b16 %v1182
        %v1515 = vunpack.c.l.b16 %v1183
        %v1516 = vunpack.c.l.b16 %v1184
        %v1517 = vunpack.c.l.b16 %v1185
        %v1518 = vunpack.c.l.b16 %v1186
        %v1519 = vunpack.c.l.b16 %v1187
        %v1520 = vunpack.c.l.b16 %v1188
        %v1521 = vunpack.c.l.b16 %v1189
        %v1522 = vunpack.c.l.b16 %v1190
        %v1523 = vunpack.c.l.b16 %v1191
        %v1524 = vunpack.c.l.b16 %v1192
        %v1525 = vunpack.c.l.b16 %v1193
        %v1526 = vunpack.c.l.b16 %v1194
        %v1527 = vunpack.c.l.b16 %v1195
        %v1528 = vunpack.c.l.b16 %v1196
        %v1529 = vunpack.c.l.b16 %v1197
        %v1530 = vunpack.c.l.b16 %v1198
        %v1531 = vunpack.c.l.b16 %v1199
        %v1532 = vunpack.c.l.b16 %v1200
        %v1533 = vunpack.c.l.b16 %v1201
        %v1534 = vunpack.c.l.b16 %v1202
        %v1535 = vunpack.c.l.b16 %v1203
        %v1536 = vunpack.c.l.b16 %v1204
        %v1537 = vunpack.c.l.b16 %v1205
        %v1538 = vunpack.c.l.b16 %v1206
        %v1539 = vunpack.c.l.b16 %v1207
        %v1540 = vunpack.c.l.b16 %v1208
        %v1541 = vunpack.c.l.b16 %v1209
        %v1542 = vunpack.c.l.b16 %v1210
        %v1543 = vunpack.c.l.b16 %v1211
        %v1544 = vunpack.c.l.b16 %v1212
        %v1545 = vunpack.c.l.b16 %v1213
        %v1546 = vunpack.c.l.b16 %v1214
        %v1547 = vunpack.c.l.b16 %v1215
        %v1548 = vunpack.c.l.b16 %v1216
        %v1549 = vunpack.c.l.b16 %v1217
        %v1550 = vunpack.c.l.b16 %v1218
        %v1551 = vunpack.c.l.b16 %v1219
        %v1552 = vunpack.c.l.b16 %v1220
        %v1553 = vunpack.c.l.b16 %v1221
        %v1554 = vunpack.c.l.b16 %v1222
        %v1555 = vunpack.c.l.b16 %v1223
        %v1556 = vunpack.c.l.b16 %v1224
        %v1557 = vunpack.c.l.b16 %v1225
        %v1558 = vunpack.c.l.b16 %v1226
        %v1559 = vunpack.c.l.b16 %v1227
        %v1560 = vunpack.c.l.b16 %v1228
        %v1561 = vunpack.c.l.b16 %v1229
        %v1562 = vunpack.c.l.b16 %v1230
        %v1563 = vunpack.c.l.b16 %v1231
        %v1564 = vunpack.c.l.b16 %v1232
        %v1565 = vunpack.c.l.b16 %v1233
        %v1566 = vunpack.c.l.b16 %v1234
        %v1567 = vunpack.c.l.b16 %v1235
        %v1568 = vunpack.c.l.b16 %v1236
        %v1569 = vunpack.c.l.b16 %v1237
        %v1570 = vunpack.c.l.b16 %v1238
        %v1571 = vunpack.c.l.b16 %v1239
        %v1572 = vunpack.c.l.b16 %v1240
        %v1573 = vunpack.c.l.b16 %v1241
        %v1574 = vunpack.c.l.b16 %v1242
        %v1575 = vunpack.c.l.b16 %v1243
        %v1576 = vunpack.c.l.b16 %v1244
        %v1577 = vunpack.c.l.b16 %v1245
        %v1578 = vunpack.c.l.b16 %v1246
        %v1579 = vunpack.c.l.b16 %v1247
        %v1580 = vunpack.c.l.b16 %v1248
        %v1581 = vunpack.c.l.b16 %v1249
        %v1582 = vunpack.c.l.b16 %v1250
        %v1583 = vunpack.c.l.b16 %v1251
        %v1584 = vunpack.c.l.b16 %v1252
        %v1585 = vunpack.c.l.b16 %v1253
        %v1586 = vunpack.c.l.b16 %v1254
        %v1587 = vunpack.c.l.b16 %v1255
        %v1588 = vunpack.c.l.b16 %v1256
        %v1589 = vunpack.c.l.b16 %v1257
        %v1590 = vunpack.c.l.b16 %v1258
        %v1591 = vunpack.c.l.b16 %v1259
        %v1592 = vunpack.c.l.b16 %v1260
        %v1593 = vunpack.c.l.b16 %v1261
        %v1594 = vunpack.c.l.b16 %v1262
        %v1595 = vunpack.c.l.b16 %v1263
        %v1596 = vunpack.c.l.b16 %v1264
        %v1597 = vunpack.c.l.b16 %v1265
        %v1598 = vpack.c.b16 %v1515, %v1514
        %v1599 = vpack.c.b16 %v1517, %v1516
        %v1600 = vpack.c.b16 %v1519, %v1518
        %v1601 = vpack.c.b16 %v1521, %v1520
        %v1602 = vpack.c.b16 %v1523, %v1522
        %v1603 = vpack.c.b16 %v1525, %v1524
        %v1604 = vpack.c.b16 %v1527, %v1526
        %v1605 = vpack.c.b16 %v1529, %v1528
        %v1606 = vpack.c.b16 %v1531, %v1530
        %v1607 = vpack.c.b16 %v1533, %v1532
        %v1608 = vpack.c.b16 %v1535, %v1534
        %v1609 = vpack.c.b16 %v1537, %v1536
        %v1610 = vpack.c.b16 %v1539, %v1538
        %v1611 = vpack.c.b16 %v1541, %v1540
        %v1612 = vpack.c.b16 %v1543, %v1542
        %v1613 = vpack.c.b16 %v1545, %v1544
        %v1614 = vpack.c.b16 %v1547, %v1546
        %v1615 = vpack.c.b16 %v1549, %v1548
        %v1616 = vpack.c.b16 %v1551, %v1550
        %v1617 = vpack.c.b16 %v1553, %v1552
        %v1618 = vpack.c.b16 %v1555, %v1554
        %v1619 = vpack.c.b16 %v1557, %v1556
        %v1620 = vpack.c.b16 %v1559, %v1558
        %v1621 = vpack.c.b16 %v1561, %v1560
        %v1622 = vpack.c.b16 %v1563, %v1562
        %v1623 = vpack.c.b16 %v1565, %v1564
        %v1624 = vpack.c.b16 %v1567, %v1566
        %v1625 = vpack.c.b16 %v1569, %v1568
        %v1626 = vpack.c.b16 %v1571, %v1570
        %v1627 = vpack.c.b16 %v1573, %v1572
        %v1628 = vpack.c.b16 %v1575, %v1574
        %v1629 = vpack.c.b16 %v1577, %v1576
        %v1630 = vpack.c.b16 %v1579, %v1578
        %v1631 = vpack.c.b16 %v1581, %v1580
        %v1632 = vpack.c.b16 %v1583, %v1582
        %v1633 = vpack.c.b16 %v1585, %v1584
        %v1634 = vpack.c.b16 %v1587, %v1586
        %v1635 = vpack.c.b16 %v1589, %v1588
        %v1636 = vpack.c.b16 %v1591, %v1590
        %v1637 = vpack.c.b16 %v1593, %v1592
        %v1638 = vpack.c.b16 %v1595, %v1594
        %v1639 = vpack.c.b16 %v1597, %v1596
        %vm1681 = vcmask 211968
        %v1683 = vsel %vm1681, %v1391, 0
        %v1686 = vsel %vm1681, %v1397, 0
        %v1689 = vsel %vm1681, %v1403, 0
        %v1692 = vsel %vm1681, %v1409, 0
        %vm1694 = vcmask 1044480
        %v1696 = vsel %vm1694, %v1639, 0
        %1698 = vmatprep.subr.bf16.mxu0 0
        %1699 = vmatpush1.bf16.msra.mxu0 %v1598
        %1700 = vmatprep.subr.bf16.mxu0 0
        %1701 = vmatpush1.bf16.msra.mxu0 %v1599
        %1702 = vmatprep.subr.bf16.mxu0 0
        %1703 = vmatpush1.bf16.msra.mxu0 %v1600
        %1704 = vmatprep.subr.bf16.mxu0 0
        %1705 = vmatpush1.bf16.msra.mxu0 %v1601
        %1706 = vmatprep.subr.bf16.mxu0 0
        %1707 = vmatpush1.bf16.msra.mxu0 %v1602
        %1708 = vmatprep.subr.bf16.mxu0 0
        %1709 = vmatpush1.bf16.msra.mxu0 %v1603
        %1710 = vmatprep.subr.bf16.mxu0 0
        %1711 = vmatpush1.bf16.msra.mxu0 %v1604
        %1712 = vmatprep.subr.bf16.mxu0 0
        %1713 = vmatpush1.bf16.msra.mxu0 %v1605
        %1714 = vmatprep.subr.bf16.mxu0 0
        %1715 = vmatpush1.bf16.msra.mxu0 %v1606
        %1716 = vmatprep.subr.bf16.mxu0 0
        %1717 = vmatpush1.bf16.msra.mxu0 %v1607
        %1718 = vmatprep.subr.bf16.mxu0 0
        %1719 = vmatpush1.bf16.msra.mxu0 %v1608
        %1720 = vmatprep.subr.bf16.mxu0 0
        %1721 = vmatpush1.bf16.msra.mxu0 %v1609
        %1722 = vmatprep.subr.bf16.mxu0 0
        %1723 = vmatpush1.bf16.msra.mxu0 %v1610
        %1724 = vmatprep.subr.bf16.mxu0 0
        %1725 = vmatpush1.bf16.msra.mxu0 %v1611
        %1726 = vmatprep.subr.bf16.mxu0 0
        %1727 = vmatpush1.bf16.msra.mxu0 %v1612
        %1728 = vmatprep.subr.bf16.mxu0 0
        %1729 = vmatpush1.bf16.msra.mxu0 %v1613
        %1730 = vmatprep.mubr.bf16.mxu0 %v1387
        %1731 = vmatmul.mubr.bf16.gmra.mrb[0].mxu0 %v1386
        %v1732 = vpop.f32.mrb[0].mxu0
        %v1733 = vadd.f32 %v1277, %v1732
        %v1734 = vpop.f32.mrb[0].mxu0
        %v1735 = vpop.f32.mrb[0].mxu0
        %v1736 = vadd.f32 %v1282, %v1735
        %v1737 = vpop.f32.mrb[0].mxu0
        %1738 = vmatprep.mubr.bf16.mxu0 %v1393
        %1739 = vmatmul.mubr.bf16.gmra.mrb[0].mxu0 %v1392
        %v1740 = vpop.f32.mrb[0].mxu0
        %v1741 = vadd.f32 %v1287, %v1740
        %v1742 = vpop.f32.mrb[0].mxu0
        %v1743 = vpop.f32.mrb[0].mxu0
        %v1744 = vadd.f32 %v1292, %v1743
        %v1745 = vpop.f32.mrb[0].mxu0
        %1746 = vmatprep.mubr.bf16.mxu0 %v1399
        %1747 = vmatmul.mubr.bf16.gmra.mrb[0].mxu0 %v1398
        %v1748 = vpop.f32.mrb[0].mxu0
        %v1749 = vadd.f32 %v1297, %v1748
        %v1750 = vpop.f32.mrb[0].mxu0
        %v1751 = vpop.f32.mrb[0].mxu0
        %v1752 = vadd.f32 %v1302, %v1751
        %v1753 = vpop.f32.mrb[0].mxu0
        %1754 = vmatprep.mubr.bf16.mxu0 %v1405
        %1755 = vmatmul.mubr.bf16.gmra.mrb[0].mxu0 %v1404
        %v1756 = vpop.f32.mrb[0].mxu0
        %v1757 = vadd.f32 %v1307, %v1756
        %v1758 = vpop.f32.mrb[0].mxu0
        %v1759 = vpop.f32.mrb[0].mxu0
        %v1760 = vadd.f32 %v1312, %v1759
        %v1761 = vpop.f32.mrb[0].mxu0
        %1762 = vdwg.mxu0
        %1763 = vmatprep.subr.bf16.mxu0 0
        %1764 = vmatpush1.bf16.msra.mxu0 %v1614
        %1765 = vmatprep.subr.bf16.mxu0 0
        %1766 = vmatpush1.bf16.msra.mxu0 %v1615
        %1767 = vmatprep.subr.bf16.mxu0 0
        %1768 = vmatpush1.bf16.msra.mxu0 %v1616
        %1769 = vmatprep.subr.bf16.mxu0 0
        %1770 = vmatpush1.bf16.msra.mxu0 %v1617
        %1771 = vmatprep.subr.bf16.mxu0 0
        %1772 = vmatpush1.bf16.msra.mxu0 %v1618
        %1773 = vmatprep.subr.bf16.mxu0 0
        %1774 = vmatpush1.bf16.msra.mxu0 %v1619
        %1775 = vmatprep.subr.bf16.mxu0 0
        %1776 = vmatpush1.bf16.msra.mxu0 %v1620
        %1777 = vmatprep.subr.bf16.mxu0 0
        %1778 = vmatpush1.bf16.msra.mxu0 %v1621
        %1779 = vmatprep.subr.bf16.mxu0 0
        %1780 = vmatpush1.bf16.msra.mxu0 %v1622
        %1781 = vmatprep.subr.bf16.mxu0 0
        %1782 = vmatpush1.bf16.msra.mxu0 %v1623
        %1783 = vmatprep.subr.bf16.mxu0 0
        %1784 = vmatpush1.bf16.msra.mxu0 %v1624
        %1785 = vmatprep.subr.bf16.mxu0 0
        %1786 = vmatpush1.bf16.msra.mxu0 %v1625
        %1787 = vmatprep.subr.bf16.mxu0 0
        %1788 = vmatpush1.bf16.msra.mxu0 %v1626
        %1789 = vmatprep.subr.bf16.mxu0 0
        %1790 = vmatpush1.bf16.msra.mxu0 %v1627
        %1791 = vmatprep.subr.bf16.mxu0 0
        %1792 = vmatpush1.bf16.msra.mxu0 %v1628
        %1793 = vmatprep.subr.bf16.mxu0 0
        %1794 = vmatpush1.bf16.msra.mxu0 %v1629
        %1795 = vmatprep.mubr.bf16.mxu0 %v1389
        %1796 = vmatmul.mubr.bf16.gmra.mrb[0].mxu0 %v1388
        %v1797 = vpop.f32.mrb[0].mxu0
        %v1798 = vadd.f32 %v1733, %v1797
        %v1799 = vpop.f32.mrb[0].mxu0
        %v1800 = vpop.f32.mrb[0].mxu0
        %v1801 = vadd.f32 %v1736, %v1800
        %v1802 = vpop.f32.mrb[0].mxu0
        %1803 = vmatprep.mubr.bf16.mxu0 %v1395
        %1804 = vmatmul.mubr.bf16.gmra.mrb[0].mxu0 %v1394
        %v1805 = vpop.f32.mrb[0].mxu0
        %v1806 = vadd.f32 %v1741, %v1805
        %v1807 = vpop.f32.mrb[0].mxu0
        %v1808 = vpop.f32.mrb[0].mxu0
        %v1809 = vadd.f32 %v1744, %v1808
        %v1810 = vpop.f32.mrb[0].mxu0
        %1811 = vmatprep.mubr.bf16.mxu0 %v1401
        %1812 = vmatmul.mubr.bf16.gmra.mrb[0].mxu0 %v1400
        %v1813 = vpop.f32.mrb[0].mxu0
        %v1814 = vadd.f32 %v1749, %v1813
        %v1815 = vpop.f32.mrb[0].mxu0
        %v1816 = vpop.f32.mrb[0].mxu0
        %v1817 = vadd.f32 %v1752, %v1816
        %v1818 = vpop.f32.mrb[0].mxu0
        %1819 = vmatprep.mubr.bf16.mxu0 %v1407
        %1820 = vmatmul.mubr.bf16.gmra.mrb[0].mxu0 %v1406
        %v1821 = vpop.f32.mrb[0].mxu0
        %v1822 = vadd.f32 %v1757, %v1821
        %v1823 = vpop.f32.mrb[0].mxu0
        %v1824 = vpop.f32.mrb[0].mxu0
        %v1825 = vadd.f32 %v1760, %v1824
        %v1826 = vpop.f32.mrb[0].mxu0
        %1827 = vdwg.mxu0
        %1828 = vmatprep.subr.bf16.mxu0 0
        %1829 = vmatpush1.bf16.msra.mxu0 %v1630
        %1830 = vmatprep.subr.bf16.mxu0 0
        %1831 = vmatpush1.bf16.msra.mxu0 %v1631
        %1832 = vmatprep.subr.bf16.mxu0 0
        %1833 = vmatpush1.bf16.msra.mxu0 %v1632
        %1834 = vmatprep.subr.bf16.mxu0 0
        %1835 = vmatpush1.bf16.msra.mxu0 %v1633
        %1836 = vmatprep.subr.bf16.mxu0 0
        %1837 = vmatpush1.bf16.msra.mxu0 %v1634
        %1838 = vmatprep.subr.bf16.mxu0 0
        %1839 = vmatpush1.bf16.msra.mxu0 %v1635
        %1840 = vmatprep.subr.bf16.mxu0 0
        %1841 = vmatpush1.bf16.msra.mxu0 %v1636
        %1842 = vmatprep.subr.bf16.mxu0 0
        %1843 = vmatpush1.bf16.msra.mxu0 %v1637
        %1844 = vmatprep.subr.bf16.mxu0 0
        %1845 = vmatpush1.bf16.msra.mxu0 %v1638
        %1846 = vmatprep.subr.bf16.mxu0 0
        %1847 = vmatpush1.bf16.msra.mxu0 %v1696
        %1848 = vmatprep.subr.bf16.mxu0 0
        %1849 = vmatpush1.bf16.msra.mxu0 0
        %1850 = vmatprep.subr.bf16.mxu0 0
        %1851 = vmatpush1.bf16.msra.mxu0 0
        %1852 = vmatprep.subr.bf16.mxu0 0
        %1853 = vmatpush1.bf16.msra.mxu0 0
        %1854 = vmatprep.subr.bf16.mxu0 0
        %1855 = vmatpush1.bf16.msra.mxu0 0
        %1856 = vmatprep.subr.bf16.mxu0 0
        %1857 = vmatpush1.bf16.msra.mxu0 0
        %1858 = vmatprep.subr.bf16.mxu0 0
        %1859 = vmatpush1.bf16.msra.mxu0 0
        %1860 = vmatprep.mubr.bf16.mxu0 %v1683
        %1861 = vmatmul.mubr.bf16.gmra.mrb[0].mxu0 %v1390
        %v1862 = vpop.f32.mrb[0].mxu0
        %v1863 = vadd.f32 %v1798, %v1862
        %v1864 = vpop.f32.mrb[0].mxu0
        %v1865 = vpop.f32.mrb[0].mxu0
        %v1866 = vadd.f32 %v1801, %v1865
        %v1867 = vpop.f32.mrb[0].mxu0
        %1868 = vmatprep.mubr.bf16.mxu0 %v1686
        %1869 = vmatmul.mubr.bf16.gmra.mrb[0].mxu0 %v1396
        %v1870 = vpop.f32.mrb[0].mxu0
        %v1871 = vadd.f32 %v1806, %v1870
        %v1872 = vpop.f32.mrb[0].mxu0
        %v1873 = vpop.f32.mrb[0].mxu0
        %v1874 = vadd.f32 %v1809, %v1873
        %v1875 = vpop.f32.mrb[0].mxu0
        %1876 = vmatprep.mubr.bf16.mxu0 %v1689
        %1877 = vmatmul.mubr.bf16.gmra.mrb[0].mxu0 %v1402
        %v1878 = vpop.f32.mrb[0].mxu0
        %v1879 = vadd.f32 %v1814, %v1878
        %v1880 = vpop.f32.mrb[0].mxu0
        %v1881 = vpop.f32.mrb[0].mxu0
        %v1882 = vadd.f32 %v1817, %v1881
        %v1883 = vpop.f32.mrb[0].mxu0
        %1884 = vmatprep.mubr.bf16.mxu0 %v1692
        %1885 = vmatmul.mubr.bf16.gmra.mrb[0].mxu0 %v1408
        %v1886 = vpop.f32.mrb[0].mxu0
        %v1887 = vadd.f32 %v1822, %v1886
        %v1888 = vpop.f32.mrb[0].mxu0
        %v1889 = vpop.f32.mrb[0].mxu0
        %v1890 = vadd.f32 %v1825, %v1889
        %v1891 = vpop.f32.mrb[0].mxu0
        %1892 = vdwg.mxu0
        %v1893 = vtanh.pop %v1863
        %v1894 = vtanh.pop %v1866
        %v1895 = vtanh.pop %v1871
        %v1896 = vtanh.pop %v1874
        %v1897 = vtanh.pop %v1879
        %v1898 = vtanh.pop %v1882
        %v1899 = vtanh.pop %v1887
        %v1900 = vtanh.pop %v1890
        %v1901 = vpack.c.bf16 %v1894, %v1893
        %v1902 = vpack.c.bf16 %v1896, %v1895
        %v1903 = vpack.c.bf16 %v1898, %v1897
        %v1904 = vpack.c.bf16 %v1900, %v1899
        %v1905 = vld [vmem:[%s3] sm:$0xf]
        %v1906 = vld [vmem:[%s3 + $0x4] sm:$0x7]
        %v1909 = vunpack.c.l.b16 %v1905
        %v1910 = vunpack.c.l.b16 %v1906
        %v1911 = vpack.c.b16 %v1910, %v1909
        %vm1912 = vcmask 105472
        %v1914 = vsel %vm1912, %v1901, 0
        %v1917 = vsel %vm1912, %v1902, 0
        %v1920 = vsel %vm1912, %v1903, 0
        %v1923 = vsel %vm1912, %v1904, 0
        %vm1925 = vcmask 1045504
        %vm1926 = vcmask 1046528
        %v1927 = vsel %vm1925, 4294967295, 65535
        %v1928 = vsel %vm1926, %v1927, 0
        %v1930 = vand.u32 %v1911, %v1928
        %1932 = vmatprep.subr.bf16.mxu0 0
        %1933 = vmatpush1.bf16.msra.mxu0 %v1930
        %1934 = vmatprep.subr.bf16.mxu0 0
        %1935 = vmatpush1.bf16.msra.mxu0 0
        %1936 = vmatprep.subr.bf16.mxu0 0
        %1937 = vmatpush1.bf16.msra.mxu0 0
        %1938 = vmatprep.subr.bf16.mxu0 0
        %1939 = vmatpush1.bf16.msra.mxu0 0
        %1940 = vmatprep.subr.bf16.mxu0 0
        %1941 = vmatpush1.bf16.msra.mxu0 0
        %1942 = vmatprep.subr.bf16.mxu0 0
        %1943 = vmatpush1.bf16.msra.mxu0 0
        %1944 = vmatprep.subr.bf16.mxu0 0
        %1945 = vmatpush1.bf16.msra.mxu0 0
        %1946 = vmatprep.subr.bf16.mxu0 0
        %1947 = vmatpush1.bf16.msra.mxu0 0
        %1948 = vmatprep.subr.bf16.mxu0 0
        %1949 = vmatpush1.bf16.msra.mxu0 0
        %1950 = vmatprep.subr.bf16.mxu0 0
        %1951 = vmatpush1.bf16.msra.mxu0 0
        %1952 = vmatprep.subr.bf16.mxu0 0
        %1953 = vmatpush1.bf16.msra.mxu0 0
        %1954 = vmatprep.subr.bf16.mxu0 0
        %1955 = vmatpush1.bf16.msra.mxu0 0
        %1956 = vmatprep.subr.bf16.mxu0 0
        %1957 = vmatpush1.bf16.msra.mxu0 0
        %1958 = vmatprep.subr.bf16.mxu0 0
        %1959 = vmatpush1.bf16.msra.mxu0 0
        %1960 = vmatprep.subr.bf16.mxu0 0
        %1961 = vmatpush1.bf16.msra.mxu0 0
        %1962 = vmatprep.subr.bf16.mxu0 0
        %1963 = vmatpush1.bf16.msra.mxu0 0
        %1964 = vmatprep.mubr.bf16.mxu0 0
        %1965 = vmatmul.mubr.bf16.gmra.mrb[0].mxu0 %v1914
        %v1966 = vpop.f32.mrb[0].mxu0
        %v1967 = vadd.f32 0.0, %v1966
        %v1968 = vpop.f32.mrb[0].mxu0
        %v1969 = vpop.f32.mrb[0].mxu0
        %v1970 = vadd.f32 0.0, %v1969
        %v1971 = vpop.f32.mrb[0].mxu0
        %1972 = vmatprep.mubr.bf16.mxu0 0
        %1973 = vmatmul.mubr.bf16.gmra.mrb[0].mxu0 %v1917
        %v1974 = vpop.f32.mrb[0].mxu0
        %v1975 = vadd.f32 0.0, %v1974
        %v1976 = vpop.f32.mrb[0].mxu0
        %v1977 = vpop.f32.mrb[0].mxu0
        %v1978 = vadd.f32 0.0, %v1977
        %v1979 = vpop.f32.mrb[0].mxu0
        %1980 = vmatprep.mubr.bf16.mxu0 0
        %1981 = vmatmul.mubr.bf16.gmra.mrb[0].mxu0 %v1920
        %v1982 = vpop.f32.mrb[0].mxu0
        %v1983 = vadd.f32 0.0, %v1982
        %v1984 = vpop.f32.mrb[0].mxu0
        %v1985 = vpop.f32.mrb[0].mxu0
        %v1986 = vadd.f32 0.0, %v1985
        %v1987 = vpop.f32.mrb[0].mxu0
        %1988 = vmatprep.mubr.bf16.mxu0 0
        %1989 = vmatmul.mubr.bf16.gmra.mrb[0].mxu0 %v1923
        %v1990 = vpop.f32.mrb[0].mxu0
        %v1991 = vadd.f32 0.0, %v1990
        %v1992 = vpop.f32.mrb[0].mxu0
        %v1993 = vpop.f32.mrb[0].mxu0
        %v1994 = vadd.f32 0.0, %v1993
        %v1995 = vpop.f32.mrb[0].mxu0
        %1996 = vdwg.mxu0
        %v1997 = vpack.c.bf16 %v1970, %v1967
        %v1998 = vpack.c.bf16 %v1978, %v1975
        %v1999 = vpack.c.bf16 %v1986, %v1983
        %v2000 = vpack.c.bf16 %v1994, %v1991
        %vm2001 = vcmask 662528
        %2002 = vst.msk [vmem:[#allocation2] sm:$0xff] %vm2001, %v1997
        %2003 = vst.msk [vmem:[#allocation2 + $0x8] sm:$0xff] %vm2001, %v1998
        %2004 = vst.msk [vmem:[#allocation2 + $0x10] sm:$0xff] %vm2001, %v1999
        %2005 = vst.msk [vmem:[#allocation2 + $0x18] sm:$0xff] %vm2001, %v2000
        %v2006 = vld [vmem:[#allocation2] sm:$0xff]
        %v2007 = vld [vmem:[#allocation2 + $0x8] sm:$0xff]
        %v2008 = vld [vmem:[#allocation2 + $0x10] sm:$0xff]
        %v2009 = vld [vmem:[#allocation2 + $0x18] sm:$0xff]
        %vm2010 = vcmask 416768
        %2011 = vst.msk [vmem:[#allocation6] sm:$0xff] %vm2010, %v2006
        %2012 = vst.msk [vmem:[#allocation6 + $0x8] sm:$0xff] %vm2010, %v2007
        %2013 = vst.msk [vmem:[#allocation6 + $0x10] sm:$0xff] %vm2010, %v2008
        %2014 = vst.msk [vmem:[#allocation6 + $0x18] sm:$0xff] %vm2010, %v2009
        %v2015 = vld [vmem:[#allocation2] sm:$0xff]
        %v2016 = vld [vmem:[#allocation2 + $0x8] sm:$0xff]
        %v2017 = vld [vmem:[#allocation2 + $0x10] sm:$0xff]
        %v2018 = vld [vmem:[#allocation2 + $0x18] sm:$0xff]
        %2023 = vrot.lane.b32.xlu0 %v2015, 127
        %v2024 = vpop.permute.xlu0 %2023
        %2025 = vrot.lane.b32.xlu0 %v2016, 127
        %v2026 = vpop.permute.xlu0 %2025
        %2027 = vrot.lane.b32.xlu0 %v2017, 127
        %v2028 = vpop.permute.xlu0 %2027
        %2029 = vrot.lane.b32.xlu0 %v2018, 127
        %v2030 = vpop.permute.xlu0 %2029
        %2035 = vst.msk [vmem:[#allocation6 + $0x20] sm:$0xff] %vm2010, %v2024
        %2036 = vst.msk [vmem:[#allocation6 + $0x28] sm:$0xff] %vm2010, %v2026
        %2037 = vst.msk [vmem:[#allocation6 + $0x30] sm:$0xff] %vm2010, %v2028
        %2038 = vst.msk [vmem:[#allocation6 + $0x38] sm:$0xff] %vm2010, %v2030
        %v2039 = vld [vmem:[#allocation2] sm:$0xff]
        %v2040 = vld [vmem:[#allocation2 + $0x8] sm:$0xff]
        %v2041 = vld [vmem:[#allocation2 + $0x10] sm:$0xff]
        %v2042 = vld [vmem:[#allocation2 + $0x18] sm:$0xff]
        %2047 = vrot.lane.b32.xlu0 %v2039, 126
        %v2048 = vpop.permute.xlu0 %2047
        %2049 = vrot.lane.b32.xlu0 %v2040, 126
        %v2050 = vpop.permute.xlu0 %2049
        %2051 = vrot.lane.b32.xlu0 %v2041, 126
        %v2052 = vpop.permute.xlu0 %2051
        %2053 = vrot.lane.b32.xlu0 %v2042, 126
        %v2054 = vpop.permute.xlu0 %2053
        %2059 = vst.msk [vmem:[#allocation6 + $0x40] sm:$0xff] %vm2010, %v2048
        %2060 = vst.msk [vmem:[#allocation6 + $0x48] sm:$0xff] %vm2010, %v2050
        %2061 = vst.msk [vmem:[#allocation6 + $0x50] sm:$0xff] %vm2010, %v2052
        %2062 = vst.msk [vmem:[#allocation6 + $0x58] sm:$0xff] %vm2010, %v2054
        %v2063 = vld [vmem:[#allocation2] sm:$0xff]
        %v2064 = vld [vmem:[#allocation2 + $0x8] sm:$0xff]
        %v2065 = vld [vmem:[#allocation2 + $0x10] sm:$0xff]
        %v2066 = vld [vmem:[#allocation2 + $0x18] sm:$0xff]
        %2071 = vrot.lane.b32.xlu0 %v2063, 125
        %v2072 = vpop.permute.xlu0 %2071
        %2073 = vrot.lane.b32.xlu0 %v2064, 125
        %v2074 = vpop.permute.xlu0 %2073
        %2075 = vrot.lane.b32.xlu0 %v2065, 125
        %v2076 = vpop.permute.xlu0 %2075
        %2077 = vrot.lane.b32.xlu0 %v2066, 125
        %v2078 = vpop.permute.xlu0 %2077
        %2083 = vst.msk [vmem:[#allocation6 + $0x60] sm:$0xff] %vm2010, %v2072
        %2084 = vst.msk [vmem:[#allocation6 + $0x68] sm:$0xff] %vm2010, %v2074
        %2085 = vst.msk [vmem:[#allocation6 + $0x70] sm:$0xff] %vm2010, %v2076
        %2086 = vst.msk [vmem:[#allocation6 + $0x78] sm:$0xff] %vm2010, %v2078
        %v2087 = vld [vmem:[#allocation2] sm:$0xff]
        %v2088 = vld [vmem:[#allocation2 + $0x8] sm:$0xff]
        %v2089 = vld [vmem:[#allocation2 + $0x10] sm:$0xff]
        %v2090 = vld [vmem:[#allocation2 + $0x18] sm:$0xff]
        %2095 = vrot.lane.b32.xlu0 %v2087, 119
        %v2096 = vpop.permute.xlu0 %2095
        %2097 = vrot.lane.b32.xlu0 %v2088, 119
        %v2098 = vpop.permute.xlu0 %2097
        %2099 = vrot.lane.b32.xlu0 %v2089, 119
        %v2100 = vpop.permute.xlu0 %2099
        %2101 = vrot.lane.b32.xlu0 %v2090, 119
        %v2102 = vpop.permute.xlu0 %2101
        %2107 = vst.msk [vmem:[#allocation6 + $0x80] sm:$0xff] %vm2010, %v2096
        %2108 = vst.msk [vmem:[#allocation6 + $0x88] sm:$0xff] %vm2010, %v2098
        %2109 = vst.msk [vmem:[#allocation6 + $0x90] sm:$0xff] %vm2010, %v2100
        %2110 = vst.msk [vmem:[#allocation6 + $0x98] sm:$0xff] %vm2010, %v2102
        %v2111 = vld [vmem:[#allocation2] sm:$0xff]
        %v2112 = vld [vmem:[#allocation2 + $0x8] sm:$0xff]
        %v2113 = vld [vmem:[#allocation2 + $0x10] sm:$0xff]
        %v2114 = vld [vmem:[#allocation2 + $0x18] sm:$0xff]
        %2119 = vrot.lane.b32.xlu0 %v2111, 118
        %v2120 = vpop.permute.xlu0 %2119
        %2121 = vrot.lane.b32.xlu0 %v2112, 118
        %v2122 = vpop.permute.xlu0 %2121
        %2123 = vrot.lane.b32.xlu0 %v2113, 118
        %v2124 = vpop.permute.xlu0 %2123
        %2125 = vrot.lane.b32.xlu0 %v2114, 118
        %v2126 = vpop.permute.xlu0 %2125
        %2131 = vst.msk [vmem:[#allocation6 + $0xa0] sm:$0xff] %vm2010, %v2120
        %2132 = vst.msk [vmem:[#allocation6 + $0xa8] sm:$0xff] %vm2010, %v2122
        %2133 = vst.msk [vmem:[#allocation6 + $0xb0] sm:$0xff] %vm2010, %v2124
        %2134 = vst.msk [vmem:[#allocation6 + $0xb8] sm:$0xff] %vm2010, %v2126
        %v2135 = vld [vmem:[#allocation2] sm:$0xff]
        %v2136 = vld [vmem:[#allocation2 + $0x8] sm:$0xff]
        %v2137 = vld [vmem:[#allocation2 + $0x10] sm:$0xff]
        %v2138 = vld [vmem:[#allocation2 + $0x18] sm:$0xff]
        %2143 = vrot.lane.b32.xlu0 %v2135, 117
        %v2144 = vpop.permute.xlu0 %2143
        %2145 = vrot.lane.b32.xlu0 %v2136, 117
        %v2146 = vpop.permute.xlu0 %2145
        %2147 = vrot.lane.b32.xlu0 %v2137, 117
        %v2148 = vpop.permute.xlu0 %2147
        %2149 = vrot.lane.b32.xlu0 %v2138, 117
        %v2150 = vpop.permute.xlu0 %2149
        %2155 = vst.msk [vmem:[#allocation6 + $0xc0] sm:$0xff] %vm2010, %v2144
        %2156 = vst.msk [vmem:[#allocation6 + $0xc8] sm:$0xff] %vm2010, %v2146
        %2157 = vst.msk [vmem:[#allocation6 + $0xd0] sm:$0xff] %vm2010, %v2148
        %2158 = vst.msk [vmem:[#allocation6 + $0xd8] sm:$0xff] %vm2010, %v2150
        %v2159 = vld [vmem:[#allocation2] sm:$0xff]
        %v2160 = vld [vmem:[#allocation2 + $0x8] sm:$0xff]
        %v2161 = vld [vmem:[#allocation2 + $0x10] sm:$0xff]
        %v2162 = vld [vmem:[#allocation2 + $0x18] sm:$0xff]
        %2167 = vrot.lane.b32.xlu0 %v2159, 116
        %v2168 = vpop.permute.xlu0 %2167
        %2169 = vrot.lane.b32.xlu0 %v2160, 116
        %v2170 = vpop.permute.xlu0 %2169
        %2171 = vrot.lane.b32.xlu0 %v2161, 116
        %v2172 = vpop.permute.xlu0 %2171
        %2173 = vrot.lane.b32.xlu0 %v2162, 116
        %v2174 = vpop.permute.xlu0 %2173
        %2179 = vst.msk [vmem:[#allocation6 + $0xe0] sm:$0xff] %vm2010, %v2168
        %2180 = vst.msk [vmem:[#allocation6 + $0xe8] sm:$0xff] %vm2010, %v2170
        %2181 = vst.msk [vmem:[#allocation6 + $0xf0] sm:$0xff] %vm2010, %v2172
        %2182 = vst.msk [vmem:[#allocation6 + $0xf8] sm:$0xff] %vm2010, %v2174
        %v2183 = vld [vmem:[#allocation2] sm:$0xff]
        %v2184 = vld [vmem:[#allocation2 + $0x8] sm:$0xff]
        %v2185 = vld [vmem:[#allocation2 + $0x10] sm:$0xff]
        %v2186 = vld [vmem:[#allocation2 + $0x18] sm:$0xff]
        %2191 = vrot.lane.b32.xlu0 %v2183, 110
        %v2192 = vpop.permute.xlu0 %2191
        %2193 = vrot.lane.b32.xlu0 %v2184, 110
        %v2194 = vpop.permute.xlu0 %2193
        %2195 = vrot.lane.b32.xlu0 %v2185, 110
        %v2196 = vpop.permute.xlu0 %2195
        %2197 = vrot.lane.b32.xlu0 %v2186, 110
        %v2198 = vpop.permute.xlu0 %2197
        %2203 = vst.msk [vmem:[#allocation6 + $0x100] sm:$0xff] %vm2010, %v2192
        %2204 = vst.msk [vmem:[#allocation6 + $0x108] sm:$0xff] %vm2010, %v2194
        %2205 = vst.msk [vmem:[#allocation6 + $0x110] sm:$0xff] %vm2010, %v2196
        %2206 = vst.msk [vmem:[#allocation6 + $0x118] sm:$0xff] %vm2010, %v2198
        %v2207 = vld [vmem:[#allocation2] sm:$0xff]
        %v2208 = vld [vmem:[#allocation2 + $0x8] sm:$0xff]
        %v2209 = vld [vmem:[#allocation2 + $0x10] sm:$0xff]
        %v2210 = vld [vmem:[#allocation2 + $0x18] sm:$0xff]
        %2215 = vrot.lane.b32.xlu0 %v2207, 109
        %v2216 = vpop.permute.xlu0 %2215
        %2217 = vrot.lane.b32.xlu0 %v2208, 109
        %v2218 = vpop.permute.xlu0 %2217
        %2219 = vrot.lane.b32.xlu0 %v2209, 109
        %v2220 = vpop.permute.xlu0 %2219
        %2221 = vrot.lane.b32.xlu0 %v2210, 109
        %v2222 = vpop.permute.xlu0 %2221
        %2227 = vst.msk [vmem:[#allocation6 + $0x120] sm:$0xff] %vm2010, %v2216
        %2228 = vst.msk [vmem:[#allocation6 + $0x128] sm:$0xff] %vm2010, %v2218
        %2229 = vst.msk [vmem:[#allocation6 + $0x130] sm:$0xff] %vm2010, %v2220
        %2230 = vst.msk [vmem:[#allocation6 + $0x138] sm:$0xff] %vm2010, %v2222
        %v2231 = vld [vmem:[#allocation2] sm:$0xff]
        %v2232 = vld [vmem:[#allocation2 + $0x8] sm:$0xff]
        %v2233 = vld [vmem:[#allocation2 + $0x10] sm:$0xff]
        %v2234 = vld [vmem:[#allocation2 + $0x18] sm:$0xff]
        %2239 = vrot.lane.b32.xlu0 %v2231, 108
        %v2240 = vpop.permute.xlu0 %2239
        %2241 = vrot.lane.b32.xlu0 %v2232, 108
        %v2242 = vpop.permute.xlu0 %2241
        %2243 = vrot.lane.b32.xlu0 %v2233, 108
        %v2244 = vpop.permute.xlu0 %2243
        %2245 = vrot.lane.b32.xlu0 %v2234, 108
        %v2246 = vpop.permute.xlu0 %2245
        %2251 = vst.msk [vmem:[#allocation6 + $0x140] sm:$0xff] %vm2010, %v2240
        %2252 = vst.msk [vmem:[#allocation6 + $0x148] sm:$0xff] %vm2010, %v2242
        %2253 = vst.msk [vmem:[#allocation6 + $0x150] sm:$0xff] %vm2010, %v2244
        %2254 = vst.msk [vmem:[#allocation6 + $0x158] sm:$0xff] %vm2010, %v2246
        %v2255 = vld [vmem:[#allocation2] sm:$0xff]
        %v2256 = vld [vmem:[#allocation2 + $0x8] sm:$0xff]
        %v2257 = vld [vmem:[#allocation2 + $0x10] sm:$0xff]
        %v2258 = vld [vmem:[#allocation2 + $0x18] sm:$0xff]
        %2263 = vrot.lane.b32.xlu0 %v2255, 107
        %v2264 = vpop.permute.xlu0 %2263
        %2265 = vrot.lane.b32.xlu0 %v2256, 107
        %v2266 = vpop.permute.xlu0 %2265
        %2267 = vrot.lane.b32.xlu0 %v2257, 107
        %v2268 = vpop.permute.xlu0 %2267
        %2269 = vrot.lane.b32.xlu0 %v2258, 107
        %v2270 = vpop.permute.xlu0 %2269
        %2275 = vst.msk [vmem:[#allocation6 + $0x160] sm:$0xff] %vm2010, %v2264
        %2276 = vst.msk [vmem:[#allocation6 + $0x168] sm:$0xff] %vm2010, %v2266
        %2277 = vst.msk [vmem:[#allocation6 + $0x170] sm:$0xff] %vm2010, %v2268
        %2278 = vst.msk [vmem:[#allocation6 + $0x178] sm:$0xff] %vm2010, %v2270
        %v2279 = vld [vmem:[#allocation2] sm:$0xff]
        %v2280 = vld [vmem:[#allocation2 + $0x8] sm:$0xff]
        %v2281 = vld [vmem:[#allocation2 + $0x10] sm:$0xff]
        %v2282 = vld [vmem:[#allocation2 + $0x18] sm:$0xff]
        %2287 = vrot.lane.b32.xlu0 %v2279, 101
        %v2288 = vpop.permute.xlu0 %2287
        %2289 = vrot.lane.b32.xlu0 %v2280, 101
        %v2290 = vpop.permute.xlu0 %2289
        %2291 = vrot.lane.b32.xlu0 %v2281, 101
        %v2292 = vpop.permute.xlu0 %2291
        %2293 = vrot.lane.b32.xlu0 %v2282, 101
        %v2294 = vpop.permute.xlu0 %2293
        %2299 = vst.msk [vmem:[#allocation6 + $0x180] sm:$0xff] %vm2010, %v2288
        %2300 = vst.msk [vmem:[#allocation6 + $0x188] sm:$0xff] %vm2010, %v2290
        %2301 = vst.msk [vmem:[#allocation6 + $0x190] sm:$0xff] %vm2010, %v2292
        %2302 = vst.msk [vmem:[#allocation6 + $0x198] sm:$0xff] %vm2010, %v2294
        %v2303 = vld [vmem:[#allocation2] sm:$0xff]
        %v2304 = vld [vmem:[#allocation2 + $0x8] sm:$0xff]
        %v2305 = vld [vmem:[#allocation2 + $0x10] sm:$0xff]
        %v2306 = vld [vmem:[#allocation2 + $0x18] sm:$0xff]
        %2311 = vrot.lane.b32.xlu0 %v2303, 100
        %v2312 = vpop.permute.xlu0 %2311
        %2313 = vrot.lane.b32.xlu0 %v2304, 100
        %v2314 = vpop.permute.xlu0 %2313
        %2315 = vrot.lane.b32.xlu0 %v2305, 100
        %v2316 = vpop.permute.xlu0 %2315
        %2317 = vrot.lane.b32.xlu0 %v2306, 100
        %v2318 = vpop.permute.xlu0 %2317
        %2323 = vst.msk [vmem:[#allocation6 + $0x1a0] sm:$0xff] %vm2010, %v2312
        %2324 = vst.msk [vmem:[#allocation6 + $0x1a8] sm:$0xff] %vm2010, %v2314
        %2325 = vst.msk [vmem:[#allocation6 + $0x1b0] sm:$0xff] %vm2010, %v2316
        %2326 = vst.msk [vmem:[#allocation6 + $0x1b8] sm:$0xff] %vm2010, %v2318
        %v2327 = vld [vmem:[#allocation2] sm:$0xff]
        %v2328 = vld [vmem:[#allocation2 + $0x8] sm:$0xff]
        %v2329 = vld [vmem:[#allocation2 + $0x10] sm:$0xff]
        %v2330 = vld [vmem:[#allocation2 + $0x18] sm:$0xff]
        %2335 = vrot.lane.b32.xlu0 %v2327, 99
        %v2336 = vpop.permute.xlu0 %2335
        %2337 = vrot.lane.b32.xlu0 %v2328, 99
        %v2338 = vpop.permute.xlu0 %2337
        %2339 = vrot.lane.b32.xlu0 %v2329, 99
        %v2340 = vpop.permute.xlu0 %2339
        %2341 = vrot.lane.b32.xlu0 %v2330, 99
        %v2342 = vpop.permute.xlu0 %2341
        %2347 = vst.msk [vmem:[#allocation6 + $0x1c0] sm:$0xff] %vm2010, %v2336
        %2348 = vst.msk [vmem:[#allocation6 + $0x1c8] sm:$0xff] %vm2010, %v2338
        %2349 = vst.msk [vmem:[#allocation6 + $0x1d0] sm:$0xff] %vm2010, %v2340
        %2350 = vst.msk [vmem:[#allocation6 + $0x1d8] sm:$0xff] %vm2010, %v2342
        %v2351 = vld [vmem:[#allocation2] sm:$0xff]
        %v2352 = vld [vmem:[#allocation2 + $0x8] sm:$0xff]
        %v2353 = vld [vmem:[#allocation2 + $0x10] sm:$0xff]
        %v2354 = vld [vmem:[#allocation2 + $0x18] sm:$0xff]
        %2359 = vrot.lane.b32.xlu0 %v2351, 98
        %v2360 = vpop.permute.xlu0 %2359
        %2361 = vrot.lane.b32.xlu0 %v2352, 98
        %v2362 = vpop.permute.xlu0 %2361
        %2363 = vrot.lane.b32.xlu0 %v2353, 98
        %v2364 = vpop.permute.xlu0 %2363
        %2365 = vrot.lane.b32.xlu0 %v2354, 98
        %v2366 = vpop.permute.xlu0 %2365
        %2371 = vst.msk [vmem:[#allocation6 + $0x1e0] sm:$0xff] %vm2010, %v2360
        %2372 = vst.msk [vmem:[#allocation6 + $0x1e8] sm:$0xff] %vm2010, %v2362
        %2373 = vst.msk [vmem:[#allocation6 + $0x1f0] sm:$0xff] %vm2010, %v2364
        %2374 = vst.msk [vmem:[#allocation6 + $0x1f8] sm:$0xff] %vm2010, %v2366
        %v2375 = vld [vmem:[%s4] sm:$0xff]
        %v2376 = vld [vmem:[%s4 + $0x8] sm:$0xff]
        %v2377 = vld [vmem:[%s4 + $0x10] sm:$0xff]
        %v2378 = vld [vmem:[%s4 + $0x18] sm:$0xff]
        %v2379 = vld [vmem:[%s4 + $0x20] sm:$0xff]
        %v2380 = vld [vmem:[%s4 + $0x28] sm:$0xff]
        %v2381 = vld [vmem:[%s4 + $0x30] sm:$0xff]
        %v2382 = vld [vmem:[%s4 + $0x38] sm:$0xff]
        %v2383 = vld [vmem:[%s4 + $0x40] sm:$0xff]
        %v2384 = vld [vmem:[%s4 + $0x48] sm:$0xff]
        %v2385 = vld [vmem:[%s4 + $0x50] sm:$0xff]
        %v2386 = vld [vmem:[%s4 + $0x58] sm:$0xff]
        %v2387 = vld [vmem:[%s4 + $0x60] sm:$0xff]
        %v2388 = vld [vmem:[%s4 + $0x68] sm:$0xff]
        %v2389 = vld [vmem:[%s4 + $0x70] sm:$0xff]
        %v2390 = vld [vmem:[%s4 + $0x78] sm:$0xff]
        %v2391 = vld [vmem:[%s4 + $0x80] sm:$0xff]
        %v2392 = vld [vmem:[%s4 + $0x88] sm:$0xff]
        %v2393 = vld [vmem:[%s4 + $0x90] sm:$0xff]
        %v2394 = vld [vmem:[%s4 + $0x98] sm:$0xff]
        %v2395 = vld [vmem:[%s4 + $0xa0] sm:$0xff]
        %v2396 = vld [vmem:[%s4 + $0xa8] sm:$0xff]
        %v2397 = vld [vmem:[%s4 + $0xb0] sm:$0xff]
        %v2398 = vld [vmem:[%s4 + $0xb8] sm:$0xff]
        %v2399 = vld [vmem:[%s4 + $0xc0] sm:$0xff]
        %v2400 = vld [vmem:[%s4 + $0xc8] sm:$0xff]
        %v2401 = vld [vmem:[%s4 + $0xd0] sm:$0xff]
        %v2402 = vld [vmem:[%s4 + $0xd8] sm:$0xff]
        %v2403 = vld [vmem:[%s4 + $0xe0] sm:$0xff]
        %v2404 = vld [vmem:[%s4 + $0xe8] sm:$0xff]
        %v2405 = vld [vmem:[%s4 + $0xf0] sm:$0xff]
        %v2406 = vld [vmem:[%s4 + $0xf8] sm:$0xff]
        %v2407 = vld [vmem:[%s4 + $0x100] sm:$0xff]
        %v2408 = vld [vmem:[%s4 + $0x108] sm:$0xff]
        %v2409 = vld [vmem:[%s4 + $0x110] sm:$0xff]
        %v2410 = vld [vmem:[%s4 + $0x118] sm:$0xff]
        %v2411 = vld [vmem:[%s4 + $0x120] sm:$0xff]
        %v2412 = vld [vmem:[%s4 + $0x128] sm:$0xff]
        %v2413 = vld [vmem:[%s4 + $0x130] sm:$0xff]
        %v2414 = vld [vmem:[%s4 + $0x138] sm:$0xff]
        %v2415 = vld [vmem:[%s4 + $0x140] sm:$0xff]
        %v2416 = vld [vmem:[%s4 + $0x148] sm:$0xff]
        %v2417 = vld [vmem:[%s4 + $0x150] sm:$0xff]
        %v2418 = vld [vmem:[%s4 + $0x158] sm:$0xff]
        %v2419 = vld [vmem:[%s4 + $0x160] sm:$0xff]
        %v2420 = vld [vmem:[%s4 + $0x168] sm:$0xff]
        %v2421 = vld [vmem:[%s4 + $0x170] sm:$0xff]
        %v2422 = vld [vmem:[%s4 + $0x178] sm:$0xff]
        %v2423 = vld [vmem:[%s4 + $0x180] sm:$0xff]
        %v2424 = vld [vmem:[%s4 + $0x188] sm:$0xff]
        %v2425 = vld [vmem:[%s4 + $0x190] sm:$0xff]
        %v2426 = vld [vmem:[%s4 + $0x198] sm:$0xff]
        %v2427 = vld [vmem:[%s4 + $0x1a0] sm:$0xff]
        %v2428 = vld [vmem:[%s4 + $0x1a8] sm:$0xff]
        %v2429 = vld [vmem:[%s4 + $0x1b0] sm:$0xff]
        %v2430 = vld [vmem:[%s4 + $0x1b8] sm:$0xff]
        %v2431 = vld [vmem:[%s4 + $0x1c0] sm:$0xff]
        %v2432 = vld [vmem:[%s4 + $0x1c8] sm:$0xff]
        %v2433 = vld [vmem:[%s4 + $0x1d0] sm:$0xff]
        %v2434 = vld [vmem:[%s4 + $0x1d8] sm:$0xff]
        %v2435 = vld [vmem:[%s4 + $0x1e0] sm:$0xff]
        %v2436 = vld [vmem:[%s4 + $0x1e8] sm:$0xff]
        %v2437 = vld [vmem:[%s4 + $0x1f0] sm:$0xff]
        %v2438 = vld [vmem:[%s4 + $0x1f8] sm:$0xff]
        %v2439 = vld [vmem:[#allocation6] sm:$0xff]
        %v2440 = vld [vmem:[#allocation6 + $0x8] sm:$0xff]
        %v2441 = vld [vmem:[#allocation6 + $0x10] sm:$0xff]
        %v2442 = vld [vmem:[#allocation6 + $0x18] sm:$0xff]
        %v2443 = vld [vmem:[#allocation6 + $0x20] sm:$0xff]
        %v2444 = vld [vmem:[#allocation6 + $0x28] sm:$0xff]
        %v2445 = vld [vmem:[#allocation6 + $0x30] sm:$0xff]
        %v2446 = vld [vmem:[#allocation6 + $0x38] sm:$0xff]
        %v2447 = vld [vmem:[#allocation6 + $0x40] sm:$0xff]
        %v2448 = vld [vmem:[#allocation6 + $0x48] sm:$0xff]
        %v2449 = vld [vmem:[#allocation6 + $0x50] sm:$0xff]
        %v2450 = vld [vmem:[#allocation6 + $0x58] sm:$0xff]
        %v2451 = vld [vmem:[#allocation6 + $0x60] sm:$0xff]
        %v2452 = vld [vmem:[#allocation6 + $0x68] sm:$0xff]
        %v2453 = vld [vmem:[#allocation6 + $0x70] sm:$0xff]
        %v2454 = vld [vmem:[#allocation6 + $0x78] sm:$0xff]
        %v2455 = vld [vmem:[#allocation6 + $0x80] sm:$0xff]
        %v2456 = vld [vmem:[#allocation6 + $0x88] sm:$0xff]
        %v2457 = vld [vmem:[#allocation6 + $0x90] sm:$0xff]
        %v2458 = vld [vmem:[#allocation6 + $0x98] sm:$0xff]
        %v2459 = vld [vmem:[#allocation6 + $0xa0] sm:$0xff]
        %v2460 = vld [vmem:[#allocation6 + $0xa8] sm:$0xff]
        %v2461 = vld [vmem:[#allocation6 + $0xb0] sm:$0xff]
        %v2462 = vld [vmem:[#allocation6 + $0xb8] sm:$0xff]
        %v2463 = vld [vmem:[#allocation6 + $0xc0] sm:$0xff]
        %v2464 = vld [vmem:[#allocation6 + $0xc8] sm:$0xff]
        %v2465 = vld [vmem:[#allocation6 + $0xd0] sm:$0xff]
        %v2466 = vld [vmem:[#allocation6 + $0xd8] sm:$0xff]
        %v2467 = vld [vmem:[#allocation6 + $0xe0] sm:$0xff]
        %v2468 = vld [vmem:[#allocation6 + $0xe8] sm:$0xff]
        %v2469 = vld [vmem:[#allocation6 + $0xf0] sm:$0xff]
        %v2470 = vld [vmem:[#allocation6 + $0xf8] sm:$0xff]
        %v2471 = vld [vmem:[#allocation6 + $0x100] sm:$0xff]
        %v2472 = vld [vmem:[#allocation6 + $0x108] sm:$0xff]
        %v2473 = vld [vmem:[#allocation6 + $0x110] sm:$0xff]
        %v2474 = vld [vmem:[#allocation6 + $0x118] sm:$0xff]
        %v2475 = vld [vmem:[#allocation6 + $0x120] sm:$0xff]
        %v2476 = vld [vmem:[#allocation6 + $0x128] sm:$0xff]
        %v2477 = vld [vmem:[#allocation6 + $0x130] sm:$0xff]
        %v2478 = vld [vmem:[#allocation6 + $0x138] sm:$0xff]
        %v2479 = vld [vmem:[#allocation6 + $0x140] sm:$0xff]
        %v2480 = vld [vmem:[#allocation6 + $0x148] sm:$0xff]
        %v2481 = vld [vmem:[#allocation6 + $0x150] sm:$0xff]
        %v2482 = vld [vmem:[#allocation6 + $0x158] sm:$0xff]
        %v2483 = vld [vmem:[#allocation6 + $0x160] sm:$0xff]
        %v2484 = vld [vmem:[#allocation6 + $0x168] sm:$0xff]
        %v2485 = vld [vmem:[#allocation6 + $0x170] sm:$0xff]
        %v2486 = vld [vmem:[#allocation6 + $0x178] sm:$0xff]
        %v2487 = vld [vmem:[#allocation6 + $0x180] sm:$0xff]
        %v2488 = vld [vmem:[#allocation6 + $0x188] sm:$0xff]
        %v2489 = vld [vmem:[#allocation6 + $0x190] sm:$0xff]
        %v2490 = vld [vmem:[#allocation6 + $0x198] sm:$0xff]
        %v2491 = vld [vmem:[#allocation6 + $0x1a0] sm:$0xff]
        %v2492 = vld [vmem:[#allocation6 + $0x1a8] sm:$0xff]
        %v2493 = vld [vmem:[#allocation6 + $0x1b0] sm:$0xff]
        %v2494 = vld [vmem:[#allocation6 + $0x1b8] sm:$0xff]
        %v2495 = vld [vmem:[#allocation6 + $0x1c0] sm:$0xff]
        %v2496 = vld [vmem:[#allocation6 + $0x1c8] sm:$0xff]
        %v2497 = vld [vmem:[#allocation6 + $0x1d0] sm:$0xff]
        %v2498 = vld [vmem:[#allocation6 + $0x1d8] sm:$0xff]
        %v2499 = vld [vmem:[#allocation6 + $0x1e0] sm:$0xff]
        %v2500 = vld [vmem:[#allocation6 + $0x1e8] sm:$0xff]
        %v2501 = vld [vmem:[#allocation6 + $0x1f0] sm:$0xff]
        %v2502 = vld [vmem:[#allocation6 + $0x1f8] sm:$0xff]
        %v2503 = vld [vmem:[%s5] sm:$0xff]
        %v2504 = vld [vmem:[%s5 + $0x8] sm:$0xff]
        %v2505 = vld [vmem:[%s5 + $0x10] sm:$0xff]
        %v2506 = vld [vmem:[%s5 + $0x18] sm:$0xff]
        %v2507 = vld [vmem:[%s5 + $0x20] sm:$0xff]
        %v2508 = vld [vmem:[%s5 + $0x28] sm:$0xff]
        %v2509 = vld [vmem:[%s5 + $0x30] sm:$0xff]
        %v2510 = vld [vmem:[%s5 + $0x38] sm:$0xff]
        %v2511 = vld [vmem:[%s5 + $0x40] sm:$0xff]
        %v2512 = vld [vmem:[%s5 + $0x48] sm:$0xff]
        %v2513 = vld [vmem:[%s5 + $0x50] sm:$0xff]
        %v2514 = vld [vmem:[%s5 + $0x58] sm:$0xff]
        %v2515 = vld [vmem:[%s5 + $0x60] sm:$0xff]
        %v2516 = vld [vmem:[%s5 + $0x68] sm:$0xff]
        %v2517 = vld [vmem:[%s5 + $0x70] sm:$0xff]
        %v2518 = vld [vmem:[%s5 + $0x78] sm:$0xff]
        %2520 = vset.pattern.permute.xlu0 0
        %2521 = vperm.xlu0 %2520, %v2503
        %v2522 = vpop.permute.xlu0 %2521
        %2525 = vset.pattern.permute.xlu0 0
        %2526 = vperm.xlu0 %2525, %v2504
        %v2527 = vpop.permute.xlu0 %2526
        %2530 = vset.pattern.permute.xlu0 0
        %2531 = vperm.xlu0 %2530, %v2505
        %v2532 = vpop.permute.xlu0 %2531
        %2535 = vset.pattern.permute.xlu0 0
        %2536 = vperm.xlu0 %2535, %v2506
        %v2537 = vpop.permute.xlu0 %2536
        %2540 = vset.pattern.permute.xlu0 0
        %2541 = vperm.xlu0 %2540, %v2507
        %v2542 = vpop.permute.xlu0 %2541
        %2545 = vset.pattern.permute.xlu0 0
        %2546 = vperm.xlu0 %2545, %v2508
        %v2547 = vpop.permute.xlu0 %2546
        %2550 = vset.pattern.permute.xlu0 0
        %2551 = vperm.xlu0 %2550, %v2509
        %v2552 = vpop.permute.xlu0 %2551
        %2555 = vset.pattern.permute.xlu0 0
        %2556 = vperm.xlu0 %2555, %v2510
        %v2557 = vpop.permute.xlu0 %2556
        %2560 = vset.pattern.permute.xlu0 0
        %2561 = vperm.xlu0 %2560, %v2511
        %v2562 = vpop.permute.xlu0 %2561
        %2565 = vset.pattern.permute.xlu0 0
        %2566 = vperm.xlu0 %2565, %v2512
        %v2567 = vpop.permute.xlu0 %2566
        %2570 = vset.pattern.permute.xlu0 0
        %2571 = vperm.xlu0 %2570, %v2513
        %v2572 = vpop.permute.xlu0 %2571
        %2575 = vset.pattern.permute.xlu0 0
        %2576 = vperm.xlu0 %2575, %v2514
        %v2577 = vpop.permute.xlu0 %2576
        %2580 = vset.pattern.permute.xlu0 0
        %2581 = vperm.xlu0 %2580, %v2515
        %v2582 = vpop.permute.xlu0 %2581
        %2585 = vset.pattern.permute.xlu0 0
        %2586 = vperm.xlu0 %2585, %v2516
        %v2587 = vpop.permute.xlu0 %2586
        %2590 = vset.pattern.permute.xlu0 0
        %2591 = vperm.xlu0 %2590, %v2517
        %v2592 = vpop.permute.xlu0 %2591
        %2595 = vset.pattern.permute.xlu0 0
        %2596 = vperm.xlu0 %2595, %v2518
        %v2597 = vpop.permute.xlu0 %2596
        %v2663 = vunpack.c.l.b16 %v2375
        %v2664 = vunpack.c.h.b16 %v2375
        %v2665 = vunpack.c.l.b16 %v2376
        %v2666 = vunpack.c.h.b16 %v2376
        %v2667 = vunpack.c.l.b16 %v2377
        %v2668 = vunpack.c.h.b16 %v2377
        %v2669 = vunpack.c.l.b16 %v2378
        %v2670 = vunpack.c.h.b16 %v2378
        %v2671 = vunpack.c.l.b16 %v2379
        %v2672 = vunpack.c.h.b16 %v2379
        %v2673 = vunpack.c.l.b16 %v2380
        %v2674 = vunpack.c.h.b16 %v2380
        %v2675 = vunpack.c.l.b16 %v2381
        %v2676 = vunpack.c.h.b16 %v2381
        %v2677 = vunpack.c.l.b16 %v2382
        %v2678 = vunpack.c.h.b16 %v2382
        %v2679 = vunpack.c.l.b16 %v2383
        %v2680 = vunpack.c.h.b16 %v2383
        %v2681 = vunpack.c.l.b16 %v2384
        %v2682 = vunpack.c.h.b16 %v2384
        %v2683 = vunpack.c.l.b16 %v2385
        %v2684 = vunpack.c.h.b16 %v2385
        %v2685 = vunpack.c.l.b16 %v2386
        %v2686 = vunpack.c.h.b16 %v2386
        %v2687 = vunpack.c.l.b16 %v2387
        %v2688 = vunpack.c.h.b16 %v2387
        %v2689 = vunpack.c.l.b16 %v2388
        %v2690 = vunpack.c.h.b16 %v2388
        %v2691 = vunpack.c.l.b16 %v2389
        %v2692 = vunpack.c.h.b16 %v2389
        %v2693 = vunpack.c.l.b16 %v2390
        %v2694 = vunpack.c.h.b16 %v2390
        %v2695 = vunpack.c.l.b16 %v2391
        %v2696 = vunpack.c.h.b16 %v2391
        %v2697 = vunpack.c.l.b16 %v2392
        %v2698 = vunpack.c.h.b16 %v2392
        %v2699 = vunpack.c.l.b16 %v2393
        %v2700 = vunpack.c.h.b16 %v2393
        %v2701 = vunpack.c.l.b16 %v2394
        %v2702 = vunpack.c.h.b16 %v2394
        %v2703 = vunpack.c.l.b16 %v2395
        %v2704 = vunpack.c.h.b16 %v2395
        %v2705 = vunpack.c.l.b16 %v2396
        %v2706 = vunpack.c.h.b16 %v2396
        %v2707 = vunpack.c.l.b16 %v2397
        %v2708 = vunpack.c.h.b16 %v2397
        %v2709 = vunpack.c.l.b16 %v2398
        %v2710 = vunpack.c.h.b16 %v2398
        %v2711 = vunpack.c.l.b16 %v2399
        %v2712 = vunpack.c.h.b16 %v2399
        %v2713 = vunpack.c.l.b16 %v2400
        %v2714 = vunpack.c.h.b16 %v2400
        %v2715 = vunpack.c.l.b16 %v2401
        %v2716 = vunpack.c.h.b16 %v2401
        %v2717 = vunpack.c.l.b16 %v2402
        %v2718 = vunpack.c.h.b16 %v2402
        %v2719 = vunpack.c.l.b16 %v2403
        %v2720 = vunpack.c.h.b16 %v2403
        %v2721 = vunpack.c.l.b16 %v2404
        %v2722 = vunpack.c.h.b16 %v2404
        %v2723 = vunpack.c.l.b16 %v2405
        %v2724 = vunpack.c.h.b16 %v2405
        %v2725 = vunpack.c.l.b16 %v2406
        %v2726 = vunpack.c.h.b16 %v2406
        %v2727 = vunpack.c.l.b16 %v2407
        %v2728 = vunpack.c.h.b16 %v2407
        %v2729 = vunpack.c.l.b16 %v2408
        %v2730 = vunpack.c.h.b16 %v2408
        %v2731 = vunpack.c.l.b16 %v2409
        %v2732 = vunpack.c.h.b16 %v2409
        %v2733 = vunpack.c.l.b16 %v2410
        %v2734 = vunpack.c.h.b16 %v2410
        %v2735 = vunpack.c.l.b16 %v2411
        %v2736 = vunpack.c.h.b16 %v2411
        %v2737 = vunpack.c.l.b16 %v2412
        %v2738 = vunpack.c.h.b16 %v2412
        %v2739 = vunpack.c.l.b16 %v2413
        %v2740 = vunpack.c.h.b16 %v2413
        %v2741 = vunpack.c.l.b16 %v2414
        %v2742 = vunpack.c.h.b16 %v2414
        %v2743 = vunpack.c.l.b16 %v2415
        %v2744 = vunpack.c.h.b16 %v2415
        %v2745 = vunpack.c.l.b16 %v2416
        %v2746 = vunpack.c.h.b16 %v2416
        %v2747 = vunpack.c.l.b16 %v2417
        %v2748 = vunpack.c.h.b16 %v2417
        %v2749 = vunpack.c.l.b16 %v2418
        %v2750 = vunpack.c.h.b16 %v2418
        %v2751 = vunpack.c.l.b16 %v2419
        %v2752 = vunpack.c.h.b16 %v2419
        %v2753 = vunpack.c.l.b16 %v2420
        %v2754 = vunpack.c.h.b16 %v2420
        %v2755 = vunpack.c.l.b16 %v2421
        %v2756 = vunpack.c.h.b16 %v2421
        %v2757 = vunpack.c.l.b16 %v2422
        %v2758 = vunpack.c.h.b16 %v2422
        %v2759 = vunpack.c.l.b16 %v2423
        %v2760 = vunpack.c.h.b16 %v2423
        %v2761 = vunpack.c.l.b16 %v2424
        %v2762 = vunpack.c.h.b16 %v2424
        %v2763 = vunpack.c.l.b16 %v2425
        %v2764 = vunpack.c.h.b16 %v2425
        %v2765 = vunpack.c.l.b16 %v2426
        %v2766 = vunpack.c.h.b16 %v2426
        %v2767 = vunpack.c.l.b16 %v2427
        %v2768 = vunpack.c.h.b16 %v2427
        %v2769 = vunpack.c.l.b16 %v2428
        %v2770 = vunpack.c.h.b16 %v2428
        %v2771 = vunpack.c.l.b16 %v2429
        %v2772 = vunpack.c.h.b16 %v2429
        %v2773 = vunpack.c.l.b16 %v2430
        %v2774 = vunpack.c.h.b16 %v2430
        %v2775 = vunpack.c.l.b16 %v2431
        %v2776 = vunpack.c.h.b16 %v2431
        %v2777 = vunpack.c.l.b16 %v2432
        %v2778 = vunpack.c.h.b16 %v2432
        %v2779 = vunpack.c.l.b16 %v2433
        %v2780 = vunpack.c.h.b16 %v2433
        %v2781 = vunpack.c.l.b16 %v2434
        %v2782 = vunpack.c.h.b16 %v2434
        %v2783 = vunpack.c.l.b16 %v2435
        %v2784 = vunpack.c.h.b16 %v2435
        %v2785 = vunpack.c.l.b16 %v2436
        %v2786 = vunpack.c.h.b16 %v2436
        %v2787 = vunpack.c.l.b16 %v2437
        %v2788 = vunpack.c.h.b16 %v2437
        %v2789 = vunpack.c.l.b16 %v2438
        %v2790 = vunpack.c.h.b16 %v2438
        %v2791 = vpack.c.b16 %v2671, %v2663
        %v2792 = vpack.c.b16 %v2672, %v2664
        %v2793 = vpack.c.b16 %v2673, %v2665
        %v2794 = vpack.c.b16 %v2674, %v2666
        %v2795 = vpack.c.b16 %v2675, %v2667
        %v2796 = vpack.c.b16 %v2676, %v2668
        %v2797 = vpack.c.b16 %v2677, %v2669
        %v2798 = vpack.c.b16 %v2678, %v2670
        %v2799 = vpack.c.b16 %v2687, %v2679
        %v2800 = vpack.c.b16 %v2688, %v2680
        %v2801 = vpack.c.b16 %v2689, %v2681
        %v2802 = vpack.c.b16 %v2690, %v2682
        %v2803 = vpack.c.b16 %v2691, %v2683
        %v2804 = vpack.c.b16 %v2692, %v2684
        %v2805 = vpack.c.b16 %v2693, %v2685
        %v2806 = vpack.c.b16 %v2694, %v2686
        %v2807 = vpack.c.b16 %v2703, %v2695
        %v2808 = vpack.c.b16 %v2704, %v2696
        %v2809 = vpack.c.b16 %v2705, %v2697
        %v2810 = vpack.c.b16 %v2706, %v2698
        %v2811 = vpack.c.b16 %v2707, %v2699
        %v2812 = vpack.c.b16 %v2708, %v2700
        %v2813 = vpack.c.b16 %v2709, %v2701
        %v2814 = vpack.c.b16 %v2710, %v2702
        %v2815 = vpack.c.b16 %v2719, %v2711
        %v2816 = vpack.c.b16 %v2720, %v2712
        %v2817 = vpack.c.b16 %v2721, %v2713
        %v2818 = vpack.c.b16 %v2722, %v2714
        %v2819 = vpack.c.b16 %v2723, %v2715
        %v2820 = vpack.c.b16 %v2724, %v2716
        %v2821 = vpack.c.b16 %v2725, %v2717
        %v2822 = vpack.c.b16 %v2726, %v2718
        %v2823 = vpack.c.b16 %v2735, %v2727
        %v2824 = vpack.c.b16 %v2736, %v2728
        %v2825 = vpack.c.b16 %v2737, %v2729
        %v2826 = vpack.c.b16 %v2738, %v2730
        %v2827 = vpack.c.b16 %v2739, %v2731
        %v2828 = vpack.c.b16 %v2740, %v2732
        %v2829 = vpack.c.b16 %v2741, %v2733
        %v2830 = vpack.c.b16 %v2742, %v2734
        %v2831 = vpack.c.b16 %v2751, %v2743
        %v2832 = vpack.c.b16 %v2752, %v2744
        %v2833 = vpack.c.b16 %v2753, %v2745
        %v2834 = vpack.c.b16 %v2754, %v2746
        %v2835 = vpack.c.b16 %v2755, %v2747
        %v2836 = vpack.c.b16 %v2756, %v2748
        %v2837 = vpack.c.b16 %v2757, %v2749
        %v2838 = vpack.c.b16 %v2758, %v2750
        %v2839 = vpack.c.b16 %v2767, %v2759
        %v2840 = vpack.c.b16 %v2768, %v2760
        %v2841 = vpack.c.b16 %v2769, %v2761
        %v2842 = vpack.c.b16 %v2770, %v2762
        %v2843 = vpack.c.b16 %v2771, %v2763
        %v2844 = vpack.c.b16 %v2772, %v2764
        %v2845 = vpack.c.b16 %v2773, %v2765
        %v2846 = vpack.c.b16 %v2774, %v2766
        %v2847 = vpack.c.b16 %v2783, %v2775
        %v2848 = vpack.c.b16 %v2784, %v2776
        %v2849 = vpack.c.b16 %v2785, %v2777
        %v2850 = vpack.c.b16 %v2786, %v2778
        %v2851 = vpack.c.b16 %v2787, %v2779
        %v2852 = vpack.c.b16 %v2788, %v2780
        %v2853 = vpack.c.b16 %v2789, %v2781
        %v2854 = vpack.c.b16 %v2790, %v2782
        %2919 = vmatprep.subr.bf16.mxu0 0
        %2920 = vmatpush1.bf16.msra.mxu0 %v2439
        %2921 = vmatprep.subr.bf16.mxu0 0
        %2922 = vmatpush1.bf16.msra.mxu0 %v2440
        %2923 = vmatprep.subr.bf16.mxu0 0
        %2924 = vmatpush1.bf16.msra.mxu0 %v2441
        %2925 = vmatprep.subr.bf16.mxu0 0
        %2926 = vmatpush1.bf16.msra.mxu0 %v2442
        %2927 = vmatprep.subr.bf16.mxu0 0
        %2928 = vmatpush1.bf16.msra.mxu0 %v2443
        %2929 = vmatprep.subr.bf16.mxu0 0
        %2930 = vmatpush1.bf16.msra.mxu0 %v2444
        %2931 = vmatprep.subr.bf16.mxu0 0
        %2932 = vmatpush1.bf16.msra.mxu0 %v2445
        %2933 = vmatprep.subr.bf16.mxu0 0
        %2934 = vmatpush1.bf16.msra.mxu0 %v2446
        %2935 = vmatprep.subr.bf16.mxu0 0
        %2936 = vmatpush1.bf16.msra.mxu0 %v2447
        %2937 = vmatprep.subr.bf16.mxu0 0
        %2938 = vmatpush1.bf16.msra.mxu0 %v2448
        %2939 = vmatprep.subr.bf16.mxu0 0
        %2940 = vmatpush1.bf16.msra.mxu0 %v2449
        %2941 = vmatprep.subr.bf16.mxu0 0
        %2942 = vmatpush1.bf16.msra.mxu0 %v2450
        %2943 = vmatprep.subr.bf16.mxu0 0
        %2944 = vmatpush1.bf16.msra.mxu0 %v2451
        %2945 = vmatprep.subr.bf16.mxu0 0
        %2946 = vmatpush1.bf16.msra.mxu0 %v2452
        %2947 = vmatprep.subr.bf16.mxu0 0
        %2948 = vmatpush1.bf16.msra.mxu0 %v2453
        %2949 = vmatprep.subr.bf16.mxu0 0
        %2950 = vmatpush1.bf16.msra.mxu0 %v2454
        %2951 = vmatprep.mubr.bf16.mxu0 %v2792
        %2952 = vmatmul.mubr.bf16.gmra.mrb[0].mxu0 %v2791
        %v2953 = vpop.f32.mrb[0].mxu0
        %v2954 = vadd.f32 %v2522, %v2953
        %v2955 = vpop.f32.mrb[0].mxu0
        %v2956 = vpop.f32.mrb[0].mxu0
        %v2957 = vadd.f32 %v2527, %v2956
        %v2958 = vpop.f32.mrb[0].mxu0
        %2959 = vmatprep.mubr.bf16.mxu0 %v2800
        %2960 = vmatmul.mubr.bf16.gmra.mrb[0].mxu0 %v2799
        %v2961 = vpop.f32.mrb[0].mxu0
        %v2962 = vadd.f32 %v2532, %v2961
        %v2963 = vpop.f32.mrb[0].mxu0
        %v2964 = vpop.f32.mrb[0].mxu0
        %v2965 = vadd.f32 %v2537, %v2964
        %v2966 = vpop.f32.mrb[0].mxu0
        %2967 = vmatprep.mubr.bf16.mxu0 %v2808
        %2968 = vmatmul.mubr.bf16.gmra.mrb[0].mxu0 %v2807
        %v2969 = vpop.f32.mrb[0].mxu0
        %v2970 = vadd.f32 %v2542, %v2969
        %v2971 = vpop.f32.mrb[0].mxu0
        %v2972 = vpop.f32.mrb[0].mxu0
        %v2973 = vadd.f32 %v2547, %v2972
        %v2974 = vpop.f32.mrb[0].mxu0
        %2975 = vmatprep.mubr.bf16.mxu0 %v2816
        %2976 = vmatmul.mubr.bf16.gmra.mrb[0].mxu0 %v2815
        %v2977 = vpop.f32.mrb[0].mxu0
        %v2978 = vadd.f32 %v2552, %v2977
        %v2979 = vpop.f32.mrb[0].mxu0
        %v2980 = vpop.f32.mrb[0].mxu0
        %v2981 = vadd.f32 %v2557, %v2980
        %v2982 = vpop.f32.mrb[0].mxu0
        %2983 = vmatprep.mubr.bf16.mxu0 %v2824
        %2984 = vmatmul.mubr.bf16.gmra.mrb[0].mxu0 %v2823
        %v2985 = vpop.f32.mrb[0].mxu0
        %v2986 = vadd.f32 %v2562, %v2985
        %v2987 = vpop.f32.mrb[0].mxu0
        %v2988 = vpop.f32.mrb[0].mxu0
        %v2989 = vadd.f32 %v2567, %v2988
        %v2990 = vpop.f32.mrb[0].mxu0
        %2991 = vmatprep.mubr.bf16.mxu0 %v2832
        %2992 = vmatmul.mubr.bf16.gmra.mrb[0].mxu0 %v2831
        %v2993 = vpop.f32.mrb[0].mxu0
        %v2994 = vadd.f32 %v2572, %v2993
        %v2995 = vpop.f32.mrb[0].mxu0
        %v2996 = vpop.f32.mrb[0].mxu0
        %v2997 = vadd.f32 %v2577, %v2996
        %v2998 = vpop.f32.mrb[0].mxu0
        %2999 = vmatprep.mubr.bf16.mxu0 %v2840
        %3000 = vmatmul.mubr.bf16.gmra.mrb[0].mxu0 %v2839
        %v3001 = vpop.f32.mrb[0].mxu0
        %v3002 = vadd.f32 %v2582, %v3001
        %v3003 = vpop.f32.mrb[0].mxu0
        %v3004 = vpop.f32.mrb[0].mxu0
        %v3005 = vadd.f32 %v2587, %v3004
        %v3006 = vpop.f32.mrb[0].mxu0
        %3007 = vmatprep.mubr.bf16.mxu0 %v2848
        %3008 = vmatmul.mubr.bf16.gmra.mrb[0].mxu0 %v2847
        %v3009 = vpop.f32.mrb[0].mxu0
        %v3010 = vadd.f32 %v2592, %v3009
        %v3011 = vpop.f32.mrb[0].mxu0
        %v3012 = vpop.f32.mrb[0].mxu0
        %v3013 = vadd.f32 %v2597, %v3012
        %v3014 = vpop.f32.mrb[0].mxu0
        %3015 = vdwg.mxu0
        %3016 = vmatprep.subr.bf16.mxu0 0
        %3017 = vmatpush1.bf16.msra.mxu0 %v2455
        %3018 = vmatprep.subr.bf16.mxu0 0
        %3019 = vmatpush1.bf16.msra.mxu0 %v2456
        %3020 = vmatprep.subr.bf16.mxu0 0
        %3021 = vmatpush1.bf16.msra.mxu0 %v2457
        %3022 = vmatprep.subr.bf16.mxu0 0
        %3023 = vmatpush1.bf16.msra.mxu0 %v2458
        %3024 = vmatprep.subr.bf16.mxu0 0
        %3025 = vmatpush1.bf16.msra.mxu0 %v2459
        %3026 = vmatprep.subr.bf16.mxu0 0
        %3027 = vmatpush1.bf16.msra.mxu0 %v2460
        %3028 = vmatprep.subr.bf16.mxu0 0
        %3029 = vmatpush1.bf16.msra.mxu0 %v2461
        %3030 = vmatprep.subr.bf16.mxu0 0
        %3031 = vmatpush1.bf16.msra.mxu0 %v2462
        %3032 = vmatprep.subr.bf16.mxu0 0
        %3033 = vmatpush1.bf16.msra.mxu0 %v2463
        %3034 = vmatprep.subr.bf16.mxu0 0
        %3035 = vmatpush1.bf16.msra.mxu0 %v2464
        %3036 = vmatprep.subr.bf16.mxu0 0
        %3037 = vmatpush1.bf16.msra.mxu0 %v2465
        %3038 = vmatprep.subr.bf16.mxu0 0
        %3039 = vmatpush1.bf16.msra.mxu0 %v2466
        %3040 = vmatprep.subr.bf16.mxu0 0
        %3041 = vmatpush1.bf16.msra.mxu0 %v2467
        %3042 = vmatprep.subr.bf16.mxu0 0
        %3043 = vmatpush1.bf16.msra.mxu0 %v2468
        %3044 = vmatprep.subr.bf16.mxu0 0
        %3045 = vmatpush1.bf16.msra.mxu0 %v2469
        %3046 = vmatprep.subr.bf16.mxu0 0
        %3047 = vmatpush1.bf16.msra.mxu0 %v2470
        %3048 = vmatprep.mubr.bf16.mxu0 %v2794
        %3049 = vmatmul.mubr.bf16.gmra.mrb[0].mxu0 %v2793
        %v3050 = vpop.f32.mrb[0].mxu0
        %v3051 = vadd.f32 %v2954, %v3050
        %v3052 = vpop.f32.mrb[0].mxu0
        %v3053 = vpop.f32.mrb[0].mxu0
        %v3054 = vadd.f32 %v2957, %v3053
        %v3055 = vpop.f32.mrb[0].mxu0
        %3056 = vmatprep.mubr.bf16.mxu0 %v2802
        %3057 = vmatmul.mubr.bf16.gmra.mrb[0].mxu0 %v2801
        %v3058 = vpop.f32.mrb[0].mxu0
        %v3059 = vadd.f32 %v2962, %v3058
        %v3060 = vpop.f32.mrb[0].mxu0
        %v3061 = vpop.f32.mrb[0].mxu0
        %v3062 = vadd.f32 %v2965, %v3061
        %v3063 = vpop.f32.mrb[0].mxu0
        %3064 = vmatprep.mubr.bf16.mxu0 %v2810
        %3065 = vmatmul.mubr.bf16.gmra.mrb[0].mxu0 %v2809
        %v3066 = vpop.f32.mrb[0].mxu0
        %v3067 = vadd.f32 %v2970, %v3066
        %v3068 = vpop.f32.mrb[0].mxu0
        %v3069 = vpop.f32.mrb[0].mxu0
        %v3070 = vadd.f32 %v2973, %v3069
        %v3071 = vpop.f32.mrb[0].mxu0
        %3072 = vmatprep.mubr.bf16.mxu0 %v2818
        %3073 = vmatmul.mubr.bf16.gmra.mrb[0].mxu0 %v2817
        %v3074 = vpop.f32.mrb[0].mxu0
        %v3075 = vadd.f32 %v2978, %v3074
        %v3076 = vpop.f32.mrb[0].mxu0
        %v3077 = vpop.f32.mrb[0].mxu0
        %v3078 = vadd.f32 %v2981, %v3077
        %v3079 = vpop.f32.mrb[0].mxu0
        %3080 = vmatprep.mubr.bf16.mxu0 %v2826
        %3081 = vmatmul.mubr.bf16.gmra.mrb[0].mxu0 %v2825
        %v3082 = vpop.f32.mrb[0].mxu0
        %v3083 = vadd.f32 %v2986, %v3082
        %v3084 = vpop.f32.mrb[0].mxu0
        %v3085 = vpop.f32.mrb[0].mxu0
        %v3086 = vadd.f32 %v2989, %v3085
        %v3087 = vpop.f32.mrb[0].mxu0
        %3088 = vmatprep.mubr.bf16.mxu0 %v2834
        %3089 = vmatmul.mubr.bf16.gmra.mrb[0].mxu0 %v2833
        %v3090 = vpop.f32.mrb[0].mxu0
        %v3091 = vadd.f32 %v2994, %v3090
        %v3092 = vpop.f32.mrb[0].mxu0
        %v3093 = vpop.f32.mrb[0].mxu0
        %v3094 = vadd.f32 %v2997, %v3093
        %v3095 = vpop.f32.mrb[0].mxu0
        %3096 = vmatprep.mubr.bf16.mxu0 %v2842
        %3097 = vmatmul.mubr.bf16.gmra.mrb[0].mxu0 %v2841
        %v3098 = vpop.f32.mrb[0].mxu0
        %v3099 = vadd.f32 %v3002, %v3098
        %v3100 = vpop.f32.mrb[0].mxu0
        %v3101 = vpop.f32.mrb[0].mxu0
        %v3102 = vadd.f32 %v3005, %v3101
        %v3103 = vpop.f32.mrb[0].mxu0
        %3104 = vmatprep.mubr.bf16.mxu0 %v2850
        %3105 = vmatmul.mubr.bf16.gmra.mrb[0].mxu0 %v2849
        %v3106 = vpop.f32.mrb[0].mxu0
        %v3107 = vadd.f32 %v3010, %v3106
        %v3108 = vpop.f32.mrb[0].mxu0
        %v3109 = vpop.f32.mrb[0].mxu0
        %v3110 = vadd.f32 %v3013, %v3109
        %v3111 = vpop.f32.mrb[0].mxu0
        %3112 = vdwg.mxu0
        %3113 = vmatprep.subr.bf16.mxu0 0
        %3114 = vmatpush1.bf16.msra.mxu0 %v2471
        %3115 = vmatprep.subr.bf16.mxu0 0
        %3116 = vmatpush1.bf16.msra.mxu0 %v2472
        %3117 = vmatprep.subr.bf16.mxu0 0
        %3118 = vmatpush1.bf16.msra.mxu0 %v2473
        %3119 = vmatprep.subr.bf16.mxu0 0
        %3120 = vmatpush1.bf16.msra.mxu0 %v2474
        %3121 = vmatprep.subr.bf16.mxu0 0
        %3122 = vmatpush1.bf16.msra.mxu0 %v2475
        %3123 = vmatprep.subr.bf16.mxu0 0
        %3124 = vmatpush1.bf16.msra.mxu0 %v2476
        %3125 = vmatprep.subr.bf16.mxu0 0
        %3126 = vmatpush1.bf16.msra.mxu0 %v2477
        %3127 = vmatprep.subr.bf16.mxu0 0
        %3128 = vmatpush1.bf16.msra.mxu0 %v2478
        %3129 = vmatprep.subr.bf16.mxu0 0
        %3130 = vmatpush1.bf16.msra.mxu0 %v2479
        %3131 = vmatprep.subr.bf16.mxu0 0
        %3132 = vmatpush1.bf16.msra.mxu0 %v2480
        %3133 = vmatprep.subr.bf16.mxu0 0
        %3134 = vmatpush1.bf16.msra.mxu0 %v2481
        %3135 = vmatprep.subr.bf16.mxu0 0
        %3136 = vmatpush1.bf16.msra.mxu0 %v2482
        %3137 = vmatprep.subr.bf16.mxu0 0
        %3138 = vmatpush1.bf16.msra.mxu0 %v2483
        %3139 = vmatprep.subr.bf16.mxu0 0
        %3140 = vmatpush1.bf16.msra.mxu0 %v2484
        %3141 = vmatprep.subr.bf16.mxu0 0
        %3142 = vmatpush1.bf16.msra.mxu0 %v2485
        %3143 = vmatprep.subr.bf16.mxu0 0
        %3144 = vmatpush1.bf16.msra.mxu0 %v2486
        %3145 = vmatprep.mubr.bf16.mxu0 %v2796
        %3146 = vmatmul.mubr.bf16.gmra.mrb[0].mxu0 %v2795
        %v3147 = vpop.f32.mrb[0].mxu0
        %v3148 = vadd.f32 %v3051, %v3147
        %v3149 = vpop.f32.mrb[0].mxu0
        %v3150 = vpop.f32.mrb[0].mxu0
        %v3151 = vadd.f32 %v3054, %v3150
        %v3152 = vpop.f32.mrb[0].mxu0
        %3153 = vmatprep.mubr.bf16.mxu0 %v2804
        %3154 = vmatmul.mubr.bf16.gmra.mrb[0].mxu0 %v2803
        %v3155 = vpop.f32.mrb[0].mxu0
        %v3156 = vadd.f32 %v3059, %v3155
        %v3157 = vpop.f32.mrb[0].mxu0
        %v3158 = vpop.f32.mrb[0].mxu0
        %v3159 = vadd.f32 %v3062, %v3158
        %v3160 = vpop.f32.mrb[0].mxu0
        %3161 = vmatprep.mubr.bf16.mxu0 %v2812
        %3162 = vmatmul.mubr.bf16.gmra.mrb[0].mxu0 %v2811
        %v3163 = vpop.f32.mrb[0].mxu0
        %v3164 = vadd.f32 %v3067, %v3163
        %v3165 = vpop.f32.mrb[0].mxu0
        %v3166 = vpop.f32.mrb[0].mxu0
        %v3167 = vadd.f32 %v3070, %v3166
        %v3168 = vpop.f32.mrb[0].mxu0
        %3169 = vmatprep.mubr.bf16.mxu0 %v2820
        %3170 = vmatmul.mubr.bf16.gmra.mrb[0].mxu0 %v2819
        %v3171 = vpop.f32.mrb[0].mxu0
        %v3172 = vadd.f32 %v3075, %v3171
        %v3173 = vpop.f32.mrb[0].mxu0
        %v3174 = vpop.f32.mrb[0].mxu0
        %v3175 = vadd.f32 %v3078, %v3174
        %v3176 = vpop.f32.mrb[0].mxu0
        %3177 = vmatprep.mubr.bf16.mxu0 %v2828
        %3178 = vmatmul.mubr.bf16.gmra.mrb[0].mxu0 %v2827
        %v3179 = vpop.f32.mrb[0].mxu0
        %v3180 = vadd.f32 %v3083, %v3179
        %v3181 = vpop.f32.mrb[0].mxu0
        %v3182 = vpop.f32.mrb[0].mxu0
        %v3183 = vadd.f32 %v3086, %v3182
        %v3184 = vpop.f32.mrb[0].mxu0
        %3185 = vmatprep.mubr.bf16.mxu0 %v2836
        %3186 = vmatmul.mubr.bf16.gmra.mrb[0].mxu0 %v2835
        %v3187 = vpop.f32.mrb[0].mxu0
        %v3188 = vadd.f32 %v3091, %v3187
        %v3189 = vpop.f32.mrb[0].mxu0
        %v3190 = vpop.f32.mrb[0].mxu0
        %v3191 = vadd.f32 %v3094, %v3190
        %v3192 = vpop.f32.mrb[0].mxu0
        %3193 = vmatprep.mubr.bf16.mxu0 %v2844
        %3194 = vmatmul.mubr.bf16.gmra.mrb[0].mxu0 %v2843
        %v3195 = vpop.f32.mrb[0].mxu0
        %v3196 = vadd.f32 %v3099, %v3195
        %v3197 = vpop.f32.mrb[0].mxu0
        %v3198 = vpop.f32.mrb[0].mxu0
        %v3199 = vadd.f32 %v3102, %v3198
        %v3200 = vpop.f32.mrb[0].mxu0
        %3201 = vmatprep.mubr.bf16.mxu0 %v2852
        %3202 = vmatmul.mubr.bf16.gmra.mrb[0].mxu0 %v2851
        %v3203 = vpop.f32.mrb[0].mxu0
        %v3204 = vadd.f32 %v3107, %v3203
        %v3205 = vpop.f32.mrb[0].mxu0
        %v3206 = vpop.f32.mrb[0].mxu0
        %v3207 = vadd.f32 %v3110, %v3206
        %v3208 = vpop.f32.mrb[0].mxu0
        %3209 = vdwg.mxu0
        %3210 = vmatprep.subr.bf16.mxu0 0
        %3211 = vmatpush1.bf16.msra.mxu0 %v2487
        %3212 = vmatprep.subr.bf16.mxu0 0
        %3213 = vmatpush1.bf16.msra.mxu0 %v2488
        %3214 = vmatprep.subr.bf16.mxu0 0
        %3215 = vmatpush1.bf16.msra.mxu0 %v2489
        %3216 = vmatprep.subr.bf16.mxu0 0
        %3217 = vmatpush1.bf16.msra.mxu0 %v2490
        %3218 = vmatprep.subr.bf16.mxu0 0
        %3219 = vmatpush1.bf16.msra.mxu0 %v2491
        %3220 = vmatprep.subr.bf16.mxu0 0
        %3221 = vmatpush1.bf16.msra.mxu0 %v2492
        %3222 = vmatprep.subr.bf16.mxu0 0
        %3223 = vmatpush1.bf16.msra.mxu0 %v2493
        %3224 = vmatprep.subr.bf16.mxu0 0
        %3225 = vmatpush1.bf16.msra.mxu0 %v2494
        %3226 = vmatprep.subr.bf16.mxu0 0
        %3227 = vmatpush1.bf16.msra.mxu0 %v2495
        %3228 = vmatprep.subr.bf16.mxu0 0
        %3229 = vmatpush1.bf16.msra.mxu0 %v2496
        %3230 = vmatprep.subr.bf16.mxu0 0
        %3231 = vmatpush1.bf16.msra.mxu0 %v2497
        %3232 = vmatprep.subr.bf16.mxu0 0
        %3233 = vmatpush1.bf16.msra.mxu0 %v2498
        %3234 = vmatprep.subr.bf16.mxu0 0
        %3235 = vmatpush1.bf16.msra.mxu0 %v2499
        %3236 = vmatprep.subr.bf16.mxu0 0
        %3237 = vmatpush1.bf16.msra.mxu0 %v2500
        %3238 = vmatprep.subr.bf16.mxu0 0
        %3239 = vmatpush1.bf16.msra.mxu0 %v2501
        %3240 = vmatprep.subr.bf16.mxu0 0
        %3241 = vmatpush1.bf16.msra.mxu0 %v2502
        %3242 = vmatprep.mubr.bf16.mxu0 %v2798
        %3243 = vmatmul.mubr.bf16.gmra.mrb[0].mxu0 %v2797
        %v3244 = vpop.f32.mrb[0].mxu0
        %v3245 = vadd.f32 %v3148, %v3244
        %v3246 = vpop.f32.mrb[0].mxu0
        %v3247 = vpop.f32.mrb[0].mxu0
        %v3248 = vadd.f32 %v3151, %v3247
        %v3249 = vpop.f32.mrb[0].mxu0
        %3250 = vmatprep.mubr.bf16.mxu0 %v2806
        %3251 = vmatmul.mubr.bf16.gmra.mrb[0].mxu0 %v2805
        %v3252 = vpop.f32.mrb[0].mxu0
        %v3253 = vadd.f32 %v3156, %v3252
        %v3254 = vpop.f32.mrb[0].mxu0
        %v3255 = vpop.f32.mrb[0].mxu0
        %v3256 = vadd.f32 %v3159, %v3255
        %v3257 = vpop.f32.mrb[0].mxu0
        %3258 = vmatprep.mubr.bf16.mxu0 %v2814
        %3259 = vmatmul.mubr.bf16.gmra.mrb[0].mxu0 %v2813
        %v3260 = vpop.f32.mrb[0].mxu0
        %v3261 = vadd.f32 %v3164, %v3260
        %v3262 = vpop.f32.mrb[0].mxu0
        %v3263 = vpop.f32.mrb[0].mxu0
        %v3264 = vadd.f32 %v3167, %v3263
        %v3265 = vpop.f32.mrb[0].mxu0
        %3266 = vmatprep.mubr.bf16.mxu0 %v2822
        %3267 = vmatmul.mubr.bf16.gmra.mrb[0].mxu0 %v2821
        %v3268 = vpop.f32.mrb[0].mxu0
        %v3269 = vadd.f32 %v3172, %v3268
        %v3270 = vpop.f32.mrb[0].mxu0
        %v3271 = vpop.f32.mrb[0].mxu0
        %v3272 = vadd.f32 %v3175, %v3271
        %v3273 = vpop.f32.mrb[0].mxu0
        %3274 = vmatprep.mubr.bf16.mxu0 %v2830
        %3275 = vmatmul.mubr.bf16.gmra.mrb[0].mxu0 %v2829
        %v3276 = vpop.f32.mrb[0].mxu0
        %v3277 = vadd.f32 %v3180, %v3276
        %v3278 = vpop.f32.mrb[0].mxu0
        %v3279 = vpop.f32.mrb[0].mxu0
        %v3280 = vadd.f32 %v3183, %v3279
        %v3281 = vpop.f32.mrb[0].mxu0
        %3282 = vmatprep.mubr.bf16.mxu0 %v2838
        %3283 = vmatmul.mubr.bf16.gmra.mrb[0].mxu0 %v2837
        %v3284 = vpop.f32.mrb[0].mxu0
        %v3285 = vadd.f32 %v3188, %v3284
        %v3286 = vpop.f32.mrb[0].mxu0
        %v3287 = vpop.f32.mrb[0].mxu0
        %v3288 = vadd.f32 %v3191, %v3287
        %v3289 = vpop.f32.mrb[0].mxu0
        %3290 = vmatprep.mubr.bf16.mxu0 %v2846
        %3291 = vmatmul.mubr.bf16.gmra.mrb[0].mxu0 %v2845
        %v3292 = vpop.f32.mrb[0].mxu0
        %v3293 = vadd.f32 %v3196, %v3292
        %v3294 = vpop.f32.mrb[0].mxu0
        %v3295 = vpop.f32.mrb[0].mxu0
        %v3296 = vadd.f32 %v3199, %v3295
        %v3297 = vpop.f32.mrb[0].mxu0
        %3298 = vmatprep.mubr.bf16.mxu0 %v2854
        %3299 = vmatmul.mubr.bf16.gmra.mrb[0].mxu0 %v2853
        %v3300 = vpop.f32.mrb[0].mxu0
        %v3301 = vadd.f32 %v3204, %v3300
        %v3302 = vpop.f32.mrb[0].mxu0
        %v3303 = vpop.f32.mrb[0].mxu0
        %v3304 = vadd.f32 %v3207, %v3303
        %v3305 = vpop.f32.mrb[0].mxu0
        %3306 = vdwg.mxu0
        %v3307 = vtanh.pop %v3245
        %v3308 = vtanh.pop %v3248
        %v3309 = vtanh.pop %v3253
        %v3310 = vtanh.pop %v3256
        %v3311 = vtanh.pop %v3261
        %v3312 = vtanh.pop %v3264
        %v3313 = vtanh.pop %v3269
        %v3314 = vtanh.pop %v3272
        %v3315 = vtanh.pop %v3277
        %v3316 = vtanh.pop %v3280
        %v3317 = vtanh.pop %v3285
        %v3318 = vtanh.pop %v3288
        %v3319 = vtanh.pop %v3293
        %v3320 = vtanh.pop %v3296
        %v3321 = vtanh.pop %v3301
        %v3322 = vtanh.pop %v3304
        %v3323 = vpack.c.bf16 %v3308, %v3307
        %v3324 = vpack.c.bf16 %v3310, %v3309
        %v3325 = vpack.c.bf16 %v3312, %v3311
        %v3326 = vpack.c.bf16 %v3314, %v3313
        %v3327 = vpack.c.bf16 %v3316, %v3315
        %v3328 = vpack.c.bf16 %v3318, %v3317
        %v3329 = vpack.c.bf16 %v3320, %v3319
        %v3330 = vpack.c.bf16 %v3322, %v3321
        %v3331 = vld [vmem:[#allocation12] sm:$0xff]
        %v3332 = vld [vmem:[#allocation12 + $0x8] sm:$0xff]
        %v3333 = vld [vmem:[#allocation12 + $0x10] sm:$0xff]
        %v3334 = vld [vmem:[#allocation12 + $0x18] sm:$0xff]
        %v3335 = vld [vmem:[#allocation12 + $0x20] sm:$0xff]
        %v3336 = vld [vmem:[#allocation12 + $0x28] sm:$0xff]
        %v3337 = vld [vmem:[#allocation12 + $0x30] sm:$0x33]
        %v3345 = vunpack.c.l.b16 %v3331
        %v3346 = vunpack.c.h.b16 %v3331
        %v3347 = vunpack.c.l.b16 %v3332
        %v3348 = vunpack.c.h.b16 %v3332
        %v3349 = vunpack.c.l.b16 %v3333
        %v3350 = vunpack.c.h.b16 %v3333
        %v3351 = vunpack.c.l.b16 %v3334
        %v3352 = vunpack.c.h.b16 %v3334
        %v3353 = vunpack.c.l.b16 %v3335
        %v3354 = vunpack.c.h.b16 %v3335
        %v3355 = vunpack.c.l.b16 %v3336
        %v3356 = vunpack.c.h.b16 %v3336
        %v3357 = vunpack.c.l.b16 %v3337
        %v3358 = vunpack.c.h.b16 %v3337
        %v3359 = vpack.c.b16 %v3347, %v3345
        %v3360 = vpack.c.b16 %v3348, %v3346
        %v3361 = vpack.c.b16 %v3351, %v3349
        %v3362 = vpack.c.b16 %v3352, %v3350
        %v3363 = vpack.c.b16 %v3355, %v3353
        %v3364 = vpack.c.b16 %v3356, %v3354
        %v3365 = vpack.c.b16 %v3357, %v3357
        %v3366 = vpack.c.b16 %v3358, %v3358
        %v3374 = vsel %vm2010, %v3323, 0
        %v3377 = vsel %vm2010, %v3324, 0
        %v3380 = vsel %vm2010, %v3325, 0
        %v3383 = vsel %vm2010, %v3326, 0
        %v3386 = vsel %vm2010, %v3327, 0
        %v3389 = vsel %vm2010, %v3328, 0
        %v3392 = vsel %vm2010, %v3329, 0
        %v3395 = vsel %vm2010, %v3330, 0
        %vm3397 = vcmask 1040384
        %vm3398 = vcmask 1041408
        %v3399 = vsel %vm3397, 4294967295, 65535
        %v3400 = vsel %vm3398, %v3399, 0
        %v3402 = vand.u32 %v3365, %v3400
        %v3405 = vand.u32 %v3366, %v3400
        %3407 = vmatprep.subr.bf16.mxu0 %v3360
        %3408 = vmatpush1.bf16.msra.mxu0 %v3359
        %3409 = vmatprep.subr.bf16.mxu0 %v3362
        %3410 = vmatpush1.bf16.msra.mxu0 %v3361
        %3411 = vmatprep.subr.bf16.mxu0 %v3364
        %3412 = vmatpush1.bf16.msra.mxu0 %v3363
        %3413 = vmatprep.subr.bf16.mxu0 %v3405
        %3414 = vmatpush1.bf16.msra.mxu0 %v3402
        %3415 = vmatprep.subr.bf16.mxu0 0
        %3416 = vmatpush1.bf16.msra.mxu0 0
        %3417 = vmatprep.subr.bf16.mxu0 0
        %3418 = vmatpush1.bf16.msra.mxu0 0
        %3419 = vmatprep.subr.bf16.mxu0 0
        %3420 = vmatpush1.bf16.msra.mxu0 0
        %3421 = vmatprep.subr.bf16.mxu0 0
        %3422 = vmatpush1.bf16.msra.mxu0 0
        %3423 = vmatprep.subr.bf16.mxu0 0
        %3424 = vmatpush1.bf16.msra.mxu0 0
        %3425 = vmatprep.subr.bf16.mxu0 0
        %3426 = vmatpush1.bf16.msra.mxu0 0
        %3427 = vmatprep.subr.bf16.mxu0 0
        %3428 = vmatpush1.bf16.msra.mxu0 0
        %3429 = vmatprep.subr.bf16.mxu0 0
        %3430 = vmatpush1.bf16.msra.mxu0 0
        %3431 = vmatprep.subr.bf16.mxu0 0
        %3432 = vmatpush1.bf16.msra.mxu0 0
        %3433 = vmatprep.subr.bf16.mxu0 0
        %3434 = vmatpush1.bf16.msra.mxu0 0
        %3435 = vmatprep.subr.bf16.mxu0 0
        %3436 = vmatpush1.bf16.msra.mxu0 0
        %3437 = vmatprep.subr.bf16.mxu0 0
        %3438 = vmatpush1.bf16.msra.mxu0 0
        %3439 = vmatprep.mubr.bf16.mxu0 0
        %3440 = vmatmul.mubr.bf16.gmra.mrb[0].mxu0 %v3374
        %v3441 = vpop.f32.mrb[0].mxu0
        %v3442 = vadd.f32 0.0, %v3441
        %v3443 = vpop.f32.mrb[0].mxu0
        %v3444 = vadd.f32 0.0, %v3443
        %v3445 = vpop.f32.mrb[0].mxu0
        %v3446 = vadd.f32 0.0, %v3445
        %v3447 = vpop.f32.mrb[0].mxu0
        %v3448 = vadd.f32 0.0, %v3447
        %3449 = vmatprep.mubr.bf16.mxu0 0
        %3450 = vmatmul.mubr.bf16.gmra.mrb[0].mxu0 %v3377
        %v3451 = vpop.f32.mrb[0].mxu0
        %v3452 = vadd.f32 0.0, %v3451
        %v3453 = vpop.f32.mrb[0].mxu0
        %v3454 = vadd.f32 0.0, %v3453
        %v3455 = vpop.f32.mrb[0].mxu0
        %v3456 = vadd.f32 0.0, %v3455
        %v3457 = vpop.f32.mrb[0].mxu0
        %v3458 = vadd.f32 0.0, %v3457
        %3459 = vmatprep.mubr.bf16.mxu0 0
        %3460 = vmatmul.mubr.bf16.gmra.mrb[0].mxu0 %v3380
        %v3461 = vpop.f32.mrb[0].mxu0
        %v3462 = vadd.f32 0.0, %v3461
        %v3463 = vpop.f32.mrb[0].mxu0
        %v3464 = vadd.f32 0.0, %v3463
        %v3465 = vpop.f32.mrb[0].mxu0
        %v3466 = vadd.f32 0.0, %v3465
        %v3467 = vpop.f32.mrb[0].mxu0
        %v3468 = vadd.f32 0.0, %v3467
        %3469 = vmatprep.mubr.bf16.mxu0 0
        %3470 = vmatmul.mubr.bf16.gmra.mrb[0].mxu0 %v3383
        %v3471 = vpop.f32.mrb[0].mxu0
        %v3472 = vadd.f32 0.0, %v3471
        %v3473 = vpop.f32.mrb[0].mxu0
        %v3474 = vadd.f32 0.0, %v3473
        %v3475 = vpop.f32.mrb[0].mxu0
        %v3476 = vadd.f32 0.0, %v3475
        %v3477 = vpop.f32.mrb[0].mxu0
        %v3478 = vadd.f32 0.0, %v3477
        %3479 = vmatprep.mubr.bf16.mxu0 0
        %3480 = vmatmul.mubr.bf16.gmra.mrb[0].mxu0 %v3386
        %v3481 = vpop.f32.mrb[0].mxu0
        %v3482 = vadd.f32 0.0, %v3481
        %v3483 = vpop.f32.mrb[0].mxu0
        %v3484 = vadd.f32 0.0, %v3483
        %v3485 = vpop.f32.mrb[0].mxu0
        %v3486 = vadd.f32 0.0, %v3485
        %v3487 = vpop.f32.mrb[0].mxu0
        %v3488 = vadd.f32 0.0, %v3487
        %3489 = vmatprep.mubr.bf16.mxu0 0
        %3490 = vmatmul.mubr.bf16.gmra.mrb[0].mxu0 %v3389
        %v3491 = vpop.f32.mrb[0].mxu0
        %v3492 = vadd.f32 0.0, %v3491
        %v3493 = vpop.f32.mrb[0].mxu0
        %v3494 = vadd.f32 0.0, %v3493
        %v3495 = vpop.f32.mrb[0].mxu0
        %v3496 = vadd.f32 0.0, %v3495
        %v3497 = vpop.f32.mrb[0].mxu0
        %v3498 = vadd.f32 0.0, %v3497
        %3499 = vmatprep.mubr.bf16.mxu0 0
        %3500 = vmatmul.mubr.bf16.gmra.mrb[0].mxu0 %v3392
        %v3501 = vpop.f32.mrb[0].mxu0
        %v3502 = vadd.f32 0.0, %v3501
        %v3503 = vpop.f32.mrb[0].mxu0
        %v3504 = vadd.f32 0.0, %v3503
        %v3505 = vpop.f32.mrb[0].mxu0
        %v3506 = vadd.f32 0.0, %v3505
        %v3507 = vpop.f32.mrb[0].mxu0
        %v3508 = vadd.f32 0.0, %v3507
        %3509 = vmatprep.mubr.bf16.mxu0 0
        %3510 = vmatmul.mubr.bf16.gmra.mrb[0].mxu0 %v3395
        %v3511 = vpop.f32.mrb[0].mxu0
        %v3512 = vadd.f32 0.0, %v3511
        %v3513 = vpop.f32.mrb[0].mxu0
        %v3514 = vadd.f32 0.0, %v3513
        %v3515 = vpop.f32.mrb[0].mxu0
        %v3516 = vadd.f32 0.0, %v3515
        %v3517 = vpop.f32.mrb[0].mxu0
        %v3518 = vadd.f32 0.0, %v3517
        %3519 = vdwg.mxu0
        %v3520 = vpack.c.bf16 %v3446, %v3442
        %v3521 = vpack.c.bf16 %v3448, %v3444
        %v3522 = vpack.c.bf16 %v3456, %v3452
        %v3523 = vpack.c.bf16 %v3458, %v3454
        %v3524 = vpack.c.bf16 %v3466, %v3462
        %v3525 = vpack.c.bf16 %v3468, %v3464
        %v3526 = vpack.c.bf16 %v3476, %v3472
        %v3527 = vpack.c.bf16 %v3478, %v3474
        %v3528 = vpack.c.bf16 %v3486, %v3482
        %v3529 = vpack.c.bf16 %v3488, %v3484
        %v3530 = vpack.c.bf16 %v3496, %v3492
        %v3531 = vpack.c.bf16 %v3498, %v3494
        %v3532 = vpack.c.bf16 %v3506, %v3502
        %v3533 = vpack.c.bf16 %v3508, %v3504
        %v3534 = vpack.c.bf16 %v3516, %v3512
        %v3535 = vpack.c.bf16 %v3518, %v3514
        %3536 = vst [vmem:[#allocation3] sm:$0xff] %v3520
        %vm3537 = vcmask 793600
        %3538 = vst.msk [vmem:[#allocation3 + $0x8] sm:$0xff] %vm3537, %v3521
        %3539 = vst [vmem:[#allocation3 + $0x10] sm:$0xff] %v3522
        %3540 = vst.msk [vmem:[#allocation3 + $0x18] sm:$0xff] %vm3537, %v3523
        %3541 = vst [vmem:[#allocation3 + $0x20] sm:$0xff] %v3524
        %3542 = vst.msk [vmem:[#allocation3 + $0x28] sm:$0xff] %vm3537, %v3525
        %3543 = vst [vmem:[#allocation3 + $0x30] sm:$0xff] %v3526
        %3544 = vst.msk [vmem:[#allocation3 + $0x38] sm:$0xff] %vm3537, %v3527
        %3545 = vst [vmem:[#allocation3 + $0x40] sm:$0xff] %v3528
        %3546 = vst.msk [vmem:[#allocation3 + $0x48] sm:$0xff] %vm3537, %v3529
        %3547 = vst [vmem:[#allocation3 + $0x50] sm:$0xff] %v3530
        %3548 = vst.msk [vmem:[#allocation3 + $0x58] sm:$0xff] %vm3537, %v3531
        %3549 = vst [vmem:[#allocation3 + $0x60] sm:$0xff] %v3532
        %3550 = vst.msk [vmem:[#allocation3 + $0x68] sm:$0xff] %vm3537, %v3533
        %3551 = vst [vmem:[#allocation3 + $0x70] sm:$0xff] %v3534
        %3552 = vst.msk [vmem:[#allocation3 + $0x78] sm:$0xff] %vm3537, %v3535
        %v3553 = vld [vmem:[#allocation3] sm:$0xff]
        %v3554 = vld [vmem:[#allocation3 + $0x8] sm:$0xff]
        %v3555 = vld [vmem:[#allocation3 + $0x10] sm:$0xff]
        %v3556 = vld [vmem:[#allocation3 + $0x18] sm:$0xff]
        %v3557 = vld [vmem:[#allocation3 + $0x20] sm:$0xff]
        %v3558 = vld [vmem:[#allocation3 + $0x28] sm:$0xff]
        %v3559 = vld [vmem:[#allocation3 + $0x30] sm:$0xff]
        %v3560 = vld [vmem:[#allocation3 + $0x38] sm:$0xff]
        %v3561 = vld [vmem:[#allocation3 + $0x40] sm:$0xff]
        %v3562 = vld [vmem:[#allocation3 + $0x48] sm:$0xff]
        %v3563 = vld [vmem:[#allocation3 + $0x50] sm:$0xff]
        %v3564 = vld [vmem:[#allocation3 + $0x58] sm:$0xff]
        %v3565 = vld [vmem:[#allocation3 + $0x60] sm:$0xff]
        %v3566 = vld [vmem:[#allocation3 + $0x68] sm:$0xff]
        %v3567 = vld [vmem:[#allocation3 + $0x70] sm:$0xff]
        %v3568 = vld [vmem:[#allocation3 + $0x78] sm:$0xff]
        %3569 = vst [vmem:[#allocation7] sm:$0xff] %v3553
        %vm3570 = vcmask 531456
        %3571 = vst.msk [vmem:[#allocation7 + $0x8] sm:$0xff] %vm3570, %v3554
        %3572 = vst [vmem:[#allocation7 + $0x10] sm:$0xff] %v3555
        %3573 = vst.msk [vmem:[#allocation7 + $0x18] sm:$0xff] %vm3570, %v3556
        %3574 = vst [vmem:[#allocation7 + $0x20] sm:$0xff] %v3557
        %3575 = vst.msk [vmem:[#allocation7 + $0x28] sm:$0xff] %vm3570, %v3558
        %3576 = vst [vmem:[#allocation7 + $0x30] sm:$0xff] %v3559
        %3577 = vst.msk [vmem:[#allocation7 + $0x38] sm:$0xff] %vm3570, %v3560
        %3578 = vst [vmem:[#allocation7 + $0x40] sm:$0xff] %v3561
        %3579 = vst.msk [vmem:[#allocation7 + $0x48] sm:$0xff] %vm3570, %v3562
        %3580 = vst [vmem:[#allocation7 + $0x50] sm:$0xff] %v3563
        %3581 = vst.msk [vmem:[#allocation7 + $0x58] sm:$0xff] %vm3570, %v3564
        %3582 = vst [vmem:[#allocation7 + $0x60] sm:$0xff] %v3565
        %3583 = vst.msk [vmem:[#allocation7 + $0x68] sm:$0xff] %vm3570, %v3566
        %3584 = vst [vmem:[#allocation7 + $0x70] sm:$0xff] %v3567
        %3585 = vst.msk [vmem:[#allocation7 + $0x78] sm:$0xff] %vm3570, %v3568
        %v3586 = vld [vmem:[#allocation3] sm:$0xff]
        %v3587 = vld [vmem:[#allocation3 + $0x8] sm:$0xff]
        %v3588 = vld [vmem:[#allocation3 + $0x10] sm:$0xff]
        %v3589 = vld [vmem:[#allocation3 + $0x18] sm:$0xff]
        %v3590 = vld [vmem:[#allocation3 + $0x20] sm:$0xff]
        %v3591 = vld [vmem:[#allocation3 + $0x28] sm:$0xff]
        %v3592 = vld [vmem:[#allocation3 + $0x30] sm:$0xff]
        %v3593 = vld [vmem:[#allocation3 + $0x38] sm:$0xff]
        %v3594 = vld [vmem:[#allocation3 + $0x40] sm:$0xff]
        %v3595 = vld [vmem:[#allocation3 + $0x48] sm:$0xff]
        %v3596 = vld [vmem:[#allocation3 + $0x50] sm:$0xff]
        %v3597 = vld [vmem:[#allocation3 + $0x58] sm:$0xff]
        %v3598 = vld [vmem:[#allocation3 + $0x60] sm:$0xff]
        %v3599 = vld [vmem:[#allocation3 + $0x68] sm:$0xff]
        %v3600 = vld [vmem:[#allocation3 + $0x70] sm:$0xff]
        %v3601 = vld [vmem:[#allocation3 + $0x78] sm:$0xff]
        %3618 = vrot.lane.b32.xlu0 %v3586, 127
        %v3619 = vpop.permute.xlu0 %3618
        %3620 = vrot.lane.b32.xlu0 %v3587, 127
        %v3621 = vpop.permute.xlu0 %3620
        %3622 = vrot.lane.b32.xlu0 %v3588, 127
        %v3623 = vpop.permute.xlu0 %3622
        %3624 = vrot.lane.b32.xlu0 %v3589, 127
        %v3625 = vpop.permute.xlu0 %3624
        %3626 = vrot.lane.b32.xlu0 %v3590, 127
        %v3627 = vpop.permute.xlu0 %3626
        %3628 = vrot.lane.b32.xlu0 %v3591, 127
        %v3629 = vpop.permute.xlu0 %3628
        %3630 = vrot.lane.b32.xlu0 %v3592, 127
        %v3631 = vpop.permute.xlu0 %3630
        %3632 = vrot.lane.b32.xlu0 %v3593, 127
        %v3633 = vpop.permute.xlu0 %3632
        %3634 = vrot.lane.b32.xlu0 %v3594, 127
        %v3635 = vpop.permute.xlu0 %3634
        %3636 = vrot.lane.b32.xlu0 %v3595, 127
        %v3637 = vpop.permute.xlu0 %3636
        %3638 = vrot.lane.b32.xlu0 %v3596, 127
        %v3639 = vpop.permute.xlu0 %3638
        %3640 = vrot.lane.b32.xlu0 %v3597, 127
        %v3641 = vpop.permute.xlu0 %3640
        %3642 = vrot.lane.b32.xlu0 %v3598, 127
        %v3643 = vpop.permute.xlu0 %3642
        %3644 = vrot.lane.b32.xlu0 %v3599, 127
        %v3645 = vpop.permute.xlu0 %3644
        %3646 = vrot.lane.b32.xlu0 %v3600, 127
        %v3647 = vpop.permute.xlu0 %3646
        %3648 = vrot.lane.b32.xlu0 %v3601, 127
        %v3649 = vpop.permute.xlu0 %3648
        %vm3650 = vcmask 1039360
        %v3651 = vsel %vm3650, %v3619, %v3621
        %v3652 = vsel %vm3650, %v3623, %v3625
        %v3653 = vsel %vm3650, %v3627, %v3629
        %v3654 = vsel %vm3650, %v3631, %v3633
        %v3655 = vsel %vm3650, %v3635, %v3637
        %v3656 = vsel %vm3650, %v3639, %v3641
        %v3657 = vsel %vm3650, %v3643, %v3645
        %v3658 = vsel %vm3650, %v3647, %v3649
        %3675 = vst [vmem:[#allocation7 + $0x80] sm:$0xff] %v3651
        %3676 = vst.msk [vmem:[#allocation7 + $0x88] sm:$0xff] %vm3570, %v3621
        %3677 = vst [vmem:[#allocation7 + $0x90] sm:$0xff] %v3652
        %3678 = vst.msk [vmem:[#allocation7 + $0x98] sm:$0xff] %vm3570, %v3625
        %3679 = vst [vmem:[#allocation7 + $0xa0] sm:$0xff] %v3653
        %3680 = vst.msk [vmem:[#allocation7 + $0xa8] sm:$0xff] %vm3570, %v3629
        %3681 = vst [vmem:[#allocation7 + $0xb0] sm:$0xff] %v3654
        %3682 = vst.msk [vmem:[#allocation7 + $0xb8] sm:$0xff] %vm3570, %v3633
        %3683 = vst [vmem:[#allocation7 + $0xc0] sm:$0xff] %v3655
        %3684 = vst.msk [vmem:[#allocation7 + $0xc8] sm:$0xff] %vm3570, %v3637
        %3685 = vst [vmem:[#allocation7 + $0xd0] sm:$0xff] %v3656
        %3686 = vst.msk [vmem:[#allocation7 + $0xd8] sm:$0xff] %vm3570, %v3641
        %3687 = vst [vmem:[#allocation7 + $0xe0] sm:$0xff] %v3657
        %3688 = vst.msk [vmem:[#allocation7 + $0xe8] sm:$0xff] %vm3570, %v3645
        %3689 = vst [vmem:[#allocation7 + $0xf0] sm:$0xff] %v3658
        %3690 = vst.msk [vmem:[#allocation7 + $0xf8] sm:$0xff] %vm3570, %v3649
        %v3691 = vld [vmem:[#allocation3] sm:$0xff]
        %v3692 = vld [vmem:[#allocation3 + $0x8] sm:$0xff]
        %v3693 = vld [vmem:[#allocation3 + $0x10] sm:$0xff]
        %v3694 = vld [vmem:[#allocation3 + $0x18] sm:$0xff]
        %v3695 = vld [vmem:[#allocation3 + $0x20] sm:$0xff]
        %v3696 = vld [vmem:[#allocation3 + $0x28] sm:$0xff]
        %v3697 = vld [vmem:[#allocation3 + $0x30] sm:$0xff]
        %v3698 = vld [vmem:[#allocation3 + $0x38] sm:$0xff]
        %v3699 = vld [vmem:[#allocation3 + $0x40] sm:$0xff]
        %v3700 = vld [vmem:[#allocation3 + $0x48] sm:$0xff]
        %v3701 = vld [vmem:[#allocation3 + $0x50] sm:$0xff]
        %v3702 = vld [vmem:[#allocation3 + $0x58] sm:$0xff]
        %v3703 = vld [vmem:[#allocation3 + $0x60] sm:$0xff]
        %v3704 = vld [vmem:[#allocation3 + $0x68] sm:$0xff]
        %v3705 = vld [vmem:[#allocation3 + $0x70] sm:$0xff]
        %v3706 = vld [vmem:[#allocation3 + $0x78] sm:$0xff]
        %3723 = vrot.lane.b32.xlu0 %v3691, 126
        %v3724 = vpop.permute.xlu0 %3723
        %3725 = vrot.lane.b32.xlu0 %v3692, 126
        %v3726 = vpop.permute.xlu0 %3725
        %3727 = vrot.lane.b32.xlu0 %v3693, 126
        %v3728 = vpop.permute.xlu0 %3727
        %3729 = vrot.lane.b32.xlu0 %v3694, 126
        %v3730 = vpop.permute.xlu0 %3729
        %3731 = vrot.lane.b32.xlu0 %v3695, 126
        %v3732 = vpop.permute.xlu0 %3731
        %3733 = vrot.lane.b32.xlu0 %v3696, 126
        %v3734 = vpop.permute.xlu0 %3733
        %3735 = vrot.lane.b32.xlu0 %v3697, 126
        %v3736 = vpop.permute.xlu0 %3735
        %3737 = vrot.lane.b32.xlu0 %v3698, 126
        %v3738 = vpop.permute.xlu0 %3737
        %3739 = vrot.lane.b32.xlu0 %v3699, 126
        %v3740 = vpop.permute.xlu0 %3739
        %3741 = vrot.lane.b32.xlu0 %v3700, 126
        %v3742 = vpop.permute.xlu0 %3741
        %3743 = vrot.lane.b32.xlu0 %v3701, 126
        %v3744 = vpop.permute.xlu0 %3743
        %3745 = vrot.lane.b32.xlu0 %v3702, 126
        %v3746 = vpop.permute.xlu0 %3745
        %3747 = vrot.lane.b32.xlu0 %v3703, 126
        %v3748 = vpop.permute.xlu0 %3747
        %3749 = vrot.lane.b32.xlu0 %v3704, 126
        %v3750 = vpop.permute.xlu0 %3749
        %3751 = vrot.lane.b32.xlu0 %v3705, 126
        %v3752 = vpop.permute.xlu0 %3751
        %3753 = vrot.lane.b32.xlu0 %v3706, 126
        %v3754 = vpop.permute.xlu0 %3753
        %vm3755 = vcmask 1031168
        %v3756 = vsel %vm3755, %v3724, %v3726
        %v3757 = vsel %vm3755, %v3728, %v3730
        %v3758 = vsel %vm3755, %v3732, %v3734
        %v3759 = vsel %vm3755, %v3736, %v3738
        %v3760 = vsel %vm3755, %v3740, %v3742
        %v3761 = vsel %vm3755, %v3744, %v3746
        %v3762 = vsel %vm3755, %v3748, %v3750
        %v3763 = vsel %vm3755, %v3752, %v3754
        %3780 = vst [vmem:[#allocation7 + $0x100] sm:$0xff] %v3756
        %3781 = vst.msk [vmem:[#allocation7 + $0x108] sm:$0xff] %vm3570, %v3726
        %3782 = vst [vmem:[#allocation7 + $0x110] sm:$0xff] %v3757
        %3783 = vst.msk [vmem:[#allocation7 + $0x118] sm:$0xff] %vm3570, %v3730
        %3784 = vst [vmem:[#allocation7 + $0x120] sm:$0xff] %v3758
        %3785 = vst.msk [vmem:[#allocation7 + $0x128] sm:$0xff] %vm3570, %v3734
        %3786 = vst [vmem:[#allocation7 + $0x130] sm:$0xff] %v3759
        %3787 = vst.msk [vmem:[#allocation7 + $0x138] sm:$0xff] %vm3570, %v3738
        %3788 = vst [vmem:[#allocation7 + $0x140] sm:$0xff] %v3760
        %3789 = vst.msk [vmem:[#allocation7 + $0x148] sm:$0xff] %vm3570, %v3742
        %3790 = vst [vmem:[#allocation7 + $0x150] sm:$0xff] %v3761
        %3791 = vst.msk [vmem:[#allocation7 + $0x158] sm:$0xff] %vm3570, %v3746
        %3792 = vst [vmem:[#allocation7 + $0x160] sm:$0xff] %v3762
        %3793 = vst.msk [vmem:[#allocation7 + $0x168] sm:$0xff] %vm3570, %v3750
        %3794 = vst [vmem:[#allocation7 + $0x170] sm:$0xff] %v3763
        %3795 = vst.msk [vmem:[#allocation7 + $0x178] sm:$0xff] %vm3570, %v3754
        %v3796 = vld [vmem:[#allocation3] sm:$0xff]
        %v3797 = vld [vmem:[#allocation3 + $0x8] sm:$0xff]
        %v3798 = vld [vmem:[#allocation3 + $0x10] sm:$0xff]
        %v3799 = vld [vmem:[#allocation3 + $0x18] sm:$0xff]
        %v3800 = vld [vmem:[#allocation3 + $0x20] sm:$0xff]
        %v3801 = vld [vmem:[#allocation3 + $0x28] sm:$0xff]
        %v3802 = vld [vmem:[#allocation3 + $0x30] sm:$0xff]
        %v3803 = vld [vmem:[#allocation3 + $0x38] sm:$0xff]
        %v3804 = vld [vmem:[#allocation3 + $0x40] sm:$0xff]
        %v3805 = vld [vmem:[#allocation3 + $0x48] sm:$0xff]
        %v3806 = vld [vmem:[#allocation3 + $0x50] sm:$0xff]
        %v3807 = vld [vmem:[#allocation3 + $0x58] sm:$0xff]
        %v3808 = vld [vmem:[#allocation3 + $0x60] sm:$0xff]
        %v3809 = vld [vmem:[#allocation3 + $0x68] sm:$0xff]
        %v3810 = vld [vmem:[#allocation3 + $0x70] sm:$0xff]
        %v3811 = vld [vmem:[#allocation3 + $0x78] sm:$0xff]
        %3828 = vrot.lane.b32.xlu0 %v3796, 113
        %v3829 = vpop.permute.xlu0 %3828
        %3830 = vrot.lane.b32.xlu0 %v3797, 113
        %v3831 = vpop.permute.xlu0 %3830
        %3832 = vrot.lane.b32.xlu0 %v3798, 113
        %v3833 = vpop.permute.xlu0 %3832
        %3834 = vrot.lane.b32.xlu0 %v3799, 113
        %v3835 = vpop.permute.xlu0 %3834
        %3836 = vrot.lane.b32.xlu0 %v3800, 113
        %v3837 = vpop.permute.xlu0 %3836
        %3838 = vrot.lane.b32.xlu0 %v3801, 113
        %v3839 = vpop.permute.xlu0 %3838
        %3840 = vrot.lane.b32.xlu0 %v3802, 113
        %v3841 = vpop.permute.xlu0 %3840
        %3842 = vrot.lane.b32.xlu0 %v3803, 113
        %v3843 = vpop.permute.xlu0 %3842
        %3844 = vrot.lane.b32.xlu0 %v3804, 113
        %v3845 = vpop.permute.xlu0 %3844
        %3846 = vrot.lane.b32.xlu0 %v3805, 113
        %v3847 = vpop.permute.xlu0 %3846
        %3848 = vrot.lane.b32.xlu0 %v3806, 113
        %v3849 = vpop.permute.xlu0 %3848
        %3850 = vrot.lane.b32.xlu0 %v3807, 113
        %v3851 = vpop.permute.xlu0 %3850
        %3852 = vrot.lane.b32.xlu0 %v3808, 113
        %v3853 = vpop.permute.xlu0 %3852
        %3854 = vrot.lane.b32.xlu0 %v3809, 113
        %v3855 = vpop.permute.xlu0 %3854
        %3856 = vrot.lane.b32.xlu0 %v3810, 113
        %v3857 = vpop.permute.xlu0 %3856
        %3858 = vrot.lane.b32.xlu0 %v3811, 113
        %v3859 = vpop.permute.xlu0 %3858
        %vm3860 = vcmask 924672
        %v3861 = vsel %vm3860, %v3829, %v3831
        %v3862 = vsel %vm3860, %v3833, %v3835
        %v3863 = vsel %vm3860, %v3837, %v3839
        %v3864 = vsel %vm3860, %v3841, %v3843
        %v3865 = vsel %vm3860, %v3845, %v3847
        %v3866 = vsel %vm3860, %v3849, %v3851
        %v3867 = vsel %vm3860, %v3853, %v3855
        %v3868 = vsel %vm3860, %v3857, %v3859
        %3885 = vst [vmem:[#allocation7 + $0x180] sm:$0xff] %v3861
        %3886 = vst.msk [vmem:[#allocation7 + $0x188] sm:$0xff] %vm3570, %v3831
        %3887 = vst [vmem:[#allocation7 + $0x190] sm:$0xff] %v3862
        %3888 = vst.msk [vmem:[#allocation7 + $0x198] sm:$0xff] %vm3570, %v3835
        %3889 = vst [vmem:[#allocation7 + $0x1a0] sm:$0xff] %v3863
        %3890 = vst.msk [vmem:[#allocation7 + $0x1a8] sm:$0xff] %vm3570, %v3839
        %3891 = vst [vmem:[#allocation7 + $0x1b0] sm:$0xff] %v3864
        %3892 = vst.msk [vmem:[#allocation7 + $0x1b8] sm:$0xff] %vm3570, %v3843
        %3893 = vst [vmem:[#allocation7 + $0x1c0] sm:$0xff] %v3865
        %3894 = vst.msk [vmem:[#allocation7 + $0x1c8] sm:$0xff] %vm3570, %v3847
        %3895 = vst [vmem:[#allocation7 + $0x1d0] sm:$0xff] %v3866
        %3896 = vst.msk [vmem:[#allocation7 + $0x1d8] sm:$0xff] %vm3570, %v3851
        %3897 = vst [vmem:[#allocation7 + $0x1e0] sm:$0xff] %v3867
        %3898 = vst.msk [vmem:[#allocation7 + $0x1e8] sm:$0xff] %vm3570, %v3855
        %3899 = vst [vmem:[#allocation7 + $0x1f0] sm:$0xff] %v3868
        %3900 = vst.msk [vmem:[#allocation7 + $0x1f8] sm:$0xff] %vm3570, %v3859
        %v3901 = vld [vmem:[#allocation3] sm:$0xff]
        %v3902 = vld [vmem:[#allocation3 + $0x8] sm:$0xff]
        %v3903 = vld [vmem:[#allocation3 + $0x10] sm:$0xff]
        %v3904 = vld [vmem:[#allocation3 + $0x18] sm:$0xff]
        %v3905 = vld [vmem:[#allocation3 + $0x20] sm:$0xff]
        %v3906 = vld [vmem:[#allocation3 + $0x28] sm:$0xff]
        %v3907 = vld [vmem:[#allocation3 + $0x30] sm:$0xff]
        %v3908 = vld [vmem:[#allocation3 + $0x38] sm:$0xff]
        %v3909 = vld [vmem:[#allocation3 + $0x40] sm:$0xff]
        %v3910 = vld [vmem:[#allocation3 + $0x48] sm:$0xff]
        %v3911 = vld [vmem:[#allocation3 + $0x50] sm:$0xff]
        %v3912 = vld [vmem:[#allocation3 + $0x58] sm:$0xff]
        %v3913 = vld [vmem:[#allocation3 + $0x60] sm:$0xff]
        %v3914 = vld [vmem:[#allocation3 + $0x68] sm:$0xff]
        %v3915 = vld [vmem:[#allocation3 + $0x70] sm:$0xff]
        %v3916 = vld [vmem:[#allocation3 + $0x78] sm:$0xff]
        %3933 = vrot.lane.b32.xlu0 %v3901, 112
        %v3934 = vpop.permute.xlu0 %3933
        %3935 = vrot.lane.b32.xlu0 %v3902, 112
        %v3936 = vpop.permute.xlu0 %3935
        %3937 = vrot.lane.b32.xlu0 %v3903, 112
        %v3938 = vpop.permute.xlu0 %3937
        %3939 = vrot.lane.b32.xlu0 %v3904, 112
        %v3940 = vpop.permute.xlu0 %3939
        %3941 = vrot.lane.b32.xlu0 %v3905, 112
        %v3942 = vpop.permute.xlu0 %3941
        %3943 = vrot.lane.b32.xlu0 %v3906, 112
        %v3944 = vpop.permute.xlu0 %3943
        %3945 = vrot.lane.b32.xlu0 %v3907, 112
        %v3946 = vpop.permute.xlu0 %3945
        %3947 = vrot.lane.b32.xlu0 %v3908, 112
        %v3948 = vpop.permute.xlu0 %3947
        %3949 = vrot.lane.b32.xlu0 %v3909, 112
        %v3950 = vpop.permute.xlu0 %3949
        %3951 = vrot.lane.b32.xlu0 %v3910, 112
        %v3952 = vpop.permute.xlu0 %3951
        %3953 = vrot.lane.b32.xlu0 %v3911, 112
        %v3954 = vpop.permute.xlu0 %3953
        %3955 = vrot.lane.b32.xlu0 %v3912, 112
        %v3956 = vpop.permute.xlu0 %3955
        %3957 = vrot.lane.b32.xlu0 %v3913, 112
        %v3958 = vpop.permute.xlu0 %3957
        %3959 = vrot.lane.b32.xlu0 %v3914, 112
        %v3960 = vpop.permute.xlu0 %3959
        %3961 = vrot.lane.b32.xlu0 %v3915, 112
        %v3962 = vpop.permute.xlu0 %3961
        %3963 = vrot.lane.b32.xlu0 %v3916, 112
        %v3964 = vpop.permute.xlu0 %3963
        %vm3965 = vcmask 916480
        %v3966 = vsel %vm3965, %v3934, %v3936
        %v3967 = vsel %vm3965, %v3938, %v3940
        %v3968 = vsel %vm3965, %v3942, %v3944
        %v3969 = vsel %vm3965, %v3946, %v3948
        %v3970 = vsel %vm3965, %v3950, %v3952
        %v3971 = vsel %vm3965, %v3954, %v3956
        %v3972 = vsel %vm3965, %v3958, %v3960
        %v3973 = vsel %vm3965, %v3962, %v3964
        %3990 = vst [vmem:[#allocation7 + $0x200] sm:$0xff] %v3966
        %3991 = vst.msk [vmem:[#allocation7 + $0x208] sm:$0xff] %vm3570, %v3936
        %3992 = vst [vmem:[#allocation7 + $0x210] sm:$0xff] %v3967
        %3993 = vst.msk [vmem:[#allocation7 + $0x218] sm:$0xff] %vm3570, %v3940
        %3994 = vst [vmem:[#allocation7 + $0x220] sm:$0xff] %v3968
        %3995 = vst.msk [vmem:[#allocation7 + $0x228] sm:$0xff] %vm3570, %v3944
        %3996 = vst [vmem:[#allocation7 + $0x230] sm:$0xff] %v3969
        %3997 = vst.msk [vmem:[#allocation7 + $0x238] sm:$0xff] %vm3570, %v3948
        %3998 = vst [vmem:[#allocation7 + $0x240] sm:$0xff] %v3970
        %3999 = vst.msk [vmem:[#allocation7 + $0x248] sm:$0xff] %vm3570, %v3952
        %4000 = vst [vmem:[#allocation7 + $0x250] sm:$0xff] %v3971
        %4001 = vst.msk [vmem:[#allocation7 + $0x258] sm:$0xff] %vm3570, %v3956
        %4002 = vst [vmem:[#allocation7 + $0x260] sm:$0xff] %v3972
        %4003 = vst.msk [vmem:[#allocation7 + $0x268] sm:$0xff] %vm3570, %v3960
        %4004 = vst [vmem:[#allocation7 + $0x270] sm:$0xff] %v3973
        %4005 = vst.msk [vmem:[#allocation7 + $0x278] sm:$0xff] %vm3570, %v3964
        %v4006 = vld [vmem:[#allocation3] sm:$0xff]
        %v4007 = vld [vmem:[#allocation3 + $0x8] sm:$0xff]
        %v4008 = vld [vmem:[#allocation3 + $0x10] sm:$0xff]
        %v4009 = vld [vmem:[#allocation3 + $0x18] sm:$0xff]
        %v4010 = vld [vmem:[#allocation3 + $0x20] sm:$0xff]
        %v4011 = vld [vmem:[#allocation3 + $0x28] sm:$0xff]
        %v4012 = vld [vmem:[#allocation3 + $0x30] sm:$0xff]
        %v4013 = vld [vmem:[#allocation3 + $0x38] sm:$0xff]
        %v4014 = vld [vmem:[#allocation3 + $0x40] sm:$0xff]
        %v4015 = vld [vmem:[#allocation3 + $0x48] sm:$0xff]
        %v4016 = vld [vmem:[#allocation3 + $0x50] sm:$0xff]
        %v4017 = vld [vmem:[#allocation3 + $0x58] sm:$0xff]
        %v4018 = vld [vmem:[#allocation3 + $0x60] sm:$0xff]
        %v4019 = vld [vmem:[#allocation3 + $0x68] sm:$0xff]
        %v4020 = vld [vmem:[#allocation3 + $0x70] sm:$0xff]
        %v4021 = vld [vmem:[#allocation3 + $0x78] sm:$0xff]
        %4038 = vrot.lane.b32.xlu0 %v4006, 111
        %v4039 = vpop.permute.xlu0 %4038
        %4040 = vrot.lane.b32.xlu0 %v4007, 111
        %v4041 = vpop.permute.xlu0 %4040
        %4042 = vrot.lane.b32.xlu0 %v4008, 111
        %v4043 = vpop.permute.xlu0 %4042
        %4044 = vrot.lane.b32.xlu0 %v4009, 111
        %v4045 = vpop.permute.xlu0 %4044
        %4046 = vrot.lane.b32.xlu0 %v4010, 111
        %v4047 = vpop.permute.xlu0 %4046
        %4048 = vrot.lane.b32.xlu0 %v4011, 111
        %v4049 = vpop.permute.xlu0 %4048
        %4050 = vrot.lane.b32.xlu0 %v4012, 111
        %v4051 = vpop.permute.xlu0 %4050
        %4052 = vrot.lane.b32.xlu0 %v4013, 111
        %v4053 = vpop.permute.xlu0 %4052
        %4054 = vrot.lane.b32.xlu0 %v4014, 111
        %v4055 = vpop.permute.xlu0 %4054
        %4056 = vrot.lane.b32.xlu0 %v4015, 111
        %v4057 = vpop.permute.xlu0 %4056
        %4058 = vrot.lane.b32.xlu0 %v4016, 111
        %v4059 = vpop.permute.xlu0 %4058
        %4060 = vrot.lane.b32.xlu0 %v4017, 111
        %v4061 = vpop.permute.xlu0 %4060
        %4062 = vrot.lane.b32.xlu0 %v4018, 111
        %v4063 = vpop.permute.xlu0 %4062
        %4064 = vrot.lane.b32.xlu0 %v4019, 111
        %v4065 = vpop.permute.xlu0 %4064
        %4066 = vrot.lane.b32.xlu0 %v4020, 111
        %v4067 = vpop.permute.xlu0 %4066
        %4068 = vrot.lane.b32.xlu0 %v4021, 111
        %v4069 = vpop.permute.xlu0 %4068
        %vm4070 = vcmask 908288
        %v4071 = vsel %vm4070, %v4039, %v4041
        %v4072 = vsel %vm4070, %v4043, %v4045
        %v4073 = vsel %vm4070, %v4047, %v4049
        %v4074 = vsel %vm4070, %v4051, %v4053
        %v4075 = vsel %vm4070, %v4055, %v4057
        %v4076 = vsel %vm4070, %v4059, %v4061
        %v4077 = vsel %vm4070, %v4063, %v4065
        %v4078 = vsel %vm4070, %v4067, %v4069
        %4095 = vst [vmem:[#allocation7 + $0x280] sm:$0xff] %v4071
        %4096 = vst.msk [vmem:[#allocation7 + $0x288] sm:$0xff] %vm3570, %v4041
        %4097 = vst [vmem:[#allocation7 + $0x290] sm:$0xff] %v4072
        %4098 = vst.msk [vmem:[#allocation7 + $0x298] sm:$0xff] %vm3570, %v4045
        %4099 = vst [vmem:[#allocation7 + $0x2a0] sm:$0xff] %v4073
        %4100 = vst.msk [vmem:[#allocation7 + $0x2a8] sm:$0xff] %vm3570, %v4049
        %4101 = vst [vmem:[#allocation7 + $0x2b0] sm:$0xff] %v4074
        %4102 = vst.msk [vmem:[#allocation7 + $0x2b8] sm:$0xff] %vm3570, %v4053
        %4103 = vst [vmem:[#allocation7 + $0x2c0] sm:$0xff] %v4075
        %4104 = vst.msk [vmem:[#allocation7 + $0x2c8] sm:$0xff] %vm3570, %v4057
        %4105 = vst [vmem:[#allocation7 + $0x2d0] sm:$0xff] %v4076
        %4106 = vst.msk [vmem:[#allocation7 + $0x2d8] sm:$0xff] %vm3570, %v4061
        %4107 = vst [vmem:[#allocation7 + $0x2e0] sm:$0xff] %v4077
        %4108 = vst.msk [vmem:[#allocation7 + $0x2e8] sm:$0xff] %vm3570, %v4065
        %4109 = vst [vmem:[#allocation7 + $0x2f0] sm:$0xff] %v4078
        %4110 = vst.msk [vmem:[#allocation7 + $0x2f8] sm:$0xff] %vm3570, %v4069
        %v4111 = vld [vmem:[#allocation3] sm:$0xff]
        %v4112 = vld [vmem:[#allocation3 + $0x8] sm:$0xff]
        %v4113 = vld [vmem:[#allocation3 + $0x10] sm:$0xff]
        %v4114 = vld [vmem:[#allocation3 + $0x18] sm:$0xff]
        %v4115 = vld [vmem:[#allocation3 + $0x20] sm:$0xff]
        %v4116 = vld [vmem:[#allocation3 + $0x28] sm:$0xff]
        %v4117 = vld [vmem:[#allocation3 + $0x30] sm:$0xff]
        %v4118 = vld [vmem:[#allocation3 + $0x38] sm:$0xff]
        %v4119 = vld [vmem:[#allocation3 + $0x40] sm:$0xff]
        %v4120 = vld [vmem:[#allocation3 + $0x48] sm:$0xff]
        %v4121 = vld [vmem:[#allocation3 + $0x50] sm:$0xff]
        %v4122 = vld [vmem:[#allocation3 + $0x58] sm:$0xff]
        %v4123 = vld [vmem:[#allocation3 + $0x60] sm:$0xff]
        %v4124 = vld [vmem:[#allocation3 + $0x68] sm:$0xff]
        %v4125 = vld [vmem:[#allocation3 + $0x70] sm:$0xff]
        %v4126 = vld [vmem:[#allocation3 + $0x78] sm:$0xff]
        %4143 = vrot.lane.b32.xlu0 %v4111, 98
        %v4144 = vpop.permute.xlu0 %4143
        %4145 = vrot.lane.b32.xlu0 %v4112, 98
        %v4146 = vpop.permute.xlu0 %4145
        %4147 = vrot.lane.b32.xlu0 %v4113, 98
        %v4148 = vpop.permute.xlu0 %4147
        %4149 = vrot.lane.b32.xlu0 %v4114, 98
        %v4150 = vpop.permute.xlu0 %4149
        %4151 = vrot.lane.b32.xlu0 %v4115, 98
        %v4152 = vpop.permute.xlu0 %4151
        %4153 = vrot.lane.b32.xlu0 %v4116, 98
        %v4154 = vpop.permute.xlu0 %4153
        %4155 = vrot.lane.b32.xlu0 %v4117, 98
        %v4156 = vpop.permute.xlu0 %4155
        %4157 = vrot.lane.b32.xlu0 %v4118, 98
        %v4158 = vpop.permute.xlu0 %4157
        %4159 = vrot.lane.b32.xlu0 %v4119, 98
        %v4160 = vpop.permute.xlu0 %4159
        %4161 = vrot.lane.b32.xlu0 %v4120, 98
        %v4162 = vpop.permute.xlu0 %4161
        %4163 = vrot.lane.b32.xlu0 %v4121, 98
        %v4164 = vpop.permute.xlu0 %4163
        %4165 = vrot.lane.b32.xlu0 %v4122, 98
        %v4166 = vpop.permute.xlu0 %4165
        %4167 = vrot.lane.b32.xlu0 %v4123, 98
        %v4168 = vpop.permute.xlu0 %4167
        %4169 = vrot.lane.b32.xlu0 %v4124, 98
        %v4170 = vpop.permute.xlu0 %4169
        %4171 = vrot.lane.b32.xlu0 %v4125, 98
        %v4172 = vpop.permute.xlu0 %4171
        %4173 = vrot.lane.b32.xlu0 %v4126, 98
        %v4174 = vpop.permute.xlu0 %4173
        %vm4175 = vcmask 801792
        %v4176 = vsel %vm4175, %v4144, %v4146
        %v4177 = vsel %vm4175, %v4148, %v4150
        %v4178 = vsel %vm4175, %v4152, %v4154
        %v4179 = vsel %vm4175, %v4156, %v4158
        %v4180 = vsel %vm4175, %v4160, %v4162
        %v4181 = vsel %vm4175, %v4164, %v4166
        %v4182 = vsel %vm4175, %v4168, %v4170
        %v4183 = vsel %vm4175, %v4172, %v4174
        %4200 = vst [vmem:[#allocation7 + $0x300] sm:$0xff] %v4176
        %4201 = vst.msk [vmem:[#allocation7 + $0x308] sm:$0xff] %vm3570, %v4146
        %4202 = vst [vmem:[#allocation7 + $0x310] sm:$0xff] %v4177
        %4203 = vst.msk [vmem:[#allocation7 + $0x318] sm:$0xff] %vm3570, %v4150
        %4204 = vst [vmem:[#allocation7 + $0x320] sm:$0xff] %v4178
        %4205 = vst.msk [vmem:[#allocation7 + $0x328] sm:$0xff] %vm3570, %v4154
        %4206 = vst [vmem:[#allocation7 + $0x330] sm:$0xff] %v4179
        %4207 = vst.msk [vmem:[#allocation7 + $0x338] sm:$0xff] %vm3570, %v4158
        %4208 = vst [vmem:[#allocation7 + $0x340] sm:$0xff] %v4180
        %4209 = vst.msk [vmem:[#allocation7 + $0x348] sm:$0xff] %vm3570, %v4162
        %4210 = vst [vmem:[#allocation7 + $0x350] sm:$0xff] %v4181
        %4211 = vst.msk [vmem:[#allocation7 + $0x358] sm:$0xff] %vm3570, %v4166
        %4212 = vst [vmem:[#allocation7 + $0x360] sm:$0xff] %v4182
        %4213 = vst.msk [vmem:[#allocation7 + $0x368] sm:$0xff] %vm3570, %v4170
        %4214 = vst [vmem:[#allocation7 + $0x370] sm:$0xff] %v4183
        %4215 = vst.msk [vmem:[#allocation7 + $0x378] sm:$0xff] %vm3570, %v4174
        %v4216 = vld [vmem:[#allocation3] sm:$0xff]
        %v4217 = vld [vmem:[#allocation3 + $0x8] sm:$0xff]
        %v4218 = vld [vmem:[#allocation3 + $0x10] sm:$0xff]
        %v4219 = vld [vmem:[#allocation3 + $0x18] sm:$0xff]
        %v4220 = vld [vmem:[#allocation3 + $0x20] sm:$0xff]
        %v4221 = vld [vmem:[#allocation3 + $0x28] sm:$0xff]
        %v4222 = vld [vmem:[#allocation3 + $0x30] sm:$0xff]
        %v4223 = vld [vmem:[#allocation3 + $0x38] sm:$0xff]
        %v4224 = vld [vmem:[#allocation3 + $0x40] sm:$0xff]
        %v4225 = vld [vmem:[#allocation3 + $0x48] sm:$0xff]
        %v4226 = vld [vmem:[#allocation3 + $0x50] sm:$0xff]
        %v4227 = vld [vmem:[#allocation3 + $0x58] sm:$0xff]
        %v4228 = vld [vmem:[#allocation3 + $0x60] sm:$0xff]
        %v4229 = vld [vmem:[#allocation3 + $0x68] sm:$0xff]
        %v4230 = vld [vmem:[#allocation3 + $0x70] sm:$0xff]
        %v4231 = vld [vmem:[#allocation3 + $0x78] sm:$0xff]
        %4248 = vrot.lane.b32.xlu0 %v4216, 97
        %v4249 = vpop.permute.xlu0 %4248
        %4250 = vrot.lane.b32.xlu0 %v4217, 97
        %v4251 = vpop.permute.xlu0 %4250
        %4252 = vrot.lane.b32.xlu0 %v4218, 97
        %v4253 = vpop.permute.xlu0 %4252
        %4254 = vrot.lane.b32.xlu0 %v4219, 97
        %v4255 = vpop.permute.xlu0 %4254
        %4256 = vrot.lane.b32.xlu0 %v4220, 97
        %v4257 = vpop.permute.xlu0 %4256
        %4258 = vrot.lane.b32.xlu0 %v4221, 97
        %v4259 = vpop.permute.xlu0 %4258
        %4260 = vrot.lane.b32.xlu0 %v4222, 97
        %v4261 = vpop.permute.xlu0 %4260
        %4262 = vrot.lane.b32.xlu0 %v4223, 97
        %v4263 = vpop.permute.xlu0 %4262
        %4264 = vrot.lane.b32.xlu0 %v4224, 97
        %v4265 = vpop.permute.xlu0 %4264
        %4266 = vrot.lane.b32.xlu0 %v4225, 97
        %v4267 = vpop.permute.xlu0 %4266
        %4268 = vrot.lane.b32.xlu0 %v4226, 97
        %v4269 = vpop.permute.xlu0 %4268
        %4270 = vrot.lane.b32.xlu0 %v4227, 97
        %v4271 = vpop.permute.xlu0 %4270
        %4272 = vrot.lane.b32.xlu0 %v4228, 97
        %v4273 = vpop.permute.xlu0 %4272
        %4274 = vrot.lane.b32.xlu0 %v4229, 97
        %v4275 = vpop.permute.xlu0 %4274
        %4276 = vrot.lane.b32.xlu0 %v4230, 97
        %v4277 = vpop.permute.xlu0 %4276
        %4278 = vrot.lane.b32.xlu0 %v4231, 97
        %v4279 = vpop.permute.xlu0 %4278
        %vm4280 = vcmask 793600
        %v4281 = vsel %vm4280, %v4249, %v4251
        %v4282 = vsel %vm4280, %v4253, %v4255
        %v4283 = vsel %vm4280, %v4257, %v4259
        %v4284 = vsel %vm4280, %v4261, %v4263
        %v4285 = vsel %vm4280, %v4265, %v4267
        %v4286 = vsel %vm4280, %v4269, %v4271
        %v4287 = vsel %vm4280, %v4273, %v4275
        %v4288 = vsel %vm4280, %v4277, %v4279
        %4305 = vst [vmem:[#allocation7 + $0x380] sm:$0xff] %v4281
        %4306 = vst.msk [vmem:[#allocation7 + $0x388] sm:$0xff] %vm3570, %v4251
        %4307 = vst [vmem:[#allocation7 + $0x390] sm:$0xff] %v4282
        %4308 = vst.msk [vmem:[#allocation7 + $0x398] sm:$0xff] %vm3570, %v4255
        %4309 = vst [vmem:[#allocation7 + $0x3a0] sm:$0xff] %v4283
        %4310 = vst.msk [vmem:[#allocation7 + $0x3a8] sm:$0xff] %vm3570, %v4259
        %4311 = vst [vmem:[#allocation7 + $0x3b0] sm:$0xff] %v4284
        %4312 = vst.msk [vmem:[#allocation7 + $0x3b8] sm:$0xff] %vm3570, %v4263
        %4313 = vst [vmem:[#allocation7 + $0x3c0] sm:$0xff] %v4285
        %4314 = vst.msk [vmem:[#allocation7 + $0x3c8] sm:$0xff] %vm3570, %v4267
        %4315 = vst [vmem:[#allocation7 + $0x3d0] sm:$0xff] %v4286
        %4316 = vst.msk [vmem:[#allocation7 + $0x3d8] sm:$0xff] %vm3570, %v4271
        %4317 = vst [vmem:[#allocation7 + $0x3e0] sm:$0xff] %v4287
        %4318 = vst.msk [vmem:[#allocation7 + $0x3e8] sm:$0xff] %vm3570, %v4275
        %4319 = vst [vmem:[#allocation7 + $0x3f0] sm:$0xff] %v4288
        %4320 = vst.msk [vmem:[#allocation7 + $0x3f8] sm:$0xff] %vm3570, %v4279
        %v4321 = vld [vmem:[#allocation3] sm:$0xff]
        %v4322 = vld [vmem:[#allocation3 + $0x8] sm:$0xff]
        %v4323 = vld [vmem:[#allocation3 + $0x10] sm:$0xff]
        %v4324 = vld [vmem:[#allocation3 + $0x18] sm:$0xff]
        %v4325 = vld [vmem:[#allocation3 + $0x20] sm:$0xff]
        %v4326 = vld [vmem:[#allocation3 + $0x28] sm:$0xff]
        %v4327 = vld [vmem:[#allocation3 + $0x30] sm:$0xff]
        %v4328 = vld [vmem:[#allocation3 + $0x38] sm:$0xff]
        %v4329 = vld [vmem:[#allocation3 + $0x40] sm:$0xff]
        %v4330 = vld [vmem:[#allocation3 + $0x48] sm:$0xff]
        %v4331 = vld [vmem:[#allocation3 + $0x50] sm:$0xff]
        %v4332 = vld [vmem:[#allocation3 + $0x58] sm:$0xff]
        %v4333 = vld [vmem:[#allocation3 + $0x60] sm:$0xff]
        %v4334 = vld [vmem:[#allocation3 + $0x68] sm:$0xff]
        %v4335 = vld [vmem:[#allocation3 + $0x70] sm:$0xff]
        %v4336 = vld [vmem:[#allocation3 + $0x78] sm:$0xff]
        %4353 = vrot.lane.b32.xlu0 %v4321, 96
        %v4354 = vpop.permute.xlu0 %4353
        %4355 = vrot.lane.b32.xlu0 %v4322, 96
        %v4356 = vpop.permute.xlu0 %4355
        %4357 = vrot.lane.b32.xlu0 %v4323, 96
        %v4358 = vpop.permute.xlu0 %4357
        %4359 = vrot.lane.b32.xlu0 %v4324, 96
        %v4360 = vpop.permute.xlu0 %4359
        %4361 = vrot.lane.b32.xlu0 %v4325, 96
        %v4362 = vpop.permute.xlu0 %4361
        %4363 = vrot.lane.b32.xlu0 %v4326, 96
        %v4364 = vpop.permute.xlu0 %4363
        %4365 = vrot.lane.b32.xlu0 %v4327, 96
        %v4366 = vpop.permute.xlu0 %4365
        %4367 = vrot.lane.b32.xlu0 %v4328, 96
        %v4368 = vpop.permute.xlu0 %4367
        %4369 = vrot.lane.b32.xlu0 %v4329, 96
        %v4370 = vpop.permute.xlu0 %4369
        %4371 = vrot.lane.b32.xlu0 %v4330, 96
        %v4372 = vpop.permute.xlu0 %4371
        %4373 = vrot.lane.b32.xlu0 %v4331, 96
        %v4374 = vpop.permute.xlu0 %4373
        %4375 = vrot.lane.b32.xlu0 %v4332, 96
        %v4376 = vpop.permute.xlu0 %4375
        %4377 = vrot.lane.b32.xlu0 %v4333, 96
        %v4378 = vpop.permute.xlu0 %4377
        %4379 = vrot.lane.b32.xlu0 %v4334, 96
        %v4380 = vpop.permute.xlu0 %4379
        %4381 = vrot.lane.b32.xlu0 %v4335, 96
        %v4382 = vpop.permute.xlu0 %4381
        %4383 = vrot.lane.b32.xlu0 %v4336, 96
        %v4384 = vpop.permute.xlu0 %4383
        %vm4385 = vcmask 785408
        %v4386 = vsel %vm4385, %v4354, %v4356
        %v4387 = vsel %vm4385, %v4358, %v4360
        %v4388 = vsel %vm4385, %v4362, %v4364
        %v4389 = vsel %vm4385, %v4366, %v4368
        %v4390 = vsel %vm4385, %v4370, %v4372
        %v4391 = vsel %vm4385, %v4374, %v4376
        %v4392 = vsel %vm4385, %v4378, %v4380
        %v4393 = vsel %vm4385, %v4382, %v4384
        %4410 = vst [vmem:[#allocation7 + $0x400] sm:$0xff] %v4386
        %4411 = vst.msk [vmem:[#allocation7 + $0x408] sm:$0xff] %vm3570, %v4356
        %4412 = vst [vmem:[#allocation7 + $0x410] sm:$0xff] %v4387
        %4413 = vst.msk [vmem:[#allocation7 + $0x418] sm:$0xff] %vm3570, %v4360
        %4414 = vst [vmem:[#allocation7 + $0x420] sm:$0xff] %v4388
        %4415 = vst.msk [vmem:[#allocation7 + $0x428] sm:$0xff] %vm3570, %v4364
        %4416 = vst [vmem:[#allocation7 + $0x430] sm:$0xff] %v4389
        %4417 = vst.msk [vmem:[#allocation7 + $0x438] sm:$0xff] %vm3570, %v4368
        %4418 = vst [vmem:[#allocation7 + $0x440] sm:$0xff] %v4390
        %4419 = vst.msk [vmem:[#allocation7 + $0x448] sm:$0xff] %vm3570, %v4372
        %4420 = vst [vmem:[#allocation7 + $0x450] sm:$0xff] %v4391
        %4421 = vst.msk [vmem:[#allocation7 + $0x458] sm:$0xff] %vm3570, %v4376
        %4422 = vst [vmem:[#allocation7 + $0x460] sm:$0xff] %v4392
        %4423 = vst.msk [vmem:[#allocation7 + $0x468] sm:$0xff] %vm3570, %v4380
        %4424 = vst [vmem:[#allocation7 + $0x470] sm:$0xff] %v4393
        %4425 = vst.msk [vmem:[#allocation7 + $0x478] sm:$0xff] %vm3570, %v4384
        %v4426 = vld [vmem:[#allocation14] sm:$0xff]
        %v4427 = vld [vmem:[#allocation14 + $0x8] sm:$0xff]
        %v4428 = vld [vmem:[#allocation14 + $0x10] sm:$0xff]
        %v4429 = vld [vmem:[#allocation14 + $0x18] sm:$0xff]
        %v4430 = vld [vmem:[#allocation14 + $0x20] sm:$0xf]
        %v4431 = vld [vmem:[#allocation14 + $0x24] sm:$0xff]
        %v4432 = vld [vmem:[#allocation14 + $0x2c] sm:$0xff]
        %v4433 = vld [vmem:[#allocation14 + $0x34] sm:$0xff]
        %v4434 = vld [vmem:[#allocation14 + $0x3c] sm:$0xff]
        %v4435 = vld [vmem:[#allocation14 + $0x44] sm:$0xf]
        %v4436 = vld [vmem:[#allocation14 + $0x48] sm:$0xff]
        %v4437 = vld [vmem:[#allocation14 + $0x50] sm:$0xff]
        %v4438 = vld [vmem:[#allocation14 + $0x58] sm:$0xff]
        %v4439 = vld [vmem:[#allocation14 + $0x60] sm:$0xff]
        %v4440 = vld [vmem:[#allocation14 + $0x68] sm:$0xf]
        %v4441 = vld [vmem:[#allocation14 + $0x6c] sm:$0xff]
        %v4442 = vld [vmem:[#allocation14 + $0x74] sm:$0xff]
        %v4443 = vld [vmem:[#allocation14 + $0x7c] sm:$0xff]
        %v4444 = vld [vmem:[#allocation14 + $0x84] sm:$0xff]
        %v4445 = vld [vmem:[#allocation14 + $0x8c] sm:$0xf]
        %v4446 = vld [vmem:[#allocation14 + $0x90] sm:$0xff]
        %v4447 = vld [vmem:[#allocation14 + $0x98] sm:$0xff]
        %v4448 = vld [vmem:[#allocation14 + $0xa0] sm:$0xff]
        %v4449 = vld [vmem:[#allocation14 + $0xa8] sm:$0xff]
        %v4450 = vld [vmem:[#allocation14 + $0xb0] sm:$0xf]
        %v4451 = vld [vmem:[#allocation14 + $0xb4] sm:$0xff]
        %v4452 = vld [vmem:[#allocation14 + $0xbc] sm:$0xff]
        %v4453 = vld [vmem:[#allocation14 + $0xc4] sm:$0xff]
        %v4454 = vld [vmem:[#allocation14 + $0xcc] sm:$0xff]
        %v4455 = vld [vmem:[#allocation14 + $0xd4] sm:$0xf]
        %v4456 = vld [vmem:[#allocation14 + $0xd8] sm:$0xff]
        %v4457 = vld [vmem:[#allocation14 + $0xe0] sm:$0xff]
        %v4458 = vld [vmem:[#allocation14 + $0xe8] sm:$0xff]
        %v4459 = vld [vmem:[#allocation14 + $0xf0] sm:$0xff]
        %v4460 = vld [vmem:[#allocation14 + $0xf8] sm:$0xf]
        %v4461 = vld [vmem:[#allocation14 + $0xfc] sm:$0xff]
        %v4462 = vld [vmem:[#allocation14 + $0x104] sm:$0xff]
        %v4463 = vld [vmem:[#allocation14 + $0x10c] sm:$0xff]
        %v4464 = vld [vmem:[#allocation14 + $0x114] sm:$0xff]
        %v4465 = vld [vmem:[#allocation14 + $0x11c] sm:$0xf]
        %v4466 = vld [vmem:[#allocation7] sm:$0xff]
        %v4467 = vld [vmem:[#allocation7 + $0x8] sm:$0xff]
        %v4468 = vld [vmem:[#allocation7 + $0x10] sm:$0xff]
        %v4469 = vld [vmem:[#allocation7 + $0x18] sm:$0xff]
        %v4470 = vld [vmem:[#allocation7 + $0x20] sm:$0xff]
        %v4471 = vld [vmem:[#allocation7 + $0x28] sm:$0xff]
        %v4472 = vld [vmem:[#allocation7 + $0x30] sm:$0xff]
        %v4473 = vld [vmem:[#allocation7 + $0x38] sm:$0xff]
        %v4474 = vld [vmem:[#allocation7 + $0x40] sm:$0xff]
        %v4475 = vld [vmem:[#allocation7 + $0x48] sm:$0xff]
        %v4476 = vld [vmem:[#allocation7 + $0x50] sm:$0xff]
        %v4477 = vld [vmem:[#allocation7 + $0x58] sm:$0xff]
        %v4478 = vld [vmem:[#allocation7 + $0x60] sm:$0xff]
        %v4479 = vld [vmem:[#allocation7 + $0x68] sm:$0xff]
        %v4480 = vld [vmem:[#allocation7 + $0x70] sm:$0xff]
        %v4481 = vld [vmem:[#allocation7 + $0x78] sm:$0xff]
        %v4482 = vld [vmem:[#allocation7 + $0x80] sm:$0xff]
        %v4483 = vld [vmem:[#allocation7 + $0x88] sm:$0xff]
        %v4484 = vld [vmem:[#allocation7 + $0x90] sm:$0xff]
        %v4485 = vld [vmem:[#allocation7 + $0x98] sm:$0xff]
        %v4486 = vld [vmem:[#allocation7 + $0xa0] sm:$0xff]
        %v4487 = vld [vmem:[#allocation7 + $0xa8] sm:$0xff]
        %v4488 = vld [vmem:[#allocation7 + $0xb0] sm:$0xff]
        %v4489 = vld [vmem:[#allocation7 + $0xb8] sm:$0xff]
        %v4490 = vld [vmem:[#allocation7 + $0xc0] sm:$0xff]
        %v4491 = vld [vmem:[#allocation7 + $0xc8] sm:$0xff]
        %v4492 = vld [vmem:[#allocation7 + $0xd0] sm:$0xff]
        %v4493 = vld [vmem:[#allocation7 + $0xd8] sm:$0xff]
        %v4494 = vld [vmem:[#allocation7 + $0xe0] sm:$0xff]
        %v4495 = vld [vmem:[#allocation7 + $0xe8] sm:$0xff]
        %v4496 = vld [vmem:[#allocation7 + $0xf0] sm:$0xff]
        %v4497 = vld [vmem:[#allocation7 + $0xf8] sm:$0xff]
        %v4498 = vld [vmem:[#allocation7 + $0x100] sm:$0xff]
        %v4499 = vld [vmem:[#allocation7 + $0x108] sm:$0xff]
        %v4500 = vld [vmem:[#allocation7 + $0x110] sm:$0xff]
        %v4501 = vld [vmem:[#allocation7 + $0x118] sm:$0xff]
        %v4502 = vld [vmem:[#allocation7 + $0x120] sm:$0xff]
        %v4503 = vld [vmem:[#allocation7 + $0x128] sm:$0xff]
        %v4504 = vld [vmem:[#allocation7 + $0x130] sm:$0xff]
        %v4505 = vld [vmem:[#allocation7 + $0x138] sm:$0xff]
        %v4506 = vld [vmem:[#allocation7 + $0x140] sm:$0xff]
        %v4507 = vld [vmem:[#allocation7 + $0x148] sm:$0xff]
        %v4508 = vld [vmem:[#allocation7 + $0x150] sm:$0xff]
        %v4509 = vld [vmem:[#allocation7 + $0x158] sm:$0xff]
        %v4510 = vld [vmem:[#allocation7 + $0x160] sm:$0xff]
        %v4511 = vld [vmem:[#allocation7 + $0x168] sm:$0xff]
        %v4512 = vld [vmem:[#allocation7 + $0x170] sm:$0xff]
        %v4513 = vld [vmem:[#allocation7 + $0x178] sm:$0xff]
        %v4514 = vld [vmem:[#allocation7 + $0x180] sm:$0xff]
        %v4515 = vld [vmem:[#allocation7 + $0x188] sm:$0xff]
        %v4516 = vld [vmem:[#allocation7 + $0x190] sm:$0xff]
        %v4517 = vld [vmem:[#allocation7 + $0x198] sm:$0xff]
        %v4518 = vld [vmem:[#allocation7 + $0x1a0] sm:$0xff]
        %v4519 = vld [vmem:[#allocation7 + $0x1a8] sm:$0xff]
        %v4520 = vld [vmem:[#allocation7 + $0x1b0] sm:$0xff]
        %v4521 = vld [vmem:[#allocation7 + $0x1b8] sm:$0xff]
        %v4522 = vld [vmem:[#allocation7 + $0x1c0] sm:$0xff]
        %v4523 = vld [vmem:[#allocation7 + $0x1c8] sm:$0xff]
        %v4524 = vld [vmem:[#allocation7 + $0x1d0] sm:$0xff]
        %v4525 = vld [vmem:[#allocation7 + $0x1d8] sm:$0xff]
        %v4526 = vld [vmem:[#allocation7 + $0x1e0] sm:$0xff]
        %v4527 = vld [vmem:[#allocation7 + $0x1e8] sm:$0xff]
        %v4528 = vld [vmem:[#allocation7 + $0x1f0] sm:$0xff]
        %v4529 = vld [vmem:[#allocation7 + $0x1f8] sm:$0xff]
        %v4530 = vld [vmem:[#allocation7 + $0x200] sm:$0xff]
        %v4531 = vld [vmem:[#allocation7 + $0x208] sm:$0xff]
        %v4532 = vld [vmem:[#allocation7 + $0x210] sm:$0xff]
        %v4533 = vld [vmem:[#allocation7 + $0x218] sm:$0xff]
        %v4534 = vld [vmem:[#allocation7 + $0x220] sm:$0xff]
        %v4535 = vld [vmem:[#allocation7 + $0x228] sm:$0xff]
        %v4536 = vld [vmem:[#allocation7 + $0x230] sm:$0xff]
        %v4537 = vld [vmem:[#allocation7 + $0x238] sm:$0xff]
        %v4538 = vld [vmem:[#allocation7 + $0x240] sm:$0xff]
        %v4539 = vld [vmem:[#allocation7 + $0x248] sm:$0xff]
        %v4540 = vld [vmem:[#allocation7 + $0x250] sm:$0xff]
        %v4541 = vld [vmem:[#allocation7 + $0x258] sm:$0xff]
        %v4542 = vld [vmem:[#allocation7 + $0x260] sm:$0xff]
        %v4543 = vld [vmem:[#allocation7 + $0x268] sm:$0xff]
        %v4544 = vld [vmem:[#allocation7 + $0x270] sm:$0xff]
        %v4545 = vld [vmem:[#allocation7 + $0x278] sm:$0xff]
        %v4546 = vld [vmem:[#allocation7 + $0x280] sm:$0xff]
        %v4547 = vld [vmem:[#allocation7 + $0x288] sm:$0xff]
        %v4548 = vld [vmem:[#allocation7 + $0x290] sm:$0xff]
        %v4549 = vld [vmem:[#allocation7 + $0x298] sm:$0xff]
        %v4550 = vld [vmem:[#allocation7 + $0x2a0] sm:$0xff]
        %v4551 = vld [vmem:[#allocation7 + $0x2a8] sm:$0xff]
        %v4552 = vld [vmem:[#allocation7 + $0x2b0] sm:$0xff]
        %v4553 = vld [vmem:[#allocation7 + $0x2b8] sm:$0xff]
        %v4554 = vld [vmem:[#allocation7 + $0x2c0] sm:$0xff]
        %v4555 = vld [vmem:[#allocation7 + $0x2c8] sm:$0xff]
        %v4556 = vld [vmem:[#allocation7 + $0x2d0] sm:$0xff]
        %v4557 = vld [vmem:[#allocation7 + $0x2d8] sm:$0xff]
        %v4558 = vld [vmem:[#allocation7 + $0x2e0] sm:$0xff]
        %v4559 = vld [vmem:[#allocation7 + $0x2e8] sm:$0xff]
        %v4560 = vld [vmem:[#allocation7 + $0x2f0] sm:$0xff]
        %v4561 = vld [vmem:[#allocation7 + $0x2f8] sm:$0xff]
        %v4562 = vld [vmem:[#allocation7 + $0x300] sm:$0xff]
        %v4563 = vld [vmem:[#allocation7 + $0x308] sm:$0xff]
        %v4564 = vld [vmem:[#allocation7 + $0x310] sm:$0xff]
        %v4565 = vld [vmem:[#allocation7 + $0x318] sm:$0xff]
        %v4566 = vld [vmem:[#allocation7 + $0x320] sm:$0xff]
        %v4567 = vld [vmem:[#allocation7 + $0x328] sm:$0xff]
        %v4568 = vld [vmem:[#allocation7 + $0x330] sm:$0xff]
        %v4569 = vld [vmem:[#allocation7 + $0x338] sm:$0xff]
        %v4570 = vld [vmem:[#allocation7 + $0x340] sm:$0xff]
        %v4571 = vld [vmem:[#allocation7 + $0x348] sm:$0xff]
        %v4572 = vld [vmem:[#allocation7 + $0x350] sm:$0xff]
        %v4573 = vld [vmem:[#allocation7 + $0x358] sm:$0xff]
        %v4574 = vld [vmem:[#allocation7 + $0x360] sm:$0xff]
        %v4575 = vld [vmem:[#allocation7 + $0x368] sm:$0xff]
        %v4576 = vld [vmem:[#allocation7 + $0x370] sm:$0xff]
        %v4577 = vld [vmem:[#allocation7 + $0x378] sm:$0xff]
        %v4578 = vld [vmem:[#allocation7 + $0x380] sm:$0xff]
        %v4579 = vld [vmem:[#allocation7 + $0x388] sm:$0xff]
        %v4580 = vld [vmem:[#allocation7 + $0x390] sm:$0xff]
        %v4581 = vld [vmem:[#allocation7 + $0x398] sm:$0xff]
        %v4582 = vld [vmem:[#allocation7 + $0x3a0] sm:$0xff]
        %v4583 = vld [vmem:[#allocation7 + $0x3a8] sm:$0xff]
        %v4584 = vld [vmem:[#allocation7 + $0x3b0] sm:$0xff]
        %v4585 = vld [vmem:[#allocation7 + $0x3b8] sm:$0xff]
        %v4586 = vld [vmem:[#allocation7 + $0x3c0] sm:$0xff]
        %v4587 = vld [vmem:[#allocation7 + $0x3c8] sm:$0xff]
        %v4588 = vld [vmem:[#allocation7 + $0x3d0] sm:$0xff]
        %v4589 = vld [vmem:[#allocation7 + $0x3d8] sm:$0xff]
        %v4590 = vld [vmem:[#allocation7 + $0x3e0] sm:$0xff]
        %v4591 = vld [vmem:[#allocation7 + $0x3e8] sm:$0xff]
        %v4592 = vld [vmem:[#allocation7 + $0x3f0] sm:$0xff]
        %v4593 = vld [vmem:[#allocation7 + $0x3f8] sm:$0xff]
        %v4594 = vld [vmem:[#allocation7 + $0x400] sm:$0xff]
        %v4595 = vld [vmem:[#allocation7 + $0x408] sm:$0xff]
        %v4596 = vld [vmem:[#allocation7 + $0x410] sm:$0xff]
        %v4597 = vld [vmem:[#allocation7 + $0x418] sm:$0xff]
        %v4598 = vld [vmem:[#allocation7 + $0x420] sm:$0xff]
        %v4599 = vld [vmem:[#allocation7 + $0x428] sm:$0xff]
        %v4600 = vld [vmem:[#allocation7 + $0x430] sm:$0xff]
        %v4601 = vld [vmem:[#allocation7 + $0x438] sm:$0xff]
        %v4602 = vld [vmem:[#allocation7 + $0x440] sm:$0xff]
        %v4603 = vld [vmem:[#allocation7 + $0x448] sm:$0xff]
        %v4604 = vld [vmem:[#allocation7 + $0x450] sm:$0xff]
        %v4605 = vld [vmem:[#allocation7 + $0x458] sm:$0xff]
        %v4606 = vld [vmem:[#allocation7 + $0x460] sm:$0xff]
        %v4607 = vld [vmem:[#allocation7 + $0x468] sm:$0xff]
        %v4608 = vld [vmem:[#allocation7 + $0x470] sm:$0xff]
        %v4609 = vld [vmem:[#allocation7 + $0x478] sm:$0xff]
        %v4610 = vld [vmem:[%s8] sm:$0xff]
        %v4611 = vld [vmem:[%s8 + $0x8] sm:$0xff]
        %v4612 = vld [vmem:[%s8 + $0x10] sm:$0xff]
        %v4613 = vld [vmem:[%s8 + $0x18] sm:$0xff]
        %v4614 = vld [vmem:[%s8 + $0x20] sm:$0xff]
        %v4615 = vld [vmem:[%s8 + $0x28] sm:$0xff]
        %v4616 = vld [vmem:[%s8 + $0x30] sm:$0xff]
        %v4617 = vld [vmem:[%s8 + $0x38] sm:$0xff]
        %4619 = vset.pattern.permute.xlu0 0
        %4620 = vperm.xlu0 %4619, %v4610
        %v4621 = vpop.permute.xlu0 %4620
        %4624 = vset.pattern.permute.xlu0 0
        %4625 = vperm.xlu0 %4624, %v4611
        %v4626 = vpop.permute.xlu0 %4625
        %4629 = vset.pattern.permute.xlu0 0
        %4630 = vperm.xlu0 %4629, %v4612
        %v4631 = vpop.permute.xlu0 %4630
        %4634 = vset.pattern.permute.xlu0 0
        %4635 = vperm.xlu0 %4634, %v4613
        %v4636 = vpop.permute.xlu0 %4635
        %4639 = vset.pattern.permute.xlu0 0
        %4640 = vperm.xlu0 %4639, %v4614
        %v4641 = vpop.permute.xlu0 %4640
        %4644 = vset.pattern.permute.xlu0 0
        %4645 = vperm.xlu0 %4644, %v4615
        %v4646 = vpop.permute.xlu0 %4645
        %4649 = vset.pattern.permute.xlu0 0
        %4650 = vperm.xlu0 %4649, %v4616
        %v4651 = vpop.permute.xlu0 %4650
        %4654 = vset.pattern.permute.xlu0 0
        %4655 = vperm.xlu0 %4654, %v4617
        %v4656 = vpop.permute.xlu0 %4655
        %v4698 = vunpack.c.l.b16 %v4426
        %v4699 = vunpack.c.h.b16 %v4426
        %v4700 = vunpack.c.l.b16 %v4427
        %v4701 = vunpack.c.h.b16 %v4427
        %v4702 = vunpack.c.l.b16 %v4428
        %v4703 = vunpack.c.h.b16 %v4428
        %v4704 = vunpack.c.l.b16 %v4429
        %v4705 = vunpack.c.h.b16 %v4429
        %v4706 = vunpack.c.l.b16 %v4430
        %v4707 = vunpack.c.l.b16 %v4431
        %v4708 = vunpack.c.h.b16 %v4431
        %v4709 = vunpack.c.l.b16 %v4432
        %v4710 = vunpack.c.h.b16 %v4432
        %v4711 = vunpack.c.l.b16 %v4433
        %v4712 = vunpack.c.h.b16 %v4433
        %v4713 = vunpack.c.l.b16 %v4434
        %v4714 = vunpack.c.h.b16 %v4434
        %v4715 = vunpack.c.l.b16 %v4435
        %v4716 = vunpack.c.l.b16 %v4436
        %v4717 = vunpack.c.h.b16 %v4436
        %v4718 = vunpack.c.l.b16 %v4437
        %v4719 = vunpack.c.h.b16 %v4437
        %v4720 = vunpack.c.l.b16 %v4438
        %v4721 = vunpack.c.h.b16 %v4438
        %v4722 = vunpack.c.l.b16 %v4439
        %v4723 = vunpack.c.h.b16 %v4439
        %v4724 = vunpack.c.l.b16 %v4440
        %v4725 = vunpack.c.l.b16 %v4441
        %v4726 = vunpack.c.h.b16 %v4441
        %v4727 = vunpack.c.l.b16 %v4442
        %v4728 = vunpack.c.h.b16 %v4442
        %v4729 = vunpack.c.l.b16 %v4443
        %v4730 = vunpack.c.h.b16 %v4443
        %v4731 = vunpack.c.l.b16 %v4444
        %v4732 = vunpack.c.h.b16 %v4444
        %v4733 = vunpack.c.l.b16 %v4445
        %v4734 = vunpack.c.l.b16 %v4446
        %v4735 = vunpack.c.h.b16 %v4446
        %v4736 = vunpack.c.l.b16 %v4447
        %v4737 = vunpack.c.h.b16 %v4447
        %v4738 = vunpack.c.l.b16 %v4448
        %v4739 = vunpack.c.h.b16 %v4448
        %v4740 = vunpack.c.l.b16 %v4449
        %v4741 = vunpack.c.h.b16 %v4449
        %v4742 = vunpack.c.l.b16 %v4450
        %v4743 = vunpack.c.l.b16 %v4451
        %v4744 = vunpack.c.h.b16 %v4451
        %v4745 = vunpack.c.l.b16 %v4452
        %v4746 = vunpack.c.h.b16 %v4452
        %v4747 = vunpack.c.l.b16 %v4453
        %v4748 = vunpack.c.h.b16 %v4453
        %v4749 = vunpack.c.l.b16 %v4454
        %v4750 = vunpack.c.h.b16 %v4454
        %v4751 = vunpack.c.l.b16 %v4455
        %v4752 = vunpack.c.l.b16 %v4456
        %v4753 = vunpack.c.h.b16 %v4456
        %v4754 = vunpack.c.l.b16 %v4457
        %v4755 = vunpack.c.h.b16 %v4457
        %v4756 = vunpack.c.l.b16 %v4458
        %v4757 = vunpack.c.h.b16 %v4458
        %v4758 = vunpack.c.l.b16 %v4459
        %v4759 = vunpack.c.h.b16 %v4459
        %v4760 = vunpack.c.l.b16 %v4460
        %v4761 = vunpack.c.l.b16 %v4461
        %v4762 = vunpack.c.h.b16 %v4461
        %v4763 = vunpack.c.l.b16 %v4462
        %v4764 = vunpack.c.h.b16 %v4462
        %v4765 = vunpack.c.l.b16 %v4463
        %v4766 = vunpack.c.h.b16 %v4463
        %v4767 = vunpack.c.l.b16 %v4464
        %v4768 = vunpack.c.h.b16 %v4464
        %v4769 = vunpack.c.l.b16 %v4465
        %v4770 = vpack.c.b16 %v4707, %v4698
        %v4771 = vpack.c.b16 %v4708, %v4699
        %v4772 = vpack.c.b16 %v4709, %v4700
        %v4773 = vpack.c.b16 %v4710, %v4701
        %v4774 = vpack.c.b16 %v4711, %v4702
        %v4775 = vpack.c.b16 %v4712, %v4703
        %v4776 = vpack.c.b16 %v4713, %v4704
        %v4777 = vpack.c.b16 %v4714, %v4705
        %v4778 = vpack.c.b16 %v4715, %v4706
        %v4779 = vpack.c.b16 %v4725, %v4716
        %v4780 = vpack.c.b16 %v4726, %v4717
        %v4781 = vpack.c.b16 %v4727, %v4718
        %v4782 = vpack.c.b16 %v4728, %v4719
        %v4783 = vpack.c.b16 %v4729, %v4720
        %v4784 = vpack.c.b16 %v4730, %v4721
        %v4785 = vpack.c.b16 %v4731, %v4722
        %v4786 = vpack.c.b16 %v4732, %v4723
        %v4787 = vpack.c.b16 %v4733, %v4724
        %v4788 = vpack.c.b16 %v4743, %v4734
        %v4789 = vpack.c.b16 %v4744, %v4735
        %v4790 = vpack.c.b16 %v4745, %v4736
        %v4791 = vpack.c.b16 %v4746, %v4737
        %v4792 = vpack.c.b16 %v4747, %v4738
        %v4793 = vpack.c.b16 %v4748, %v4739
        %v4794 = vpack.c.b16 %v4749, %v4740
        %v4795 = vpack.c.b16 %v4750, %v4741
        %v4796 = vpack.c.b16 %v4751, %v4742
        %v4797 = vpack.c.b16 %v4761, %v4752
        %v4798 = vpack.c.b16 %v4762, %v4753
        %v4799 = vpack.c.b16 %v4763, %v4754
        %v4800 = vpack.c.b16 %v4764, %v4755
        %v4801 = vpack.c.b16 %v4765, %v4756
        %v4802 = vpack.c.b16 %v4766, %v4757
        %v4803 = vpack.c.b16 %v4767, %v4758
        %v4804 = vpack.c.b16 %v4768, %v4759
        %v4805 = vpack.c.b16 %v4769, %v4760
        %4842 = vmatprep.subr.bf16.mxu0 %v4467
        %4843 = vmatpush1.bf16.msra.mxu0 %v4466
        %4844 = vmatprep.subr.bf16.mxu0 %v4469
        %4845 = vmatpush1.bf16.msra.mxu0 %v4468
        %4846 = vmatprep.subr.bf16.mxu0 %v4471
        %4847 = vmatpush1.bf16.msra.mxu0 %v4470
        %4848 = vmatprep.subr.bf16.mxu0 %v4473
        %4849 = vmatpush1.bf16.msra.mxu0 %v4472
        %4850 = vmatprep.subr.bf16.mxu0 %v4475
        %4851 = vmatpush1.bf16.msra.mxu0 %v4474
        %4852 = vmatprep.subr.bf16.mxu0 %v4477
        %4853 = vmatpush1.bf16.msra.mxu0 %v4476
        %4854 = vmatprep.subr.bf16.mxu0 %v4479
        %4855 = vmatpush1.bf16.msra.mxu0 %v4478
        %4856 = vmatprep.subr.bf16.mxu0 %v4481
        %4857 = vmatpush1.bf16.msra.mxu0 %v4480
        %4858 = vmatprep.subr.bf16.mxu0 %v4483
        %4859 = vmatpush1.bf16.msra.mxu0 %v4482
        %4860 = vmatprep.subr.bf16.mxu0 %v4485
        %4861 = vmatpush1.bf16.msra.mxu0 %v4484
        %4862 = vmatprep.subr.bf16.mxu0 %v4487
        %4863 = vmatpush1.bf16.msra.mxu0 %v4486
        %4864 = vmatprep.subr.bf16.mxu0 %v4489
        %4865 = vmatpush1.bf16.msra.mxu0 %v4488
        %4866 = vmatprep.subr.bf16.mxu0 %v4491
        %4867 = vmatpush1.bf16.msra.mxu0 %v4490
        %4868 = vmatprep.subr.bf16.mxu0 %v4493
        %4869 = vmatpush1.bf16.msra.mxu0 %v4492
        %4870 = vmatprep.subr.bf16.mxu0 %v4495
        %4871 = vmatpush1.bf16.msra.mxu0 %v4494
        %4872 = vmatprep.subr.bf16.mxu0 %v4497
        %4873 = vmatpush1.bf16.msra.mxu0 %v4496
        %4874 = vmatprep.mubr.bf16.mxu0 %v4771
        %4875 = vmatmul.mubr.bf16.gmra.mrb[0].mxu0 %v4770
        %v4876 = vpop.f32.mrb[0].mxu0
        %v4877 = vadd.f32 %v4621, %v4876
        %v4878 = vpop.f32.mrb[0].mxu0
        %v4879 = vadd.f32 %v4621, %v4878
        %v4880 = vpop.f32.mrb[0].mxu0
        %v4881 = vadd.f32 %v4626, %v4880
        %v4882 = vpop.f32.mrb[0].mxu0
        %v4883 = vadd.f32 %v4626, %v4882
        %4884 = vmatprep.mubr.bf16.mxu0 %v4780
        %4885 = vmatmul.mubr.bf16.gmra.mrb[0].mxu0 %v4779
        %v4886 = vpop.f32.mrb[0].mxu0
        %v4887 = vadd.f32 %v4631, %v4886
        %v4888 = vpop.f32.mrb[0].mxu0
        %v4889 = vadd.f32 %v4631, %v4888
        %v4890 = vpop.f32.mrb[0].mxu0
        %v4891 = vadd.f32 %v4636, %v4890
        %v4892 = vpop.f32.mrb[0].mxu0
        %v4893 = vadd.f32 %v4636, %v4892
        %4894 = vmatprep.mubr.bf16.mxu0 %v4789
        %4895 = vmatmul.mubr.bf16.gmra.mrb[0].mxu0 %v4788
        %v4896 = vpop.f32.mrb[0].mxu0
        %v4897 = vadd.f32 %v4641, %v4896
        %v4898 = vpop.f32.mrb[0].mxu0
        %v4899 = vadd.f32 %v4641, %v4898
        %v4900 = vpop.f32.mrb[0].mxu0
        %v4901 = vadd.f32 %v4646, %v4900
        %v4902 = vpop.f32.mrb[0].mxu0
        %v4903 = vadd.f32 %v4646, %v4902
        %4904 = vmatprep.mubr.bf16.mxu0 %v4798
        %4905 = vmatmul.mubr.bf16.gmra.mrb[0].mxu0 %v4797
        %v4906 = vpop.f32.mrb[0].mxu0
        %v4907 = vadd.f32 %v4651, %v4906
        %v4908 = vpop.f32.mrb[0].mxu0
        %v4909 = vadd.f32 %v4651, %v4908
        %v4910 = vpop.f32.mrb[0].mxu0
        %v4911 = vadd.f32 %v4656, %v4910
        %v4912 = vpop.f32.mrb[0].mxu0
        %v4913 = vadd.f32 %v4656, %v4912
        %4914 = vdwg.mxu0
        %4915 = vmatprep.subr.bf16.mxu0 %v4499
        %4916 = vmatpush1.bf16.msra.mxu0 %v4498
        %4917 = vmatprep.subr.bf16.mxu0 %v4501
        %4918 = vmatpush1.bf16.msra.mxu0 %v4500
        %4919 = vmatprep.subr.bf16.mxu0 %v4503
        %4920 = vmatpush1.bf16.msra.mxu0 %v4502
        %4921 = vmatprep.subr.bf16.mxu0 %v4505
        %4922 = vmatpush1.bf16.msra.mxu0 %v4504
        %4923 = vmatprep.subr.bf16.mxu0 %v4507
        %4924 = vmatpush1.bf16.msra.mxu0 %v4506
        %4925 = vmatprep.subr.bf16.mxu0 %v4509
        %4926 = vmatpush1.bf16.msra.mxu0 %v4508
        %4927 = vmatprep.subr.bf16.mxu0 %v4511
        %4928 = vmatpush1.bf16.msra.mxu0 %v4510
        %4929 = vmatprep.subr.bf16.mxu0 %v4513
        %4930 = vmatpush1.bf16.msra.mxu0 %v4512
        %4931 = vmatprep.subr.bf16.mxu0 %v4515
        %4932 = vmatpush1.bf16.msra.mxu0 %v4514
        %4933 = vmatprep.subr.bf16.mxu0 %v4517
        %4934 = vmatpush1.bf16.msra.mxu0 %v4516
        %4935 = vmatprep.subr.bf16.mxu0 %v4519
        %4936 = vmatpush1.bf16.msra.mxu0 %v4518
        %4937 = vmatprep.subr.bf16.mxu0 %v4521
        %4938 = vmatpush1.bf16.msra.mxu0 %v4520
        %4939 = vmatprep.subr.bf16.mxu0 %v4523
        %4940 = vmatpush1.bf16.msra.mxu0 %v4522
        %4941 = vmatprep.subr.bf16.mxu0 %v4525
        %4942 = vmatpush1.bf16.msra.mxu0 %v4524
        %4943 = vmatprep.subr.bf16.mxu0 %v4527
        %4944 = vmatpush1.bf16.msra.mxu0 %v4526
        %4945 = vmatprep.subr.bf16.mxu0 %v4529
        %4946 = vmatpush1.bf16.msra.mxu0 %v4528
        %4947 = vmatprep.mubr.bf16.mxu0 %v4773
        %4948 = vmatmul.mubr.bf16.gmra.mrb[0].mxu0 %v4772
        %v4949 = vpop.f32.mrb[0].mxu0
        %v4950 = vadd.f32 %v4877, %v4949
        %v4951 = vpop.f32.mrb[0].mxu0
        %v4952 = vadd.f32 %v4879, %v4951
        %v4953 = vpop.f32.mrb[0].mxu0
        %v4954 = vadd.f32 %v4881, %v4953
        %v4955 = vpop.f32.mrb[0].mxu0
        %v4956 = vadd.f32 %v4883, %v4955
        %4957 = vmatprep.mubr.bf16.mxu0 %v4782
        %4958 = vmatmul.mubr.bf16.gmra.mrb[0].mxu0 %v4781
        %v4959 = vpop.f32.mrb[0].mxu0
        %v4960 = vadd.f32 %v4887, %v4959
        %v4961 = vpop.f32.mrb[0].mxu0
        %v4962 = vadd.f32 %v4889, %v4961
        %v4963 = vpop.f32.mrb[0].mxu0
        %v4964 = vadd.f32 %v4891, %v4963
        %v4965 = vpop.f32.mrb[0].mxu0
        %v4966 = vadd.f32 %v4893, %v4965
        %4967 = vmatprep.mubr.bf16.mxu0 %v4791
        %4968 = vmatmul.mubr.bf16.gmra.mrb[0].mxu0 %v4790
        %v4969 = vpop.f32.mrb[0].mxu0
        %v4970 = vadd.f32 %v4897, %v4969
        %v4971 = vpop.f32.mrb[0].mxu0
        %v4972 = vadd.f32 %v4899, %v4971
        %v4973 = vpop.f32.mrb[0].mxu0
        %v4974 = vadd.f32 %v4901, %v4973
        %v4975 = vpop.f32.mrb[0].mxu0
        %v4976 = vadd.f32 %v4903, %v4975
        %4977 = vmatprep.mubr.bf16.mxu0 %v4800
        %4978 = vmatmul.mubr.bf16.gmra.mrb[0].mxu0 %v4799
        %v4979 = vpop.f32.mrb[0].mxu0
        %v4980 = vadd.f32 %v4907, %v4979
        %v4981 = vpop.f32.mrb[0].mxu0
        %v4982 = vadd.f32 %v4909, %v4981
        %v4983 = vpop.f32.mrb[0].mxu0
        %v4984 = vadd.f32 %v4911, %v4983
        %v4985 = vpop.f32.mrb[0].mxu0
        %v4986 = vadd.f32 %v4913, %v4985
        %4987 = vdwg.mxu0
        %4988 = vmatprep.subr.bf16.mxu0 %v4531
        %4989 = vmatpush1.bf16.msra.mxu0 %v4530
        %4990 = vmatprep.subr.bf16.mxu0 %v4533
        %4991 = vmatpush1.bf16.msra.mxu0 %v4532
        %4992 = vmatprep.subr.bf16.mxu0 %v4535
        %4993 = vmatpush1.bf16.msra.mxu0 %v4534
        %4994 = vmatprep.subr.bf16.mxu0 %v4537
        %4995 = vmatpush1.bf16.msra.mxu0 %v4536
        %4996 = vmatprep.subr.bf16.mxu0 %v4539
        %4997 = vmatpush1.bf16.msra.mxu0 %v4538
        %4998 = vmatprep.subr.bf16.mxu0 %v4541
        %4999 = vmatpush1.bf16.msra.mxu0 %v4540
        %5000 = vmatprep.subr.bf16.mxu0 %v4543
        %5001 = vmatpush1.bf16.msra.mxu0 %v4542
        %5002 = vmatprep.subr.bf16.mxu0 %v4545
        %5003 = vmatpush1.bf16.msra.mxu0 %v4544
        %5004 = vmatprep.subr.bf16.mxu0 %v4547
        %5005 = vmatpush1.bf16.msra.mxu0 %v4546
        %5006 = vmatprep.subr.bf16.mxu0 %v4549
        %5007 = vmatpush1.bf16.msra.mxu0 %v4548
        %5008 = vmatprep.subr.bf16.mxu0 %v4551
        %5009 = vmatpush1.bf16.msra.mxu0 %v4550
        %5010 = vmatprep.subr.bf16.mxu0 %v4553
        %5011 = vmatpush1.bf16.msra.mxu0 %v4552
        %5012 = vmatprep.subr.bf16.mxu0 %v4555
        %5013 = vmatpush1.bf16.msra.mxu0 %v4554
        %5014 = vmatprep.subr.bf16.mxu0 %v4557
        %5015 = vmatpush1.bf16.msra.mxu0 %v4556
        %5016 = vmatprep.subr.bf16.mxu0 %v4559
        %5017 = vmatpush1.bf16.msra.mxu0 %v4558
        %5018 = vmatprep.subr.bf16.mxu0 %v4561
        %5019 = vmatpush1.bf16.msra.mxu0 %v4560
        %5020 = vmatprep.mubr.bf16.mxu0 %v4775
        %5021 = vmatmul.mubr.bf16.gmra.mrb[0].mxu0 %v4774
        %v5022 = vpop.f32.mrb[0].mxu0
        %v5023 = vadd.f32 %v4950, %v5022
        %v5024 = vpop.f32.mrb[0].mxu0
        %v5025 = vadd.f32 %v4952, %v5024
        %v5026 = vpop.f32.mrb[0].mxu0
        %v5027 = vadd.f32 %v4954, %v5026
        %v5028 = vpop.f32.mrb[0].mxu0
        %v5029 = vadd.f32 %v4956, %v5028
        %5030 = vmatprep.mubr.bf16.mxu0 %v4784
        %5031 = vmatmul.mubr.bf16.gmra.mrb[0].mxu0 %v4783
        %v5032 = vpop.f32.mrb[0].mxu0
        %v5033 = vadd.f32 %v4960, %v5032
        %v5034 = vpop.f32.mrb[0].mxu0
        %v5035 = vadd.f32 %v4962, %v5034
        %v5036 = vpop.f32.mrb[0].mxu0
        %v5037 = vadd.f32 %v4964, %v5036
        %v5038 = vpop.f32.mrb[0].mxu0
        %v5039 = vadd.f32 %v4966, %v5038
        %5040 = vmatprep.mubr.bf16.mxu0 %v4793
        %5041 = vmatmul.mubr.bf16.gmra.mrb[0].mxu0 %v4792
        %v5042 = vpop.f32.mrb[0].mxu0
        %v5043 = vadd.f32 %v4970, %v5042
        %v5044 = vpop.f32.mrb[0].mxu0
        %v5045 = vadd.f32 %v4972, %v5044
        %v5046 = vpop.f32.mrb[0].mxu0
        %v5047 = vadd.f32 %v4974, %v5046
        %v5048 = vpop.f32.mrb[0].mxu0
        %v5049 = vadd.f32 %v4976, %v5048
        %5050 = vmatprep.mubr.bf16.mxu0 %v4802
        %5051 = vmatmul.mubr.bf16.gmra.mrb[0].mxu0 %v4801
        %v5052 = vpop.f32.mrb[0].mxu0
        %v5053 = vadd.f32 %v4980, %v5052
        %v5054 = vpop.f32.mrb[0].mxu0
        %v5055 = vadd.f32 %v4982, %v5054
        %v5056 = vpop.f32.mrb[0].mxu0
        %v5057 = vadd.f32 %v4984, %v5056
        %v5058 = vpop.f32.mrb[0].mxu0
        %v5059 = vadd.f32 %v4986, %v5058
        %5060 = vdwg.mxu0
        %5061 = vmatprep.subr.bf16.mxu0 %v4563
        %5062 = vmatpush1.bf16.msra.mxu0 %v4562
        %5063 = vmatprep.subr.bf16.mxu0 %v4565
        %5064 = vmatpush1.bf16.msra.mxu0 %v4564
        %5065 = vmatprep.subr.bf16.mxu0 %v4567
        %5066 = vmatpush1.bf16.msra.mxu0 %v4566
        %5067 = vmatprep.subr.bf16.mxu0 %v4569
        %5068 = vmatpush1.bf16.msra.mxu0 %v4568
        %5069 = vmatprep.subr.bf16.mxu0 %v4571
        %5070 = vmatpush1.bf16.msra.mxu0 %v4570
        %5071 = vmatprep.subr.bf16.mxu0 %v4573
        %5072 = vmatpush1.bf16.msra.mxu0 %v4572
        %5073 = vmatprep.subr.bf16.mxu0 %v4575
        %5074 = vmatpush1.bf16.msra.mxu0 %v4574
        %5075 = vmatprep.subr.bf16.mxu0 %v4577
        %5076 = vmatpush1.bf16.msra.mxu0 %v4576
        %5077 = vmatprep.subr.bf16.mxu0 %v4579
        %5078 = vmatpush1.bf16.msra.mxu0 %v4578
        %5079 = vmatprep.subr.bf16.mxu0 %v4581
        %5080 = vmatpush1.bf16.msra.mxu0 %v4580
        %5081 = vmatprep.subr.bf16.mxu0 %v4583
        %5082 = vmatpush1.bf16.msra.mxu0 %v4582
        %5083 = vmatprep.subr.bf16.mxu0 %v4585
        %5084 = vmatpush1.bf16.msra.mxu0 %v4584
        %5085 = vmatprep.subr.bf16.mxu0 %v4587
        %5086 = vmatpush1.bf16.msra.mxu0 %v4586
        %5087 = vmatprep.subr.bf16.mxu0 %v4589
        %5088 = vmatpush1.bf16.msra.mxu0 %v4588
        %5089 = vmatprep.subr.bf16.mxu0 %v4591
        %5090 = vmatpush1.bf16.msra.mxu0 %v4590
        %5091 = vmatprep.subr.bf16.mxu0 %v4593
        %5092 = vmatpush1.bf16.msra.mxu0 %v4592
        %5093 = vmatprep.mubr.bf16.mxu0 %v4777
        %5094 = vmatmul.mubr.bf16.gmra.mrb[0].mxu0 %v4776
        %v5095 = vpop.f32.mrb[0].mxu0
        %v5096 = vadd.f32 %v5023, %v5095
        %v5097 = vpop.f32.mrb[0].mxu0
        %v5098 = vadd.f32 %v5025, %v5097
        %v5099 = vpop.f32.mrb[0].mxu0
        %v5100 = vadd.f32 %v5027, %v5099
        %v5101 = vpop.f32.mrb[0].mxu0
        %v5102 = vadd.f32 %v5029, %v5101
        %5103 = vmatprep.mubr.bf16.mxu0 %v4786
        %5104 = vmatmul.mubr.bf16.gmra.mrb[0].mxu0 %v4785
        %v5105 = vpop.f32.mrb[0].mxu0
        %v5106 = vadd.f32 %v5033, %v5105
        %v5107 = vpop.f32.mrb[0].mxu0
        %v5108 = vadd.f32 %v5035, %v5107
        %v5109 = vpop.f32.mrb[0].mxu0
        %v5110 = vadd.f32 %v5037, %v5109
        %v5111 = vpop.f32.mrb[0].mxu0
        %v5112 = vadd.f32 %v5039, %v5111
        %5113 = vmatprep.mubr.bf16.mxu0 %v4795
        %5114 = vmatmul.mubr.bf16.gmra.mrb[0].mxu0 %v4794
        %v5115 = vpop.f32.mrb[0].mxu0
        %v5116 = vadd.f32 %v5043, %v5115
        %v5117 = vpop.f32.mrb[0].mxu0
        %v5118 = vadd.f32 %v5045, %v5117
        %v5119 = vpop.f32.mrb[0].mxu0
        %v5120 = vadd.f32 %v5047, %v5119
        %v5121 = vpop.f32.mrb[0].mxu0
        %v5122 = vadd.f32 %v5049, %v5121
        %5123 = vmatprep.mubr.bf16.mxu0 %v4804
        %5124 = vmatmul.mubr.bf16.gmra.mrb[0].mxu0 %v4803
        %v5125 = vpop.f32.mrb[0].mxu0
        %v5126 = vadd.f32 %v5053, %v5125
        %v5127 = vpop.f32.mrb[0].mxu0
        %v5128 = vadd.f32 %v5055, %v5127
        %v5129 = vpop.f32.mrb[0].mxu0
        %v5130 = vadd.f32 %v5057, %v5129
        %v5131 = vpop.f32.mrb[0].mxu0
        %v5132 = vadd.f32 %v5059, %v5131
        %5133 = vdwg.mxu0
        %5134 = vmatprep.subr.bf16.mxu0 %v4595
        %5135 = vmatpush1.bf16.msra.mxu0 %v4594
        %5136 = vmatprep.subr.bf16.mxu0 %v4597
        %5137 = vmatpush1.bf16.msra.mxu0 %v4596
        %5138 = vmatprep.subr.bf16.mxu0 %v4599
        %5139 = vmatpush1.bf16.msra.mxu0 %v4598
        %5140 = vmatprep.subr.bf16.mxu0 %v4601
        %5141 = vmatpush1.bf16.msra.mxu0 %v4600
        %5142 = vmatprep.subr.bf16.mxu0 %v4603
        %5143 = vmatpush1.bf16.msra.mxu0 %v4602
        %5144 = vmatprep.subr.bf16.mxu0 %v4605
        %5145 = vmatpush1.bf16.msra.mxu0 %v4604
        %5146 = vmatprep.subr.bf16.mxu0 %v4607
        %5147 = vmatpush1.bf16.msra.mxu0 %v4606
        %5148 = vmatprep.subr.bf16.mxu0 %v4609
        %5149 = vmatpush1.bf16.msra.mxu0 %v4608
        %5150 = vmatprep.subr.bf16.mxu0 0
        %5151 = vmatpush1.bf16.msra.mxu0 0
        %5152 = vmatprep.subr.bf16.mxu0 0
        %5153 = vmatpush1.bf16.msra.mxu0 0
        %5154 = vmatprep.subr.bf16.mxu0 0
        %5155 = vmatpush1.bf16.msra.mxu0 0
        %5156 = vmatprep.subr.bf16.mxu0 0
        %5157 = vmatpush1.bf16.msra.mxu0 0
        %5158 = vmatprep.subr.bf16.mxu0 0
        %5159 = vmatpush1.bf16.msra.mxu0 0
        %5160 = vmatprep.subr.bf16.mxu0 0
        %5161 = vmatpush1.bf16.msra.mxu0 0
        %5162 = vmatprep.subr.bf16.mxu0 0
        %5163 = vmatpush1.bf16.msra.mxu0 0
        %5164 = vmatprep.subr.bf16.mxu0 0
        %5165 = vmatpush1.bf16.msra.mxu0 0
        %5166 = vmatprep.mubr.bf16.mxu0 0
        %5167 = vmatmul.mubr.bf16.gmra.mrb[0].mxu0 %v4778
        %v5168 = vpop.f32.mrb[0].mxu0
        %v5169 = vadd.f32 %v5096, %v5168
        %v5170 = vpop.f32.mrb[0].mxu0
        %v5171 = vadd.f32 %v5098, %v5170
        %v5172 = vpop.f32.mrb[0].mxu0
        %v5173 = vadd.f32 %v5100, %v5172
        %v5174 = vpop.f32.mrb[0].mxu0
        %v5175 = vadd.f32 %v5102, %v5174
        %5176 = vmatprep.mubr.bf16.mxu0 0
        %5177 = vmatmul.mubr.bf16.gmra.mrb[0].mxu0 %v4787
        %v5178 = vpop.f32.mrb[0].mxu0
        %v5179 = vadd.f32 %v5106, %v5178
        %v5180 = vpop.f32.mrb[0].mxu0
        %v5181 = vadd.f32 %v5108, %v5180
        %v5182 = vpop.f32.mrb[0].mxu0
        %v5183 = vadd.f32 %v5110, %v5182
        %v5184 = vpop.f32.mrb[0].mxu0
        %v5185 = vadd.f32 %v5112, %v5184
        %5186 = vmatprep.mubr.bf16.mxu0 0
        %5187 = vmatmul.mubr.bf16.gmra.mrb[0].mxu0 %v4796
        %v5188 = vpop.f32.mrb[0].mxu0
        %v5189 = vadd.f32 %v5116, %v5188
        %v5190 = vpop.f32.mrb[0].mxu0
        %v5191 = vadd.f32 %v5118, %v5190
        %v5192 = vpop.f32.mrb[0].mxu0
        %v5193 = vadd.f32 %v5120, %v5192
        %v5194 = vpop.f32.mrb[0].mxu0
        %v5195 = vadd.f32 %v5122, %v5194
        %5196 = vmatprep.mubr.bf16.mxu0 0
        %5197 = vmatmul.mubr.bf16.gmra.mrb[0].mxu0 %v4805
        %v5198 = vpop.f32.mrb[0].mxu0
        %v5199 = vadd.f32 %v5126, %v5198
        %v5200 = vpop.f32.mrb[0].mxu0
        %v5201 = vadd.f32 %v5128, %v5200
        %v5202 = vpop.f32.mrb[0].mxu0
        %v5203 = vadd.f32 %v5130, %v5202
        %v5204 = vpop.f32.mrb[0].mxu0
        %v5205 = vadd.f32 %v5132, %v5204
        %5206 = vdwg.mxu0
        %v5207 = vtanh.pop %v5169
        %v5208 = vtanh.pop %v5171
        %v5209 = vtanh.pop %v5173
        %v5210 = vtanh.pop %v5175
        %v5211 = vtanh.pop %v5179
        %v5212 = vtanh.pop %v5181
        %v5213 = vtanh.pop %v5183
        %v5214 = vtanh.pop %v5185
        %v5215 = vtanh.pop %v5189
        %v5216 = vtanh.pop %v5191
        %v5217 = vtanh.pop %v5193
        %v5218 = vtanh.pop %v5195
        %v5219 = vtanh.pop %v5199
        %v5220 = vtanh.pop %v5201
        %v5221 = vtanh.pop %v5203
        %v5222 = vtanh.pop %v5205
        %v5223 = vpack.c.bf16 %v5209, %v5207
        %v5224 = vpack.c.bf16 %v5210, %v5208
        %v5225 = vpack.c.bf16 %v5213, %v5211
        %v5226 = vpack.c.bf16 %v5214, %v5212
        %v5227 = vpack.c.bf16 %v5217, %v5215
        %v5228 = vpack.c.bf16 %v5218, %v5216
        %v5229 = vpack.c.bf16 %v5221, %v5219
        %v5230 = vpack.c.bf16 %v5222, %v5220
        %v5231 = vld [vmem:[#allocation15] sm:$0xff]
        %v5232 = vld [vmem:[#allocation15 + $0x8] sm:$0xff]
        %v5233 = vld [vmem:[#allocation15 + $0x10] sm:$0xff]
        %v5234 = vld [vmem:[#allocation15 + $0x18] sm:$0xff]
        %v5235 = vld [vmem:[#allocation15 + $0x20] sm:$0xff]
        %v5236 = vld [vmem:[#allocation15 + $0x28] sm:$0xff]
        %v5237 = vld [vmem:[#allocation15 + $0x30] sm:$0xff]
        %v5238 = vld [vmem:[#allocation15 + $0x38] sm:$0xff]
        %v5239 = vld [vmem:[#allocation15 + $0x40] sm:$0xff]
        %v5240 = vld [vmem:[#allocation15 + $0x48] sm:$0xff]
        %v5241 = vld [vmem:[#allocation15 + $0x50] sm:$0xff]
        %v5242 = vld [vmem:[#allocation15 + $0x58] sm:$0xff]
        %v5243 = vld [vmem:[#allocation15 + $0x60] sm:$0xff]
        %v5244 = vld [vmem:[#allocation15 + $0x68] sm:$0xff]
        %v5245 = vld [vmem:[#allocation15 + $0x70] sm:$0xff]
        %v5246 = vld [vmem:[#allocation15 + $0x78] sm:$0xff]
        %v5247 = vld [vmem:[#allocation15 + $0x80] sm:$0xff]
        %v5248 = vld [vmem:[#allocation15 + $0x88] sm:$0xff]
        %v5249 = vld [vmem:[#allocation15 + $0x90] sm:$0xff]
        %v5250 = vld [vmem:[#allocation15 + $0x98] sm:$0xff]
        %v5251 = vld [vmem:[#allocation15 + $0xa0] sm:$0xff]
        %v5252 = vld [vmem:[#allocation15 + $0xa8] sm:$0xff]
        %v5253 = vld [vmem:[#allocation15 + $0xb0] sm:$0xff]
        %v5254 = vld [vmem:[#allocation15 + $0xb8] sm:$0xff]
        %v5255 = vld [vmem:[#allocation15 + $0xc0] sm:$0xff]
        %v5256 = vld [vmem:[#allocation15 + $0xc8] sm:$0xff]
        %v5257 = vld [vmem:[#allocation15 + $0xd0] sm:$0xff]
        %v5258 = vld [vmem:[#allocation15 + $0xd8] sm:$0xff]
        %v5259 = vld [vmem:[#allocation15 + $0xe0] sm:$0xff]
        %v5260 = vld [vmem:[#allocation15 + $0xe8] sm:$0xff]
        %v5261 = vld [vmem:[#allocation15 + $0xf0] sm:$0xff]
        %v5262 = vld [vmem:[#allocation15 + $0xf8] sm:$0xff]
        %v5263 = vld [vmem:[#allocation15 + $0x100] sm:$0xff]
        %v5264 = vld [vmem:[#allocation15 + $0x108] sm:$0xff]
        %v5265 = vld [vmem:[#allocation15 + $0x110] sm:$0xff]
        %v5266 = vld [vmem:[#allocation15 + $0x118] sm:$0xff]
        %v5267 = vld [vmem:[#allocation15 + $0x120] sm:$0xff]
        %v5268 = vld [vmem:[#allocation15 + $0x128] sm:$0xff]
        %v5269 = vld [vmem:[#allocation15 + $0x130] sm:$0xff]
        %v5270 = vld [vmem:[#allocation15 + $0x138] sm:$0xff]
        %v5271 = vld [vmem:[#allocation15 + $0x140] sm:$0xff]
        %v5272 = vld [vmem:[#allocation15 + $0x148] sm:$0xff]
        %v5273 = vld [vmem:[#allocation15 + $0x150] sm:$0xff]
        %v5274 = vld [vmem:[#allocation15 + $0x158] sm:$0xff]
        %v5275 = vld [vmem:[#allocation15 + $0x160] sm:$0xff]
        %v5276 = vld [vmem:[#allocation15 + $0x168] sm:$0xff]
        %v5277 = vld [vmem:[#allocation15 + $0x170] sm:$0xff]
        %v5278 = vld [vmem:[#allocation15 + $0x178] sm:$0xff]
        %v5279 = vld [vmem:[#allocation15 + $0x180] sm:$0xff]
        %v5280 = vld [vmem:[#allocation15 + $0x188] sm:$0xff]
        %v5281 = vld [vmem:[#allocation15 + $0x190] sm:$0xff]
        %v5282 = vld [vmem:[#allocation15 + $0x198] sm:$0xff]
        %v5283 = vld [vmem:[#allocation15 + $0x1a0] sm:$0xff]
        %v5284 = vld [vmem:[#allocation15 + $0x1a8] sm:$0xff]
        %v5285 = vld [vmem:[#allocation15 + $0x1b0] sm:$0xff]
        %v5286 = vld [vmem:[#allocation15 + $0x1b8] sm:$0xff]
        %v5287 = vld [vmem:[#allocation15 + $0x1c0] sm:$0xff]
        %v5288 = vld [vmem:[#allocation15 + $0x1c8] sm:$0xff]
        %v5289 = vld [vmem:[#allocation15 + $0x1d0] sm:$0xff]
        %v5290 = vld [vmem:[#allocation15 + $0x1d8] sm:$0xff]
        %v5291 = vld [vmem:[#allocation15 + $0x1e0] sm:$0xff]
        %v5292 = vld [vmem:[#allocation15 + $0x1e8] sm:$0xff]
        %v5293 = vld [vmem:[#allocation15 + $0x1f0] sm:$0xff]
        %v5294 = vld [vmem:[#allocation15 + $0x1f8] sm:$0xff]
        %v5295 = vld [vmem:[#allocation15 + $0x200] sm:$0xff]
        %v5296 = vld [vmem:[#allocation15 + $0x208] sm:$0xff]
        %v5297 = vld [vmem:[#allocation15 + $0x210] sm:$0xff]
        %v5298 = vld [vmem:[#allocation15 + $0x218] sm:$0xff]
        %v5299 = vld [vmem:[#allocation15 + $0x220] sm:$0xff]
        %v5300 = vld [vmem:[#allocation15 + $0x228] sm:$0xff]
        %v5301 = vld [vmem:[#allocation15 + $0x230] sm:$0xff]
        %v5302 = vld [vmem:[#allocation15 + $0x238] sm:$0xff]
        %v5303 = vld [vmem:[#allocation15 + $0x240] sm:$0xff]
        %v5304 = vld [vmem:[#allocation15 + $0x248] sm:$0xff]
        %v5305 = vld [vmem:[#allocation15 + $0x250] sm:$0xff]
        %v5306 = vld [vmem:[#allocation15 + $0x258] sm:$0xff]
        %v5307 = vld [vmem:[#allocation15 + $0x260] sm:$0xff]
        %v5308 = vld [vmem:[#allocation15 + $0x268] sm:$0xff]
        %v5309 = vld [vmem:[#allocation15 + $0x270] sm:$0xff]
        %v5310 = vld [vmem:[#allocation15 + $0x278] sm:$0xff]
        %v5311 = vld [vmem:[#allocation15 + $0x280] sm:$0xff]
        %v5312 = vld [vmem:[#allocation15 + $0x288] sm:$0xff]
        %v5313 = vld [vmem:[#allocation15 + $0x290] sm:$0xff]
        %v5314 = vld [vmem:[#allocation15 + $0x298] sm:$0xff]
        %v5315 = vld [vmem:[#allocation15 + $0x2a0] sm:$0xff]
        %v5316 = vld [vmem:[#allocation15 + $0x2a8] sm:$0xff]
        %v5317 = vld [vmem:[#allocation15 + $0x2b0] sm:$0xff]
        %v5318 = vld [vmem:[#allocation15 + $0x2b8] sm:$0xff]
        %v5319 = vld [vmem:[#allocation15 + $0x2c0] sm:$0xff]
        %v5320 = vld [vmem:[#allocation15 + $0x2c8] sm:$0xff]
        %v5321 = vld [vmem:[#allocation15 + $0x2d0] sm:$0xff]
        %v5322 = vld [vmem:[#allocation15 + $0x2d8] sm:$0xff]
        %v5323 = vld [vmem:[#allocation15 + $0x2e0] sm:$0xff]
        %v5324 = vld [vmem:[#allocation15 + $0x2e8] sm:$0xff]
        %v5325 = vld [vmem:[#allocation15 + $0x2f0] sm:$0xff]
        %v5326 = vld [vmem:[#allocation15 + $0x2f8] sm:$0xff]
        %v5327 = vld [vmem:[#allocation15 + $0x300] sm:$0x11]
        %v5328 = vld [vmem:[#allocation15 + $0x308] sm:$0x11]
        %v5329 = vld [vmem:[#allocation15 + $0x310] sm:$0x11]
        %v5330 = vld [vmem:[#allocation15 + $0x318] sm:$0x11]
        %v5431 = vunpack.c.l.b16 %v5231
        %v5432 = vunpack.c.h.b16 %v5231
        %v5433 = vunpack.c.l.b16 %v5232
        %v5434 = vunpack.c.h.b16 %v5232
        %v5435 = vunpack.c.l.b16 %v5233
        %v5436 = vunpack.c.h.b16 %v5233
        %v5437 = vunpack.c.l.b16 %v5234
        %v5438 = vunpack.c.h.b16 %v5234
        %v5439 = vunpack.c.l.b16 %v5235
        %v5440 = vunpack.c.h.b16 %v5235
        %v5441 = vunpack.c.l.b16 %v5236
        %v5442 = vunpack.c.h.b16 %v5236
        %v5443 = vunpack.c.l.b16 %v5237
        %v5444 = vunpack.c.h.b16 %v5237
        %v5445 = vunpack.c.l.b16 %v5238
        %v5446 = vunpack.c.h.b16 %v5238
        %v5447 = vunpack.c.l.b16 %v5239
        %v5448 = vunpack.c.h.b16 %v5239
        %v5449 = vunpack.c.l.b16 %v5240
        %v5450 = vunpack.c.h.b16 %v5240
        %v5451 = vunpack.c.l.b16 %v5241
        %v5452 = vunpack.c.h.b16 %v5241
        %v5453 = vunpack.c.l.b16 %v5242
        %v5454 = vunpack.c.h.b16 %v5242
        %v5455 = vunpack.c.l.b16 %v5243
        %v5456 = vunpack.c.h.b16 %v5243
        %v5457 = vunpack.c.l.b16 %v5244
        %v5458 = vunpack.c.h.b16 %v5244
        %v5459 = vunpack.c.l.b16 %v5245
        %v5460 = vunpack.c.h.b16 %v5245
        %v5461 = vunpack.c.l.b16 %v5246
        %v5462 = vunpack.c.h.b16 %v5246
        %v5463 = vunpack.c.l.b16 %v5247
        %v5464 = vunpack.c.h.b16 %v5247
        %v5465 = vunpack.c.l.b16 %v5248
        %v5466 = vunpack.c.h.b16 %v5248
        %v5467 = vunpack.c.l.b16 %v5249
        %v5468 = vunpack.c.h.b16 %v5249
        %v5469 = vunpack.c.l.b16 %v5250
        %v5470 = vunpack.c.h.b16 %v5250
        %v5471 = vunpack.c.l.b16 %v5251
        %v5472 = vunpack.c.h.b16 %v5251
        %v5473 = vunpack.c.l.b16 %v5252
        %v5474 = vunpack.c.h.b16 %v5252
        %v5475 = vunpack.c.l.b16 %v5253
        %v5476 = vunpack.c.h.b16 %v5253
        %v5477 = vunpack.c.l.b16 %v5254
        %v5478 = vunpack.c.h.b16 %v5254
        %v5479 = vunpack.c.l.b16 %v5255
        %v5480 = vunpack.c.h.b16 %v5255
        %v5481 = vunpack.c.l.b16 %v5256
        %v5482 = vunpack.c.h.b16 %v5256
        %v5483 = vunpack.c.l.b16 %v5257
        %v5484 = vunpack.c.h.b16 %v5257
        %v5485 = vunpack.c.l.b16 %v5258
        %v5486 = vunpack.c.h.b16 %v5258
        %v5487 = vunpack.c.l.b16 %v5259
        %v5488 = vunpack.c.h.b16 %v5259
        %v5489 = vunpack.c.l.b16 %v5260
        %v5490 = vunpack.c.h.b16 %v5260
        %v5491 = vunpack.c.l.b16 %v5261
        %v5492 = vunpack.c.h.b16 %v5261
        %v5493 = vunpack.c.l.b16 %v5262
        %v5494 = vunpack.c.h.b16 %v5262
        %v5495 = vunpack.c.l.b16 %v5263
        %v5496 = vunpack.c.h.b16 %v5263
        %v5497 = vunpack.c.l.b16 %v5264
        %v5498 = vunpack.c.h.b16 %v5264
        %v5499 = vunpack.c.l.b16 %v5265
        %v5500 = vunpack.c.h.b16 %v5265
        %v5501 = vunpack.c.l.b16 %v5266
        %v5502 = vunpack.c.h.b16 %v5266
        %v5503 = vunpack.c.l.b16 %v5267
        %v5504 = vunpack.c.h.b16 %v5267
        %v5505 = vunpack.c.l.b16 %v5268
        %v5506 = vunpack.c.h.b16 %v5268
        %v5507 = vunpack.c.l.b16 %v5269
        %v5508 = vunpack.c.h.b16 %v5269
        %v5509 = vunpack.c.l.b16 %v5270
        %v5510 = vunpack.c.h.b16 %v5270
        %v5511 = vunpack.c.l.b16 %v5271
        %v5512 = vunpack.c.h.b16 %v5271
        %v5513 = vunpack.c.l.b16 %v5272
        %v5514 = vunpack.c.h.b16 %v5272
        %v5515 = vunpack.c.l.b16 %v5273
        %v5516 = vunpack.c.h.b16 %v5273
        %v5517 = vunpack.c.l.b16 %v5274
        %v5518 = vunpack.c.h.b16 %v5274
        %v5519 = vunpack.c.l.b16 %v5275
        %v5520 = vunpack.c.h.b16 %v5275
        %v5521 = vunpack.c.l.b16 %v5276
        %v5522 = vunpack.c.h.b16 %v5276
        %v5523 = vunpack.c.l.b16 %v5277
        %v5524 = vunpack.c.h.b16 %v5277
        %v5525 = vunpack.c.l.b16 %v5278
        %v5526 = vunpack.c.h.b16 %v5278
        %v5527 = vunpack.c.l.b16 %v5279
        %v5528 = vunpack.c.h.b16 %v5279
        %v5529 = vunpack.c.l.b16 %v5280
        %v5530 = vunpack.c.h.b16 %v5280
        %v5531 = vunpack.c.l.b16 %v5281
        %v5532 = vunpack.c.h.b16 %v5281
        %v5533 = vunpack.c.l.b16 %v5282
        %v5534 = vunpack.c.h.b16 %v5282
        %v5535 = vunpack.c.l.b16 %v5283
        %v5536 = vunpack.c.h.b16 %v5283
        %v5537 = vunpack.c.l.b16 %v5284
        %v5538 = vunpack.c.h.b16 %v5284
        %v5539 = vunpack.c.l.b16 %v5285
        %v5540 = vunpack.c.h.b16 %v5285
        %v5541 = vunpack.c.l.b16 %v5286
        %v5542 = vunpack.c.h.b16 %v5286
        %v5543 = vunpack.c.l.b16 %v5287
        %v5544 = vunpack.c.h.b16 %v5287
        %v5545 = vunpack.c.l.b16 %v5288
        %v5546 = vunpack.c.h.b16 %v5288
        %v5547 = vunpack.c.l.b16 %v5289
        %v5548 = vunpack.c.h.b16 %v5289
        %v5549 = vunpack.c.l.b16 %v5290
        %v5550 = vunpack.c.h.b16 %v5290
        %v5551 = vunpack.c.l.b16 %v5291
        %v5552 = vunpack.c.h.b16 %v5291
        %v5553 = vunpack.c.l.b16 %v5292
        %v5554 = vunpack.c.h.b16 %v5292
        %v5555 = vunpack.c.l.b16 %v5293
        %v5556 = vunpack.c.h.b16 %v5293
        %v5557 = vunpack.c.l.b16 %v5294
        %v5558 = vunpack.c.h.b16 %v5294
        %v5559 = vunpack.c.l.b16 %v5295
        %v5560 = vunpack.c.h.b16 %v5295
        %v5561 = vunpack.c.l.b16 %v5296
        %v5562 = vunpack.c.h.b16 %v5296
        %v5563 = vunpack.c.l.b16 %v5297
        %v5564 = vunpack.c.h.b16 %v5297
        %v5565 = vunpack.c.l.b16 %v5298
        %v5566 = vunpack.c.h.b16 %v5298
        %v5567 = vunpack.c.l.b16 %v5299
        %v5568 = vunpack.c.h.b16 %v5299
        %v5569 = vunpack.c.l.b16 %v5300
        %v5570 = vunpack.c.h.b16 %v5300
        %v5571 = vunpack.c.l.b16 %v5301
        %v5572 = vunpack.c.h.b16 %v5301
        %v5573 = vunpack.c.l.b16 %v5302
        %v5574 = vunpack.c.h.b16 %v5302
        %v5575 = vunpack.c.l.b16 %v5303
        %v5576 = vunpack.c.h.b16 %v5303
        %v5577 = vunpack.c.l.b16 %v5304
        %v5578 = vunpack.c.h.b16 %v5304
        %v5579 = vunpack.c.l.b16 %v5305
        %v5580 = vunpack.c.h.b16 %v5305
        %v5581 = vunpack.c.l.b16 %v5306
        %v5582 = vunpack.c.h.b16 %v5306
        %v5583 = vunpack.c.l.b16 %v5307
        %v5584 = vunpack.c.h.b16 %v5307
        %v5585 = vunpack.c.l.b16 %v5308
        %v5586 = vunpack.c.h.b16 %v5308
        %v5587 = vunpack.c.l.b16 %v5309
        %v5588 = vunpack.c.h.b16 %v5309
        %v5589 = vunpack.c.l.b16 %v5310
        %v5590 = vunpack.c.h.b16 %v5310
        %v5591 = vunpack.c.l.b16 %v5311
        %v5592 = vunpack.c.h.b16 %v5311
        %v5593 = vunpack.c.l.b16 %v5312
        %v5594 = vunpack.c.h.b16 %v5312
        %v5595 = vunpack.c.l.b16 %v5313
        %v5596 = vunpack.c.h.b16 %v5313
        %v5597 = vunpack.c.l.b16 %v5314
        %v5598 = vunpack.c.h.b16 %v5314
        %v5599 = vunpack.c.l.b16 %v5315
        %v5600 = vunpack.c.h.b16 %v5315
        %v5601 = vunpack.c.l.b16 %v5316
        %v5602 = vunpack.c.h.b16 %v5316
        %v5603 = vunpack.c.l.b16 %v5317
        %v5604 = vunpack.c.h.b16 %v5317
        %v5605 = vunpack.c.l.b16 %v5318
        %v5606 = vunpack.c.h.b16 %v5318
        %v5607 = vunpack.c.l.b16 %v5319
        %v5608 = vunpack.c.h.b16 %v5319
        %v5609 = vunpack.c.l.b16 %v5320
        %v5610 = vunpack.c.h.b16 %v5320
        %v5611 = vunpack.c.l.b16 %v5321
        %v5612 = vunpack.c.h.b16 %v5321
        %v5613 = vunpack.c.l.b16 %v5322
        %v5614 = vunpack.c.h.b16 %v5322
        %v5615 = vunpack.c.l.b16 %v5323
        %v5616 = vunpack.c.h.b16 %v5323
        %v5617 = vunpack.c.l.b16 %v5324
        %v5618 = vunpack.c.h.b16 %v5324
        %v5619 = vunpack.c.l.b16 %v5325
        %v5620 = vunpack.c.h.b16 %v5325
        %v5621 = vunpack.c.l.b16 %v5326
        %v5622 = vunpack.c.h.b16 %v5326
        %v5623 = vunpack.c.l.b16 %v5327
        %v5624 = vunpack.c.h.b16 %v5327
        %v5625 = vunpack.c.l.b16 %v5328
        %v5626 = vunpack.c.h.b16 %v5328
        %v5627 = vunpack.c.l.b16 %v5329
        %v5628 = vunpack.c.h.b16 %v5329
        %v5629 = vunpack.c.l.b16 %v5330
        %v5630 = vunpack.c.h.b16 %v5330
        %v5631 = vpack.c.b16 %v5439, %v5431
        %v5632 = vpack.c.b16 %v5440, %v5432
        %v5633 = vpack.c.b16 %v5441, %v5433
        %v5634 = vpack.c.b16 %v5442, %v5434
        %v5635 = vpack.c.b16 %v5443, %v5435
        %v5636 = vpack.c.b16 %v5444, %v5436
        %v5637 = vpack.c.b16 %v5445, %v5437
        %v5638 = vpack.c.b16 %v5446, %v5438
        %v5639 = vpack.c.b16 %v5455, %v5447
        %v5640 = vpack.c.b16 %v5456, %v5448
        %v5641 = vpack.c.b16 %v5457, %v5449
        %v5642 = vpack.c.b16 %v5458, %v5450
        %v5643 = vpack.c.b16 %v5459, %v5451
        %v5644 = vpack.c.b16 %v5460, %v5452
        %v5645 = vpack.c.b16 %v5461, %v5453
        %v5646 = vpack.c.b16 %v5462, %v5454
        %v5647 = vpack.c.b16 %v5471, %v5463
        %v5648 = vpack.c.b16 %v5472, %v5464
        %v5649 = vpack.c.b16 %v5473, %v5465
        %v5650 = vpack.c.b16 %v5474, %v5466
        %v5651 = vpack.c.b16 %v5475, %v5467
        %v5652 = vpack.c.b16 %v5476, %v5468
        %v5653 = vpack.c.b16 %v5477, %v5469
        %v5654 = vpack.c.b16 %v5478, %v5470
        %v5655 = vpack.c.b16 %v5487, %v5479
        %v5656 = vpack.c.b16 %v5488, %v5480
        %v5657 = vpack.c.b16 %v5489, %v5481
        %v5658 = vpack.c.b16 %v5490, %v5482
        %v5659 = vpack.c.b16 %v5491, %v5483
        %v5660 = vpack.c.b16 %v5492, %v5484
        %v5661 = vpack.c.b16 %v5493, %v5485
        %v5662 = vpack.c.b16 %v5494, %v5486
        %v5663 = vpack.c.b16 %v5503, %v5495
        %v5664 = vpack.c.b16 %v5504, %v5496
        %v5665 = vpack.c.b16 %v5505, %v5497
        %v5666 = vpack.c.b16 %v5506, %v5498
        %v5667 = vpack.c.b16 %v5507, %v5499
        %v5668 = vpack.c.b16 %v5508, %v5500
        %v5669 = vpack.c.b16 %v5509, %v5501
        %v5670 = vpack.c.b16 %v5510, %v5502
        %v5671 = vpack.c.b16 %v5519, %v5511
        %v5672 = vpack.c.b16 %v5520, %v5512
        %v5673 = vpack.c.b16 %v5521, %v5513
        %v5674 = vpack.c.b16 %v5522, %v5514
        %v5675 = vpack.c.b16 %v5523, %v5515
        %v5676 = vpack.c.b16 %v5524, %v5516
        %v5677 = vpack.c.b16 %v5525, %v5517
        %v5678 = vpack.c.b16 %v5526, %v5518
        %v5679 = vpack.c.b16 %v5535, %v5527
        %v5680 = vpack.c.b16 %v5536, %v5528
        %v5681 = vpack.c.b16 %v5537, %v5529
        %v5682 = vpack.c.b16 %v5538, %v5530
        %v5683 = vpack.c.b16 %v5539, %v5531
        %v5684 = vpack.c.b16 %v5540, %v5532
        %v5685 = vpack.c.b16 %v5541, %v5533
        %v5686 = vpack.c.b16 %v5542, %v5534
        %v5687 = vpack.c.b16 %v5551, %v5543
        %v5688 = vpack.c.b16 %v5552, %v5544
        %v5689 = vpack.c.b16 %v5553, %v5545
        %v5690 = vpack.c.b16 %v5554, %v5546
        %v5691 = vpack.c.b16 %v5555, %v5547
        %v5692 = vpack.c.b16 %v5556, %v5548
        %v5693 = vpack.c.b16 %v5557, %v5549
        %v5694 = vpack.c.b16 %v5558, %v5550
        %v5695 = vpack.c.b16 %v5567, %v5559
        %v5696 = vpack.c.b16 %v5568, %v5560
        %v5697 = vpack.c.b16 %v5569, %v5561
        %v5698 = vpack.c.b16 %v5570, %v5562
        %v5699 = vpack.c.b16 %v5571, %v5563
        %v5700 = vpack.c.b16 %v5572, %v5564
        %v5701 = vpack.c.b16 %v5573, %v5565
        %v5702 = vpack.c.b16 %v5574, %v5566
        %v5703 = vpack.c.b16 %v5583, %v5575
        %v5704 = vpack.c.b16 %v5584, %v5576
        %v5705 = vpack.c.b16 %v5585, %v5577
        %v5706 = vpack.c.b16 %v5586, %v5578
        %v5707 = vpack.c.b16 %v5587, %v5579
        %v5708 = vpack.c.b16 %v5588, %v5580
        %v5709 = vpack.c.b16 %v5589, %v5581
        %v5710 = vpack.c.b16 %v5590, %v5582
        %v5711 = vpack.c.b16 %v5599, %v5591
        %v5712 = vpack.c.b16 %v5600, %v5592
        %v5713 = vpack.c.b16 %v5601, %v5593
        %v5714 = vpack.c.b16 %v5602, %v5594
        %v5715 = vpack.c.b16 %v5603, %v5595
        %v5716 = vpack.c.b16 %v5604, %v5596
        %v5717 = vpack.c.b16 %v5605, %v5597
        %v5718 = vpack.c.b16 %v5606, %v5598
        %v5719 = vpack.c.b16 %v5615, %v5607
        %v5720 = vpack.c.b16 %v5616, %v5608
        %v5721 = vpack.c.b16 %v5617, %v5609
        %v5722 = vpack.c.b16 %v5618, %v5610
        %v5723 = vpack.c.b16 %v5619, %v5611
        %v5724 = vpack.c.b16 %v5620, %v5612
        %v5725 = vpack.c.b16 %v5621, %v5613
        %v5726 = vpack.c.b16 %v5622, %v5614
        %v5727 = vpack.c.b16 %v5623, %v5623
        %v5728 = vpack.c.b16 %v5624, %v5624
        %v5729 = vpack.c.b16 %v5625, %v5625
        %v5730 = vpack.c.b16 %v5626, %v5626
        %v5731 = vpack.c.b16 %v5627, %v5627
        %v5732 = vpack.c.b16 %v5628, %v5628
        %v5733 = vpack.c.b16 %v5629, %v5629
        %v5734 = vpack.c.b16 %v5630, %v5630
        %v5832 = vsel %vm3570, %v5224, 0
        %v5835 = vsel %vm3570, %v5226, 0
        %v5838 = vsel %vm3570, %v5228, 0
        %v5841 = vsel %vm3570, %v5230, 0
        %v5843 = vsel 0, 4294967295, 65535
        %v5844 = vsel %vm3397, %v5843, 0
        %v5846 = vand.u32 %v5727, %v5844
        %v5849 = vand.u32 %v5728, %v5844
        %v5852 = vand.u32 %v5729, %v5844
        %v5855 = vand.u32 %v5730, %v5844
        %v5858 = vand.u32 %v5731, %v5844
        %v5861 = vand.u32 %v5732, %v5844
        %v5864 = vand.u32 %v5733, %v5844
        %v5867 = vand.u32 %v5734, %v5844
        %5869 = vmatprep.subr.bf16.mxu0 %v5632
        %5870 = vmatpush1.bf16.msra.mxu0 %v5631
        %5871 = vmatprep.subr.bf16.mxu0 %v5640
        %5872 = vmatpush1.bf16.msra.mxu0 %v5639
        %5873 = vmatprep.subr.bf16.mxu0 %v5648
        %5874 = vmatpush1.bf16.msra.mxu0 %v5647
        %5875 = vmatprep.subr.bf16.mxu0 %v5656
        %5876 = vmatpush1.bf16.msra.mxu0 %v5655
        %5877 = vmatprep.subr.bf16.mxu0 %v5664
        %5878 = vmatpush1.bf16.msra.mxu0 %v5663
        %5879 = vmatprep.subr.bf16.mxu0 %v5672
        %5880 = vmatpush1.bf16.msra.mxu0 %v5671
        %5881 = vmatprep.subr.bf16.mxu0 %v5680
        %5882 = vmatpush1.bf16.msra.mxu0 %v5679
        %5883 = vmatprep.subr.bf16.mxu0 %v5688
        %5884 = vmatpush1.bf16.msra.mxu0 %v5687
        %5885 = vmatprep.subr.bf16.mxu0 %v5696
        %5886 = vmatpush1.bf16.msra.mxu0 %v5695
        %5887 = vmatprep.subr.bf16.mxu0 %v5704
        %5888 = vmatpush1.bf16.msra.mxu0 %v5703
        %5889 = vmatprep.subr.bf16.mxu0 %v5712
        %5890 = vmatpush1.bf16.msra.mxu0 %v5711
        %5891 = vmatprep.subr.bf16.mxu0 %v5720
        %5892 = vmatpush1.bf16.msra.mxu0 %v5719
        %5893 = vmatprep.subr.bf16.mxu0 %v5849
        %5894 = vmatpush1.bf16.msra.mxu0 %v5846
        %5895 = vmatprep.subr.bf16.mxu0 0
        %5896 = vmatpush1.bf16.msra.mxu0 0
        %5897 = vmatprep.subr.bf16.mxu0 0
        %5898 = vmatpush1.bf16.msra.mxu0 0
        %5899 = vmatprep.subr.bf16.mxu0 0
        %5900 = vmatpush1.bf16.msra.mxu0 0
        %5901 = vmatprep.mubr.bf16.mxu0 %v5832
        %5902 = vmatmul.mubr.bf16.gmra.mrb[0].mxu0 %v5223
        %v5903 = vpop.f32.mrb[0].mxu0
        %v5904 = vadd.f32 0.0, %v5903
        %v5905 = vpop.f32.mrb[0].mxu0
        %v5906 = vadd.f32 0.0, %v5905
        %v5907 = vpop.f32.mrb[0].mxu0
        %v5908 = vadd.f32 0.0, %v5907
        %v5909 = vpop.f32.mrb[0].mxu0
        %v5910 = vadd.f32 0.0, %v5909
        %5911 = vmatprep.mubr.bf16.mxu0 %v5835
        %5912 = vmatmul.mubr.bf16.gmra.mrb[0].mxu0 %v5225
        %v5913 = vpop.f32.mrb[0].mxu0
        %v5914 = vadd.f32 0.0, %v5913
        %v5915 = vpop.f32.mrb[0].mxu0
        %v5916 = vadd.f32 0.0, %v5915
        %v5917 = vpop.f32.mrb[0].mxu0
        %v5918 = vadd.f32 0.0, %v5917
        %v5919 = vpop.f32.mrb[0].mxu0
        %v5920 = vadd.f32 0.0, %v5919
        %5921 = vmatprep.mubr.bf16.mxu0 %v5838
        %5922 = vmatmul.mubr.bf16.gmra.mrb[0].mxu0 %v5227
        %v5923 = vpop.f32.mrb[0].mxu0
        %v5924 = vadd.f32 0.0, %v5923
        %v5925 = vpop.f32.mrb[0].mxu0
        %v5926 = vadd.f32 0.0, %v5925
        %v5927 = vpop.f32.mrb[0].mxu0
        %v5928 = vadd.f32 0.0, %v5927
        %v5929 = vpop.f32.mrb[0].mxu0
        %v5930 = vadd.f32 0.0, %v5929
        %5931 = vmatprep.mubr.bf16.mxu0 %v5841
        %5932 = vmatmul.mubr.bf16.gmra.mrb[0].mxu0 %v5229
        %v5933 = vpop.f32.mrb[0].mxu0
        %v5934 = vadd.f32 0.0, %v5933
        %v5935 = vpop.f32.mrb[0].mxu0
        %v5936 = vadd.f32 0.0, %v5935
        %v5937 = vpop.f32.mrb[0].mxu0
        %v5938 = vadd.f32 0.0, %v5937
        %v5939 = vpop.f32.mrb[0].mxu0
        %v5940 = vadd.f32 0.0, %v5939
        %5941 = vdwg.mxu0
        %5942 = vmatprep.subr.bf16.mxu0 %v5634
        %5943 = vmatpush1.bf16.msra.mxu0 %v5633
        %5944 = vmatprep.subr.bf16.mxu0 %v5642
        %5945 = vmatpush1.bf16.msra.mxu0 %v5641
        %5946 = vmatprep.subr.bf16.mxu0 %v5650
        %5947 = vmatpush1.bf16.msra.mxu0 %v5649
        %5948 = vmatprep.subr.bf16.mxu0 %v5658
        %5949 = vmatpush1.bf16.msra.mxu0 %v5657
        %5950 = vmatprep.subr.bf16.mxu0 %v5666
        %5951 = vmatpush1.bf16.msra.mxu0 %v5665
        %5952 = vmatprep.subr.bf16.mxu0 %v5674
        %5953 = vmatpush1.bf16.msra.mxu0 %v5673
        %5954 = vmatprep.subr.bf16.mxu0 %v5682
        %5955 = vmatpush1.bf16.msra.mxu0 %v5681
        %5956 = vmatprep.subr.bf16.mxu0 %v5690
        %5957 = vmatpush1.bf16.msra.mxu0 %v5689
        %5958 = vmatprep.subr.bf16.mxu0 %v5698
        %5959 = vmatpush1.bf16.msra.mxu0 %v5697
        %5960 = vmatprep.subr.bf16.mxu0 %v5706
        %5961 = vmatpush1.bf16.msra.mxu0 %v5705
        %5962 = vmatprep.subr.bf16.mxu0 %v5714
        %5963 = vmatpush1.bf16.msra.mxu0 %v5713
        %5964 = vmatprep.subr.bf16.mxu0 %v5722
        %5965 = vmatpush1.bf16.msra.mxu0 %v5721
        %5966 = vmatprep.subr.bf16.mxu0 %v5855
        %5967 = vmatpush1.bf16.msra.mxu0 %v5852
        %5968 = vmatprep.subr.bf16.mxu0 0
        %5969 = vmatpush1.bf16.msra.mxu0 0
        %5970 = vmatprep.subr.bf16.mxu0 0
        %5971 = vmatpush1.bf16.msra.mxu0 0
        %5972 = vmatprep.subr.bf16.mxu0 0
        %5973 = vmatpush1.bf16.msra.mxu0 0
        %5974 = vmatprep.mubr.bf16.mxu0 %v5832
        %5975 = vmatmul.mubr.bf16.gmra.mrb[0].mxu0 %v5223
        %v5976 = vpop.f32.mrb[0].mxu0
        %v5977 = vadd.f32 0.0, %v5976
        %v5978 = vpop.f32.mrb[0].mxu0
        %v5979 = vadd.f32 0.0, %v5978
        %v5980 = vpop.f32.mrb[0].mxu0
        %v5981 = vadd.f32 0.0, %v5980
        %v5982 = vpop.f32.mrb[0].mxu0
        %v5983 = vadd.f32 0.0, %v5982
        %5984 = vmatprep.mubr.bf16.mxu0 %v5835
        %5985 = vmatmul.mubr.bf16.gmra.mrb[0].mxu0 %v5225
        %v5986 = vpop.f32.mrb[0].mxu0
        %v5987 = vadd.f32 0.0, %v5986
        %v5988 = vpop.f32.mrb[0].mxu0
        %v5989 = vadd.f32 0.0, %v5988
        %v5990 = vpop.f32.mrb[0].mxu0
        %v5991 = vadd.f32 0.0, %v5990
        %v5992 = vpop.f32.mrb[0].mxu0
        %v5993 = vadd.f32 0.0, %v5992
        %5994 = vmatprep.mubr.bf16.mxu0 %v5838
        %5995 = vmatmul.mubr.bf16.gmra.mrb[0].mxu0 %v5227
        %v5996 = vpop.f32.mrb[0].mxu0
        %v5997 = vadd.f32 0.0, %v5996
        %v5998 = vpop.f32.mrb[0].mxu0
        %v5999 = vadd.f32 0.0, %v5998
        %v6000 = vpop.f32.mrb[0].mxu0
        %v6001 = vadd.f32 0.0, %v6000
        %v6002 = vpop.f32.mrb[0].mxu0
        %v6003 = vadd.f32 0.0, %v6002
        %6004 = vmatprep.mubr.bf16.mxu0 %v5841
        %6005 = vmatmul.mubr.bf16.gmra.mrb[0].mxu0 %v5229
        %v6006 = vpop.f32.mrb[0].mxu0
        %v6007 = vadd.f32 0.0, %v6006
        %v6008 = vpop.f32.mrb[0].mxu0
        %v6009 = vadd.f32 0.0, %v6008
        %v6010 = vpop.f32.mrb[0].mxu0
        %v6011 = vadd.f32 0.0, %v6010
        %v6012 = vpop.f32.mrb[0].mxu0
        %v6013 = vadd.f32 0.0, %v6012
        %6014 = vdwg.mxu0
        %6015 = vmatprep.subr.bf16.mxu0 %v5636
        %6016 = vmatpush1.bf16.msra.mxu0 %v5635
        %6017 = vmatprep.subr.bf16.mxu0 %v5644
        %6018 = vmatpush1.bf16.msra.mxu0 %v5643
        %6019 = vmatprep.subr.bf16.mxu0 %v5652
        %6020 = vmatpush1.bf16.msra.mxu0 %v5651
        %6021 = vmatprep.subr.bf16.mxu0 %v5660
        %6022 = vmatpush1.bf16.msra.mxu0 %v5659
        %6023 = vmatprep.subr.bf16.mxu0 %v5668
        %6024 = vmatpush1.bf16.msra.mxu0 %v5667
        %6025 = vmatprep.subr.bf16.mxu0 %v5676
        %6026 = vmatpush1.bf16.msra.mxu0 %v5675
        %6027 = vmatprep.subr.bf16.mxu0 %v5684
        %6028 = vmatpush1.bf16.msra.mxu0 %v5683
        %6029 = vmatprep.subr.bf16.mxu0 %v5692
        %6030 = vmatpush1.bf16.msra.mxu0 %v5691
        %6031 = vmatprep.subr.bf16.mxu0 %v5700
        %6032 = vmatpush1.bf16.msra.mxu0 %v5699
        %6033 = vmatprep.subr.bf16.mxu0 %v5708
        %6034 = vmatpush1.bf16.msra.mxu0 %v5707
        %6035 = vmatprep.subr.bf16.mxu0 %v5716
        %6036 = vmatpush1.bf16.msra.mxu0 %v5715
        %6037 = vmatprep.subr.bf16.mxu0 %v5724
        %6038 = vmatpush1.bf16.msra.mxu0 %v5723
        %6039 = vmatprep.subr.bf16.mxu0 %v5861
        %6040 = vmatpush1.bf16.msra.mxu0 %v5858
        %6041 = vmatprep.subr.bf16.mxu0 0
        %6042 = vmatpush1.bf16.msra.mxu0 0
        %6043 = vmatprep.subr.bf16.mxu0 0
        %6044 = vmatpush1.bf16.msra.mxu0 0
        %6045 = vmatprep.subr.bf16.mxu0 0
        %6046 = vmatpush1.bf16.msra.mxu0 0
        %6047 = vmatprep.mubr.bf16.mxu0 %v5832
        %6048 = vmatmul.mubr.bf16.gmra.mrb[0].mxu0 %v5223
        %v6049 = vpop.f32.mrb[0].mxu0
        %v6050 = vadd.f32 0.0, %v6049
        %v6051 = vpop.f32.mrb[0].mxu0
        %v6052 = vadd.f32 0.0, %v6051
        %v6053 = vpop.f32.mrb[0].mxu0
        %v6054 = vadd.f32 0.0, %v6053
        %v6055 = vpop.f32.mrb[0].mxu0
        %v6056 = vadd.f32 0.0, %v6055
        %6057 = vmatprep.mubr.bf16.mxu0 %v5835
        %6058 = vmatmul.mubr.bf16.gmra.mrb[0].mxu0 %v5225
        %v6059 = vpop.f32.mrb[0].mxu0
        %v6060 = vadd.f32 0.0, %v6059
        %v6061 = vpop.f32.mrb[0].mxu0
        %v6062 = vadd.f32 0.0, %v6061
        %v6063 = vpop.f32.mrb[0].mxu0
        %v6064 = vadd.f32 0.0, %v6063
        %v6065 = vpop.f32.mrb[0].mxu0
        %v6066 = vadd.f32 0.0, %v6065
        %6067 = vmatprep.mubr.bf16.mxu0 %v5838
        %6068 = vmatmul.mubr.bf16.gmra.mrb[0].mxu0 %v5227
        %v6069 = vpop.f32.mrb[0].mxu0
        %v6070 = vadd.f32 0.0, %v6069
        %v6071 = vpop.f32.mrb[0].mxu0
        %v6072 = vadd.f32 0.0, %v6071
        %v6073 = vpop.f32.mrb[0].mxu0
        %v6074 = vadd.f32 0.0, %v6073
        %v6075 = vpop.f32.mrb[0].mxu0
        %v6076 = vadd.f32 0.0, %v6075
        %6077 = vmatprep.mubr.bf16.mxu0 %v5841
        %6078 = vmatmul.mubr.bf16.gmra.mrb[0].mxu0 %v5229
        %v6079 = vpop.f32.mrb[0].mxu0
        %v6080 = vadd.f32 0.0, %v6079
        %v6081 = vpop.f32.mrb[0].mxu0
        %v6082 = vadd.f32 0.0, %v6081
        %v6083 = vpop.f32.mrb[0].mxu0
        %v6084 = vadd.f32 0.0, %v6083
        %v6085 = vpop.f32.mrb[0].mxu0
        %v6086 = vadd.f32 0.0, %v6085
        %6087 = vdwg.mxu0
        %6088 = vmatprep.subr.bf16.mxu0 %v5638
        %6089 = vmatpush1.bf16.msra.mxu0 %v5637
        %6090 = vmatprep.subr.bf16.mxu0 %v5646
        %6091 = vmatpush1.bf16.msra.mxu0 %v5645
        %6092 = vmatprep.subr.bf16.mxu0 %v5654
        %6093 = vmatpush1.bf16.msra.mxu0 %v5653
        %6094 = vmatprep.subr.bf16.mxu0 %v5662
        %6095 = vmatpush1.bf16.msra.mxu0 %v5661
        %6096 = vmatprep.subr.bf16.mxu0 %v5670
        %6097 = vmatpush1.bf16.msra.mxu0 %v5669
        %6098 = vmatprep.subr.bf16.mxu0 %v5678
        %6099 = vmatpush1.bf16.msra.mxu0 %v5677
        %6100 = vmatprep.subr.bf16.mxu0 %v5686
        %6101 = vmatpush1.bf16.msra.mxu0 %v5685
        %6102 = vmatprep.subr.bf16.mxu0 %v5694
        %6103 = vmatpush1.bf16.msra.mxu0 %v5693
        %6104 = vmatprep.subr.bf16.mxu0 %v5702
        %6105 = vmatpush1.bf16.msra.mxu0 %v5701
        %6106 = vmatprep.subr.bf16.mxu0 %v5710
        %6107 = vmatpush1.bf16.msra.mxu0 %v5709
        %6108 = vmatprep.subr.bf16.mxu0 %v5718
        %6109 = vmatpush1.bf16.msra.mxu0 %v5717
        %6110 = vmatprep.subr.bf16.mxu0 %v5726
        %6111 = vmatpush1.bf16.msra.mxu0 %v5725
        %6112 = vmatprep.subr.bf16.mxu0 %v5867
        %6113 = vmatpush1.bf16.msra.mxu0 %v5864
        %6114 = vmatprep.subr.bf16.mxu0 0
        %6115 = vmatpush1.bf16.msra.mxu0 0
        %6116 = vmatprep.subr.bf16.mxu0 0
        %6117 = vmatpush1.bf16.msra.mxu0 0
        %6118 = vmatprep.subr.bf16.mxu0 0
        %6119 = vmatpush1.bf16.msra.mxu0 0
        %6120 = vmatprep.mubr.bf16.mxu0 %v5832
        %6121 = vmatmul.mubr.bf16.gmra.mrb[0].mxu0 %v5223
        %v6122 = vpop.f32.mrb[0].mxu0
        %v6123 = vadd.f32 0.0, %v6122
        %v6124 = vpop.f32.mrb[0].mxu0
        %v6125 = vadd.f32 0.0, %v6124
        %v6126 = vpop.f32.mrb[0].mxu0
        %v6127 = vadd.f32 0.0, %v6126
        %v6128 = vpop.f32.mrb[0].mxu0
        %v6129 = vadd.f32 0.0, %v6128
        %6130 = vmatprep.mubr.bf16.mxu0 %v5835
        %6131 = vmatmul.mubr.bf16.gmra.mrb[0].mxu0 %v5225
        %v6132 = vpop.f32.mrb[0].mxu0
        %v6133 = vadd.f32 0.0, %v6132
        %v6134 = vpop.f32.mrb[0].mxu0
        %v6135 = vadd.f32 0.0, %v6134
        %v6136 = vpop.f32.mrb[0].mxu0
        %v6137 = vadd.f32 0.0, %v6136
        %v6138 = vpop.f32.mrb[0].mxu0
        %v6139 = vadd.f32 0.0, %v6138
        %6140 = vmatprep.mubr.bf16.mxu0 %v5838
        %6141 = vmatmul.mubr.bf16.gmra.mrb[0].mxu0 %v5227
        %v6142 = vpop.f32.mrb[0].mxu0
        %v6143 = vadd.f32 0.0, %v6142
        %v6144 = vpop.f32.mrb[0].mxu0
        %v6145 = vadd.f32 0.0, %v6144
        %v6146 = vpop.f32.mrb[0].mxu0
        %v6147 = vadd.f32 0.0, %v6146
        %v6148 = vpop.f32.mrb[0].mxu0
        %v6149 = vadd.f32 0.0, %v6148
        %6150 = vmatprep.mubr.bf16.mxu0 %v5841
        %6151 = vmatmul.mubr.bf16.gmra.mrb[0].mxu0 %v5229
        %v6152 = vpop.f32.mrb[0].mxu0
        %v6153 = vadd.f32 0.0, %v6152
        %v6154 = vpop.f32.mrb[0].mxu0
        %v6155 = vadd.f32 0.0, %v6154
        %v6156 = vpop.f32.mrb[0].mxu0
        %v6157 = vadd.f32 0.0, %v6156
        %v6158 = vpop.f32.mrb[0].mxu0
        %v6159 = vadd.f32 0.0, %v6158
        %6160 = vdwg.mxu0
        %v6161 = vpack.c.bf16 %v5908, %v5904
        %v6162 = vpack.c.bf16 %v5910, %v5906
        %v6163 = vpack.c.bf16 %v5981, %v5977
        %v6164 = vpack.c.bf16 %v5983, %v5979
        %v6165 = vpack.c.bf16 %v6054, %v6050
        %v6166 = vpack.c.bf16 %v6056, %v6052
        %v6167 = vpack.c.bf16 %v6127, %v6123
        %v6168 = vpack.c.bf16 %v6129, %v6125
        %v6169 = vpack.c.bf16 %v5918, %v5914
        %v6170 = vpack.c.bf16 %v5920, %v5916
        %v6171 = vpack.c.bf16 %v5991, %v5987
        %v6172 = vpack.c.bf16 %v5993, %v5989
        %v6173 = vpack.c.bf16 %v6064, %v6060
        %v6174 = vpack.c.bf16 %v6066, %v6062
        %v6175 = vpack.c.bf16 %v6137, %v6133
        %v6176 = vpack.c.bf16 %v6139, %v6135
        %v6177 = vpack.c.bf16 %v5928, %v5924
        %v6178 = vpack.c.bf16 %v5930, %v5926
        %v6179 = vpack.c.bf16 %v6001, %v5997
        %v6180 = vpack.c.bf16 %v6003, %v5999
        %v6181 = vpack.c.bf16 %v6074, %v6070
        %v6182 = vpack.c.bf16 %v6076, %v6072
        %v6183 = vpack.c.bf16 %v6147, %v6143
        %v6184 = vpack.c.bf16 %v6149, %v6145
        %v6185 = vpack.c.bf16 %v5938, %v5934
        %v6186 = vpack.c.bf16 %v5940, %v5936
        %v6187 = vpack.c.bf16 %v6011, %v6007
        %v6188 = vpack.c.bf16 %v6013, %v6009
        %v6189 = vpack.c.bf16 %v6084, %v6080
        %v6190 = vpack.c.bf16 %v6086, %v6082
        %v6191 = vpack.c.bf16 %v6157, %v6153
        %v6192 = vpack.c.bf16 %v6159, %v6155
        %6193 = vst [vmem:[#allocation4] sm:$0xff] %v6161
        %6194 = vst [vmem:[#allocation4 + $0x8] sm:$0xff] %v6162
        %6195 = vst [vmem:[#allocation4 + $0x10] sm:$0xff] %v6163
        %6196 = vst [vmem:[#allocation4 + $0x18] sm:$0xff] %v6164
        %6197 = vst [vmem:[#allocation4 + $0x20] sm:$0xff] %v6165
        %6198 = vst [vmem:[#allocation4 + $0x28] sm:$0xff] %v6166
        %6199 = vst [vmem:[#allocation4 + $0x30] sm:$0xff] %v6167
        %6200 = vst.msk [vmem:[#allocation4 + $0x38] sm:$0xff] %vm3570, %v6168
        %6201 = vst [vmem:[#allocation4 + $0x40] sm:$0xff] %v6169
        %6202 = vst [vmem:[#allocation4 + $0x48] sm:$0xff] %v6170
        %6203 = vst [vmem:[#allocation4 + $0x50] sm:$0xff] %v6171
        %6204 = vst [vmem:[#allocation4 + $0x58] sm:$0xff] %v6172
        %6205 = vst [vmem:[#allocation4 + $0x60] sm:$0xff] %v6173
        %6206 = vst [vmem:[#allocation4 + $0x68] sm:$0xff] %v6174
        %6207 = vst [vmem:[#allocation4 + $0x70] sm:$0xff] %v6175
        %6208 = vst.msk [vmem:[#allocation4 + $0x78] sm:$0xff] %vm3570, %v6176
        %6209 = vst [vmem:[#allocation4 + $0x80] sm:$0xff] %v6177
        %6210 = vst [vmem:[#allocation4 + $0x88] sm:$0xff] %v6178
        %6211 = vst [vmem:[#allocation4 + $0x90] sm:$0xff] %v6179
        %6212 = vst [vmem:[#allocation4 + $0x98] sm:$0xff] %v6180
        %6213 = vst [vmem:[#allocation4 + $0xa0] sm:$0xff] %v6181
        %6214 = vst [vmem:[#allocation4 + $0xa8] sm:$0xff] %v6182
        %6215 = vst [vmem:[#allocation4 + $0xb0] sm:$0xff] %v6183
        %6216 = vst.msk [vmem:[#allocation4 + $0xb8] sm:$0xff] %vm3570, %v6184
        %6217 = vst [vmem:[#allocation4 + $0xc0] sm:$0xff] %v6185
        %6218 = vst [vmem:[#allocation4 + $0xc8] sm:$0xff] %v6186
        %6219 = vst [vmem:[#allocation4 + $0xd0] sm:$0xff] %v6187
        %6220 = vst [vmem:[#allocation4 + $0xd8] sm:$0xff] %v6188
        %6221 = vst [vmem:[#allocation4 + $0xe0] sm:$0xff] %v6189
        %6222 = vst [vmem:[#allocation4 + $0xe8] sm:$0xff] %v6190
        %6223 = vst [vmem:[#allocation4 + $0xf0] sm:$0xff] %v6191
        %6224 = vst.msk [vmem:[#allocation4 + $0xf8] sm:$0xff] %vm3570, %v6192
        %v6225 = vld [vmem:[#allocation4] sm:$0xff]
        %v6226 = vld [vmem:[#allocation4 + $0x8] sm:$0xff]
        %v6227 = vld [vmem:[#allocation4 + $0x10] sm:$0xff]
        %v6228 = vld [vmem:[#allocation4 + $0x18] sm:$0xff]
        %v6229 = vld [vmem:[#allocation4 + $0x20] sm:$0xff]
        %v6230 = vld [vmem:[#allocation4 + $0x28] sm:$0xff]
        %v6231 = vld [vmem:[#allocation4 + $0x30] sm:$0xff]
        %v6232 = vld [vmem:[#allocation4 + $0x40] sm:$0xff]
        %v6233 = vld [vmem:[#allocation4 + $0x48] sm:$0xff]
        %v6234 = vld [vmem:[#allocation4 + $0x50] sm:$0xff]
        %v6235 = vld [vmem:[#allocation4 + $0x58] sm:$0xff]
        %v6236 = vld [vmem:[#allocation4 + $0x60] sm:$0xff]
        %v6237 = vld [vmem:[#allocation4 + $0x68] sm:$0xff]
        %v6238 = vld [vmem:[#allocation4 + $0x70] sm:$0xff]
        %v6239 = vld [vmem:[#allocation4 + $0x80] sm:$0xff]
        %v6240 = vld [vmem:[#allocation4 + $0x88] sm:$0xff]
        %v6241 = vld [vmem:[#allocation4 + $0x90] sm:$0xff]
        %v6242 = vld [vmem:[#allocation4 + $0x98] sm:$0xff]
        %v6243 = vld [vmem:[#allocation4 + $0xa0] sm:$0xff]
        %v6244 = vld [vmem:[#allocation4 + $0xa8] sm:$0xff]
        %v6245 = vld [vmem:[#allocation4 + $0xb0] sm:$0xff]
        %v6246 = vld [vmem:[#allocation4 + $0xc0] sm:$0xff]
        %v6247 = vld [vmem:[#allocation4 + $0xc8] sm:$0xff]
        %v6248 = vld [vmem:[#allocation4 + $0xd0] sm:$0xff]
        %v6249 = vld [vmem:[#allocation4 + $0xd8] sm:$0xff]
        %v6250 = vld [vmem:[#allocation4 + $0xe0] sm:$0xff]
        %v6251 = vld [vmem:[#allocation4 + $0xe8] sm:$0xff]
        %v6252 = vld [vmem:[#allocation4 + $0xf0] sm:$0xff]
        %6253 = vst [vmem:[#allocation8] sm:$0xff] %v6225
        %6254 = vst [vmem:[#allocation8 + $0x8] sm:$0xff] %v6226
        %6255 = vst [vmem:[#allocation8 + $0x10] sm:$0xff] %v6227
        %6256 = vst [vmem:[#allocation8 + $0x18] sm:$0xff] %v6228
        %6257 = vst [vmem:[#allocation8 + $0x20] sm:$0xff] %v6229
        %6258 = vst [vmem:[#allocation8 + $0x28] sm:$0xff] %v6230
        %6259 = vst.msk [vmem:[#allocation8 + $0x30] sm:$0xff] %vm3537, %v6231
        %6260 = vst [vmem:[#allocation8 + $0x38] sm:$0xff] %v6232
        %6261 = vst [vmem:[#allocation8 + $0x40] sm:$0xff] %v6233
        %6262 = vst [vmem:[#allocation8 + $0x48] sm:$0xff] %v6234
        %6263 = vst [vmem:[#allocation8 + $0x50] sm:$0xff] %v6235
        %6264 = vst [vmem:[#allocation8 + $0x58] sm:$0xff] %v6236
        %6265 = vst [vmem:[#allocation8 + $0x60] sm:$0xff] %v6237
        %6266 = vst.msk [vmem:[#allocation8 + $0x68] sm:$0xff] %vm3537, %v6238
        %6267 = vst [vmem:[#allocation8 + $0x70] sm:$0xff] %v6239
        %6268 = vst [vmem:[#allocation8 + $0x78] sm:$0xff] %v6240
        %6269 = vst [vmem:[#allocation8 + $0x80] sm:$0xff] %v6241
        %6270 = vst [vmem:[#allocation8 + $0x88] sm:$0xff] %v6242
        %6271 = vst [vmem:[#allocation8 + $0x90] sm:$0xff] %v6243
        %6272 = vst [vmem:[#allocation8 + $0x98] sm:$0xff] %v6244
        %6273 = vst.msk [vmem:[#allocation8 + $0xa0] sm:$0xff] %vm3537, %v6245
        %6274 = vst [vmem:[#allocation8 + $0xa8] sm:$0xff] %v6246
        %6275 = vst [vmem:[#allocation8 + $0xb0] sm:$0xff] %v6247
        %6276 = vst [vmem:[#allocation8 + $0xb8] sm:$0xff] %v6248
        %6277 = vst [vmem:[#allocation8 + $0xc0] sm:$0xff] %v6249
        %6278 = vst [vmem:[#allocation8 + $0xc8] sm:$0xff] %v6250
        %6279 = vst [vmem:[#allocation8 + $0xd0] sm:$0xff] %v6251
        %6280 = vst.msk [vmem:[#allocation8 + $0xd8] sm:$0xff] %vm3537, %v6252
        %v6281 = vld [vmem:[#allocation4] sm:$0xff]
        %v6282 = vld [vmem:[#allocation4 + $0x8] sm:$0xff]
        %v6283 = vld [vmem:[#allocation4 + $0x10] sm:$0xff]
        %v6284 = vld [vmem:[#allocation4 + $0x18] sm:$0xff]
        %v6285 = vld [vmem:[#allocation4 + $0x20] sm:$0xff]
        %v6286 = vld [vmem:[#allocation4 + $0x28] sm:$0xff]
        %v6287 = vld [vmem:[#allocation4 + $0x30] sm:$0xff]
        %v6288 = vld [vmem:[#allocation4 + $0x40] sm:$0xff]
        %v6289 = vld [vmem:[#allocation4 + $0x48] sm:$0xff]
        %v6290 = vld [vmem:[#allocation4 + $0x50] sm:$0xff]
        %v6291 = vld [vmem:[#allocation4 + $0x58] sm:$0xff]
        %v6292 = vld [vmem:[#allocation4 + $0x60] sm:$0xff]
        %v6293 = vld [vmem:[#allocation4 + $0x68] sm:$0xff]
        %v6294 = vld [vmem:[#allocation4 + $0x70] sm:$0xff]
        %v6295 = vld [vmem:[#allocation4 + $0x80] sm:$0xff]
        %v6296 = vld [vmem:[#allocation4 + $0x88] sm:$0xff]
        %v6297 = vld [vmem:[#allocation4 + $0x90] sm:$0xff]
        %v6298 = vld [vmem:[#allocation4 + $0x98] sm:$0xff]
        %v6299 = vld [vmem:[#allocation4 + $0xa0] sm:$0xff]
        %v6300 = vld [vmem:[#allocation4 + $0xa8] sm:$0xff]
        %v6301 = vld [vmem:[#allocation4 + $0xb0] sm:$0xff]
        %v6302 = vld [vmem:[#allocation4 + $0xc0] sm:$0xff]
        %v6303 = vld [vmem:[#allocation4 + $0xc8] sm:$0xff]
        %v6304 = vld [vmem:[#allocation4 + $0xd0] sm:$0xff]
        %v6305 = vld [vmem:[#allocation4 + $0xd8] sm:$0xff]
        %v6306 = vld [vmem:[#allocation4 + $0xe0] sm:$0xff]
        %v6307 = vld [vmem:[#allocation4 + $0xe8] sm:$0xff]
        %v6308 = vld [vmem:[#allocation4 + $0xf0] sm:$0xff]
        %6337 = vrot.lane.b32.xlu0 %v6281, 127
        %v6338 = vpop.permute.xlu0 %6337
        %6339 = vrot.lane.b32.xlu0 %v6282, 127
        %v6340 = vpop.permute.xlu0 %6339
        %6341 = vrot.lane.b32.xlu0 %v6283, 127
        %v6342 = vpop.permute.xlu0 %6341
        %6343 = vrot.lane.b32.xlu0 %v6284, 127
        %v6344 = vpop.permute.xlu0 %6343
        %6345 = vrot.lane.b32.xlu0 %v6285, 127
        %v6346 = vpop.permute.xlu0 %6345
        %6347 = vrot.lane.b32.xlu0 %v6286, 127
        %v6348 = vpop.permute.xlu0 %6347
        %6349 = vrot.lane.b32.xlu0 %v6287, 127
        %v6350 = vpop.permute.xlu0 %6349
        %6351 = vrot.lane.b32.xlu0 %v6288, 127
        %v6352 = vpop.permute.xlu0 %6351
        %6353 = vrot.lane.b32.xlu0 %v6289, 127
        %v6354 = vpop.permute.xlu0 %6353
        %6355 = vrot.lane.b32.xlu0 %v6290, 127
        %v6356 = vpop.permute.xlu0 %6355
        %6357 = vrot.lane.b32.xlu0 %v6291, 127
        %v6358 = vpop.permute.xlu0 %6357
        %6359 = vrot.lane.b32.xlu0 %v6292, 127
        %v6360 = vpop.permute.xlu0 %6359
        %6361 = vrot.lane.b32.xlu0 %v6293, 127
        %v6362 = vpop.permute.xlu0 %6361
        %6363 = vrot.lane.b32.xlu0 %v6294, 127
        %v6364 = vpop.permute.xlu0 %6363
        %6365 = vrot.lane.b32.xlu0 %v6295, 127
        %v6366 = vpop.permute.xlu0 %6365
        %6367 = vrot.lane.b32.xlu0 %v6296, 127
        %v6368 = vpop.permute.xlu0 %6367
        %6369 = vrot.lane.b32.xlu0 %v6297, 127
        %v6370 = vpop.permute.xlu0 %6369
        %6371 = vrot.lane.b32.xlu0 %v6298, 127
        %v6372 = vpop.permute.xlu0 %6371
        %6373 = vrot.lane.b32.xlu0 %v6299, 127
        %v6374 = vpop.permute.xlu0 %6373
        %6375 = vrot.lane.b32.xlu0 %v6300, 127
        %v6376 = vpop.permute.xlu0 %6375
        %6377 = vrot.lane.b32.xlu0 %v6301, 127
        %v6378 = vpop.permute.xlu0 %6377
        %6379 = vrot.lane.b32.xlu0 %v6302, 127
        %v6380 = vpop.permute.xlu0 %6379
        %6381 = vrot.lane.b32.xlu0 %v6303, 127
        %v6382 = vpop.permute.xlu0 %6381
        %6383 = vrot.lane.b32.xlu0 %v6304, 127
        %v6384 = vpop.permute.xlu0 %6383
        %6385 = vrot.lane.b32.xlu0 %v6305, 127
        %v6386 = vpop.permute.xlu0 %6385
        %6387 = vrot.lane.b32.xlu0 %v6306, 127
        %v6388 = vpop.permute.xlu0 %6387
        %6389 = vrot.lane.b32.xlu0 %v6307, 127
        %v6390 = vpop.permute.xlu0 %6389
        %6391 = vrot.lane.b32.xlu0 %v6308, 127
        %v6392 = vpop.permute.xlu0 %6391
        %v6393 = vsel %vm3650, %v6338, %v6340
        %v6394 = vsel %vm3650, %v6340, %v6342
        %v6395 = vsel %vm3650, %v6342, %v6344
        %v6396 = vsel %vm3650, %v6344, %v6346
        %v6397 = vsel %vm3650, %v6346, %v6348
        %v6398 = vsel %vm3650, %v6348, %v6350
        %v6399 = vsel %vm3650, %v6352, %v6354
        %v6400 = vsel %vm3650, %v6354, %v6356
        %v6401 = vsel %vm3650, %v6356, %v6358
        %v6402 = vsel %vm3650, %v6358, %v6360
        %v6403 = vsel %vm3650, %v6360, %v6362
        %v6404 = vsel %vm3650, %v6362, %v6364
        %v6405 = vsel %vm3650, %v6366, %v6368
        %v6406 = vsel %vm3650, %v6368, %v6370
        %v6407 = vsel %vm3650, %v6370, %v6372
        %v6408 = vsel %vm3650, %v6372, %v6374
        %v6409 = vsel %vm3650, %v6374, %v6376
        %v6410 = vsel %vm3650, %v6376, %v6378
        %v6411 = vsel %vm3650, %v6380, %v6382
        %v6412 = vsel %vm3650, %v6382, %v6384
        %v6413 = vsel %vm3650, %v6384, %v6386
        %v6414 = vsel %vm3650, %v6386, %v6388
        %v6415 = vsel %vm3650, %v6388, %v6390
        %v6416 = vsel %vm3650, %v6390, %v6392
        %6445 = vst [vmem:[#allocation8 + $0xe0] sm:$0xff] %v6393
        %6446 = vst [vmem:[#allocation8 + $0xe8] sm:$0xff] %v6394
        %6447 = vst [vmem:[#allocation8 + $0xf0] sm:$0xff] %v6395
        %6448 = vst [vmem:[#allocation8 + $0xf8] sm:$0xff] %v6396
        %6449 = vst [vmem:[#allocation8 + $0x100] sm:$0xff] %v6397
        %6450 = vst [vmem:[#allocation8 + $0x108] sm:$0xff] %v6398
        %6451 = vst.msk [vmem:[#allocation8 + $0x110] sm:$0xff] %vm3537, %v6350
        %6452 = vst [vmem:[#allocation8 + $0x118] sm:$0xff] %v6399
        %6453 = vst [vmem:[#allocation8 + $0x120] sm:$0xff] %v6400
        %6454 = vst [vmem:[#allocation8 + $0x128] sm:$0xff] %v6401
        %6455 = vst [vmem:[#allocation8 + $0x130] sm:$0xff] %v6402
        %6456 = vst [vmem:[#allocation8 + $0x138] sm:$0xff] %v6403
        %6457 = vst [vmem:[#allocation8 + $0x140] sm:$0xff] %v6404
        %6458 = vst.msk [vmem:[#allocation8 + $0x148] sm:$0xff] %vm3537, %v6364
        %6459 = vst [vmem:[#allocation8 + $0x150] sm:$0xff] %v6405
        %6460 = vst [vmem:[#allocation8 + $0x158] sm:$0xff] %v6406
        %6461 = vst [vmem:[#allocation8 + $0x160] sm:$0xff] %v6407
        %6462 = vst [vmem:[#allocation8 + $0x168] sm:$0xff] %v6408
        %6463 = vst [vmem:[#allocation8 + $0x170] sm:$0xff] %v6409
        %6464 = vst [vmem:[#allocation8 + $0x178] sm:$0xff] %v6410
        %6465 = vst.msk [vmem:[#allocation8 + $0x180] sm:$0xff] %vm3537, %v6378
        %6466 = vst [vmem:[#allocation8 + $0x188] sm:$0xff] %v6411
        %6467 = vst [vmem:[#allocation8 + $0x190] sm:$0xff] %v6412
        %6468 = vst [vmem:[#allocation8 + $0x198] sm:$0xff] %v6413
        %6469 = vst [vmem:[#allocation8 + $0x1a0] sm:$0xff] %v6414
        %6470 = vst [vmem:[#allocation8 + $0x1a8] sm:$0xff] %v6415
        %6471 = vst [vmem:[#allocation8 + $0x1b0] sm:$0xff] %v6416
        %6472 = vst.msk [vmem:[#allocation8 + $0x1b8] sm:$0xff] %vm3537, %v6392
        %v6473 = vld [vmem:[#allocation4] sm:$0xff]
        %v6474 = vld [vmem:[#allocation4 + $0x8] sm:$0xff]
        %v6475 = vld [vmem:[#allocation4 + $0x10] sm:$0xff]
        %v6476 = vld [vmem:[#allocation4 + $0x18] sm:$0xff]
        %v6477 = vld [vmem:[#allocation4 + $0x20] sm:$0xff]
        %v6478 = vld [vmem:[#allocation4 + $0x28] sm:$0xff]
        %v6479 = vld [vmem:[#allocation4 + $0x30] sm:$0xff]
        %v6480 = vld [vmem:[#allocation4 + $0x40] sm:$0xff]
        %v6481 = vld [vmem:[#allocation4 + $0x48] sm:$0xff]
        %v6482 = vld [vmem:[#allocation4 + $0x50] sm:$0xff]
        %v6483 = vld [vmem:[#allocation4 + $0x58] sm:$0xff]
        %v6484 = vld [vmem:[#allocation4 + $0x60] sm:$0xff]
        %v6485 = vld [vmem:[#allocation4 + $0x68] sm:$0xff]
        %v6486 = vld [vmem:[#allocation4 + $0x70] sm:$0xff]
        %v6487 = vld [vmem:[#allocation4 + $0x80] sm:$0xff]
        %v6488 = vld [vmem:[#allocation4 + $0x88] sm:$0xff]
        %v6489 = vld [vmem:[#allocation4 + $0x90] sm:$0xff]
        %v6490 = vld [vmem:[#allocation4 + $0x98] sm:$0xff]
        %v6491 = vld [vmem:[#allocation4 + $0xa0] sm:$0xff]
        %v6492 = vld [vmem:[#allocation4 + $0xa8] sm:$0xff]
        %v6493 = vld [vmem:[#allocation4 + $0xb0] sm:$0xff]
        %v6494 = vld [vmem:[#allocation4 + $0xc0] sm:$0xff]
        %v6495 = vld [vmem:[#allocation4 + $0xc8] sm:$0xff]
        %v6496 = vld [vmem:[#allocation4 + $0xd0] sm:$0xff]
        %v6497 = vld [vmem:[#allocation4 + $0xd8] sm:$0xff]
        %v6498 = vld [vmem:[#allocation4 + $0xe0] sm:$0xff]
        %v6499 = vld [vmem:[#allocation4 + $0xe8] sm:$0xff]
        %v6500 = vld [vmem:[#allocation4 + $0xf0] sm:$0xff]
        %6529 = vrot.lane.b32.xlu0 %v6473, 126
        %v6530 = vpop.permute.xlu0 %6529
        %6531 = vrot.lane.b32.xlu0 %v6474, 126
        %v6532 = vpop.permute.xlu0 %6531
        %6533 = vrot.lane.b32.xlu0 %v6475, 126
        %v6534 = vpop.permute.xlu0 %6533
        %6535 = vrot.lane.b32.xlu0 %v6476, 126
        %v6536 = vpop.permute.xlu0 %6535
        %6537 = vrot.lane.b32.xlu0 %v6477, 126
        %v6538 = vpop.permute.xlu0 %6537
        %6539 = vrot.lane.b32.xlu0 %v6478, 126
        %v6540 = vpop.permute.xlu0 %6539
        %6541 = vrot.lane.b32.xlu0 %v6479, 126
        %v6542 = vpop.permute.xlu0 %6541
        %6543 = vrot.lane.b32.xlu0 %v6480, 126
        %v6544 = vpop.permute.xlu0 %6543
        %6545 = vrot.lane.b32.xlu0 %v6481, 126
        %v6546 = vpop.permute.xlu0 %6545
        %6547 = vrot.lane.b32.xlu0 %v6482, 126
        %v6548 = vpop.permute.xlu0 %6547
        %6549 = vrot.lane.b32.xlu0 %v6483, 126
        %v6550 = vpop.permute.xlu0 %6549
        %6551 = vrot.lane.b32.xlu0 %v6484, 126
        %v6552 = vpop.permute.xlu0 %6551
        %6553 = vrot.lane.b32.xlu0 %v6485, 126
        %v6554 = vpop.permute.xlu0 %6553
        %6555 = vrot.lane.b32.xlu0 %v6486, 126
        %v6556 = vpop.permute.xlu0 %6555
        %6557 = vrot.lane.b32.xlu0 %v6487, 126
        %v6558 = vpop.permute.xlu0 %6557
        %6559 = vrot.lane.b32.xlu0 %v6488, 126
        %v6560 = vpop.permute.xlu0 %6559
        %6561 = vrot.lane.b32.xlu0 %v6489, 126
        %v6562 = vpop.permute.xlu0 %6561
        %6563 = vrot.lane.b32.xlu0 %v6490, 126
        %v6564 = vpop.permute.xlu0 %6563
        %6565 = vrot.lane.b32.xlu0 %v6491, 126
        %v6566 = vpop.permute.xlu0 %6565
        %6567 = vrot.lane.b32.xlu0 %v6492, 126
        %v6568 = vpop.permute.xlu0 %6567
        %6569 = vrot.lane.b32.xlu0 %v6493, 126
        %v6570 = vpop.permute.xlu0 %6569
        %6571 = vrot.lane.b32.xlu0 %v6494, 126
        %v6572 = vpop.permute.xlu0 %6571
        %6573 = vrot.lane.b32.xlu0 %v6495, 126
        %v6574 = vpop.permute.xlu0 %6573
        %6575 = vrot.lane.b32.xlu0 %v6496, 126
        %v6576 = vpop.permute.xlu0 %6575
        %6577 = vrot.lane.b32.xlu0 %v6497, 126
        %v6578 = vpop.permute.xlu0 %6577
        %6579 = vrot.lane.b32.xlu0 %v6498, 126
        %v6580 = vpop.permute.xlu0 %6579
        %6581 = vrot.lane.b32.xlu0 %v6499, 126
        %v6582 = vpop.permute.xlu0 %6581
        %6583 = vrot.lane.b32.xlu0 %v6500, 126
        %v6584 = vpop.permute.xlu0 %6583
        %v6585 = vsel %vm3755, %v6530, %v6532
        %v6586 = vsel %vm3755, %v6532, %v6534
        %v6587 = vsel %vm3755, %v6534, %v6536
        %v6588 = vsel %vm3755, %v6536, %v6538
        %v6589 = vsel %vm3755, %v6538, %v6540
        %v6590 = vsel %vm3755, %v6540, %v6542
        %v6591 = vsel %vm3755, %v6544, %v6546
        %v6592 = vsel %vm3755, %v6546, %v6548
        %v6593 = vsel %vm3755, %v6548, %v6550
        %v6594 = vsel %vm3755, %v6550, %v6552
        %v6595 = vsel %vm3755, %v6552, %v6554
        %v6596 = vsel %vm3755, %v6554, %v6556
        %v6597 = vsel %vm3755, %v6558, %v6560
        %v6598 = vsel %vm3755, %v6560, %v6562
        %v6599 = vsel %vm3755, %v6562, %v6564
        %v6600 = vsel %vm3755, %v6564, %v6566
        %v6601 = vsel %vm3755, %v6566, %v6568
        %v6602 = vsel %vm3755, %v6568, %v6570
        %v6603 = vsel %vm3755, %v6572, %v6574
        %v6604 = vsel %vm3755, %v6574, %v6576
        %v6605 = vsel %vm3755, %v6576, %v6578
        %v6606 = vsel %vm3755, %v6578, %v6580
        %v6607 = vsel %vm3755, %v6580, %v6582
        %v6608 = vsel %vm3755, %v6582, %v6584
        %6637 = vst [vmem:[#allocation8 + $0x1c0] sm:$0xff] %v6585
        %6638 = vst [vmem:[#allocation8 + $0x1c8] sm:$0xff] %v6586
        %6639 = vst [vmem:[#allocation8 + $0x1d0] sm:$0xff] %v6587
        %6640 = vst [vmem:[#allocation8 + $0x1d8] sm:$0xff] %v6588
        %6641 = vst [vmem:[#allocation8 + $0x1e0] sm:$0xff] %v6589
        %6642 = vst [vmem:[#allocation8 + $0x1e8] sm:$0xff] %v6590
        %6643 = vst.msk [vmem:[#allocation8 + $0x1f0] sm:$0xff] %vm3537, %v6542
        %6644 = vst [vmem:[#allocation8 + $0x1f8] sm:$0xff] %v6591
        %6645 = vst [vmem:[#allocation8 + $0x200] sm:$0xff] %v6592
        %6646 = vst [vmem:[#allocation8 + $0x208] sm:$0xff] %v6593
        %6647 = vst [vmem:[#allocation8 + $0x210] sm:$0xff] %v6594
        %6648 = vst [vmem:[#allocation8 + $0x218] sm:$0xff] %v6595
        %6649 = vst [vmem:[#allocation8 + $0x220] sm:$0xff] %v6596
        %6650 = vst.msk [vmem:[#allocation8 + $0x228] sm:$0xff] %vm3537, %v6556
        %6651 = vst [vmem:[#allocation8 + $0x230] sm:$0xff] %v6597
        %6652 = vst [vmem:[#allocation8 + $0x238] sm:$0xff] %v6598
        %6653 = vst [vmem:[#allocation8 + $0x240] sm:$0xff] %v6599
        %6654 = vst [vmem:[#allocation8 + $0x248] sm:$0xff] %v6600
        %6655 = vst [vmem:[#allocation8 + $0x250] sm:$0xff] %v6601
        %6656 = vst [vmem:[#allocation8 + $0x258] sm:$0xff] %v6602
        %6657 = vst.msk [vmem:[#allocation8 + $0x260] sm:$0xff] %vm3537, %v6570
        %6658 = vst [vmem:[#allocation8 + $0x268] sm:$0xff] %v6603
        %6659 = vst [vmem:[#allocation8 + $0x270] sm:$0xff] %v6604
        %6660 = vst [vmem:[#allocation8 + $0x278] sm:$0xff] %v6605
        %6661 = vst [vmem:[#allocation8 + $0x280] sm:$0xff] %v6606
        %6662 = vst [vmem:[#allocation8 + $0x288] sm:$0xff] %v6607
        %6663 = vst [vmem:[#allocation8 + $0x290] sm:$0xff] %v6608
        %6664 = vst.msk [vmem:[#allocation8 + $0x298] sm:$0xff] %vm3537, %v6584
        %v6665 = vld [vmem:[#allocation4] sm:$0xff]
        %v6666 = vld [vmem:[#allocation4 + $0x8] sm:$0xff]
        %v6667 = vld [vmem:[#allocation4 + $0x10] sm:$0xff]
        %v6668 = vld [vmem:[#allocation4 + $0x18] sm:$0xff]
        %v6669 = vld [vmem:[#allocation4 + $0x20] sm:$0xff]
        %v6670 = vld [vmem:[#allocation4 + $0x28] sm:$0xff]
        %v6671 = vld [vmem:[#allocation4 + $0x30] sm:$0xff]
        %v6672 = vld [vmem:[#allocation4 + $0x40] sm:$0xff]
        %v6673 = vld [vmem:[#allocation4 + $0x48] sm:$0xff]
        %v6674 = vld [vmem:[#allocation4 + $0x50] sm:$0xff]
        %v6675 = vld [vmem:[#allocation4 + $0x58] sm:$0xff]
        %v6676 = vld [vmem:[#allocation4 + $0x60] sm:$0xff]
        %v6677 = vld [vmem:[#allocation4 + $0x68] sm:$0xff]
        %v6678 = vld [vmem:[#allocation4 + $0x70] sm:$0xff]
        %v6679 = vld [vmem:[#allocation4 + $0x80] sm:$0xff]
        %v6680 = vld [vmem:[#allocation4 + $0x88] sm:$0xff]
        %v6681 = vld [vmem:[#allocation4 + $0x90] sm:$0xff]
        %v6682 = vld [vmem:[#allocation4 + $0x98] sm:$0xff]
        %v6683 = vld [vmem:[#allocation4 + $0xa0] sm:$0xff]
        %v6684 = vld [vmem:[#allocation4 + $0xa8] sm:$0xff]
        %v6685 = vld [vmem:[#allocation4 + $0xb0] sm:$0xff]
        %v6686 = vld [vmem:[#allocation4 + $0xc0] sm:$0xff]
        %v6687 = vld [vmem:[#allocation4 + $0xc8] sm:$0xff]
        %v6688 = vld [vmem:[#allocation4 + $0xd0] sm:$0xff]
        %v6689 = vld [vmem:[#allocation4 + $0xd8] sm:$0xff]
        %v6690 = vld [vmem:[#allocation4 + $0xe0] sm:$0xff]
        %v6691 = vld [vmem:[#allocation4 + $0xe8] sm:$0xff]
        %v6692 = vld [vmem:[#allocation4 + $0xf0] sm:$0xff]
        %6721 = vrot.lane.b32.xlu0 %v6665, 125
        %v6722 = vpop.permute.xlu0 %6721
        %6723 = vrot.lane.b32.xlu0 %v6666, 125
        %v6724 = vpop.permute.xlu0 %6723
        %6725 = vrot.lane.b32.xlu0 %v6667, 125
        %v6726 = vpop.permute.xlu0 %6725
        %6727 = vrot.lane.b32.xlu0 %v6668, 125
        %v6728 = vpop.permute.xlu0 %6727
        %6729 = vrot.lane.b32.xlu0 %v6669, 125
        %v6730 = vpop.permute.xlu0 %6729
        %6731 = vrot.lane.b32.xlu0 %v6670, 125
        %v6732 = vpop.permute.xlu0 %6731
        %6733 = vrot.lane.b32.xlu0 %v6671, 125
        %v6734 = vpop.permute.xlu0 %6733
        %6735 = vrot.lane.b32.xlu0 %v6672, 125
        %v6736 = vpop.permute.xlu0 %6735
        %6737 = vrot.lane.b32.xlu0 %v6673, 125
        %v6738 = vpop.permute.xlu0 %6737
        %6739 = vrot.lane.b32.xlu0 %v6674, 125
        %v6740 = vpop.permute.xlu0 %6739
        %6741 = vrot.lane.b32.xlu0 %v6675, 125
        %v6742 = vpop.permute.xlu0 %6741
        %6743 = vrot.lane.b32.xlu0 %v6676, 125
        %v6744 = vpop.permute.xlu0 %6743
        %6745 = vrot.lane.b32.xlu0 %v6677, 125
        %v6746 = vpop.permute.xlu0 %6745
        %6747 = vrot.lane.b32.xlu0 %v6678, 125
        %v6748 = vpop.permute.xlu0 %6747
        %6749 = vrot.lane.b32.xlu0 %v6679, 125
        %v6750 = vpop.permute.xlu0 %6749
        %6751 = vrot.lane.b32.xlu0 %v6680, 125
        %v6752 = vpop.permute.xlu0 %6751
        %6753 = vrot.lane.b32.xlu0 %v6681, 125
        %v6754 = vpop.permute.xlu0 %6753
        %6755 = vrot.lane.b32.xlu0 %v6682, 125
        %v6756 = vpop.permute.xlu0 %6755
        %6757 = vrot.lane.b32.xlu0 %v6683, 125
        %v6758 = vpop.permute.xlu0 %6757
        %6759 = vrot.lane.b32.xlu0 %v6684, 125
        %v6760 = vpop.permute.xlu0 %6759
        %6761 = vrot.lane.b32.xlu0 %v6685, 125
        %v6762 = vpop.permute.xlu0 %6761
        %6763 = vrot.lane.b32.xlu0 %v6686, 125
        %v6764 = vpop.permute.xlu0 %6763
        %6765 = vrot.lane.b32.xlu0 %v6687, 125
        %v6766 = vpop.permute.xlu0 %6765
        %6767 = vrot.lane.b32.xlu0 %v6688, 125
        %v6768 = vpop.permute.xlu0 %6767
        %6769 = vrot.lane.b32.xlu0 %v6689, 125
        %v6770 = vpop.permute.xlu0 %6769
        %6771 = vrot.lane.b32.xlu0 %v6690, 125
        %v6772 = vpop.permute.xlu0 %6771
        %6773 = vrot.lane.b32.xlu0 %v6691, 125
        %v6774 = vpop.permute.xlu0 %6773
        %6775 = vrot.lane.b32.xlu0 %v6692, 125
        %v6776 = vpop.permute.xlu0 %6775
        %vm6777 = vcmask 1022976
        %v6778 = vsel %vm6777, %v6722, %v6724
        %v6779 = vsel %vm6777, %v6724, %v6726
        %v6780 = vsel %vm6777, %v6726, %v6728
        %v6781 = vsel %vm6777, %v6728, %v6730
        %v6782 = vsel %vm6777, %v6730, %v6732
        %v6783 = vsel %vm6777, %v6732, %v6734
        %v6784 = vsel %vm6777, %v6736, %v6738
        %v6785 = vsel %vm6777, %v6738, %v6740
        %v6786 = vsel %vm6777, %v6740, %v6742
        %v6787 = vsel %vm6777, %v6742, %v6744
        %v6788 = vsel %vm6777, %v6744, %v6746
        %v6789 = vsel %vm6777, %v6746, %v6748
        %v6790 = vsel %vm6777, %v6750, %v6752
        %v6791 = vsel %vm6777, %v6752, %v6754
        %v6792 = vsel %vm6777, %v6754, %v6756
        %v6793 = vsel %vm6777, %v6756, %v6758
        %v6794 = vsel %vm6777, %v6758, %v6760
        %v6795 = vsel %vm6777, %v6760, %v6762
        %v6796 = vsel %vm6777, %v6764, %v6766
        %v6797 = vsel %vm6777, %v6766, %v6768
        %v6798 = vsel %vm6777, %v6768, %v6770
        %v6799 = vsel %vm6777, %v6770, %v6772
        %v6800 = vsel %vm6777, %v6772, %v6774
        %v6801 = vsel %vm6777, %v6774, %v6776
        %6830 = vst [vmem:[#allocation8 + $0x2a0] sm:$0xff] %v6778
        %6831 = vst [vmem:[#allocation8 + $0x2a8] sm:$0xff] %v6779
        %6832 = vst [vmem:[#allocation8 + $0x2b0] sm:$0xff] %v6780
        %6833 = vst [vmem:[#allocation8 + $0x2b8] sm:$0xff] %v6781
        %6834 = vst [vmem:[#allocation8 + $0x2c0] sm:$0xff] %v6782
        %6835 = vst [vmem:[#allocation8 + $0x2c8] sm:$0xff] %v6783
        %6836 = vst.msk [vmem:[#allocation8 + $0x2d0] sm:$0xff] %vm3537, %v6734
        %6837 = vst [vmem:[#allocation8 + $0x2d8] sm:$0xff] %v6784
        %6838 = vst [vmem:[#allocation8 + $0x2e0] sm:$0xff] %v6785
        %6839 = vst [vmem:[#allocation8 + $0x2e8] sm:$0xff] %v6786
        %6840 = vst [vmem:[#allocation8 + $0x2f0] sm:$0xff] %v6787
        %6841 = vst [vmem:[#allocation8 + $0x2f8] sm:$0xff] %v6788
        %6842 = vst [vmem:[#allocation8 + $0x300] sm:$0xff] %v6789
        %6843 = vst.msk [vmem:[#allocation8 + $0x308] sm:$0xff] %vm3537, %v6748
        %6844 = vst [vmem:[#allocation8 + $0x310] sm:$0xff] %v6790
        %6845 = vst [vmem:[#allocation8 + $0x318] sm:$0xff] %v6791
        %6846 = vst [vmem:[#allocation8 + $0x320] sm:$0xff] %v6792
        %6847 = vst [vmem:[#allocation8 + $0x328] sm:$0xff] %v6793
        %6848 = vst [vmem:[#allocation8 + $0x330] sm:$0xff] %v6794
        %6849 = vst [vmem:[#allocation8 + $0x338] sm:$0xff] %v6795
        %6850 = vst.msk [vmem:[#allocation8 + $0x340] sm:$0xff] %vm3537, %v6762
        %6851 = vst [vmem:[#allocation8 + $0x348] sm:$0xff] %v6796
        %6852 = vst [vmem:[#allocation8 + $0x350] sm:$0xff] %v6797
        %6853 = vst [vmem:[#allocation8 + $0x358] sm:$0xff] %v6798
        %6854 = vst [vmem:[#allocation8 + $0x360] sm:$0xff] %v6799
        %6855 = vst [vmem:[#allocation8 + $0x368] sm:$0xff] %v6800
        %6856 = vst [vmem:[#allocation8 + $0x370] sm:$0xff] %v6801
        %6857 = vst.msk [vmem:[#allocation8 + $0x378] sm:$0xff] %vm3537, %v6776
        %v6858 = vld [vmem:[#allocation4] sm:$0xff]
        %v6859 = vld [vmem:[#allocation4 + $0x8] sm:$0xff]
        %v6860 = vld [vmem:[#allocation4 + $0x10] sm:$0xff]
        %v6861 = vld [vmem:[#allocation4 + $0x18] sm:$0xff]
        %v6862 = vld [vmem:[#allocation4 + $0x20] sm:$0xff]
        %v6863 = vld [vmem:[#allocation4 + $0x28] sm:$0xff]
        %v6864 = vld [vmem:[#allocation4 + $0x30] sm:$0xff]
        %v6865 = vld [vmem:[#allocation4 + $0x40] sm:$0xff]
        %v6866 = vld [vmem:[#allocation4 + $0x48] sm:$0xff]
        %v6867 = vld [vmem:[#allocation4 + $0x50] sm:$0xff]
        %v6868 = vld [vmem:[#allocation4 + $0x58] sm:$0xff]
        %v6869 = vld [vmem:[#allocation4 + $0x60] sm:$0xff]
        %v6870 = vld [vmem:[#allocation4 + $0x68] sm:$0xff]
        %v6871 = vld [vmem:[#allocation4 + $0x70] sm:$0xff]
        %v6872 = vld [vmem:[#allocation4 + $0x80] sm:$0xff]
        %v6873 = vld [vmem:[#allocation4 + $0x88] sm:$0xff]
        %v6874 = vld [vmem:[#allocation4 + $0x90] sm:$0xff]
        %v6875 = vld [vmem:[#allocation4 + $0x98] sm:$0xff]
        %v6876 = vld [vmem:[#allocation4 + $0xa0] sm:$0xff]
        %v6877 = vld [vmem:[#allocation4 + $0xa8] sm:$0xff]
        %v6878 = vld [vmem:[#allocation4 + $0xb0] sm:$0xff]
        %v6879 = vld [vmem:[#allocation4 + $0xc0] sm:$0xff]
        %v6880 = vld [vmem:[#allocation4 + $0xc8] sm:$0xff]
        %v6881 = vld [vmem:[#allocation4 + $0xd0] sm:$0xff]
        %v6882 = vld [vmem:[#allocation4 + $0xd8] sm:$0xff]
        %v6883 = vld [vmem:[#allocation4 + $0xe0] sm:$0xff]
        %v6884 = vld [vmem:[#allocation4 + $0xe8] sm:$0xff]
        %v6885 = vld [vmem:[#allocation4 + $0xf0] sm:$0xff]
        %6914 = vrot.lane.b32.xlu0 %v6858, 97
        %v6915 = vpop.permute.xlu0 %6914
        %6916 = vrot.lane.b32.xlu0 %v6859, 97
        %v6917 = vpop.permute.xlu0 %6916
        %6918 = vrot.lane.b32.xlu0 %v6860, 97
        %v6919 = vpop.permute.xlu0 %6918
        %6920 = vrot.lane.b32.xlu0 %v6861, 97
        %v6921 = vpop.permute.xlu0 %6920
        %6922 = vrot.lane.b32.xlu0 %v6862, 97
        %v6923 = vpop.permute.xlu0 %6922
        %6924 = vrot.lane.b32.xlu0 %v6863, 97
        %v6925 = vpop.permute.xlu0 %6924
        %6926 = vrot.lane.b32.xlu0 %v6864, 97
        %v6927 = vpop.permute.xlu0 %6926
        %6928 = vrot.lane.b32.xlu0 %v6865, 97
        %v6929 = vpop.permute.xlu0 %6928
        %6930 = vrot.lane.b32.xlu0 %v6866, 97
        %v6931 = vpop.permute.xlu0 %6930
        %6932 = vrot.lane.b32.xlu0 %v6867, 97
        %v6933 = vpop.permute.xlu0 %6932
        %6934 = vrot.lane.b32.xlu0 %v6868, 97
        %v6935 = vpop.permute.xlu0 %6934
        %6936 = vrot.lane.b32.xlu0 %v6869, 97
        %v6937 = vpop.permute.xlu0 %6936
        %6938 = vrot.lane.b32.xlu0 %v6870, 97
        %v6939 = vpop.permute.xlu0 %6938
        %6940 = vrot.lane.b32.xlu0 %v6871, 97
        %v6941 = vpop.permute.xlu0 %6940
        %6942 = vrot.lane.b32.xlu0 %v6872, 97
        %v6943 = vpop.permute.xlu0 %6942
        %6944 = vrot.lane.b32.xlu0 %v6873, 97
        %v6945 = vpop.permute.xlu0 %6944
        %6946 = vrot.lane.b32.xlu0 %v6874, 97
        %v6947 = vpop.permute.xlu0 %6946
        %6948 = vrot.lane.b32.xlu0 %v6875, 97
        %v6949 = vpop.permute.xlu0 %6948
        %6950 = vrot.lane.b32.xlu0 %v6876, 97
        %v6951 = vpop.permute.xlu0 %6950
        %6952 = vrot.lane.b32.xlu0 %v6877, 97
        %v6953 = vpop.permute.xlu0 %6952
        %6954 = vrot.lane.b32.xlu0 %v6878, 97
        %v6955 = vpop.permute.xlu0 %6954
        %6956 = vrot.lane.b32.xlu0 %v6879, 97
        %v6957 = vpop.permute.xlu0 %6956
        %6958 = vrot.lane.b32.xlu0 %v6880, 97
        %v6959 = vpop.permute.xlu0 %6958
        %6960 = vrot.lane.b32.xlu0 %v6881, 97
        %v6961 = vpop.permute.xlu0 %6960
        %6962 = vrot.lane.b32.xlu0 %v6882, 97
        %v6963 = vpop.permute.xlu0 %6962
        %6964 = vrot.lane.b32.xlu0 %v6883, 97
        %v6965 = vpop.permute.xlu0 %6964
        %6966 = vrot.lane.b32.xlu0 %v6884, 97
        %v6967 = vpop.permute.xlu0 %6966
        %6968 = vrot.lane.b32.xlu0 %v6885, 97
        %v6969 = vpop.permute.xlu0 %6968
        %v6970 = vsel %vm4280, %v6915, %v6917
        %v6971 = vsel %vm4280, %v6917, %v6919
        %v6972 = vsel %vm4280, %v6919, %v6921
        %v6973 = vsel %vm4280, %v6921, %v6923
        %v6974 = vsel %vm4280, %v6923, %v6925
        %v6975 = vsel %vm4280, %v6925, %v6927
        %v6976 = vsel %vm4280, %v6929, %v6931
        %v6977 = vsel %vm4280, %v6931, %v6933
        %v6978 = vsel %vm4280, %v6933, %v6935
        %v6979 = vsel %vm4280, %v6935, %v6937
        %v6980 = vsel %vm4280, %v6937, %v6939
        %v6981 = vsel %vm4280, %v6939, %v6941
        %v6982 = vsel %vm4280, %v6943, %v6945
        %v6983 = vsel %vm4280, %v6945, %v6947
        %v6984 = vsel %vm4280, %v6947, %v6949
        %v6985 = vsel %vm4280, %v6949, %v6951
        %v6986 = vsel %vm4280, %v6951, %v6953
        %v6987 = vsel %vm4280, %v6953, %v6955
        %v6988 = vsel %vm4280, %v6957, %v6959
        %v6989 = vsel %vm4280, %v6959, %v6961
        %v6990 = vsel %vm4280, %v6961, %v6963
        %v6991 = vsel %vm4280, %v6963, %v6965
        %v6992 = vsel %vm4280, %v6965, %v6967
        %v6993 = vsel %vm4280, %v6967, %v6969
        %7022 = vst [vmem:[#allocation8 + $0x380] sm:$0xff] %v6970
        %7023 = vst [vmem:[#allocation8 + $0x388] sm:$0xff] %v6971
        %7024 = vst [vmem:[#allocation8 + $0x390] sm:$0xff] %v6972
        %7025 = vst [vmem:[#allocation8 + $0x398] sm:$0xff] %v6973
        %7026 = vst [vmem:[#allocation8 + $0x3a0] sm:$0xff] %v6974
        %7027 = vst [vmem:[#allocation8 + $0x3a8] sm:$0xff] %v6975
        %7028 = vst.msk [vmem:[#allocation8 + $0x3b0] sm:$0xff] %vm3537, %v6927
        %7029 = vst [vmem:[#allocation8 + $0x3b8] sm:$0xff] %v6976
        %7030 = vst [vmem:[#allocation8 + $0x3c0] sm:$0xff] %v6977
        %7031 = vst [vmem:[#allocation8 + $0x3c8] sm:$0xff] %v6978
        %7032 = vst [vmem:[#allocation8 + $0x3d0] sm:$0xff] %v6979
        %7033 = vst [vmem:[#allocation8 + $0x3d8] sm:$0xff] %v6980
        %7034 = vst [vmem:[#allocation8 + $0x3e0] sm:$0xff] %v6981
        %7035 = vst.msk [vmem:[#allocation8 + $0x3e8] sm:$0xff] %vm3537, %v6941
        %7036 = vst [vmem:[#allocation8 + $0x3f0] sm:$0xff] %v6982
        %7037 = vst [vmem:[#allocation8 + $0x3f8] sm:$0xff] %v6983
        %7038 = vst [vmem:[#allocation8 + $0x400] sm:$0xff] %v6984
        %7039 = vst [vmem:[#allocation8 + $0x408] sm:$0xff] %v6985
        %7040 = vst [vmem:[#allocation8 + $0x410] sm:$0xff] %v6986
        %7041 = vst [vmem:[#allocation8 + $0x418] sm:$0xff] %v6987
        %7042 = vst.msk [vmem:[#allocation8 + $0x420] sm:$0xff] %vm3537, %v6955
        %7043 = vst [vmem:[#allocation8 + $0x428] sm:$0xff] %v6988
        %7044 = vst [vmem:[#allocation8 + $0x430] sm:$0xff] %v6989
        %7045 = vst [vmem:[#allocation8 + $0x438] sm:$0xff] %v6990
        %7046 = vst [vmem:[#allocation8 + $0x440] sm:$0xff] %v6991
        %7047 = vst [vmem:[#allocation8 + $0x448] sm:$0xff] %v6992
        %7048 = vst [vmem:[#allocation8 + $0x450] sm:$0xff] %v6993
        %7049 = vst.msk [vmem:[#allocation8 + $0x458] sm:$0xff] %vm3537, %v6969
        %v7050 = vld [vmem:[#allocation4] sm:$0xff]
        %v7051 = vld [vmem:[#allocation4 + $0x8] sm:$0xff]
        %v7052 = vld [vmem:[#allocation4 + $0x10] sm:$0xff]
        %v7053 = vld [vmem:[#allocation4 + $0x18] sm:$0xff]
        %v7054 = vld [vmem:[#allocation4 + $0x20] sm:$0xff]
        %v7055 = vld [vmem:[#allocation4 + $0x28] sm:$0xff]
        %v7056 = vld [vmem:[#allocation4 + $0x30] sm:$0xff]
        %v7057 = vld [vmem:[#allocation4 + $0x38] sm:$0xff]
        %v7058 = vld [vmem:[#allocation4 + $0x40] sm:$0xff]
        %v7059 = vld [vmem:[#allocation4 + $0x48] sm:$0xff]
        %v7060 = vld [vmem:[#allocation4 + $0x50] sm:$0xff]
        %v7061 = vld [vmem:[#allocation4 + $0x58] sm:$0xff]
        %v7062 = vld [vmem:[#allocation4 + $0x60] sm:$0xff]
        %v7063 = vld [vmem:[#allocation4 + $0x68] sm:$0xff]
        %v7064 = vld [vmem:[#allocation4 + $0x70] sm:$0xff]
        %v7065 = vld [vmem:[#allocation4 + $0x78] sm:$0xff]
        %v7066 = vld [vmem:[#allocation4 + $0x80] sm:$0xff]
        %v7067 = vld [vmem:[#allocation4 + $0x88] sm:$0xff]
        %v7068 = vld [vmem:[#allocation4 + $0x90] sm:$0xff]
        %v7069 = vld [vmem:[#allocation4 + $0x98] sm:$0xff]
        %v7070 = vld [vmem:[#allocation4 + $0xa0] sm:$0xff]
        %v7071 = vld [vmem:[#allocation4 + $0xa8] sm:$0xff]
        %v7072 = vld [vmem:[#allocation4 + $0xb0] sm:$0xff]
        %v7073 = vld [vmem:[#allocation4 + $0xb8] sm:$0xff]
        %v7074 = vld [vmem:[#allocation4 + $0xc0] sm:$0xff]
        %v7075 = vld [vmem:[#allocation4 + $0xc8] sm:$0xff]
        %v7076 = vld [vmem:[#allocation4 + $0xd0] sm:$0xff]
        %v7077 = vld [vmem:[#allocation4 + $0xd8] sm:$0xff]
        %v7078 = vld [vmem:[#allocation4 + $0xe0] sm:$0xff]
        %v7079 = vld [vmem:[#allocation4 + $0xe8] sm:$0xff]
        %v7080 = vld [vmem:[#allocation4 + $0xf0] sm:$0xff]
        %v7081 = vld [vmem:[#allocation4 + $0xf8] sm:$0xff]
        %7114 = vrot.lane.b32.xlu0 %v7050, 96
        %v7115 = vpop.permute.xlu0 %7114
        %7116 = vrot.lane.b32.xlu0 %v7051, 96
        %v7117 = vpop.permute.xlu0 %7116
        %7118 = vrot.lane.b32.xlu0 %v7052, 96
        %v7119 = vpop.permute.xlu0 %7118
        %7120 = vrot.lane.b32.xlu0 %v7053, 96
        %v7121 = vpop.permute.xlu0 %7120
        %7122 = vrot.lane.b32.xlu0 %v7054, 96
        %v7123 = vpop.permute.xlu0 %7122
        %7124 = vrot.lane.b32.xlu0 %v7055, 96
        %v7125 = vpop.permute.xlu0 %7124
        %7126 = vrot.lane.b32.xlu0 %v7056, 96
        %v7127 = vpop.permute.xlu0 %7126
        %7128 = vrot.lane.b32.xlu0 %v7057, 96
        %v7129 = vpop.permute.xlu0 %7128
        %7130 = vrot.lane.b32.xlu0 %v7058, 96
        %v7131 = vpop.permute.xlu0 %7130
        %7132 = vrot.lane.b32.xlu0 %v7059, 96
        %v7133 = vpop.permute.xlu0 %7132
        %7134 = vrot.lane.b32.xlu0 %v7060, 96
        %v7135 = vpop.permute.xlu0 %7134
        %7136 = vrot.lane.b32.xlu0 %v7061, 96
        %v7137 = vpop.permute.xlu0 %7136
        %7138 = vrot.lane.b32.xlu0 %v7062, 96
        %v7139 = vpop.permute.xlu0 %7138
        %7140 = vrot.lane.b32.xlu0 %v7063, 96
        %v7141 = vpop.permute.xlu0 %7140
        %7142 = vrot.lane.b32.xlu0 %v7064, 96
        %v7143 = vpop.permute.xlu0 %7142
        %7144 = vrot.lane.b32.xlu0 %v7065, 96
        %v7145 = vpop.permute.xlu0 %7144
        %7146 = vrot.lane.b32.xlu0 %v7066, 96
        %v7147 = vpop.permute.xlu0 %7146
        %7148 = vrot.lane.b32.xlu0 %v7067, 96
        %v7149 = vpop.permute.xlu0 %7148
        %7150 = vrot.lane.b32.xlu0 %v7068, 96
        %v7151 = vpop.permute.xlu0 %7150
        %7152 = vrot.lane.b32.xlu0 %v7069, 96
        %v7153 = vpop.permute.xlu0 %7152
        %7154 = vrot.lane.b32.xlu0 %v7070, 96
        %v7155 = vpop.permute.xlu0 %7154
        %7156 = vrot.lane.b32.xlu0 %v7071, 96
        %v7157 = vpop.permute.xlu0 %7156
        %7158 = vrot.lane.b32.xlu0 %v7072, 96
        %v7159 = vpop.permute.xlu0 %7158
        %7160 = vrot.lane.b32.xlu0 %v7073, 96
        %v7161 = vpop.permute.xlu0 %7160
        %7162 = vrot.lane.b32.xlu0 %v7074, 96
        %v7163 = vpop.permute.xlu0 %7162
        %7164 = vrot.lane.b32.xlu0 %v7075, 96
        %v7165 = vpop.permute.xlu0 %7164
        %7166 = vrot.lane.b32.xlu0 %v7076, 96
        %v7167 = vpop.permute.xlu0 %7166
        %7168 = vrot.lane.b32.xlu0 %v7077, 96
        %v7169 = vpop.permute.xlu0 %7168
        %7170 = vrot.lane.b32.xlu0 %v7078, 96
        %v7171 = vpop.permute.xlu0 %7170
        %7172 = vrot.lane.b32.xlu0 %v7079, 96
        %v7173 = vpop.permute.xlu0 %7172
        %7174 = vrot.lane.b32.xlu0 %v7080, 96
        %v7175 = vpop.permute.xlu0 %7174
        %7176 = vrot.lane.b32.xlu0 %v7081, 96
        %v7177 = vpop.permute.xlu0 %7176
        %v7178 = vsel %vm4385, %v7115, %v7117
        %v7179 = vsel %vm4385, %v7117, %v7119
        %v7180 = vsel %vm4385, %v7119, %v7121
        %v7181 = vsel %vm4385, %v7121, %v7123
        %v7182 = vsel %vm4385, %v7123, %v7125
        %v7183 = vsel %vm4385, %v7125, %v7127
        %v7184 = vsel %vm4385, %v7127, %v7129
        %v7185 = vsel %vm4385, %v7131, %v7133
        %v7186 = vsel %vm4385, %v7133, %v7135
        %v7187 = vsel %vm4385, %v7135, %v7137
        %v7188 = vsel %vm4385, %v7137, %v7139
        %v7189 = vsel %vm4385, %v7139, %v7141
        %v7190 = vsel %vm4385, %v7141, %v7143
        %v7191 = vsel %vm4385, %v7143, %v7145
        %v7192 = vsel %vm4385, %v7147, %v7149
        %v7193 = vsel %vm4385, %v7149, %v7151
        %v7194 = vsel %vm4385, %v7151, %v7153
        %v7195 = vsel %vm4385, %v7153, %v7155
        %v7196 = vsel %vm4385, %v7155, %v7157
        %v7197 = vsel %vm4385, %v7157, %v7159
        %v7198 = vsel %vm4385, %v7159, %v7161
        %v7199 = vsel %vm4385, %v7163, %v7165
        %v7200 = vsel %vm4385, %v7165, %v7167
        %v7201 = vsel %vm4385, %v7167, %v7169
        %v7202 = vsel %vm4385, %v7169, %v7171
        %v7203 = vsel %vm4385, %v7171, %v7173
        %v7204 = vsel %vm4385, %v7173, %v7175
        %v7205 = vsel %vm4385, %v7175, %v7177
        %7234 = vst [vmem:[#allocation8 + $0x460] sm:$0xff] %v7178
        %7235 = vst [vmem:[#allocation8 + $0x468] sm:$0xff] %v7179
        %7236 = vst [vmem:[#allocation8 + $0x470] sm:$0xff] %v7180
        %7237 = vst [vmem:[#allocation8 + $0x478] sm:$0xff] %v7181
        %7238 = vst [vmem:[#allocation8 + $0x480] sm:$0xff] %v7182
        %7239 = vst [vmem:[#allocation8 + $0x488] sm:$0xff] %v7183
        %7240 = vst.msk [vmem:[#allocation8 + $0x490] sm:$0xff] %vm3537, %v7184
        %7241 = vst [vmem:[#allocation8 + $0x498] sm:$0xff] %v7185
        %7242 = vst [vmem:[#allocation8 + $0x4a0] sm:$0xff] %v7186
        %7243 = vst [vmem:[#allocation8 + $0x4a8] sm:$0xff] %v7187
        %7244 = vst [vmem:[#allocation8 + $0x4b0] sm:$0xff] %v7188
        %7245 = vst [vmem:[#allocation8 + $0x4b8] sm:$0xff] %v7189
        %7246 = vst [vmem:[#allocation8 + $0x4c0] sm:$0xff] %v7190
        %7247 = vst.msk [vmem:[#allocation8 + $0x4c8] sm:$0xff] %vm3537, %v7191
        %7248 = vst [vmem:[#allocation8 + $0x4d0] sm:$0xff] %v7192
        %7249 = vst [vmem:[#allocation8 + $0x4d8] sm:$0xff] %v7193
        %7250 = vst [vmem:[#allocation8 + $0x4e0] sm:$0xff] %v7194
        %7251 = vst [vmem:[#allocation8 + $0x4e8] sm:$0xff] %v7195
        %7252 = vst [vmem:[#allocation8 + $0x4f0] sm:$0xff] %v7196
        %7253 = vst [vmem:[#allocation8 + $0x4f8] sm:$0xff] %v7197
        %7254 = vst.msk [vmem:[#allocation8 + $0x500] sm:$0xff] %vm3537, %v7198
        %7255 = vst [vmem:[#allocation8 + $0x508] sm:$0xff] %v7199
        %7256 = vst [vmem:[#allocation8 + $0x510] sm:$0xff] %v7200
        %7257 = vst [vmem:[#allocation8 + $0x518] sm:$0xff] %v7201
        %7258 = vst [vmem:[#allocation8 + $0x520] sm:$0xff] %v7202
        %7259 = vst [vmem:[#allocation8 + $0x528] sm:$0xff] %v7203
        %7260 = vst [vmem:[#allocation8 + $0x530] sm:$0xff] %v7204
        %7261 = vst.msk [vmem:[#allocation8 + $0x538] sm:$0xff] %vm3537, %v7205
        %v7262 = vld [vmem:[#allocation4] sm:$0xff]
        %v7263 = vld [vmem:[#allocation4 + $0x8] sm:$0xff]
        %v7264 = vld [vmem:[#allocation4 + $0x10] sm:$0xff]
        %v7265 = vld [vmem:[#allocation4 + $0x18] sm:$0xff]
        %v7266 = vld [vmem:[#allocation4 + $0x20] sm:$0xff]
        %v7267 = vld [vmem:[#allocation4 + $0x28] sm:$0xff]
        %v7268 = vld [vmem:[#allocation4 + $0x30] sm:$0xff]
        %v7269 = vld [vmem:[#allocation4 + $0x38] sm:$0xff]
        %v7270 = vld [vmem:[#allocation4 + $0x40] sm:$0xff]
        %v7271 = vld [vmem:[#allocation4 + $0x48] sm:$0xff]
        %v7272 = vld [vmem:[#allocation4 + $0x50] sm:$0xff]
        %v7273 = vld [vmem:[#allocation4 + $0x58] sm:$0xff]
        %v7274 = vld [vmem:[#allocation4 + $0x60] sm:$0xff]
        %v7275 = vld [vmem:[#allocation4 + $0x68] sm:$0xff]
        %v7276 = vld [vmem:[#allocation4 + $0x70] sm:$0xff]
        %v7277 = vld [vmem:[#allocation4 + $0x78] sm:$0xff]
        %v7278 = vld [vmem:[#allocation4 + $0x80] sm:$0xff]
        %v7279 = vld [vmem:[#allocation4 + $0x88] sm:$0xff]
        %v7280 = vld [vmem:[#allocation4 + $0x90] sm:$0xff]
        %v7281 = vld [vmem:[#allocation4 + $0x98] sm:$0xff]
        %v7282 = vld [vmem:[#allocation4 + $0xa0] sm:$0xff]
        %v7283 = vld [vmem:[#allocation4 + $0xa8] sm:$0xff]
        %v7284 = vld [vmem:[#allocation4 + $0xb0] sm:$0xff]
        %v7285 = vld [vmem:[#allocation4 + $0xb8] sm:$0xff]
        %v7286 = vld [vmem:[#allocation4 + $0xc0] sm:$0xff]
        %v7287 = vld [vmem:[#allocation4 + $0xc8] sm:$0xff]
        %v7288 = vld [vmem:[#allocation4 + $0xd0] sm:$0xff]
        %v7289 = vld [vmem:[#allocation4 + $0xd8] sm:$0xff]
        %v7290 = vld [vmem:[#allocation4 + $0xe0] sm:$0xff]
        %v7291 = vld [vmem:[#allocation4 + $0xe8] sm:$0xff]
        %v7292 = vld [vmem:[#allocation4 + $0xf0] sm:$0xff]
        %v7293 = vld [vmem:[#allocation4 + $0xf8] sm:$0xff]
        %7326 = vrot.lane.b32.xlu0 %v7262, 95
        %v7327 = vpop.permute.xlu0 %7326
        %7328 = vrot.lane.b32.xlu0 %v7263, 95
        %v7329 = vpop.permute.xlu0 %7328
        %7330 = vrot.lane.b32.xlu0 %v7264, 95
        %v7331 = vpop.permute.xlu0 %7330
        %7332 = vrot.lane.b32.xlu0 %v7265, 95
        %v7333 = vpop.permute.xlu0 %7332
        %7334 = vrot.lane.b32.xlu0 %v7266, 95
        %v7335 = vpop.permute.xlu0 %7334
        %7336 = vrot.lane.b32.xlu0 %v7267, 95
        %v7337 = vpop.permute.xlu0 %7336
        %7338 = vrot.lane.b32.xlu0 %v7268, 95
        %v7339 = vpop.permute.xlu0 %7338
        %7340 = vrot.lane.b32.xlu0 %v7269, 95
        %v7341 = vpop.permute.xlu0 %7340
        %7342 = vrot.lane.b32.xlu0 %v7270, 95
        %v7343 = vpop.permute.xlu0 %7342
        %7344 = vrot.lane.b32.xlu0 %v7271, 95
        %v7345 = vpop.permute.xlu0 %7344
        %7346 = vrot.lane.b32.xlu0 %v7272, 95
        %v7347 = vpop.permute.xlu0 %7346
        %7348 = vrot.lane.b32.xlu0 %v7273, 95
        %v7349 = vpop.permute.xlu0 %7348
        %7350 = vrot.lane.b32.xlu0 %v7274, 95
        %v7351 = vpop.permute.xlu0 %7350
        %7352 = vrot.lane.b32.xlu0 %v7275, 95
        %v7353 = vpop.permute.xlu0 %7352
        %7354 = vrot.lane.b32.xlu0 %v7276, 95
        %v7355 = vpop.permute.xlu0 %7354
        %7356 = vrot.lane.b32.xlu0 %v7277, 95
        %v7357 = vpop.permute.xlu0 %7356
        %7358 = vrot.lane.b32.xlu0 %v7278, 95
        %v7359 = vpop.permute.xlu0 %7358
        %7360 = vrot.lane.b32.xlu0 %v7279, 95
        %v7361 = vpop.permute.xlu0 %7360
        %7362 = vrot.lane.b32.xlu0 %v7280, 95
        %v7363 = vpop.permute.xlu0 %7362
        %7364 = vrot.lane.b32.xlu0 %v7281, 95
        %v7365 = vpop.permute.xlu0 %7364
        %7366 = vrot.lane.b32.xlu0 %v7282, 95
        %v7367 = vpop.permute.xlu0 %7366
        %7368 = vrot.lane.b32.xlu0 %v7283, 95
        %v7369 = vpop.permute.xlu0 %7368
        %7370 = vrot.lane.b32.xlu0 %v7284, 95
        %v7371 = vpop.permute.xlu0 %7370
        %7372 = vrot.lane.b32.xlu0 %v7285, 95
        %v7373 = vpop.permute.xlu0 %7372
        %7374 = vrot.lane.b32.xlu0 %v7286, 95
        %v7375 = vpop.permute.xlu0 %7374
        %7376 = vrot.lane.b32.xlu0 %v7287, 95
        %v7377 = vpop.permute.xlu0 %7376
        %7378 = vrot.lane.b32.xlu0 %v7288, 95
        %v7379 = vpop.permute.xlu0 %7378
        %7380 = vrot.lane.b32.xlu0 %v7289, 95
        %v7381 = vpop.permute.xlu0 %7380
        %7382 = vrot.lane.b32.xlu0 %v7290, 95
        %v7383 = vpop.permute.xlu0 %7382
        %7384 = vrot.lane.b32.xlu0 %v7291, 95
        %v7385 = vpop.permute.xlu0 %7384
        %7386 = vrot.lane.b32.xlu0 %v7292, 95
        %v7387 = vpop.permute.xlu0 %7386
        %7388 = vrot.lane.b32.xlu0 %v7293, 95
        %v7389 = vpop.permute.xlu0 %7388
        %vm7390 = vcmask 777216
        %v7391 = vsel %vm7390, %v7327, %v7329
        %v7392 = vsel %vm7390, %v7329, %v7331
        %v7393 = vsel %vm7390, %v7331, %v7333
        %v7394 = vsel %vm7390, %v7333, %v7335
        %v7395 = vsel %vm7390, %v7335, %v7337
        %v7396 = vsel %vm7390, %v7337, %v7339
        %v7397 = vsel %vm7390, %v7339, %v7341
        %v7398 = vsel %vm7390, %v7343, %v7345
        %v7399 = vsel %vm7390, %v7345, %v7347
        %v7400 = vsel %vm7390, %v7347, %v7349
        %v7401 = vsel %vm7390, %v7349, %v7351
        %v7402 = vsel %vm7390, %v7351, %v7353
        %v7403 = vsel %vm7390, %v7353, %v7355
        %v7404 = vsel %vm7390, %v7355, %v7357
        %v7405 = vsel %vm7390, %v7359, %v7361
        %v7406 = vsel %vm7390, %v7361, %v7363
        %v7407 = vsel %vm7390, %v7363, %v7365
        %v7408 = vsel %vm7390, %v7365, %v7367
        %v7409 = vsel %vm7390, %v7367, %v7369
        %v7410 = vsel %vm7390, %v7369, %v7371
        %v7411 = vsel %vm7390, %v7371, %v7373
        %v7412 = vsel %vm7390, %v7375, %v7377
        %v7413 = vsel %vm7390, %v7377, %v7379
        %v7414 = vsel %vm7390, %v7379, %v7381
        %v7415 = vsel %vm7390, %v7381, %v7383
        %v7416 = vsel %vm7390, %v7383, %v7385
        %v7417 = vsel %vm7390, %v7385, %v7387
        %v7418 = vsel %vm7390, %v7387, %v7389
        %7447 = vst [vmem:[#allocation8 + $0x540] sm:$0xff] %v7391
        %7448 = vst [vmem:[#allocation8 + $0x548] sm:$0xff] %v7392
        %7449 = vst [vmem:[#allocation8 + $0x550] sm:$0xff] %v7393
        %7450 = vst [vmem:[#allocation8 + $0x558] sm:$0xff] %v7394
        %7451 = vst [vmem:[#allocation8 + $0x560] sm:$0xff] %v7395
        %7452 = vst [vmem:[#allocation8 + $0x568] sm:$0xff] %v7396
        %7453 = vst.msk [vmem:[#allocation8 + $0x570] sm:$0xff] %vm3537, %v7397
        %7454 = vst [vmem:[#allocation8 + $0x578] sm:$0xff] %v7398
        %7455 = vst [vmem:[#allocation8 + $0x580] sm:$0xff] %v7399
        %7456 = vst [vmem:[#allocation8 + $0x588] sm:$0xff] %v7400
        %7457 = vst [vmem:[#allocation8 + $0x590] sm:$0xff] %v7401
        %7458 = vst [vmem:[#allocation8 + $0x598] sm:$0xff] %v7402
        %7459 = vst [vmem:[#allocation8 + $0x5a0] sm:$0xff] %v7403
        %7460 = vst.msk [vmem:[#allocation8 + $0x5a8] sm:$0xff] %vm3537, %v7404
        %7461 = vst [vmem:[#allocation8 + $0x5b0] sm:$0xff] %v7405
        %7462 = vst [vmem:[#allocation8 + $0x5b8] sm:$0xff] %v7406
        %7463 = vst [vmem:[#allocation8 + $0x5c0] sm:$0xff] %v7407
        %7464 = vst [vmem:[#allocation8 + $0x5c8] sm:$0xff] %v7408
        %7465 = vst [vmem:[#allocation8 + $0x5d0] sm:$0xff] %v7409
        %7466 = vst [vmem:[#allocation8 + $0x5d8] sm:$0xff] %v7410
        %7467 = vst.msk [vmem:[#allocation8 + $0x5e0] sm:$0xff] %vm3537, %v7411
        %7468 = vst [vmem:[#allocation8 + $0x5e8] sm:$0xff] %v7412
        %7469 = vst [vmem:[#allocation8 + $0x5f0] sm:$0xff] %v7413
        %7470 = vst [vmem:[#allocation8 + $0x5f8] sm:$0xff] %v7414
        %7471 = vst [vmem:[#allocation8 + $0x600] sm:$0xff] %v7415
        %7472 = vst [vmem:[#allocation8 + $0x608] sm:$0xff] %v7416
        %7473 = vst [vmem:[#allocation8 + $0x610] sm:$0xff] %v7417
        %7474 = vst.msk [vmem:[#allocation8 + $0x618] sm:$0xff] %vm3537, %v7418
        %v7475 = vld [vmem:[#allocation4] sm:$0xff]
        %v7476 = vld [vmem:[#allocation4 + $0x8] sm:$0xff]
        %v7477 = vld [vmem:[#allocation4 + $0x10] sm:$0xff]
        %v7478 = vld [vmem:[#allocation4 + $0x18] sm:$0xff]
        %v7479 = vld [vmem:[#allocation4 + $0x20] sm:$0xff]
        %v7480 = vld [vmem:[#allocation4 + $0x28] sm:$0xff]
        %v7481 = vld [vmem:[#allocation4 + $0x30] sm:$0xff]
        %v7482 = vld [vmem:[#allocation4 + $0x38] sm:$0xff]
        %v7483 = vld [vmem:[#allocation4 + $0x40] sm:$0xff]
        %v7484 = vld [vmem:[#allocation4 + $0x48] sm:$0xff]
        %v7485 = vld [vmem:[#allocation4 + $0x50] sm:$0xff]
        %v7486 = vld [vmem:[#allocation4 + $0x58] sm:$0xff]
        %v7487 = vld [vmem:[#allocation4 + $0x60] sm:$0xff]
        %v7488 = vld [vmem:[#allocation4 + $0x68] sm:$0xff]
        %v7489 = vld [vmem:[#allocation4 + $0x70] sm:$0xff]
        %v7490 = vld [vmem:[#allocation4 + $0x78] sm:$0xff]
        %v7491 = vld [vmem:[#allocation4 + $0x80] sm:$0xff]
        %v7492 = vld [vmem:[#allocation4 + $0x88] sm:$0xff]
        %v7493 = vld [vmem:[#allocation4 + $0x90] sm:$0xff]
        %v7494 = vld [vmem:[#allocation4 + $0x98] sm:$0xff]
        %v7495 = vld [vmem:[#allocation4 + $0xa0] sm:$0xff]
        %v7496 = vld [vmem:[#allocation4 + $0xa8] sm:$0xff]
        %v7497 = vld [vmem:[#allocation4 + $0xb0] sm:$0xff]
        %v7498 = vld [vmem:[#allocation4 + $0xb8] sm:$0xff]
        %v7499 = vld [vmem:[#allocation4 + $0xc0] sm:$0xff]
        %v7500 = vld [vmem:[#allocation4 + $0xc8] sm:$0xff]
        %v7501 = vld [vmem:[#allocation4 + $0xd0] sm:$0xff]
        %v7502 = vld [vmem:[#allocation4 + $0xd8] sm:$0xff]
        %v7503 = vld [vmem:[#allocation4 + $0xe0] sm:$0xff]
        %v7504 = vld [vmem:[#allocation4 + $0xe8] sm:$0xff]
        %v7505 = vld [vmem:[#allocation4 + $0xf0] sm:$0xff]
        %v7506 = vld [vmem:[#allocation4 + $0xf8] sm:$0xff]
        %7539 = vrot.lane.b32.xlu0 %v7475, 94
        %v7540 = vpop.permute.xlu0 %7539
        %7541 = vrot.lane.b32.xlu0 %v7476, 94
        %v7542 = vpop.permute.xlu0 %7541
        %7543 = vrot.lane.b32.xlu0 %v7477, 94
        %v7544 = vpop.permute.xlu0 %7543
        %7545 = vrot.lane.b32.xlu0 %v7478, 94
        %v7546 = vpop.permute.xlu0 %7545
        %7547 = vrot.lane.b32.xlu0 %v7479, 94
        %v7548 = vpop.permute.xlu0 %7547
        %7549 = vrot.lane.b32.xlu0 %v7480, 94
        %v7550 = vpop.permute.xlu0 %7549
        %7551 = vrot.lane.b32.xlu0 %v7481, 94
        %v7552 = vpop.permute.xlu0 %7551
        %7553 = vrot.lane.b32.xlu0 %v7482, 94
        %v7554 = vpop.permute.xlu0 %7553
        %7555 = vrot.lane.b32.xlu0 %v7483, 94
        %v7556 = vpop.permute.xlu0 %7555
        %7557 = vrot.lane.b32.xlu0 %v7484, 94
        %v7558 = vpop.permute.xlu0 %7557
        %7559 = vrot.lane.b32.xlu0 %v7485, 94
        %v7560 = vpop.permute.xlu0 %7559
        %7561 = vrot.lane.b32.xlu0 %v7486, 94
        %v7562 = vpop.permute.xlu0 %7561
        %7563 = vrot.lane.b32.xlu0 %v7487, 94
        %v7564 = vpop.permute.xlu0 %7563
        %7565 = vrot.lane.b32.xlu0 %v7488, 94
        %v7566 = vpop.permute.xlu0 %7565
        %7567 = vrot.lane.b32.xlu0 %v7489, 94
        %v7568 = vpop.permute.xlu0 %7567
        %7569 = vrot.lane.b32.xlu0 %v7490, 94
        %v7570 = vpop.permute.xlu0 %7569
        %7571 = vrot.lane.b32.xlu0 %v7491, 94
        %v7572 = vpop.permute.xlu0 %7571
        %7573 = vrot.lane.b32.xlu0 %v7492, 94
        %v7574 = vpop.permute.xlu0 %7573
        %7575 = vrot.lane.b32.xlu0 %v7493, 94
        %v7576 = vpop.permute.xlu0 %7575
        %7577 = vrot.lane.b32.xlu0 %v7494, 94
        %v7578 = vpop.permute.xlu0 %7577
        %7579 = vrot.lane.b32.xlu0 %v7495, 94
        %v7580 = vpop.permute.xlu0 %7579
        %7581 = vrot.lane.b32.xlu0 %v7496, 94
        %v7582 = vpop.permute.xlu0 %7581
        %7583 = vrot.lane.b32.xlu0 %v7497, 94
        %v7584 = vpop.permute.xlu0 %7583
        %7585 = vrot.lane.b32.xlu0 %v7498, 94
        %v7586 = vpop.permute.xlu0 %7585
        %7587 = vrot.lane.b32.xlu0 %v7499, 94
        %v7588 = vpop.permute.xlu0 %7587
        %7589 = vrot.lane.b32.xlu0 %v7500, 94
        %v7590 = vpop.permute.xlu0 %7589
        %7591 = vrot.lane.b32.xlu0 %v7501, 94
        %v7592 = vpop.permute.xlu0 %7591
        %7593 = vrot.lane.b32.xlu0 %v7502, 94
        %v7594 = vpop.permute.xlu0 %7593
        %7595 = vrot.lane.b32.xlu0 %v7503, 94
        %v7596 = vpop.permute.xlu0 %7595
        %7597 = vrot.lane.b32.xlu0 %v7504, 94
        %v7598 = vpop.permute.xlu0 %7597
        %7599 = vrot.lane.b32.xlu0 %v7505, 94
        %v7600 = vpop.permute.xlu0 %7599
        %7601 = vrot.lane.b32.xlu0 %v7506, 94
        %v7602 = vpop.permute.xlu0 %7601
        %vm7603 = vcmask 769024
        %v7604 = vsel %vm7603, %v7540, %v7542
        %v7605 = vsel %vm7603, %v7542, %v7544
        %v7606 = vsel %vm7603, %v7544, %v7546
        %v7607 = vsel %vm7603, %v7546, %v7548
        %v7608 = vsel %vm7603, %v7548, %v7550
        %v7609 = vsel %vm7603, %v7550, %v7552
        %v7610 = vsel %vm7603, %v7552, %v7554
        %v7611 = vsel %vm7603, %v7556, %v7558
        %v7612 = vsel %vm7603, %v7558, %v7560
        %v7613 = vsel %vm7603, %v7560, %v7562
        %v7614 = vsel %vm7603, %v7562, %v7564
        %v7615 = vsel %vm7603, %v7564, %v7566
        %v7616 = vsel %vm7603, %v7566, %v7568
        %v7617 = vsel %vm7603, %v7568, %v7570
        %v7618 = vsel %vm7603, %v7572, %v7574
        %v7619 = vsel %vm7603, %v7574, %v7576
        %v7620 = vsel %vm7603, %v7576, %v7578
        %v7621 = vsel %vm7603, %v7578, %v7580
        %v7622 = vsel %vm7603, %v7580, %v7582
        %v7623 = vsel %vm7603, %v7582, %v7584
        %v7624 = vsel %vm7603, %v7584, %v7586
        %v7625 = vsel %vm7603, %v7588, %v7590
        %v7626 = vsel %vm7603, %v7590, %v7592
        %v7627 = vsel %vm7603, %v7592, %v7594
        %v7628 = vsel %vm7603, %v7594, %v7596
        %v7629 = vsel %vm7603, %v7596, %v7598
        %v7630 = vsel %vm7603, %v7598, %v7600
        %v7631 = vsel %vm7603, %v7600, %v7602
        %7660 = vst [vmem:[#allocation8 + $0x620] sm:$0xff] %v7604
        %7661 = vst [vmem:[#allocation8 + $0x628] sm:$0xff] %v7605
        %7662 = vst [vmem:[#allocation8 + $0x630] sm:$0xff] %v7606
        %7663 = vst [vmem:[#allocation8 + $0x638] sm:$0xff] %v7607
        %7664 = vst [vmem:[#allocation8 + $0x640] sm:$0xff] %v7608
        %7665 = vst [vmem:[#allocation8 + $0x648] sm:$0xff] %v7609
        %7666 = vst.msk [vmem:[#allocation8 + $0x650] sm:$0xff] %vm3537, %v7610
        %7667 = vst [vmem:[#allocation8 + $0x658] sm:$0xff] %v7611
        %7668 = vst [vmem:[#allocation8 + $0x660] sm:$0xff] %v7612
        %7669 = vst [vmem:[#allocation8 + $0x668] sm:$0xff] %v7613
        %7670 = vst [vmem:[#allocation8 + $0x670] sm:$0xff] %v7614
        %7671 = vst [vmem:[#allocation8 + $0x678] sm:$0xff] %v7615
        %7672 = vst [vmem:[#allocation8 + $0x680] sm:$0xff] %v7616
        %7673 = vst.msk [vmem:[#allocation8 + $0x688] sm:$0xff] %vm3537, %v7617
        %7674 = vst [vmem:[#allocation8 + $0x690] sm:$0xff] %v7618
        %7675 = vst [vmem:[#allocation8 + $0x698] sm:$0xff] %v7619
        %7676 = vst [vmem:[#allocation8 + $0x6a0] sm:$0xff] %v7620
        %7677 = vst [vmem:[#allocation8 + $0x6a8] sm:$0xff] %v7621
        %7678 = vst [vmem:[#allocation8 + $0x6b0] sm:$0xff] %v7622
        %7679 = vst [vmem:[#allocation8 + $0x6b8] sm:$0xff] %v7623
        %7680 = vst.msk [vmem:[#allocation8 + $0x6c0] sm:$0xff] %vm3537, %v7624
        %7681 = vst [vmem:[#allocation8 + $0x6c8] sm:$0xff] %v7625
        %7682 = vst [vmem:[#allocation8 + $0x6d0] sm:$0xff] %v7626
        %7683 = vst [vmem:[#allocation8 + $0x6d8] sm:$0xff] %v7627
        %7684 = vst [vmem:[#allocation8 + $0x6e0] sm:$0xff] %v7628
        %7685 = vst [vmem:[#allocation8 + $0x6e8] sm:$0xff] %v7629
        %7686 = vst [vmem:[#allocation8 + $0x6f0] sm:$0xff] %v7630
        %7687 = vst.msk [vmem:[#allocation8 + $0x6f8] sm:$0xff] %vm3537, %v7631
        %v7688 = vld [vmem:[#allocation4] sm:$0xff]
        %v7689 = vld [vmem:[#allocation4 + $0x8] sm:$0xff]
        %v7690 = vld [vmem:[#allocation4 + $0x10] sm:$0xff]
        %v7691 = vld [vmem:[#allocation4 + $0x18] sm:$0xff]
        %v7692 = vld [vmem:[#allocation4 + $0x20] sm:$0xff]
        %v7693 = vld [vmem:[#allocation4 + $0x28] sm:$0xff]
        %v7694 = vld [vmem:[#allocation4 + $0x30] sm:$0xff]
        %v7695 = vld [vmem:[#allocation4 + $0x38] sm:$0xff]
        %v7696 = vld [vmem:[#allocation4 + $0x40] sm:$0xff]
        %v7697 = vld [vmem:[#allocation4 + $0x48] sm:$0xff]
        %v7698 = vld [vmem:[#allocation4 + $0x50] sm:$0xff]
        %v7699 = vld [vmem:[#allocation4 + $0x58] sm:$0xff]
        %v7700 = vld [vmem:[#allocation4 + $0x60] sm:$0xff]
        %v7701 = vld [vmem:[#allocation4 + $0x68] sm:$0xff]
        %v7702 = vld [vmem:[#allocation4 + $0x70] sm:$0xff]
        %v7703 = vld [vmem:[#allocation4 + $0x78] sm:$0xff]
        %v7704 = vld [vmem:[#allocation4 + $0x80] sm:$0xff]
        %v7705 = vld [vmem:[#allocation4 + $0x88] sm:$0xff]
        %v7706 = vld [vmem:[#allocation4 + $0x90] sm:$0xff]
        %v7707 = vld [vmem:[#allocation4 + $0x98] sm:$0xff]
        %v7708 = vld [vmem:[#allocation4 + $0xa0] sm:$0xff]
        %v7709 = vld [vmem:[#allocation4 + $0xa8] sm:$0xff]
        %v7710 = vld [vmem:[#allocation4 + $0xb0] sm:$0xff]
        %v7711 = vld [vmem:[#allocation4 + $0xb8] sm:$0xff]
        %v7712 = vld [vmem:[#allocation4 + $0xc0] sm:$0xff]
        %v7713 = vld [vmem:[#allocation4 + $0xc8] sm:$0xff]
        %v7714 = vld [vmem:[#allocation4 + $0xd0] sm:$0xff]
        %v7715 = vld [vmem:[#allocation4 + $0xd8] sm:$0xff]
        %v7716 = vld [vmem:[#allocation4 + $0xe0] sm:$0xff]
        %v7717 = vld [vmem:[#allocation4 + $0xe8] sm:$0xff]
        %v7718 = vld [vmem:[#allocation4 + $0xf0] sm:$0xff]
        %v7719 = vld [vmem:[#allocation4 + $0xf8] sm:$0xff]
        %7752 = vrot.lane.b32.xlu0 %v7688, 66
        %v7753 = vpop.permute.xlu0 %7752
        %7754 = vrot.lane.b32.xlu0 %v7689, 66
        %v7755 = vpop.permute.xlu0 %7754
        %7756 = vrot.lane.b32.xlu0 %v7690, 66
        %v7757 = vpop.permute.xlu0 %7756
        %7758 = vrot.lane.b32.xlu0 %v7691, 66
        %v7759 = vpop.permute.xlu0 %7758
        %7760 = vrot.lane.b32.xlu0 %v7692, 66
        %v7761 = vpop.permute.xlu0 %7760
        %7762 = vrot.lane.b32.xlu0 %v7693, 66
        %v7763 = vpop.permute.xlu0 %7762
        %7764 = vrot.lane.b32.xlu0 %v7694, 66
        %v7765 = vpop.permute.xlu0 %7764
        %7766 = vrot.lane.b32.xlu0 %v7695, 66
        %v7767 = vpop.permute.xlu0 %7766
        %7768 = vrot.lane.b32.xlu0 %v7696, 66
        %v7769 = vpop.permute.xlu0 %7768
        %7770 = vrot.lane.b32.xlu0 %v7697, 66
        %v7771 = vpop.permute.xlu0 %7770
        %7772 = vrot.lane.b32.xlu0 %v7698, 66
        %v7773 = vpop.permute.xlu0 %7772
        %7774 = vrot.lane.b32.xlu0 %v7699, 66
        %v7775 = vpop.permute.xlu0 %7774
        %7776 = vrot.lane.b32.xlu0 %v7700, 66
        %v7777 = vpop.permute.xlu0 %7776
        %7778 = vrot.lane.b32.xlu0 %v7701, 66
        %v7779 = vpop.permute.xlu0 %7778
        %7780 = vrot.lane.b32.xlu0 %v7702, 66
        %v7781 = vpop.permute.xlu0 %7780
        %7782 = vrot.lane.b32.xlu0 %v7703, 66
        %v7783 = vpop.permute.xlu0 %7782
        %7784 = vrot.lane.b32.xlu0 %v7704, 66
        %v7785 = vpop.permute.xlu0 %7784
        %7786 = vrot.lane.b32.xlu0 %v7705, 66
        %v7787 = vpop.permute.xlu0 %7786
        %7788 = vrot.lane.b32.xlu0 %v7706, 66
        %v7789 = vpop.permute.xlu0 %7788
        %7790 = vrot.lane.b32.xlu0 %v7707, 66
        %v7791 = vpop.permute.xlu0 %7790
        %7792 = vrot.lane.b32.xlu0 %v7708, 66
        %v7793 = vpop.permute.xlu0 %7792
        %7794 = vrot.lane.b32.xlu0 %v7709, 66
        %v7795 = vpop.permute.xlu0 %7794
        %7796 = vrot.lane.b32.xlu0 %v7710, 66
        %v7797 = vpop.permute.xlu0 %7796
        %7798 = vrot.lane.b32.xlu0 %v7711, 66
        %v7799 = vpop.permute.xlu0 %7798
        %7800 = vrot.lane.b32.xlu0 %v7712, 66
        %v7801 = vpop.permute.xlu0 %7800
        %7802 = vrot.lane.b32.xlu0 %v7713, 66
        %v7803 = vpop.permute.xlu0 %7802
        %7804 = vrot.lane.b32.xlu0 %v7714, 66
        %v7805 = vpop.permute.xlu0 %7804
        %7806 = vrot.lane.b32.xlu0 %v7715, 66
        %v7807 = vpop.permute.xlu0 %7806
        %7808 = vrot.lane.b32.xlu0 %v7716, 66
        %v7809 = vpop.permute.xlu0 %7808
        %7810 = vrot.lane.b32.xlu0 %v7717, 66
        %v7811 = vpop.permute.xlu0 %7810
        %7812 = vrot.lane.b32.xlu0 %v7718, 66
        %v7813 = vpop.permute.xlu0 %7812
        %7814 = vrot.lane.b32.xlu0 %v7719, 66
        %v7815 = vpop.permute.xlu0 %7814
        %vm7816 = vcmask 539648
        %v7817 = vsel %vm7816, %v7753, %v7755
        %v7818 = vsel %vm7816, %v7755, %v7757
        %v7819 = vsel %vm7816, %v7757, %v7759
        %v7820 = vsel %vm7816, %v7759, %v7761
        %v7821 = vsel %vm7816, %v7761, %v7763
        %v7822 = vsel %vm7816, %v7763, %v7765
        %v7823 = vsel %vm7816, %v7765, %v7767
        %v7824 = vsel %vm7816, %v7769, %v7771
        %v7825 = vsel %vm7816, %v7771, %v7773
        %v7826 = vsel %vm7816, %v7773, %v7775
        %v7827 = vsel %vm7816, %v7775, %v7777
        %v7828 = vsel %vm7816, %v7777, %v7779
        %v7829 = vsel %vm7816, %v7779, %v7781
        %v7830 = vsel %vm7816, %v7781, %v7783
        %v7831 = vsel %vm7816, %v7785, %v7787
        %v7832 = vsel %vm7816, %v7787, %v7789
        %v7833 = vsel %vm7816, %v7789, %v7791
        %v7834 = vsel %vm7816, %v7791, %v7793
        %v7835 = vsel %vm7816, %v7793, %v7795
        %v7836 = vsel %vm7816, %v7795, %v7797
        %v7837 = vsel %vm7816, %v7797, %v7799
        %v7838 = vsel %vm7816, %v7801, %v7803
        %v7839 = vsel %vm7816, %v7803, %v7805
        %v7840 = vsel %vm7816, %v7805, %v7807
        %v7841 = vsel %vm7816, %v7807, %v7809
        %v7842 = vsel %vm7816, %v7809, %v7811
        %v7843 = vsel %vm7816, %v7811, %v7813
        %v7844 = vsel %vm7816, %v7813, %v7815
        %7873 = vst [vmem:[#allocation8 + $0x700] sm:$0xff] %v7817
        %7874 = vst [vmem:[#allocation8 + $0x708] sm:$0xff] %v7818
        %7875 = vst [vmem:[#allocation8 + $0x710] sm:$0xff] %v7819
        %7876 = vst [vmem:[#allocation8 + $0x718] sm:$0xff] %v7820
        %7877 = vst [vmem:[#allocation8 + $0x720] sm:$0xff] %v7821
        %7878 = vst [vmem:[#allocation8 + $0x728] sm:$0xff] %v7822
        %7879 = vst.msk [vmem:[#allocation8 + $0x730] sm:$0xff] %vm3537, %v7823
        %7880 = vst [vmem:[#allocation8 + $0x738] sm:$0xff] %v7824
        %7881 = vst [vmem:[#allocation8 + $0x740] sm:$0xff] %v7825
        %7882 = vst [vmem:[#allocation8 + $0x748] sm:$0xff] %v7826
        %7883 = vst [vmem:[#allocation8 + $0x750] sm:$0xff] %v7827
        %7884 = vst [vmem:[#allocation8 + $0x758] sm:$0xff] %v7828
        %7885 = vst [vmem:[#allocation8 + $0x760] sm:$0xff] %v7829
        %7886 = vst.msk [vmem:[#allocation8 + $0x768] sm:$0xff] %vm3537, %v7830
        %7887 = vst [vmem:[#allocation8 + $0x770] sm:$0xff] %v7831
        %7888 = vst [vmem:[#allocation8 + $0x778] sm:$0xff] %v7832
        %7889 = vst [vmem:[#allocation8 + $0x780] sm:$0xff] %v7833
        %7890 = vst [vmem:[#allocation8 + $0x788] sm:$0xff] %v7834
        %7891 = vst [vmem:[#allocation8 + $0x790] sm:$0xff] %v7835
        %7892 = vst [vmem:[#allocation8 + $0x798] sm:$0xff] %v7836
        %7893 = vst.msk [vmem:[#allocation8 + $0x7a0] sm:$0xff] %vm3537, %v7837
        %7894 = vst [vmem:[#allocation8 + $0x7a8] sm:$0xff] %v7838
        %7895 = vst [vmem:[#allocation8 + $0x7b0] sm:$0xff] %v7839
        %7896 = vst [vmem:[#allocation8 + $0x7b8] sm:$0xff] %v7840
        %7897 = vst [vmem:[#allocation8 + $0x7c0] sm:$0xff] %v7841
        %7898 = vst [vmem:[#allocation8 + $0x7c8] sm:$0xff] %v7842
        %7899 = vst [vmem:[#allocation8 + $0x7d0] sm:$0xff] %v7843
        %7900 = vst.msk [vmem:[#allocation8 + $0x7d8] sm:$0xff] %vm3537, %v7844
        %v7901 = vld [vmem:[#allocation4] sm:$0xff]
        %v7902 = vld [vmem:[#allocation4 + $0x8] sm:$0xff]
        %v7903 = vld [vmem:[#allocation4 + $0x10] sm:$0xff]
        %v7904 = vld [vmem:[#allocation4 + $0x18] sm:$0xff]
        %v7905 = vld [vmem:[#allocation4 + $0x20] sm:$0xff]
        %v7906 = vld [vmem:[#allocation4 + $0x28] sm:$0xff]
        %v7907 = vld [vmem:[#allocation4 + $0x30] sm:$0xff]
        %v7908 = vld [vmem:[#allocation4 + $0x38] sm:$0xff]
        %v7909 = vld [vmem:[#allocation4 + $0x40] sm:$0xff]
        %v7910 = vld [vmem:[#allocation4 + $0x48] sm:$0xff]
        %v7911 = vld [vmem:[#allocation4 + $0x50] sm:$0xff]
        %v7912 = vld [vmem:[#allocation4 + $0x58] sm:$0xff]
        %v7913 = vld [vmem:[#allocation4 + $0x60] sm:$0xff]
        %v7914 = vld [vmem:[#allocation4 + $0x68] sm:$0xff]
        %v7915 = vld [vmem:[#allocation4 + $0x70] sm:$0xff]
        %v7916 = vld [vmem:[#allocation4 + $0x78] sm:$0xff]
        %v7917 = vld [vmem:[#allocation4 + $0x80] sm:$0xff]
        %v7918 = vld [vmem:[#allocation4 + $0x88] sm:$0xff]
        %v7919 = vld [vmem:[#allocation4 + $0x90] sm:$0xff]
        %v7920 = vld [vmem:[#allocation4 + $0x98] sm:$0xff]
        %v7921 = vld [vmem:[#allocation4 + $0xa0] sm:$0xff]
        %v7922 = vld [vmem:[#allocation4 + $0xa8] sm:$0xff]
        %v7923 = vld [vmem:[#allocation4 + $0xb0] sm:$0xff]
        %v7924 = vld [vmem:[#allocation4 + $0xb8] sm:$0xff]
        %v7925 = vld [vmem:[#allocation4 + $0xc0] sm:$0xff]
        %v7926 = vld [vmem:[#allocation4 + $0xc8] sm:$0xff]
        %v7927 = vld [vmem:[#allocation4 + $0xd0] sm:$0xff]
        %v7928 = vld [vmem:[#allocation4 + $0xd8] sm:$0xff]
        %v7929 = vld [vmem:[#allocation4 + $0xe0] sm:$0xff]
        %v7930 = vld [vmem:[#allocation4 + $0xe8] sm:$0xff]
        %v7931 = vld [vmem:[#allocation4 + $0xf0] sm:$0xff]
        %v7932 = vld [vmem:[#allocation4 + $0xf8] sm:$0xff]
        %7965 = vrot.lane.b32.xlu0 %v7901, 65
        %v7966 = vpop.permute.xlu0 %7965
        %7967 = vrot.lane.b32.xlu0 %v7902, 65
        %v7968 = vpop.permute.xlu0 %7967
        %7969 = vrot.lane.b32.xlu0 %v7903, 65
        %v7970 = vpop.permute.xlu0 %7969
        %7971 = vrot.lane.b32.xlu0 %v7904, 65
        %v7972 = vpop.permute.xlu0 %7971
        %7973 = vrot.lane.b32.xlu0 %v7905, 65
        %v7974 = vpop.permute.xlu0 %7973
        %7975 = vrot.lane.b32.xlu0 %v7906, 65
        %v7976 = vpop.permute.xlu0 %7975
        %7977 = vrot.lane.b32.xlu0 %v7907, 65
        %v7978 = vpop.permute.xlu0 %7977
        %7979 = vrot.lane.b32.xlu0 %v7908, 65
        %v7980 = vpop.permute.xlu0 %7979
        %7981 = vrot.lane.b32.xlu0 %v7909, 65
        %v7982 = vpop.permute.xlu0 %7981
        %7983 = vrot.lane.b32.xlu0 %v7910, 65
        %v7984 = vpop.permute.xlu0 %7983
        %7985 = vrot.lane.b32.xlu0 %v7911, 65
        %v7986 = vpop.permute.xlu0 %7985
        %7987 = vrot.lane.b32.xlu0 %v7912, 65
        %v7988 = vpop.permute.xlu0 %7987
        %7989 = vrot.lane.b32.xlu0 %v7913, 65
        %v7990 = vpop.permute.xlu0 %7989
        %7991 = vrot.lane.b32.xlu0 %v7914, 65
        %v7992 = vpop.permute.xlu0 %7991
        %7993 = vrot.lane.b32.xlu0 %v7915, 65
        %v7994 = vpop.permute.xlu0 %7993
        %7995 = vrot.lane.b32.xlu0 %v7916, 65
        %v7996 = vpop.permute.xlu0 %7995
        %7997 = vrot.lane.b32.xlu0 %v7917, 65
        %v7998 = vpop.permute.xlu0 %7997
        %7999 = vrot.lane.b32.xlu0 %v7918, 65
        %v8000 = vpop.permute.xlu0 %7999
        %8001 = vrot.lane.b32.xlu0 %v7919, 65
        %v8002 = vpop.permute.xlu0 %8001
        %8003 = vrot.lane.b32.xlu0 %v7920, 65
        %v8004 = vpop.permute.xlu0 %8003
        %8005 = vrot.lane.b32.xlu0 %v7921, 65
        %v8006 = vpop.permute.xlu0 %8005
        %8007 = vrot.lane.b32.xlu0 %v7922, 65
        %v8008 = vpop.permute.xlu0 %8007
        %8009 = vrot.lane.b32.xlu0 %v7923, 65
        %v8010 = vpop.permute.xlu0 %8009
        %8011 = vrot.lane.b32.xlu0 %v7924, 65
        %v8012 = vpop.permute.xlu0 %8011
        %8013 = vrot.lane.b32.xlu0 %v7925, 65
        %v8014 = vpop.permute.xlu0 %8013
        %8015 = vrot.lane.b32.xlu0 %v7926, 65
        %v8016 = vpop.permute.xlu0 %8015
        %8017 = vrot.lane.b32.xlu0 %v7927, 65
        %v8018 = vpop.permute.xlu0 %8017
        %8019 = vrot.lane.b32.xlu0 %v7928, 65
        %v8020 = vpop.permute.xlu0 %8019
        %8021 = vrot.lane.b32.xlu0 %v7929, 65
        %v8022 = vpop.permute.xlu0 %8021
        %8023 = vrot.lane.b32.xlu0 %v7930, 65
        %v8024 = vpop.permute.xlu0 %8023
        %8025 = vrot.lane.b32.xlu0 %v7931, 65
        %v8026 = vpop.permute.xlu0 %8025
        %8027 = vrot.lane.b32.xlu0 %v7932, 65
        %v8028 = vpop.permute.xlu0 %8027
        %vm8029 = vcmask 531456
        %v8030 = vsel %vm8029, %v7966, %v7968
        %v8031 = vsel %vm8029, %v7968, %v7970
        %v8032 = vsel %vm8029, %v7970, %v7972
        %v8033 = vsel %vm8029, %v7972, %v7974
        %v8034 = vsel %vm8029, %v7974, %v7976
        %v8035 = vsel %vm8029, %v7976, %v7978
        %v8036 = vsel %vm8029, %v7978, %v7980
        %v8037 = vsel %vm8029, %v7982, %v7984
        %v8038 = vsel %vm8029, %v7984, %v7986
        %v8039 = vsel %vm8029, %v7986, %v7988
        %v8040 = vsel %vm8029, %v7988, %v7990
        %v8041 = vsel %vm8029, %v7990, %v7992
        %v8042 = vsel %vm8029, %v7992, %v7994
        %v8043 = vsel %vm8029, %v7994, %v7996
        %v8044 = vsel %vm8029, %v7998, %v8000
        %v8045 = vsel %vm8029, %v8000, %v8002
        %v8046 = vsel %vm8029, %v8002, %v8004
        %v8047 = vsel %vm8029, %v8004, %v8006
        %v8048 = vsel %vm8029, %v8006, %v8008
        %v8049 = vsel %vm8029, %v8008, %v8010
        %v8050 = vsel %vm8029, %v8010, %v8012
        %v8051 = vsel %vm8029, %v8014, %v8016
        %v8052 = vsel %vm8029, %v8016, %v8018
        %v8053 = vsel %vm8029, %v8018, %v8020
        %v8054 = vsel %vm8029, %v8020, %v8022
        %v8055 = vsel %vm8029, %v8022, %v8024
        %v8056 = vsel %vm8029, %v8024, %v8026
        %v8057 = vsel %vm8029, %v8026, %v8028
        %8086 = vst [vmem:[#allocation8 + $0x7e0] sm:$0xff] %v8030
        %8087 = vst [vmem:[#allocation8 + $0x7e8] sm:$0xff] %v8031
        %8088 = vst [vmem:[#allocation8 + $0x7f0] sm:$0xff] %v8032
        %8089 = vst [vmem:[#allocation8 + $0x7f8] sm:$0xff] %v8033
        %8090 = vst [vmem:[#allocation8 + $0x800] sm:$0xff] %v8034
        %8091 = vst [vmem:[#allocation8 + $0x808] sm:$0xff] %v8035
        %8092 = vst.msk [vmem:[#allocation8 + $0x810] sm:$0xff] %vm3537, %v8036
        %8093 = vst [vmem:[#allocation8 + $0x818] sm:$0xff] %v8037
        %8094 = vst [vmem:[#allocation8 + $0x820] sm:$0xff] %v8038
        %8095 = vst [vmem:[#allocation8 + $0x828] sm:$0xff] %v8039
        %8096 = vst [vmem:[#allocation8 + $0x830] sm:$0xff] %v8040
        %8097 = vst [vmem:[#allocation8 + $0x838] sm:$0xff] %v8041
        %8098 = vst [vmem:[#allocation8 + $0x840] sm:$0xff] %v8042
        %8099 = vst.msk [vmem:[#allocation8 + $0x848] sm:$0xff] %vm3537, %v8043
        %8100 = vst [vmem:[#allocation8 + $0x850] sm:$0xff] %v8044
        %8101 = vst [vmem:[#allocation8 + $0x858] sm:$0xff] %v8045
        %8102 = vst [vmem:[#allocation8 + $0x860] sm:$0xff] %v8046
        %8103 = vst [vmem:[#allocation8 + $0x868] sm:$0xff] %v8047
        %8104 = vst [vmem:[#allocation8 + $0x870] sm:$0xff] %v8048
        %8105 = vst [vmem:[#allocation8 + $0x878] sm:$0xff] %v8049
        %8106 = vst.msk [vmem:[#allocation8 + $0x880] sm:$0xff] %vm3537, %v8050
        %8107 = vst [vmem:[#allocation8 + $0x888] sm:$0xff] %v8051
        %8108 = vst [vmem:[#allocation8 + $0x890] sm:$0xff] %v8052
        %8109 = vst [vmem:[#allocation8 + $0x898] sm:$0xff] %v8053
        %8110 = vst [vmem:[#allocation8 + $0x8a0] sm:$0xff] %v8054
        %8111 = vst [vmem:[#allocation8 + $0x8a8] sm:$0xff] %v8055
        %8112 = vst [vmem:[#allocation8 + $0x8b0] sm:$0xff] %v8056
        %8113 = vst.msk [vmem:[#allocation8 + $0x8b8] sm:$0xff] %vm3537, %v8057
        %v8114 = vld [vmem:[#allocation4] sm:$0xff]
        %v8115 = vld [vmem:[#allocation4 + $0x8] sm:$0xff]
        %v8116 = vld [vmem:[#allocation4 + $0x10] sm:$0xff]
        %v8117 = vld [vmem:[#allocation4 + $0x18] sm:$0xff]
        %v8118 = vld [vmem:[#allocation4 + $0x20] sm:$0xff]
        %v8119 = vld [vmem:[#allocation4 + $0x28] sm:$0xff]
        %v8120 = vld [vmem:[#allocation4 + $0x30] sm:$0xff]
        %v8121 = vld [vmem:[#allocation4 + $0x38] sm:$0xff]
        %v8122 = vld [vmem:[#allocation4 + $0x40] sm:$0xff]
        %v8123 = vld [vmem:[#allocation4 + $0x48] sm:$0xff]
        %v8124 = vld [vmem:[#allocation4 + $0x50] sm:$0xff]
        %v8125 = vld [vmem:[#allocation4 + $0x58] sm:$0xff]
        %v8126 = vld [vmem:[#allocation4 + $0x60] sm:$0xff]
        %v8127 = vld [vmem:[#allocation4 + $0x68] sm:$0xff]
        %v8128 = vld [vmem:[#allocation4 + $0x70] sm:$0xff]
        %v8129 = vld [vmem:[#allocation4 + $0x78] sm:$0xff]
        %v8130 = vld [vmem:[#allocation4 + $0x80] sm:$0xff]
        %v8131 = vld [vmem:[#allocation4 + $0x88] sm:$0xff]
        %v8132 = vld [vmem:[#allocation4 + $0x90] sm:$0xff]
        %v8133 = vld [vmem:[#allocation4 + $0x98] sm:$0xff]
        %v8134 = vld [vmem:[#allocation4 + $0xa0] sm:$0xff]
        %v8135 = vld [vmem:[#allocation4 + $0xa8] sm:$0xff]
        %v8136 = vld [vmem:[#allocation4 + $0xb0] sm:$0xff]
        %v8137 = vld [vmem:[#allocation4 + $0xb8] sm:$0xff]
        %v8138 = vld [vmem:[#allocation4 + $0xc0] sm:$0xff]
        %v8139 = vld [vmem:[#allocation4 + $0xc8] sm:$0xff]
        %v8140 = vld [vmem:[#allocation4 + $0xd0] sm:$0xff]
        %v8141 = vld [vmem:[#allocation4 + $0xd8] sm:$0xff]
        %v8142 = vld [vmem:[#allocation4 + $0xe0] sm:$0xff]
        %v8143 = vld [vmem:[#allocation4 + $0xe8] sm:$0xff]
        %v8144 = vld [vmem:[#allocation4 + $0xf0] sm:$0xff]
        %v8145 = vld [vmem:[#allocation4 + $0xf8] sm:$0xff]
        %8178 = vrot.lane.b32.xlu0 %v8114, 64
        %v8179 = vpop.permute.xlu0 %8178
        %8180 = vrot.lane.b32.xlu0 %v8115, 64
        %v8181 = vpop.permute.xlu0 %8180
        %8182 = vrot.lane.b32.xlu0 %v8116, 64
        %v8183 = vpop.permute.xlu0 %8182
        %8184 = vrot.lane.b32.xlu0 %v8117, 64
        %v8185 = vpop.permute.xlu0 %8184
        %8186 = vrot.lane.b32.xlu0 %v8118, 64
        %v8187 = vpop.permute.xlu0 %8186
        %8188 = vrot.lane.b32.xlu0 %v8119, 64
        %v8189 = vpop.permute.xlu0 %8188
        %8190 = vrot.lane.b32.xlu0 %v8120, 64
        %v8191 = vpop.permute.xlu0 %8190
        %8192 = vrot.lane.b32.xlu0 %v8121, 64
        %v8193 = vpop.permute.xlu0 %8192
        %8194 = vrot.lane.b32.xlu0 %v8122, 64
        %v8195 = vpop.permute.xlu0 %8194
        %8196 = vrot.lane.b32.xlu0 %v8123, 64
        %v8197 = vpop.permute.xlu0 %8196
        %8198 = vrot.lane.b32.xlu0 %v8124, 64
        %v8199 = vpop.permute.xlu0 %8198
        %8200 = vrot.lane.b32.xlu0 %v8125, 64
        %v8201 = vpop.permute.xlu0 %8200
        %8202 = vrot.lane.b32.xlu0 %v8126, 64
        %v8203 = vpop.permute.xlu0 %8202
        %8204 = vrot.lane.b32.xlu0 %v8127, 64
        %v8205 = vpop.permute.xlu0 %8204
        %8206 = vrot.lane.b32.xlu0 %v8128, 64
        %v8207 = vpop.permute.xlu0 %8206
        %8208 = vrot.lane.b32.xlu0 %v8129, 64
        %v8209 = vpop.permute.xlu0 %8208
        %8210 = vrot.lane.b32.xlu0 %v8130, 64
        %v8211 = vpop.permute.xlu0 %8210
        %8212 = vrot.lane.b32.xlu0 %v8131, 64
        %v8213 = vpop.permute.xlu0 %8212
        %8214 = vrot.lane.b32.xlu0 %v8132, 64
        %v8215 = vpop.permute.xlu0 %8214
        %8216 = vrot.lane.b32.xlu0 %v8133, 64
        %v8217 = vpop.permute.xlu0 %8216
        %8218 = vrot.lane.b32.xlu0 %v8134, 64
        %v8219 = vpop.permute.xlu0 %8218
        %8220 = vrot.lane.b32.xlu0 %v8135, 64
        %v8221 = vpop.permute.xlu0 %8220
        %8222 = vrot.lane.b32.xlu0 %v8136, 64
        %v8223 = vpop.permute.xlu0 %8222
        %8224 = vrot.lane.b32.xlu0 %v8137, 64
        %v8225 = vpop.permute.xlu0 %8224
        %8226 = vrot.lane.b32.xlu0 %v8138, 64
        %v8227 = vpop.permute.xlu0 %8226
        %8228 = vrot.lane.b32.xlu0 %v8139, 64
        %v8229 = vpop.permute.xlu0 %8228
        %8230 = vrot.lane.b32.xlu0 %v8140, 64
        %v8231 = vpop.permute.xlu0 %8230
        %8232 = vrot.lane.b32.xlu0 %v8141, 64
        %v8233 = vpop.permute.xlu0 %8232
        %8234 = vrot.lane.b32.xlu0 %v8142, 64
        %v8235 = vpop.permute.xlu0 %8234
        %8236 = vrot.lane.b32.xlu0 %v8143, 64
        %v8237 = vpop.permute.xlu0 %8236
        %8238 = vrot.lane.b32.xlu0 %v8144, 64
        %v8239 = vpop.permute.xlu0 %8238
        %8240 = vrot.lane.b32.xlu0 %v8145, 64
        %v8241 = vpop.permute.xlu0 %8240
        %vm8242 = vcmask 523264
        %v8243 = vsel %vm8242, %v8179, %v8181
        %v8244 = vsel %vm8242, %v8181, %v8183
        %v8245 = vsel %vm8242, %v8183, %v8185
        %v8246 = vsel %vm8242, %v8185, %v8187
        %v8247 = vsel %vm8242, %v8187, %v8189
        %v8248 = vsel %vm8242, %v8189, %v8191
        %v8249 = vsel %vm8242, %v8191, %v8193
        %v8250 = vsel %vm8242, %v8195, %v8197
        %v8251 = vsel %vm8242, %v8197, %v8199
        %v8252 = vsel %vm8242, %v8199, %v8201
        %v8253 = vsel %vm8242, %v8201, %v8203
        %v8254 = vsel %vm8242, %v8203, %v8205
        %v8255 = vsel %vm8242, %v8205, %v8207
        %v8256 = vsel %vm8242, %v8207, %v8209
        %v8257 = vsel %vm8242, %v8211, %v8213
        %v8258 = vsel %vm8242, %v8213, %v8215
        %v8259 = vsel %vm8242, %v8215, %v8217
        %v8260 = vsel %vm8242, %v8217, %v8219
        %v8261 = vsel %vm8242, %v8219, %v8221
        %v8262 = vsel %vm8242, %v8221, %v8223
        %v8263 = vsel %vm8242, %v8223, %v8225
        %v8264 = vsel %vm8242, %v8227, %v8229
        %v8265 = vsel %vm8242, %v8229, %v8231
        %v8266 = vsel %vm8242, %v8231, %v8233
        %v8267 = vsel %vm8242, %v8233, %v8235
        %v8268 = vsel %vm8242, %v8235, %v8237
        %v8269 = vsel %vm8242, %v8237, %v8239
        %v8270 = vsel %vm8242, %v8239, %v8241
        %8299 = vst [vmem:[#allocation8 + $0x8c0] sm:$0xff] %v8243
        %8300 = vst [vmem:[#allocation8 + $0x8c8] sm:$0xff] %v8244
        %8301 = vst [vmem:[#allocation8 + $0x8d0] sm:$0xff] %v8245
        %8302 = vst [vmem:[#allocation8 + $0x8d8] sm:$0xff] %v8246
        %8303 = vst [vmem:[#allocation8 + $0x8e0] sm:$0xff] %v8247
        %8304 = vst [vmem:[#allocation8 + $0x8e8] sm:$0xff] %v8248
        %8305 = vst.msk [vmem:[#allocation8 + $0x8f0] sm:$0xff] %vm3537, %v8249
        %8306 = vst [vmem:[#allocation8 + $0x8f8] sm:$0xff] %v8250
        %8307 = vst [vmem:[#allocation8 + $0x900] sm:$0xff] %v8251
        %8308 = vst [vmem:[#allocation8 + $0x908] sm:$0xff] %v8252
        %8309 = vst [vmem:[#allocation8 + $0x910] sm:$0xff] %v8253
        %8310 = vst [vmem:[#allocation8 + $0x918] sm:$0xff] %v8254
        %8311 = vst [vmem:[#allocation8 + $0x920] sm:$0xff] %v8255
        %8312 = vst.msk [vmem:[#allocation8 + $0x928] sm:$0xff] %vm3537, %v8256
        %8313 = vst [vmem:[#allocation8 + $0x930] sm:$0xff] %v8257
        %8314 = vst [vmem:[#allocation8 + $0x938] sm:$0xff] %v8258
        %8315 = vst [vmem:[#allocation8 + $0x940] sm:$0xff] %v8259
        %8316 = vst [vmem:[#allocation8 + $0x948] sm:$0xff] %v8260
        %8317 = vst [vmem:[#allocation8 + $0x950] sm:$0xff] %v8261
        %8318 = vst [vmem:[#allocation8 + $0x958] sm:$0xff] %v8262
        %8319 = vst.msk [vmem:[#allocation8 + $0x960] sm:$0xff] %vm3537, %v8263
        %8320 = vst [vmem:[#allocation8 + $0x968] sm:$0xff] %v8264
        %8321 = vst [vmem:[#allocation8 + $0x970] sm:$0xff] %v8265
        %8322 = vst [vmem:[#allocation8 + $0x978] sm:$0xff] %v8266
        %8323 = vst [vmem:[#allocation8 + $0x980] sm:$0xff] %v8267
        %8324 = vst [vmem:[#allocation8 + $0x988] sm:$0xff] %v8268
        %8325 = vst [vmem:[#allocation8 + $0x990] sm:$0xff] %v8269
        %8326 = vst.msk [vmem:[#allocation8 + $0x998] sm:$0xff] %vm3537, %v8270
        %v8327 = vld [vmem:[#allocation4] sm:$0xff]
        %v8328 = vld [vmem:[#allocation4 + $0x8] sm:$0xff]
        %v8329 = vld [vmem:[#allocation4 + $0x10] sm:$0xff]
        %v8330 = vld [vmem:[#allocation4 + $0x18] sm:$0xff]
        %v8331 = vld [vmem:[#allocation4 + $0x20] sm:$0xff]
        %v8332 = vld [vmem:[#allocation4 + $0x28] sm:$0xff]
        %v8333 = vld [vmem:[#allocation4 + $0x30] sm:$0xff]
        %v8334 = vld [vmem:[#allocation4 + $0x38] sm:$0xff]
        %v8335 = vld [vmem:[#allocation4 + $0x40] sm:$0xff]
        %v8336 = vld [vmem:[#allocation4 + $0x48] sm:$0xff]
        %v8337 = vld [vmem:[#allocation4 + $0x50] sm:$0xff]
        %v8338 = vld [vmem:[#allocation4 + $0x58] sm:$0xff]
        %v8339 = vld [vmem:[#allocation4 + $0x60] sm:$0xff]
        %v8340 = vld [vmem:[#allocation4 + $0x68] sm:$0xff]
        %v8341 = vld [vmem:[#allocation4 + $0x70] sm:$0xff]
        %v8342 = vld [vmem:[#allocation4 + $0x78] sm:$0xff]
        %v8343 = vld [vmem:[#allocation4 + $0x80] sm:$0xff]
        %v8344 = vld [vmem:[#allocation4 + $0x88] sm:$0xff]
        %v8345 = vld [vmem:[#allocation4 + $0x90] sm:$0xff]
        %v8346 = vld [vmem:[#allocation4 + $0x98] sm:$0xff]
        %v8347 = vld [vmem:[#allocation4 + $0xa0] sm:$0xff]
        %v8348 = vld [vmem:[#allocation4 + $0xa8] sm:$0xff]
        %v8349 = vld [vmem:[#allocation4 + $0xb0] sm:$0xff]
        %v8350 = vld [vmem:[#allocation4 + $0xb8] sm:$0xff]
        %v8351 = vld [vmem:[#allocation4 + $0xc0] sm:$0xff]
        %v8352 = vld [vmem:[#allocation4 + $0xc8] sm:$0xff]
        %v8353 = vld [vmem:[#allocation4 + $0xd0] sm:$0xff]
        %v8354 = vld [vmem:[#allocation4 + $0xd8] sm:$0xff]
        %v8355 = vld [vmem:[#allocation4 + $0xe0] sm:$0xff]
        %v8356 = vld [vmem:[#allocation4 + $0xe8] sm:$0xff]
        %v8357 = vld [vmem:[#allocation4 + $0xf0] sm:$0xff]
        %v8358 = vld [vmem:[#allocation4 + $0xf8] sm:$0xff]
        %8391 = vrot.lane.b32.xlu0 %v8327, 63
        %v8392 = vpop.permute.xlu0 %8391
        %8393 = vrot.lane.b32.xlu0 %v8328, 63
        %v8394 = vpop.permute.xlu0 %8393
        %8395 = vrot.lane.b32.xlu0 %v8329, 63
        %v8396 = vpop.permute.xlu0 %8395
        %8397 = vrot.lane.b32.xlu0 %v8330, 63
        %v8398 = vpop.permute.xlu0 %8397
        %8399 = vrot.lane.b32.xlu0 %v8331, 63
        %v8400 = vpop.permute.xlu0 %8399
        %8401 = vrot.lane.b32.xlu0 %v8332, 63
        %v8402 = vpop.permute.xlu0 %8401
        %8403 = vrot.lane.b32.xlu0 %v8333, 63
        %v8404 = vpop.permute.xlu0 %8403
        %8405 = vrot.lane.b32.xlu0 %v8334, 63
        %v8406 = vpop.permute.xlu0 %8405
        %8407 = vrot.lane.b32.xlu0 %v8335, 63
        %v8408 = vpop.permute.xlu0 %8407
        %8409 = vrot.lane.b32.xlu0 %v8336, 63
        %v8410 = vpop.permute.xlu0 %8409
        %8411 = vrot.lane.b32.xlu0 %v8337, 63
        %v8412 = vpop.permute.xlu0 %8411
        %8413 = vrot.lane.b32.xlu0 %v8338, 63
        %v8414 = vpop.permute.xlu0 %8413
        %8415 = vrot.lane.b32.xlu0 %v8339, 63
        %v8416 = vpop.permute.xlu0 %8415
        %8417 = vrot.lane.b32.xlu0 %v8340, 63
        %v8418 = vpop.permute.xlu0 %8417
        %8419 = vrot.lane.b32.xlu0 %v8341, 63
        %v8420 = vpop.permute.xlu0 %8419
        %8421 = vrot.lane.b32.xlu0 %v8342, 63
        %v8422 = vpop.permute.xlu0 %8421
        %8423 = vrot.lane.b32.xlu0 %v8343, 63
        %v8424 = vpop.permute.xlu0 %8423
        %8425 = vrot.lane.b32.xlu0 %v8344, 63
        %v8426 = vpop.permute.xlu0 %8425
        %8427 = vrot.lane.b32.xlu0 %v8345, 63
        %v8428 = vpop.permute.xlu0 %8427
        %8429 = vrot.lane.b32.xlu0 %v8346, 63
        %v8430 = vpop.permute.xlu0 %8429
        %8431 = vrot.lane.b32.xlu0 %v8347, 63
        %v8432 = vpop.permute.xlu0 %8431
        %8433 = vrot.lane.b32.xlu0 %v8348, 63
        %v8434 = vpop.permute.xlu0 %8433
        %8435 = vrot.lane.b32.xlu0 %v8349, 63
        %v8436 = vpop.permute.xlu0 %8435
        %8437 = vrot.lane.b32.xlu0 %v8350, 63
        %v8438 = vpop.permute.xlu0 %8437
        %8439 = vrot.lane.b32.xlu0 %v8351, 63
        %v8440 = vpop.permute.xlu0 %8439
        %8441 = vrot.lane.b32.xlu0 %v8352, 63
        %v8442 = vpop.permute.xlu0 %8441
        %8443 = vrot.lane.b32.xlu0 %v8353, 63
        %v8444 = vpop.permute.xlu0 %8443
        %8445 = vrot.lane.b32.xlu0 %v8354, 63
        %v8446 = vpop.permute.xlu0 %8445
        %8447 = vrot.lane.b32.xlu0 %v8355, 63
        %v8448 = vpop.permute.xlu0 %8447
        %8449 = vrot.lane.b32.xlu0 %v8356, 63
        %v8450 = vpop.permute.xlu0 %8449
        %8451 = vrot.lane.b32.xlu0 %v8357, 63
        %v8452 = vpop.permute.xlu0 %8451
        %8453 = vrot.lane.b32.xlu0 %v8358, 63
        %v8454 = vpop.permute.xlu0 %8453
        %vm8455 = vcmask 515072
        %v8456 = vsel %vm8455, %v8392, %v8394
        %v8457 = vsel %vm8455, %v8394, %v8396
        %v8458 = vsel %vm8455, %v8396, %v8398
        %v8459 = vsel %vm8455, %v8398, %v8400
        %v8460 = vsel %vm8455, %v8400, %v8402
        %v8461 = vsel %vm8455, %v8402, %v8404
        %v8462 = vsel %vm8455, %v8404, %v8406
        %v8463 = vsel %vm8455, %v8408, %v8410
        %v8464 = vsel %vm8455, %v8410, %v8412
        %v8465 = vsel %vm8455, %v8412, %v8414
        %v8466 = vsel %vm8455, %v8414, %v8416
        %v8467 = vsel %vm8455, %v8416, %v8418
        %v8468 = vsel %vm8455, %v8418, %v8420
        %v8469 = vsel %vm8455, %v8420, %v8422
        %v8470 = vsel %vm8455, %v8424, %v8426
        %v8471 = vsel %vm8455, %v8426, %v8428
        %v8472 = vsel %vm8455, %v8428, %v8430
        %v8473 = vsel %vm8455, %v8430, %v8432
        %v8474 = vsel %vm8455, %v8432, %v8434
        %v8475 = vsel %vm8455, %v8434, %v8436
        %v8476 = vsel %vm8455, %v8436, %v8438
        %v8477 = vsel %vm8455, %v8440, %v8442
        %v8478 = vsel %vm8455, %v8442, %v8444
        %v8479 = vsel %vm8455, %v8444, %v8446
        %v8480 = vsel %vm8455, %v8446, %v8448
        %v8481 = vsel %vm8455, %v8448, %v8450
        %v8482 = vsel %vm8455, %v8450, %v8452
        %v8483 = vsel %vm8455, %v8452, %v8454
        %8512 = vst [vmem:[#allocation8 + $0x9a0] sm:$0xff] %v8456
        %8513 = vst [vmem:[#allocation8 + $0x9a8] sm:$0xff] %v8457
        %8514 = vst [vmem:[#allocation8 + $0x9b0] sm:$0xff] %v8458
        %8515 = vst [vmem:[#allocation8 + $0x9b8] sm:$0xff] %v8459
        %8516 = vst [vmem:[#allocation8 + $0x9c0] sm:$0xff] %v8460
        %8517 = vst [vmem:[#allocation8 + $0x9c8] sm:$0xff] %v8461
        %8518 = vst.msk [vmem:[#allocation8 + $0x9d0] sm:$0xff] %vm3537, %v8462
        %8519 = vst [vmem:[#allocation8 + $0x9d8] sm:$0xff] %v8463
        %8520 = vst [vmem:[#allocation8 + $0x9e0] sm:$0xff] %v8464
        %8521 = vst [vmem:[#allocation8 + $0x9e8] sm:$0xff] %v8465
        %8522 = vst [vmem:[#allocation8 + $0x9f0] sm:$0xff] %v8466
        %8523 = vst [vmem:[#allocation8 + $0x9f8] sm:$0xff] %v8467
        %8524 = vst [vmem:[#allocation8 + $0xa00] sm:$0xff] %v8468
        %8525 = vst.msk [vmem:[#allocation8 + $0xa08] sm:$0xff] %vm3537, %v8469
        %8526 = vst [vmem:[#allocation8 + $0xa10] sm:$0xff] %v8470
        %8527 = vst [vmem:[#allocation8 + $0xa18] sm:$0xff] %v8471
        %8528 = vst [vmem:[#allocation8 + $0xa20] sm:$0xff] %v8472
        %8529 = vst [vmem:[#allocation8 + $0xa28] sm:$0xff] %v8473
        %8530 = vst [vmem:[#allocation8 + $0xa30] sm:$0xff] %v8474
        %8531 = vst [vmem:[#allocation8 + $0xa38] sm:$0xff] %v8475
        %8532 = vst.msk [vmem:[#allocation8 + $0xa40] sm:$0xff] %vm3537, %v8476
        %8533 = vst [vmem:[#allocation8 + $0xa48] sm:$0xff] %v8477
        %8534 = vst [vmem:[#allocation8 + $0xa50] sm:$0xff] %v8478
        %8535 = vst [vmem:[#allocation8 + $0xa58] sm:$0xff] %v8479
        %8536 = vst [vmem:[#allocation8 + $0xa60] sm:$0xff] %v8480
        %8537 = vst [vmem:[#allocation8 + $0xa68] sm:$0xff] %v8481
        %8538 = vst [vmem:[#allocation8 + $0xa70] sm:$0xff] %v8482
        %8539 = vst.msk [vmem:[#allocation8 + $0xa78] sm:$0xff] %vm3537, %v8483
        %v8540 = vld [vmem:[#allocation4] sm:$0xff]
        %v8541 = vld [vmem:[#allocation4 + $0x8] sm:$0xff]
        %v8542 = vld [vmem:[#allocation4 + $0x10] sm:$0xff]
        %v8543 = vld [vmem:[#allocation4 + $0x18] sm:$0xff]
        %v8544 = vld [vmem:[#allocation4 + $0x20] sm:$0xff]
        %v8545 = vld [vmem:[#allocation4 + $0x28] sm:$0xff]
        %v8546 = vld [vmem:[#allocation4 + $0x30] sm:$0xff]
        %v8547 = vld [vmem:[#allocation4 + $0x38] sm:$0xff]
        %v8548 = vld [vmem:[#allocation4 + $0x40] sm:$0xff]
        %v8549 = vld [vmem:[#allocation4 + $0x48] sm:$0xff]
        %v8550 = vld [vmem:[#allocation4 + $0x50] sm:$0xff]
        %v8551 = vld [vmem:[#allocation4 + $0x58] sm:$0xff]
        %v8552 = vld [vmem:[#allocation4 + $0x60] sm:$0xff]
        %v8553 = vld [vmem:[#allocation4 + $0x68] sm:$0xff]
        %v8554 = vld [vmem:[#allocation4 + $0x70] sm:$0xff]
        %v8555 = vld [vmem:[#allocation4 + $0x78] sm:$0xff]
        %v8556 = vld [vmem:[#allocation4 + $0x80] sm:$0xff]
        %v8557 = vld [vmem:[#allocation4 + $0x88] sm:$0xff]
        %v8558 = vld [vmem:[#allocation4 + $0x90] sm:$0xff]
        %v8559 = vld [vmem:[#allocation4 + $0x98] sm:$0xff]
        %v8560 = vld [vmem:[#allocation4 + $0xa0] sm:$0xff]
        %v8561 = vld [vmem:[#allocation4 + $0xa8] sm:$0xff]
        %v8562 = vld [vmem:[#allocation4 + $0xb0] sm:$0xff]
        %v8563 = vld [vmem:[#allocation4 + $0xb8] sm:$0xff]
        %v8564 = vld [vmem:[#allocation4 + $0xc0] sm:$0xff]
        %v8565 = vld [vmem:[#allocation4 + $0xc8] sm:$0xff]
        %v8566 = vld [vmem:[#allocation4 + $0xd0] sm:$0xff]
        %v8567 = vld [vmem:[#allocation4 + $0xd8] sm:$0xff]
        %v8568 = vld [vmem:[#allocation4 + $0xe0] sm:$0xff]
        %v8569 = vld [vmem:[#allocation4 + $0xe8] sm:$0xff]
        %v8570 = vld [vmem:[#allocation4 + $0xf0] sm:$0xff]
        %v8571 = vld [vmem:[#allocation4 + $0xf8] sm:$0xff]
        %8604 = vrot.lane.b32.xlu0 %v8540, 35
        %v8605 = vpop.permute.xlu0 %8604
        %8606 = vrot.lane.b32.xlu0 %v8541, 35
        %v8607 = vpop.permute.xlu0 %8606
        %8608 = vrot.lane.b32.xlu0 %v8542, 35
        %v8609 = vpop.permute.xlu0 %8608
        %8610 = vrot.lane.b32.xlu0 %v8543, 35
        %v8611 = vpop.permute.xlu0 %8610
        %8612 = vrot.lane.b32.xlu0 %v8544, 35
        %v8613 = vpop.permute.xlu0 %8612
        %8614 = vrot.lane.b32.xlu0 %v8545, 35
        %v8615 = vpop.permute.xlu0 %8614
        %8616 = vrot.lane.b32.xlu0 %v8546, 35
        %v8617 = vpop.permute.xlu0 %8616
        %8618 = vrot.lane.b32.xlu0 %v8547, 35
        %v8619 = vpop.permute.xlu0 %8618
        %8620 = vrot.lane.b32.xlu0 %v8548, 35
        %v8621 = vpop.permute.xlu0 %8620
        %8622 = vrot.lane.b32.xlu0 %v8549, 35
        %v8623 = vpop.permute.xlu0 %8622
        %8624 = vrot.lane.b32.xlu0 %v8550, 35
        %v8625 = vpop.permute.xlu0 %8624
        %8626 = vrot.lane.b32.xlu0 %v8551, 35
        %v8627 = vpop.permute.xlu0 %8626
        %8628 = vrot.lane.b32.xlu0 %v8552, 35
        %v8629 = vpop.permute.xlu0 %8628
        %8630 = vrot.lane.b32.xlu0 %v8553, 35
        %v8631 = vpop.permute.xlu0 %8630
        %8632 = vrot.lane.b32.xlu0 %v8554, 35
        %v8633 = vpop.permute.xlu0 %8632
        %8634 = vrot.lane.b32.xlu0 %v8555, 35
        %v8635 = vpop.permute.xlu0 %8634
        %8636 = vrot.lane.b32.xlu0 %v8556, 35
        %v8637 = vpop.permute.xlu0 %8636
        %8638 = vrot.lane.b32.xlu0 %v8557, 35
        %v8639 = vpop.permute.xlu0 %8638
        %8640 = vrot.lane.b32.xlu0 %v8558, 35
        %v8641 = vpop.permute.xlu0 %8640
        %8642 = vrot.lane.b32.xlu0 %v8559, 35
        %v8643 = vpop.permute.xlu0 %8642
        %8644 = vrot.lane.b32.xlu0 %v8560, 35
        %v8645 = vpop.permute.xlu0 %8644
        %8646 = vrot.lane.b32.xlu0 %v8561, 35
        %v8647 = vpop.permute.xlu0 %8646
        %8648 = vrot.lane.b32.xlu0 %v8562, 35
        %v8649 = vpop.permute.xlu0 %8648
        %8650 = vrot.lane.b32.xlu0 %v8563, 35
        %v8651 = vpop.permute.xlu0 %8650
        %8652 = vrot.lane.b32.xlu0 %v8564, 35
        %v8653 = vpop.permute.xlu0 %8652
        %8654 = vrot.lane.b32.xlu0 %v8565, 35
        %v8655 = vpop.permute.xlu0 %8654
        %8656 = vrot.lane.b32.xlu0 %v8566, 35
        %v8657 = vpop.permute.xlu0 %8656
        %8658 = vrot.lane.b32.xlu0 %v8567, 35
        %v8659 = vpop.permute.xlu0 %8658
        %8660 = vrot.lane.b32.xlu0 %v8568, 35
        %v8661 = vpop.permute.xlu0 %8660
        %8662 = vrot.lane.b32.xlu0 %v8569, 35
        %v8663 = vpop.permute.xlu0 %8662
        %8664 = vrot.lane.b32.xlu0 %v8570, 35
        %v8665 = vpop.permute.xlu0 %8664
        %8666 = vrot.lane.b32.xlu0 %v8571, 35
        %v8667 = vpop.permute.xlu0 %8666
        %vm8668 = vcmask 285696
        %v8669 = vsel %vm8668, %v8605, %v8607
        %v8670 = vsel %vm8668, %v8607, %v8609
        %v8671 = vsel %vm8668, %v8609, %v8611
        %v8672 = vsel %vm8668, %v8611, %v8613
        %v8673 = vsel %vm8668, %v8613, %v8615
        %v8674 = vsel %vm8668, %v8615, %v8617
        %v8675 = vsel %vm8668, %v8617, %v8619
        %v8676 = vsel %vm8668, %v8621, %v8623
        %v8677 = vsel %vm8668, %v8623, %v8625
        %v8678 = vsel %vm8668, %v8625, %v8627
        %v8679 = vsel %vm8668, %v8627, %v8629
        %v8680 = vsel %vm8668, %v8629, %v8631
        %v8681 = vsel %vm8668, %v8631, %v8633
        %v8682 = vsel %vm8668, %v8633, %v8635
        %v8683 = vsel %vm8668, %v8637, %v8639
        %v8684 = vsel %vm8668, %v8639, %v8641
        %v8685 = vsel %vm8668, %v8641, %v8643
        %v8686 = vsel %vm8668, %v8643, %v8645
        %v8687 = vsel %vm8668, %v8645, %v8647
        %v8688 = vsel %vm8668, %v8647, %v8649
        %v8689 = vsel %vm8668, %v8649, %v8651
        %v8690 = vsel %vm8668, %v8653, %v8655
        %v8691 = vsel %vm8668, %v8655, %v8657
        %v8692 = vsel %vm8668, %v8657, %v8659
        %v8693 = vsel %vm8668, %v8659, %v8661
        %v8694 = vsel %vm8668, %v8661, %v8663
        %v8695 = vsel %vm8668, %v8663, %v8665
        %v8696 = vsel %vm8668, %v8665, %v8667
        %8725 = vst [vmem:[#allocation8 + $0xa80] sm:$0xff] %v8669
        %8726 = vst [vmem:[#allocation8 + $0xa88] sm:$0xff] %v8670
        %8727 = vst [vmem:[#allocation8 + $0xa90] sm:$0xff] %v8671
        %8728 = vst [vmem:[#allocation8 + $0xa98] sm:$0xff] %v8672
        %8729 = vst [vmem:[#allocation8 + $0xaa0] sm:$0xff] %v8673
        %8730 = vst [vmem:[#allocation8 + $0xaa8] sm:$0xff] %v8674
        %8731 = vst.msk [vmem:[#allocation8 + $0xab0] sm:$0xff] %vm3537, %v8675
        %8732 = vst [vmem:[#allocation8 + $0xab8] sm:$0xff] %v8676
        %8733 = vst [vmem:[#allocation8 + $0xac0] sm:$0xff] %v8677
        %8734 = vst [vmem:[#allocation8 + $0xac8] sm:$0xff] %v8678
        %8735 = vst [vmem:[#allocation8 + $0xad0] sm:$0xff] %v8679
        %8736 = vst [vmem:[#allocation8 + $0xad8] sm:$0xff] %v8680
        %8737 = vst [vmem:[#allocation8 + $0xae0] sm:$0xff] %v8681
        %8738 = vst.msk [vmem:[#allocation8 + $0xae8] sm:$0xff] %vm3537, %v8682
        %8739 = vst [vmem:[#allocation8 + $0xaf0] sm:$0xff] %v8683
        %8740 = vst [vmem:[#allocation8 + $0xaf8] sm:$0xff] %v8684
        %8741 = vst [vmem:[#allocation8 + $0xb00] sm:$0xff] %v8685
        %8742 = vst [vmem:[#allocation8 + $0xb08] sm:$0xff] %v8686
        %8743 = vst [vmem:[#allocation8 + $0xb10] sm:$0xff] %v8687
        %8744 = vst [vmem:[#allocation8 + $0xb18] sm:$0xff] %v8688
        %8745 = vst.msk [vmem:[#allocation8 + $0xb20] sm:$0xff] %vm3537, %v8689
        %8746 = vst [vmem:[#allocation8 + $0xb28] sm:$0xff] %v8690
        %8747 = vst [vmem:[#allocation8 + $0xb30] sm:$0xff] %v8691
        %8748 = vst [vmem:[#allocation8 + $0xb38] sm:$0xff] %v8692
        %8749 = vst [vmem:[#allocation8 + $0xb40] sm:$0xff] %v8693
        %8750 = vst [vmem:[#allocation8 + $0xb48] sm:$0xff] %v8694
        %8751 = vst [vmem:[#allocation8 + $0xb50] sm:$0xff] %v8695
        %8752 = vst.msk [vmem:[#allocation8 + $0xb58] sm:$0xff] %vm3537, %v8696
        %v8753 = vld [vmem:[#allocation4] sm:$0xff]
        %v8754 = vld [vmem:[#allocation4 + $0x8] sm:$0xff]
        %v8755 = vld [vmem:[#allocation4 + $0x10] sm:$0xff]
        %v8756 = vld [vmem:[#allocation4 + $0x18] sm:$0xff]
        %v8757 = vld [vmem:[#allocation4 + $0x20] sm:$0xff]
        %v8758 = vld [vmem:[#allocation4 + $0x28] sm:$0xff]
        %v8759 = vld [vmem:[#allocation4 + $0x30] sm:$0xff]
        %v8760 = vld [vmem:[#allocation4 + $0x38] sm:$0xff]
        %v8761 = vld [vmem:[#allocation4 + $0x40] sm:$0xff]
        %v8762 = vld [vmem:[#allocation4 + $0x48] sm:$0xff]
        %v8763 = vld [vmem:[#allocation4 + $0x50] sm:$0xff]
        %v8764 = vld [vmem:[#allocation4 + $0x58] sm:$0xff]
        %v8765 = vld [vmem:[#allocation4 + $0x60] sm:$0xff]
        %v8766 = vld [vmem:[#allocation4 + $0x68] sm:$0xff]
        %v8767 = vld [vmem:[#allocation4 + $0x70] sm:$0xff]
        %v8768 = vld [vmem:[#allocation4 + $0x78] sm:$0xff]
        %v8769 = vld [vmem:[#allocation4 + $0x80] sm:$0xff]
        %v8770 = vld [vmem:[#allocation4 + $0x88] sm:$0xff]
        %v8771 = vld [vmem:[#allocation4 + $0x90] sm:$0xff]
        %v8772 = vld [vmem:[#allocation4 + $0x98] sm:$0xff]
        %v8773 = vld [vmem:[#allocation4 + $0xa0] sm:$0xff]
        %v8774 = vld [vmem:[#allocation4 + $0xa8] sm:$0xff]
        %v8775 = vld [vmem:[#allocation4 + $0xb0] sm:$0xff]
        %v8776 = vld [vmem:[#allocation4 + $0xb8] sm:$0xff]
        %v8777 = vld [vmem:[#allocation4 + $0xc0] sm:$0xff]
        %v8778 = vld [vmem:[#allocation4 + $0xc8] sm:$0xff]
        %v8779 = vld [vmem:[#allocation4 + $0xd0] sm:$0xff]
        %v8780 = vld [vmem:[#allocation4 + $0xd8] sm:$0xff]
        %v8781 = vld [vmem:[#allocation4 + $0xe0] sm:$0xff]
        %v8782 = vld [vmem:[#allocation4 + $0xe8] sm:$0xff]
        %v8783 = vld [vmem:[#allocation4 + $0xf0] sm:$0xff]
        %v8784 = vld [vmem:[#allocation4 + $0xf8] sm:$0xff]
        %8817 = vrot.lane.b32.xlu0 %v8753, 34
        %v8818 = vpop.permute.xlu0 %8817
        %8819 = vrot.lane.b32.xlu0 %v8754, 34
        %v8820 = vpop.permute.xlu0 %8819
        %8821 = vrot.lane.b32.xlu0 %v8755, 34
        %v8822 = vpop.permute.xlu0 %8821
        %8823 = vrot.lane.b32.xlu0 %v8756, 34
        %v8824 = vpop.permute.xlu0 %8823
        %8825 = vrot.lane.b32.xlu0 %v8757, 34
        %v8826 = vpop.permute.xlu0 %8825
        %8827 = vrot.lane.b32.xlu0 %v8758, 34
        %v8828 = vpop.permute.xlu0 %8827
        %8829 = vrot.lane.b32.xlu0 %v8759, 34
        %v8830 = vpop.permute.xlu0 %8829
        %8831 = vrot.lane.b32.xlu0 %v8760, 34
        %v8832 = vpop.permute.xlu0 %8831
        %8833 = vrot.lane.b32.xlu0 %v8761, 34
        %v8834 = vpop.permute.xlu0 %8833
        %8835 = vrot.lane.b32.xlu0 %v8762, 34
        %v8836 = vpop.permute.xlu0 %8835
        %8837 = vrot.lane.b32.xlu0 %v8763, 34
        %v8838 = vpop.permute.xlu0 %8837
        %8839 = vrot.lane.b32.xlu0 %v8764, 34
        %v8840 = vpop.permute.xlu0 %8839
        %8841 = vrot.lane.b32.xlu0 %v8765, 34
        %v8842 = vpop.permute.xlu0 %8841
        %8843 = vrot.lane.b32.xlu0 %v8766, 34
        %v8844 = vpop.permute.xlu0 %8843
        %8845 = vrot.lane.b32.xlu0 %v8767, 34
        %v8846 = vpop.permute.xlu0 %8845
        %8847 = vrot.lane.b32.xlu0 %v8768, 34
        %v8848 = vpop.permute.xlu0 %8847
        %8849 = vrot.lane.b32.xlu0 %v8769, 34
        %v8850 = vpop.permute.xlu0 %8849
        %8851 = vrot.lane.b32.xlu0 %v8770, 34
        %v8852 = vpop.permute.xlu0 %8851
        %8853 = vrot.lane.b32.xlu0 %v8771, 34
        %v8854 = vpop.permute.xlu0 %8853
        %8855 = vrot.lane.b32.xlu0 %v8772, 34
        %v8856 = vpop.permute.xlu0 %8855
        %8857 = vrot.lane.b32.xlu0 %v8773, 34
        %v8858 = vpop.permute.xlu0 %8857
        %8859 = vrot.lane.b32.xlu0 %v8774, 34
        %v8860 = vpop.permute.xlu0 %8859
        %8861 = vrot.lane.b32.xlu0 %v8775, 34
        %v8862 = vpop.permute.xlu0 %8861
        %8863 = vrot.lane.b32.xlu0 %v8776, 34
        %v8864 = vpop.permute.xlu0 %8863
        %8865 = vrot.lane.b32.xlu0 %v8777, 34
        %v8866 = vpop.permute.xlu0 %8865
        %8867 = vrot.lane.b32.xlu0 %v8778, 34
        %v8868 = vpop.permute.xlu0 %8867
        %8869 = vrot.lane.b32.xlu0 %v8779, 34
        %v8870 = vpop.permute.xlu0 %8869
        %8871 = vrot.lane.b32.xlu0 %v8780, 34
        %v8872 = vpop.permute.xlu0 %8871
        %8873 = vrot.lane.b32.xlu0 %v8781, 34
        %v8874 = vpop.permute.xlu0 %8873
        %8875 = vrot.lane.b32.xlu0 %v8782, 34
        %v8876 = vpop.permute.xlu0 %8875
        %8877 = vrot.lane.b32.xlu0 %v8783, 34
        %v8878 = vpop.permute.xlu0 %8877
        %8879 = vrot.lane.b32.xlu0 %v8784, 34
        %v8880 = vpop.permute.xlu0 %8879
        %vm8881 = vcmask 277504
        %v8882 = vsel %vm8881, %v8818, %v8820
        %v8883 = vsel %vm8881, %v8820, %v8822
        %v8884 = vsel %vm8881, %v8822, %v8824
        %v8885 = vsel %vm8881, %v8824, %v8826
        %v8886 = vsel %vm8881, %v8826, %v8828
        %v8887 = vsel %vm8881, %v8828, %v8830
        %v8888 = vsel %vm8881, %v8830, %v8832
        %v8889 = vsel %vm8881, %v8834, %v8836
        %v8890 = vsel %vm8881, %v8836, %v8838
        %v8891 = vsel %vm8881, %v8838, %v8840
        %v8892 = vsel %vm8881, %v8840, %v8842
        %v8893 = vsel %vm8881, %v8842, %v8844
        %v8894 = vsel %vm8881, %v8844, %v8846
        %v8895 = vsel %vm8881, %v8846, %v8848
        %v8896 = vsel %vm8881, %v8850, %v8852
        %v8897 = vsel %vm8881, %v8852, %v8854
        %v8898 = vsel %vm8881, %v8854, %v8856
        %v8899 = vsel %vm8881, %v8856, %v8858
        %v8900 = vsel %vm8881, %v8858, %v8860
        %v8901 = vsel %vm8881, %v8860, %v8862
        %v8902 = vsel %vm8881, %v8862, %v8864
        %v8903 = vsel %vm8881, %v8866, %v8868
        %v8904 = vsel %vm8881, %v8868, %v8870
        %v8905 = vsel %vm8881, %v8870, %v8872
        %v8906 = vsel %vm8881, %v8872, %v8874
        %v8907 = vsel %vm8881, %v8874, %v8876
        %v8908 = vsel %vm8881, %v8876, %v8878
        %v8909 = vsel %vm8881, %v8878, %v8880
        %8938 = vst [vmem:[#allocation8 + $0xb60] sm:$0xff] %v8882
        %8939 = vst [vmem:[#allocation8 + $0xb68] sm:$0xff] %v8883
        %8940 = vst [vmem:[#allocation8 + $0xb70] sm:$0xff] %v8884
        %8941 = vst [vmem:[#allocation8 + $0xb78] sm:$0xff] %v8885
        %8942 = vst [vmem:[#allocation8 + $0xb80] sm:$0xff] %v8886
        %8943 = vst [vmem:[#allocation8 + $0xb88] sm:$0xff] %v8887
        %8944 = vst.msk [vmem:[#allocation8 + $0xb90] sm:$0xff] %vm3537, %v8888
        %8945 = vst [vmem:[#allocation8 + $0xb98] sm:$0xff] %v8889
        %8946 = vst [vmem:[#allocation8 + $0xba0] sm:$0xff] %v8890
        %8947 = vst [vmem:[#allocation8 + $0xba8] sm:$0xff] %v8891
        %8948 = vst [vmem:[#allocation8 + $0xbb0] sm:$0xff] %v8892
        %8949 = vst [vmem:[#allocation8 + $0xbb8] sm:$0xff] %v8893
        %8950 = vst [vmem:[#allocation8 + $0xbc0] sm:$0xff] %v8894
        %8951 = vst.msk [vmem:[#allocation8 + $0xbc8] sm:$0xff] %vm3537, %v8895
        %8952 = vst [vmem:[#allocation8 + $0xbd0] sm:$0xff] %v8896
        %8953 = vst [vmem:[#allocation8 + $0xbd8] sm:$0xff] %v8897
        %8954 = vst [vmem:[#allocation8 + $0xbe0] sm:$0xff] %v8898
        %8955 = vst [vmem:[#allocation8 + $0xbe8] sm:$0xff] %v8899
        %8956 = vst [vmem:[#allocation8 + $0xbf0] sm:$0xff] %v8900
        %8957 = vst [vmem:[#allocation8 + $0xbf8] sm:$0xff] %v8901
        %8958 = vst.msk [vmem:[#allocation8 + $0xc00] sm:$0xff] %vm3537, %v8902
        %8959 = vst [vmem:[#allocation8 + $0xc08] sm:$0xff] %v8903
        %8960 = vst [vmem:[#allocation8 + $0xc10] sm:$0xff] %v8904
        %8961 = vst [vmem:[#allocation8 + $0xc18] sm:$0xff] %v8905
        %8962 = vst [vmem:[#allocation8 + $0xc20] sm:$0xff] %v8906
        %8963 = vst [vmem:[#allocation8 + $0xc28] sm:$0xff] %v8907
        %8964 = vst [vmem:[#allocation8 + $0xc30] sm:$0xff] %v8908
        %8965 = vst.msk [vmem:[#allocation8 + $0xc38] sm:$0xff] %vm3537, %v8909
        %v8966 = vld [vmem:[#allocation4] sm:$0xff]
        %v8967 = vld [vmem:[#allocation4 + $0x8] sm:$0xff]
        %v8968 = vld [vmem:[#allocation4 + $0x10] sm:$0xff]
        %v8969 = vld [vmem:[#allocation4 + $0x18] sm:$0xff]
        %v8970 = vld [vmem:[#allocation4 + $0x20] sm:$0xff]
        %v8971 = vld [vmem:[#allocation4 + $0x28] sm:$0xff]
        %v8972 = vld [vmem:[#allocation4 + $0x30] sm:$0xff]
        %v8973 = vld [vmem:[#allocation4 + $0x38] sm:$0xff]
        %v8974 = vld [vmem:[#allocation4 + $0x40] sm:$0xff]
        %v8975 = vld [vmem:[#allocation4 + $0x48] sm:$0xff]
        %v8976 = vld [vmem:[#allocation4 + $0x50] sm:$0xff]
        %v8977 = vld [vmem:[#allocation4 + $0x58] sm:$0xff]
        %v8978 = vld [vmem:[#allocation4 + $0x60] sm:$0xff]
        %v8979 = vld [vmem:[#allocation4 + $0x68] sm:$0xff]
        %v8980 = vld [vmem:[#allocation4 + $0x70] sm:$0xff]
        %v8981 = vld [vmem:[#allocation4 + $0x78] sm:$0xff]
        %v8982 = vld [vmem:[#allocation4 + $0x80] sm:$0xff]
        %v8983 = vld [vmem:[#allocation4 + $0x88] sm:$0xff]
        %v8984 = vld [vmem:[#allocation4 + $0x90] sm:$0xff]
        %v8985 = vld [vmem:[#allocation4 + $0x98] sm:$0xff]
        %v8986 = vld [vmem:[#allocation4 + $0xa0] sm:$0xff]
        %v8987 = vld [vmem:[#allocation4 + $0xa8] sm:$0xff]
        %v8988 = vld [vmem:[#allocation4 + $0xb0] sm:$0xff]
        %v8989 = vld [vmem:[#allocation4 + $0xb8] sm:$0xff]
        %v8990 = vld [vmem:[#allocation4 + $0xc0] sm:$0xff]
        %v8991 = vld [vmem:[#allocation4 + $0xc8] sm:$0xff]
        %v8992 = vld [vmem:[#allocation4 + $0xd0] sm:$0xff]
        %v8993 = vld [vmem:[#allocation4 + $0xd8] sm:$0xff]
        %v8994 = vld [vmem:[#allocation4 + $0xe0] sm:$0xff]
        %v8995 = vld [vmem:[#allocation4 + $0xe8] sm:$0xff]
        %v8996 = vld [vmem:[#allocation4 + $0xf0] sm:$0xff]
        %v8997 = vld [vmem:[#allocation4 + $0xf8] sm:$0xff]
        %9030 = vrot.lane.b32.xlu0 %v8966, 33
        %v9031 = vpop.permute.xlu0 %9030
        %9032 = vrot.lane.b32.xlu0 %v8967, 33
        %v9033 = vpop.permute.xlu0 %9032
        %9034 = vrot.lane.b32.xlu0 %v8968, 33
        %v9035 = vpop.permute.xlu0 %9034
        %9036 = vrot.lane.b32.xlu0 %v8969, 33
        %v9037 = vpop.permute.xlu0 %9036
        %9038 = vrot.lane.b32.xlu0 %v8970, 33
        %v9039 = vpop.permute.xlu0 %9038
        %9040 = vrot.lane.b32.xlu0 %v8971, 33
        %v9041 = vpop.permute.xlu0 %9040
        %9042 = vrot.lane.b32.xlu0 %v8972, 33
        %v9043 = vpop.permute.xlu0 %9042
        %9044 = vrot.lane.b32.xlu0 %v8973, 33
        %v9045 = vpop.permute.xlu0 %9044
        %9046 = vrot.lane.b32.xlu0 %v8974, 33
        %v9047 = vpop.permute.xlu0 %9046
        %9048 = vrot.lane.b32.xlu0 %v8975, 33
        %v9049 = vpop.permute.xlu0 %9048
        %9050 = vrot.lane.b32.xlu0 %v8976, 33
        %v9051 = vpop.permute.xlu0 %9050
        %9052 = vrot.lane.b32.xlu0 %v8977, 33
        %v9053 = vpop.permute.xlu0 %9052
        %9054 = vrot.lane.b32.xlu0 %v8978, 33
        %v9055 = vpop.permute.xlu0 %9054
        %9056 = vrot.lane.b32.xlu0 %v8979, 33
        %v9057 = vpop.permute.xlu0 %9056
        %9058 = vrot.lane.b32.xlu0 %v8980, 33
        %v9059 = vpop.permute.xlu0 %9058
        %9060 = vrot.lane.b32.xlu0 %v8981, 33
        %v9061 = vpop.permute.xlu0 %9060
        %9062 = vrot.lane.b32.xlu0 %v8982, 33
        %v9063 = vpop.permute.xlu0 %9062
        %9064 = vrot.lane.b32.xlu0 %v8983, 33
        %v9065 = vpop.permute.xlu0 %9064
        %9066 = vrot.lane.b32.xlu0 %v8984, 33
        %v9067 = vpop.permute.xlu0 %9066
        %9068 = vrot.lane.b32.xlu0 %v8985, 33
        %v9069 = vpop.permute.xlu0 %9068
        %9070 = vrot.lane.b32.xlu0 %v8986, 33
        %v9071 = vpop.permute.xlu0 %9070
        %9072 = vrot.lane.b32.xlu0 %v8987, 33
        %v9073 = vpop.permute.xlu0 %9072
        %9074 = vrot.lane.b32.xlu0 %v8988, 33
        %v9075 = vpop.permute.xlu0 %9074
        %9076 = vrot.lane.b32.xlu0 %v8989, 33
        %v9077 = vpop.permute.xlu0 %9076
        %9078 = vrot.lane.b32.xlu0 %v8990, 33
        %v9079 = vpop.permute.xlu0 %9078
        %9080 = vrot.lane.b32.xlu0 %v8991, 33
        %v9081 = vpop.permute.xlu0 %9080
        %9082 = vrot.lane.b32.xlu0 %v8992, 33
        %v9083 = vpop.permute.xlu0 %9082
        %9084 = vrot.lane.b32.xlu0 %v8993, 33
        %v9085 = vpop.permute.xlu0 %9084
        %9086 = vrot.lane.b32.xlu0 %v8994, 33
        %v9087 = vpop.permute.xlu0 %9086
        %9088 = vrot.lane.b32.xlu0 %v8995, 33
        %v9089 = vpop.permute.xlu0 %9088
        %9090 = vrot.lane.b32.xlu0 %v8996, 33
        %v9091 = vpop.permute.xlu0 %9090
        %9092 = vrot.lane.b32.xlu0 %v8997, 33
        %v9093 = vpop.permute.xlu0 %9092
        %vm9094 = vcmask 269312
        %v9095 = vsel %vm9094, %v9031, %v9033
        %v9096 = vsel %vm9094, %v9033, %v9035
        %v9097 = vsel %vm9094, %v9035, %v9037
        %v9098 = vsel %vm9094, %v9037, %v9039
        %v9099 = vsel %vm9094, %v9039, %v9041
        %v9100 = vsel %vm9094, %v9041, %v9043
        %v9101 = vsel %vm9094, %v9043, %v9045
        %v9102 = vsel %vm9094, %v9047, %v9049
        %v9103 = vsel %vm9094, %v9049, %v9051
        %v9104 = vsel %vm9094, %v9051, %v9053
        %v9105 = vsel %vm9094, %v9053, %v9055
        %v9106 = vsel %vm9094, %v9055, %v9057
        %v9107 = vsel %vm9094, %v9057, %v9059
        %v9108 = vsel %vm9094, %v9059, %v9061
        %v9109 = vsel %vm9094, %v9063, %v9065
        %v9110 = vsel %vm9094, %v9065, %v9067
        %v9111 = vsel %vm9094, %v9067, %v9069
        %v9112 = vsel %vm9094, %v9069, %v9071
        %v9113 = vsel %vm9094, %v9071, %v9073
        %v9114 = vsel %vm9094, %v9073, %v9075
        %v9115 = vsel %vm9094, %v9075, %v9077
        %v9116 = vsel %vm9094, %v9079, %v9081
        %v9117 = vsel %vm9094, %v9081, %v9083
        %v9118 = vsel %vm9094, %v9083, %v9085
        %v9119 = vsel %vm9094, %v9085, %v9087
        %v9120 = vsel %vm9094, %v9087, %v9089
        %v9121 = vsel %vm9094, %v9089, %v9091
        %v9122 = vsel %vm9094, %v9091, %v9093
        %9151 = vst [vmem:[#allocation8 + $0xc40] sm:$0xff] %v9095
        %9152 = vst [vmem:[#allocation8 + $0xc48] sm:$0xff] %v9096
        %9153 = vst [vmem:[#allocation8 + $0xc50] sm:$0xff] %v9097
        %9154 = vst [vmem:[#allocation8 + $0xc58] sm:$0xff] %v9098
        %9155 = vst [vmem:[#allocation8 + $0xc60] sm:$0xff] %v9099
        %9156 = vst [vmem:[#allocation8 + $0xc68] sm:$0xff] %v9100
        %9157 = vst.msk [vmem:[#allocation8 + $0xc70] sm:$0xff] %vm3537, %v9101
        %9158 = vst [vmem:[#allocation8 + $0xc78] sm:$0xff] %v9102
        %9159 = vst [vmem:[#allocation8 + $0xc80] sm:$0xff] %v9103
        %9160 = vst [vmem:[#allocation8 + $0xc88] sm:$0xff] %v9104
        %9161 = vst [vmem:[#allocation8 + $0xc90] sm:$0xff] %v9105
        %9162 = vst [vmem:[#allocation8 + $0xc98] sm:$0xff] %v9106
        %9163 = vst [vmem:[#allocation8 + $0xca0] sm:$0xff] %v9107
        %9164 = vst.msk [vmem:[#allocation8 + $0xca8] sm:$0xff] %vm3537, %v9108
        %9165 = vst [vmem:[#allocation8 + $0xcb0] sm:$0xff] %v9109
        %9166 = vst [vmem:[#allocation8 + $0xcb8] sm:$0xff] %v9110
        %9167 = vst [vmem:[#allocation8 + $0xcc0] sm:$0xff] %v9111
        %9168 = vst [vmem:[#allocation8 + $0xcc8] sm:$0xff] %v9112
        %9169 = vst [vmem:[#allocation8 + $0xcd0] sm:$0xff] %v9113
        %9170 = vst [vmem:[#allocation8 + $0xcd8] sm:$0xff] %v9114
        %9171 = vst.msk [vmem:[#allocation8 + $0xce0] sm:$0xff] %vm3537, %v9115
        %9172 = vst [vmem:[#allocation8 + $0xce8] sm:$0xff] %v9116
        %9173 = vst [vmem:[#allocation8 + $0xcf0] sm:$0xff] %v9117
        %9174 = vst [vmem:[#allocation8 + $0xcf8] sm:$0xff] %v9118
        %9175 = vst [vmem:[#allocation8 + $0xd00] sm:$0xff] %v9119
        %9176 = vst [vmem:[#allocation8 + $0xd08] sm:$0xff] %v9120
        %9177 = vst [vmem:[#allocation8 + $0xd10] sm:$0xff] %v9121
        %9178 = vst.msk [vmem:[#allocation8 + $0xd18] sm:$0xff] %vm3537, %v9122
        %v9179 = vld [vmem:[#allocation4] sm:$0xff]
        %v9180 = vld [vmem:[#allocation4 + $0x8] sm:$0xff]
        %v9181 = vld [vmem:[#allocation4 + $0x10] sm:$0xff]
        %v9182 = vld [vmem:[#allocation4 + $0x18] sm:$0xff]
        %v9183 = vld [vmem:[#allocation4 + $0x20] sm:$0xff]
        %v9184 = vld [vmem:[#allocation4 + $0x28] sm:$0xff]
        %v9185 = vld [vmem:[#allocation4 + $0x30] sm:$0xff]
        %v9186 = vld [vmem:[#allocation4 + $0x38] sm:$0xff]
        %v9187 = vld [vmem:[#allocation4 + $0x40] sm:$0xff]
        %v9188 = vld [vmem:[#allocation4 + $0x48] sm:$0xff]
        %v9189 = vld [vmem:[#allocation4 + $0x50] sm:$0xff]
        %v9190 = vld [vmem:[#allocation4 + $0x58] sm:$0xff]
        %v9191 = vld [vmem:[#allocation4 + $0x60] sm:$0xff]
        %v9192 = vld [vmem:[#allocation4 + $0x68] sm:$0xff]
        %v9193 = vld [vmem:[#allocation4 + $0x70] sm:$0xff]
        %v9194 = vld [vmem:[#allocation4 + $0x78] sm:$0xff]
        %v9195 = vld [vmem:[#allocation4 + $0x80] sm:$0xff]
        %v9196 = vld [vmem:[#allocation4 + $0x88] sm:$0xff]
        %v9197 = vld [vmem:[#allocation4 + $0x90] sm:$0xff]
        %v9198 = vld [vmem:[#allocation4 + $0x98] sm:$0xff]
        %v9199 = vld [vmem:[#allocation4 + $0xa0] sm:$0xff]
        %v9200 = vld [vmem:[#allocation4 + $0xa8] sm:$0xff]
        %v9201 = vld [vmem:[#allocation4 + $0xb0] sm:$0xff]
        %v9202 = vld [vmem:[#allocation4 + $0xb8] sm:$0xff]
        %v9203 = vld [vmem:[#allocation4 + $0xc0] sm:$0xff]
        %v9204 = vld [vmem:[#allocation4 + $0xc8] sm:$0xff]
        %v9205 = vld [vmem:[#allocation4 + $0xd0] sm:$0xff]
        %v9206 = vld [vmem:[#allocation4 + $0xd8] sm:$0xff]
        %v9207 = vld [vmem:[#allocation4 + $0xe0] sm:$0xff]
        %v9208 = vld [vmem:[#allocation4 + $0xe8] sm:$0xff]
        %v9209 = vld [vmem:[#allocation4 + $0xf0] sm:$0xff]
        %v9210 = vld [vmem:[#allocation4 + $0xf8] sm:$0xff]
        %9243 = vrot.lane.b32.xlu0 %v9179, 32
        %v9244 = vpop.permute.xlu0 %9243
        %9245 = vrot.lane.b32.xlu0 %v9180, 32
        %v9246 = vpop.permute.xlu0 %9245
        %9247 = vrot.lane.b32.xlu0 %v9181, 32
        %v9248 = vpop.permute.xlu0 %9247
        %9249 = vrot.lane.b32.xlu0 %v9182, 32
        %v9250 = vpop.permute.xlu0 %9249
        %9251 = vrot.lane.b32.xlu0 %v9183, 32
        %v9252 = vpop.permute.xlu0 %9251
        %9253 = vrot.lane.b32.xlu0 %v9184, 32
        %v9254 = vpop.permute.xlu0 %9253
        %9255 = vrot.lane.b32.xlu0 %v9185, 32
        %v9256 = vpop.permute.xlu0 %9255
        %9257 = vrot.lane.b32.xlu0 %v9186, 32
        %v9258 = vpop.permute.xlu0 %9257
        %9259 = vrot.lane.b32.xlu0 %v9187, 32
        %v9260 = vpop.permute.xlu0 %9259
        %9261 = vrot.lane.b32.xlu0 %v9188, 32
        %v9262 = vpop.permute.xlu0 %9261
        %9263 = vrot.lane.b32.xlu0 %v9189, 32
        %v9264 = vpop.permute.xlu0 %9263
        %9265 = vrot.lane.b32.xlu0 %v9190, 32
        %v9266 = vpop.permute.xlu0 %9265
        %9267 = vrot.lane.b32.xlu0 %v9191, 32
        %v9268 = vpop.permute.xlu0 %9267
        %9269 = vrot.lane.b32.xlu0 %v9192, 32
        %v9270 = vpop.permute.xlu0 %9269
        %9271 = vrot.lane.b32.xlu0 %v9193, 32
        %v9272 = vpop.permute.xlu0 %9271
        %9273 = vrot.lane.b32.xlu0 %v9194, 32
        %v9274 = vpop.permute.xlu0 %9273
        %9275 = vrot.lane.b32.xlu0 %v9195, 32
        %v9276 = vpop.permute.xlu0 %9275
        %9277 = vrot.lane.b32.xlu0 %v9196, 32
        %v9278 = vpop.permute.xlu0 %9277
        %9279 = vrot.lane.b32.xlu0 %v9197, 32
        %v9280 = vpop.permute.xlu0 %9279
        %9281 = vrot.lane.b32.xlu0 %v9198, 32
        %v9282 = vpop.permute.xlu0 %9281
        %9283 = vrot.lane.b32.xlu0 %v9199, 32
        %v9284 = vpop.permute.xlu0 %9283
        %9285 = vrot.lane.b32.xlu0 %v9200, 32
        %v9286 = vpop.permute.xlu0 %9285
        %9287 = vrot.lane.b32.xlu0 %v9201, 32
        %v9288 = vpop.permute.xlu0 %9287
        %9289 = vrot.lane.b32.xlu0 %v9202, 32
        %v9290 = vpop.permute.xlu0 %9289
        %9291 = vrot.lane.b32.xlu0 %v9203, 32
        %v9292 = vpop.permute.xlu0 %9291
        %9293 = vrot.lane.b32.xlu0 %v9204, 32
        %v9294 = vpop.permute.xlu0 %9293
        %9295 = vrot.lane.b32.xlu0 %v9205, 32
        %v9296 = vpop.permute.xlu0 %9295
        %9297 = vrot.lane.b32.xlu0 %v9206, 32
        %v9298 = vpop.permute.xlu0 %9297
        %9299 = vrot.lane.b32.xlu0 %v9207, 32
        %v9300 = vpop.permute.xlu0 %9299
        %9301 = vrot.lane.b32.xlu0 %v9208, 32
        %v9302 = vpop.permute.xlu0 %9301
        %9303 = vrot.lane.b32.xlu0 %v9209, 32
        %v9304 = vpop.permute.xlu0 %9303
        %9305 = vrot.lane.b32.xlu0 %v9210, 32
        %v9306 = vpop.permute.xlu0 %9305
        %vm9307 = vcmask 261120
        %v9308 = vsel %vm9307, %v9244, %v9246
        %v9309 = vsel %vm9307, %v9246, %v9248
        %v9310 = vsel %vm9307, %v9248, %v9250
        %v9311 = vsel %vm9307, %v9250, %v9252
        %v9312 = vsel %vm9307, %v9252, %v9254
        %v9313 = vsel %vm9307, %v9254, %v9256
        %v9314 = vsel %vm9307, %v9256, %v9258
        %v9315 = vsel %vm9307, %v9260, %v9262
        %v9316 = vsel %vm9307, %v9262, %v9264
        %v9317 = vsel %vm9307, %v9264, %v9266
        %v9318 = vsel %vm9307, %v9266, %v9268
        %v9319 = vsel %vm9307, %v9268, %v9270
        %v9320 = vsel %vm9307, %v9270, %v9272
        %v9321 = vsel %vm9307, %v9272, %v9274
        %v9322 = vsel %vm9307, %v9276, %v9278
        %v9323 = vsel %vm9307, %v9278, %v9280
        %v9324 = vsel %vm9307, %v9280, %v9282
        %v9325 = vsel %vm9307, %v9282, %v9284
        %v9326 = vsel %vm9307, %v9284, %v9286
        %v9327 = vsel %vm9307, %v9286, %v9288
        %v9328 = vsel %vm9307, %v9288, %v9290
        %v9329 = vsel %vm9307, %v9292, %v9294
        %v9330 = vsel %vm9307, %v9294, %v9296
        %v9331 = vsel %vm9307, %v9296, %v9298
        %v9332 = vsel %vm9307, %v9298, %v9300
        %v9333 = vsel %vm9307, %v9300, %v9302
        %v9334 = vsel %vm9307, %v9302, %v9304
        %v9335 = vsel %vm9307, %v9304, %v9306
        %9364 = vst [vmem:[#allocation8 + $0xd20] sm:$0xff] %v9308
        %9365 = vst [vmem:[#allocation8 + $0xd28] sm:$0xff] %v9309
        %9366 = vst [vmem:[#allocation8 + $0xd30] sm:$0xff] %v9310
        %9367 = vst [vmem:[#allocation8 + $0xd38] sm:$0xff] %v9311
        %9368 = vst [vmem:[#allocation8 + $0xd40] sm:$0xff] %v9312
        %9369 = vst [vmem:[#allocation8 + $0xd48] sm:$0xff] %v9313
        %9370 = vst.msk [vmem:[#allocation8 + $0xd50] sm:$0xff] %vm3537, %v9314
        %9371 = vst [vmem:[#allocation8 + $0xd58] sm:$0xff] %v9315
        %9372 = vst [vmem:[#allocation8 + $0xd60] sm:$0xff] %v9316
        %9373 = vst [vmem:[#allocation8 + $0xd68] sm:$0xff] %v9317
        %9374 = vst [vmem:[#allocation8 + $0xd70] sm:$0xff] %v9318
        %9375 = vst [vmem:[#allocation8 + $0xd78] sm:$0xff] %v9319
        %9376 = vst [vmem:[#allocation8 + $0xd80] sm:$0xff] %v9320
        %9377 = vst.msk [vmem:[#allocation8 + $0xd88] sm:$0xff] %vm3537, %v9321
        %9378 = vst [vmem:[#allocation8 + $0xd90] sm:$0xff] %v9322
        %9379 = vst [vmem:[#allocation8 + $0xd98] sm:$0xff] %v9323
        %9380 = vst [vmem:[#allocation8 + $0xda0] sm:$0xff] %v9324
        %9381 = vst [vmem:[#allocation8 + $0xda8] sm:$0xff] %v9325
        %9382 = vst [vmem:[#allocation8 + $0xdb0] sm:$0xff] %v9326
        %9383 = vst [vmem:[#allocation8 + $0xdb8] sm:$0xff] %v9327
        %9384 = vst.msk [vmem:[#allocation8 + $0xdc0] sm:$0xff] %vm3537, %v9328
        %9385 = vst [vmem:[#allocation8 + $0xdc8] sm:$0xff] %v9329
        %9386 = vst [vmem:[#allocation8 + $0xdd0] sm:$0xff] %v9330
        %9387 = vst [vmem:[#allocation8 + $0xdd8] sm:$0xff] %v9331
        %9388 = vst [vmem:[#allocation8 + $0xde0] sm:$0xff] %v9332
        %9389 = vst [vmem:[#allocation8 + $0xde8] sm:$0xff] %v9333
        %9390 = vst [vmem:[#allocation8 + $0xdf0] sm:$0xff] %v9334
        %9391 = vst.msk [vmem:[#allocation8 + $0xdf8] sm:$0xff] %vm3537, %v9335
        %v9392 = vld [vmem:[%s10] sm:$0xff]
        %v9393 = vld [vmem:[#allocation8] sm:$0xff]
        %v9394 = vld [vmem:[#allocation8 + $0x8] sm:$0xff]
        %v9395 = vld [vmem:[#allocation8 + $0x10] sm:$0xff]
        %v9396 = vld [vmem:[#allocation8 + $0x18] sm:$0xff]
        %v9397 = vld [vmem:[#allocation8 + $0x20] sm:$0xff]
        %v9398 = vld [vmem:[#allocation8 + $0x28] sm:$0xff]
        %v9399 = vld [vmem:[#allocation8 + $0x30] sm:$0xff]
        %v9400 = vld [vmem:[#allocation8 + $0x38] sm:$0xff]
        %v9401 = vld [vmem:[#allocation8 + $0x40] sm:$0xff]
        %v9402 = vld [vmem:[#allocation8 + $0x48] sm:$0xff]
        %v9403 = vld [vmem:[#allocation8 + $0x50] sm:$0xff]
        %v9404 = vld [vmem:[#allocation8 + $0x58] sm:$0xff]
        %v9405 = vld [vmem:[#allocation8 + $0x60] sm:$0xff]
        %v9406 = vld [vmem:[#allocation8 + $0x68] sm:$0xff]
        %v9407 = vld [vmem:[#allocation8 + $0x70] sm:$0xff]
        %v9408 = vld [vmem:[#allocation8 + $0x78] sm:$0xff]
        %v9409 = vld [vmem:[#allocation8 + $0x80] sm:$0xff]
        %v9410 = vld [vmem:[#allocation8 + $0x88] sm:$0xff]
        %v9411 = vld [vmem:[#allocation8 + $0x90] sm:$0xff]
        %v9412 = vld [vmem:[#allocation8 + $0x98] sm:$0xff]
        %v9413 = vld [vmem:[#allocation8 + $0xa0] sm:$0xff]
        %v9414 = vld [vmem:[#allocation8 + $0xa8] sm:$0xff]
        %v9415 = vld [vmem:[#allocation8 + $0xb0] sm:$0xff]
        %v9416 = vld [vmem:[#allocation8 + $0xb8] sm:$0xff]
        %v9417 = vld [vmem:[#allocation8 + $0xc0] sm:$0xff]
        %v9418 = vld [vmem:[#allocation8 + $0xc8] sm:$0xff]
        %v9419 = vld [vmem:[#allocation8 + $0xd0] sm:$0xff]
        %v9420 = vld [vmem:[#allocation8 + $0xd8] sm:$0xff]
        %v9421 = vld [vmem:[#allocation8 + $0xe0] sm:$0xff]
        %v9422 = vld [vmem:[#allocation8 + $0xe8] sm:$0xff]
        %v9423 = vld [vmem:[#allocation8 + $0xf0] sm:$0xff]
        %v9424 = vld [vmem:[#allocation8 + $0xf8] sm:$0xff]
        %v9425 = vld [vmem:[#allocation8 + $0x100] sm:$0xff]
        %v9426 = vld [vmem:[#allocation8 + $0x108] sm:$0xff]
        %v9427 = vld [vmem:[#allocation8 + $0x110] sm:$0xff]
        %v9428 = vld [vmem:[#allocation8 + $0x118] sm:$0xff]
        %v9429 = vld [vmem:[#allocation8 + $0x120] sm:$0xff]
        %v9430 = vld [vmem:[#allocation8 + $0x128] sm:$0xff]
        %v9431 = vld [vmem:[#allocation8 + $0x130] sm:$0xff]
        %v9432 = vld [vmem:[#allocation8 + $0x138] sm:$0xff]
        %v9433 = vld [vmem:[#allocation8 + $0x140] sm:$0xff]
        %v9434 = vld [vmem:[#allocation8 + $0x148] sm:$0xff]
        %v9435 = vld [vmem:[#allocation8 + $0x150] sm:$0xff]
        %v9436 = vld [vmem:[#allocation8 + $0x158] sm:$0xff]
        %v9437 = vld [vmem:[#allocation8 + $0x160] sm:$0xff]
        %v9438 = vld [vmem:[#allocation8 + $0x168] sm:$0xff]
        %v9439 = vld [vmem:[#allocation8 + $0x170] sm:$0xff]
        %v9440 = vld [vmem:[#allocation8 + $0x178] sm:$0xff]
        %v9441 = vld [vmem:[#allocation8 + $0x180] sm:$0xff]
        %v9442 = vld [vmem:[#allocation8 + $0x188] sm:$0xff]
        %v9443 = vld [vmem:[#allocation8 + $0x190] sm:$0xff]
        %v9444 = vld [vmem:[#allocation8 + $0x198] sm:$0xff]
        %v9445 = vld [vmem:[#allocation8 + $0x1a0] sm:$0xff]
        %v9446 = vld [vmem:[#allocation8 + $0x1a8] sm:$0xff]
        %v9447 = vld [vmem:[#allocation8 + $0x1b0] sm:$0xff]
        %v9448 = vld [vmem:[#allocation8 + $0x1b8] sm:$0xff]
        %v9449 = vld [vmem:[#allocation8 + $0x1c0] sm:$0xff]
        %v9450 = vld [vmem:[#allocation8 + $0x1c8] sm:$0xff]
        %v9451 = vld [vmem:[#allocation8 + $0x1d0] sm:$0xff]
        %v9452 = vld [vmem:[#allocation8 + $0x1d8] sm:$0xff]
        %v9453 = vld [vmem:[#allocation8 + $0x1e0] sm:$0xff]
        %v9454 = vld [vmem:[#allocation8 + $0x1e8] sm:$0xff]
        %v9455 = vld [vmem:[#allocation8 + $0x1f0] sm:$0xff]
        %v9456 = vld [vmem:[#allocation8 + $0x1f8] sm:$0xff]
        %v9457 = vld [vmem:[#allocation8 + $0x200] sm:$0xff]
        %v9458 = vld [vmem:[#allocation8 + $0x208] sm:$0xff]
        %v9459 = vld [vmem:[#allocation8 + $0x210] sm:$0xff]
        %v9460 = vld [vmem:[#allocation8 + $0x218] sm:$0xff]
        %v9461 = vld [vmem:[#allocation8 + $0x220] sm:$0xff]
        %v9462 = vld [vmem:[#allocation8 + $0x228] sm:$0xff]
        %v9463 = vld [vmem:[#allocation8 + $0x230] sm:$0xff]
        %v9464 = vld [vmem:[#allocation8 + $0x238] sm:$0xff]
        %v9465 = vld [vmem:[#allocation8 + $0x240] sm:$0xff]
        %v9466 = vld [vmem:[#allocation8 + $0x248] sm:$0xff]
        %v9467 = vld [vmem:[#allocation8 + $0x250] sm:$0xff]
        %v9468 = vld [vmem:[#allocation8 + $0x258] sm:$0xff]
        %v9469 = vld [vmem:[#allocation8 + $0x260] sm:$0xff]
        %v9470 = vld [vmem:[#allocation8 + $0x268] sm:$0xff]
        %v9471 = vld [vmem:[#allocation8 + $0x270] sm:$0xff]
        %v9472 = vld [vmem:[#allocation8 + $0x278] sm:$0xff]
        %v9473 = vld [vmem:[#allocation8 + $0x280] sm:$0xff]
        %v9474 = vld [vmem:[#allocation8 + $0x288] sm:$0xff]
        %v9475 = vld [vmem:[#allocation8 + $0x290] sm:$0xff]
        %v9476 = vld [vmem:[#allocation8 + $0x298] sm:$0xff]
        %v9477 = vld [vmem:[#allocation8 + $0x2a0] sm:$0xff]
        %v9478 = vld [vmem:[#allocation8 + $0x2a8] sm:$0xff]
        %v9479 = vld [vmem:[#allocation8 + $0x2b0] sm:$0xff]
        %v9480 = vld [vmem:[#allocation8 + $0x2b8] sm:$0xff]
        %v9481 = vld [vmem:[#allocation8 + $0x2c0] sm:$0xff]
        %v9482 = vld [vmem:[#allocation8 + $0x2c8] sm:$0xff]
        %v9483 = vld [vmem:[#allocation8 + $0x2d0] sm:$0xff]
        %v9484 = vld [vmem:[#allocation8 + $0x2d8] sm:$0xff]
        %v9485 = vld [vmem:[#allocation8 + $0x2e0] sm:$0xff]
        %v9486 = vld [vmem:[#allocation8 + $0x2e8] sm:$0xff]
        %v9487 = vld [vmem:[#allocation8 + $0x2f0] sm:$0xff]
        %v9488 = vld [vmem:[#allocation8 + $0x2f8] sm:$0xff]
        %v9489 = vld [vmem:[#allocation8 + $0x300] sm:$0xff]
        %v9490 = vld [vmem:[#allocation8 + $0x308] sm:$0xff]
        %v9491 = vld [vmem:[#allocation8 + $0x310] sm:$0xff]
        %v9492 = vld [vmem:[#allocation8 + $0x318] sm:$0xff]
        %v9493 = vld [vmem:[#allocation8 + $0x320] sm:$0xff]
        %v9494 = vld [vmem:[#allocation8 + $0x328] sm:$0xff]
        %v9495 = vld [vmem:[#allocation8 + $0x330] sm:$0xff]
        %v9496 = vld [vmem:[#allocation8 + $0x338] sm:$0xff]
        %v9497 = vld [vmem:[#allocation8 + $0x340] sm:$0xff]
        %v9498 = vld [vmem:[#allocation8 + $0x348] sm:$0xff]
        %v9499 = vld [vmem:[#allocation8 + $0x350] sm:$0xff]
        %v9500 = vld [vmem:[#allocation8 + $0x358] sm:$0xff]
        %v9501 = vld [vmem:[#allocation8 + $0x360] sm:$0xff]
        %v9502 = vld [vmem:[#allocation8 + $0x368] sm:$0xff]
        %v9503 = vld [vmem:[#allocation8 + $0x370] sm:$0xff]
        %v9504 = vld [vmem:[#allocation8 + $0x378] sm:$0xff]
        %v9505 = vld [vmem:[#allocation8 + $0x380] sm:$0xff]
        %v9506 = vld [vmem:[#allocation8 + $0x388] sm:$0xff]
        %v9507 = vld [vmem:[#allocation8 + $0x390] sm:$0xff]
        %v9508 = vld [vmem:[#allocation8 + $0x398] sm:$0xff]
        %v9509 = vld [vmem:[#allocation8 + $0x3a0] sm:$0xff]
        %v9510 = vld [vmem:[#allocation8 + $0x3a8] sm:$0xff]
        %v9511 = vld [vmem:[#allocation8 + $0x3b0] sm:$0xff]
        %v9512 = vld [vmem:[#allocation8 + $0x3b8] sm:$0xff]
        %v9513 = vld [vmem:[#allocation8 + $0x3c0] sm:$0xff]
        %v9514 = vld [vmem:[#allocation8 + $0x3c8] sm:$0xff]
        %v9515 = vld [vmem:[#allocation8 + $0x3d0] sm:$0xff]
        %v9516 = vld [vmem:[#allocation8 + $0x3d8] sm:$0xff]
        %v9517 = vld [vmem:[#allocation8 + $0x3e0] sm:$0xff]
        %v9518 = vld [vmem:[#allocation8 + $0x3e8] sm:$0xff]
        %v9519 = vld [vmem:[#allocation8 + $0x3f0] sm:$0xff]
        %v9520 = vld [vmem:[#allocation8 + $0x3f8] sm:$0xff]
        %v9521 = vld [vmem:[#allocation8 + $0x400] sm:$0xff]
        %v9522 = vld [vmem:[#allocation8 + $0x408] sm:$0xff]
        %v9523 = vld [vmem:[#allocation8 + $0x410] sm:$0xff]
        %v9524 = vld [vmem:[#allocation8 + $0x418] sm:$0xff]
        %v9525 = vld [vmem:[#allocation8 + $0x420] sm:$0xff]
        %v9526 = vld [vmem:[#allocation8 + $0x428] sm:$0xff]
        %v9527 = vld [vmem:[#allocation8 + $0x430] sm:$0xff]
        %v9528 = vld [vmem:[#allocation8 + $0x438] sm:$0xff]
        %v9529 = vld [vmem:[#allocation8 + $0x440] sm:$0xff]
        %v9530 = vld [vmem:[#allocation8 + $0x448] sm:$0xff]
        %v9531 = vld [vmem:[#allocation8 + $0x450] sm:$0xff]
        %v9532 = vld [vmem:[#allocation8 + $0x458] sm:$0xff]
        %v9533 = vld [vmem:[#allocation8 + $0x460] sm:$0xff]
        %v9534 = vld [vmem:[#allocation8 + $0x468] sm:$0xff]
        %v9535 = vld [vmem:[#allocation8 + $0x470] sm:$0xff]
        %v9536 = vld [vmem:[#allocation8 + $0x478] sm:$0xff]
        %v9537 = vld [vmem:[#allocation8 + $0x480] sm:$0xff]
        %v9538 = vld [vmem:[#allocation8 + $0x488] sm:$0xff]
        %v9539 = vld [vmem:[#allocation8 + $0x490] sm:$0xff]
        %v9540 = vld [vmem:[#allocation8 + $0x498] sm:$0xff]
        %v9541 = vld [vmem:[#allocation8 + $0x4a0] sm:$0xff]
        %v9542 = vld [vmem:[#allocation8 + $0x4a8] sm:$0xff]
        %v9543 = vld [vmem:[#allocation8 + $0x4b0] sm:$0xff]
        %v9544 = vld [vmem:[#allocation8 + $0x4b8] sm:$0xff]
        %v9545 = vld [vmem:[#allocation8 + $0x4c0] sm:$0xff]
        %v9546 = vld [vmem:[#allocation8 + $0x4c8] sm:$0xff]
        %v9547 = vld [vmem:[#allocation8 + $0x4d0] sm:$0xff]
        %v9548 = vld [vmem:[#allocation8 + $0x4d8] sm:$0xff]
        %v9549 = vld [vmem:[#allocation8 + $0x4e0] sm:$0xff]
        %v9550 = vld [vmem:[#allocation8 + $0x4e8] sm:$0xff]
        %v9551 = vld [vmem:[#allocation8 + $0x4f0] sm:$0xff]
        %v9552 = vld [vmem:[#allocation8 + $0x4f8] sm:$0xff]
        %v9553 = vld [vmem:[#allocation8 + $0x500] sm:$0xff]
        %v9554 = vld [vmem:[#allocation8 + $0x508] sm:$0xff]
        %v9555 = vld [vmem:[#allocation8 + $0x510] sm:$0xff]
        %v9556 = vld [vmem:[#allocation8 + $0x518] sm:$0xff]
        %v9557 = vld [vmem:[#allocation8 + $0x520] sm:$0xff]
        %v9558 = vld [vmem:[#allocation8 + $0x528] sm:$0xff]
        %v9559 = vld [vmem:[#allocation8 + $0x530] sm:$0xff]
        %v9560 = vld [vmem:[#allocation8 + $0x538] sm:$0xff]
        %v9561 = vld [vmem:[#allocation8 + $0x540] sm:$0xff]
        %v9562 = vld [vmem:[#allocation8 + $0x548] sm:$0xff]
        %v9563 = vld [vmem:[#allocation8 + $0x550] sm:$0xff]
        %v9564 = vld [vmem:[#allocation8 + $0x558] sm:$0xff]
        %v9565 = vld [vmem:[#allocation8 + $0x560] sm:$0xff]
        %v9566 = vld [vmem:[#allocation8 + $0x568] sm:$0xff]
        %v9567 = vld [vmem:[#allocation8 + $0x570] sm:$0xff]
        %v9568 = vld [vmem:[#allocation8 + $0x578] sm:$0xff]
        %v9569 = vld [vmem:[#allocation8 + $0x580] sm:$0xff]
        %v9570 = vld [vmem:[#allocation8 + $0x588] sm:$0xff]
        %v9571 = vld [vmem:[#allocation8 + $0x590] sm:$0xff]
        %v9572 = vld [vmem:[#allocation8 + $0x598] sm:$0xff]
        %v9573 = vld [vmem:[#allocation8 + $0x5a0] sm:$0xff]
        %v9574 = vld [vmem:[#allocation8 + $0x5a8] sm:$0xff]
        %v9575 = vld [vmem:[#allocation8 + $0x5b0] sm:$0xff]
        %v9576 = vld [vmem:[#allocation8 + $0x5b8] sm:$0xff]
        %v9577 = vld [vmem:[#allocation8 + $0x5c0] sm:$0xff]
        %v9578 = vld [vmem:[#allocation8 + $0x5c8] sm:$0xff]
        %v9579 = vld [vmem:[#allocation8 + $0x5d0] sm:$0xff]
        %v9580 = vld [vmem:[#allocation8 + $0x5d8] sm:$0xff]
        %v9581 = vld [vmem:[#allocation8 + $0x5e0] sm:$0xff]
        %v9582 = vld [vmem:[#allocation8 + $0x5e8] sm:$0xff]
        %v9583 = vld [vmem:[#allocation8 + $0x5f0] sm:$0xff]
        %v9584 = vld [vmem:[#allocation8 + $0x5f8] sm:$0xff]
        %v9585 = vld [vmem:[#allocation8 + $0x600] sm:$0xff]
        %v9586 = vld [vmem:[#allocation8 + $0x608] sm:$0xff]
        %v9587 = vld [vmem:[#allocation8 + $0x610] sm:$0xff]
        %v9588 = vld [vmem:[#allocation8 + $0x618] sm:$0xff]
        %v9589 = vld [vmem:[#allocation8 + $0x620] sm:$0xff]
        %v9590 = vld [vmem:[#allocation8 + $0x628] sm:$0xff]
        %v9591 = vld [vmem:[#allocation8 + $0x630] sm:$0xff]
        %v9592 = vld [vmem:[#allocation8 + $0x638] sm:$0xff]
        %v9593 = vld [vmem:[#allocation8 + $0x640] sm:$0xff]
        %v9594 = vld [vmem:[#allocation8 + $0x648] sm:$0xff]
        %v9595 = vld [vmem:[#allocation8 + $0x650] sm:$0xff]
        %v9596 = vld [vmem:[#allocation8 + $0x658] sm:$0xff]
        %v9597 = vld [vmem:[#allocation8 + $0x660] sm:$0xff]
        %v9598 = vld [vmem:[#allocation8 + $0x668] sm:$0xff]
        %v9599 = vld [vmem:[#allocation8 + $0x670] sm:$0xff]
        %v9600 = vld [vmem:[#allocation8 + $0x678] sm:$0xff]
        %v9601 = vld [vmem:[#allocation8 + $0x680] sm:$0xff]
        %v9602 = vld [vmem:[#allocation8 + $0x688] sm:$0xff]
        %v9603 = vld [vmem:[#allocation8 + $0x690] sm:$0xff]
        %v9604 = vld [vmem:[#allocation8 + $0x698] sm:$0xff]
        %v9605 = vld [vmem:[#allocation8 + $0x6a0] sm:$0xff]
        %v9606 = vld [vmem:[#allocation8 + $0x6a8] sm:$0xff]
        %v9607 = vld [vmem:[#allocation8 + $0x6b0] sm:$0xff]
        %v9608 = vld [vmem:[#allocation8 + $0x6b8] sm:$0xff]
        %v9609 = vld [vmem:[#allocation8 + $0x6c0] sm:$0xff]
        %v9610 = vld [vmem:[#allocation8 + $0x6c8] sm:$0xff]
        %v9611 = vld [vmem:[#allocation8 + $0x6d0] sm:$0xff]
        %v9612 = vld [vmem:[#allocation8 + $0x6d8] sm:$0xff]
        %v9613 = vld [vmem:[#allocation8 + $0x6e0] sm:$0xff]
        %v9614 = vld [vmem:[#allocation8 + $0x6e8] sm:$0xff]
        %v9615 = vld [vmem:[#allocation8 + $0x6f0] sm:$0xff]
        %v9616 = vld [vmem:[#allocation8 + $0x6f8] sm:$0xff]
        %v9617 = vld [vmem:[#allocation8 + $0x700] sm:$0xff]
        %v9618 = vld [vmem:[#allocation8 + $0x708] sm:$0xff]
        %v9619 = vld [vmem:[#allocation8 + $0x710] sm:$0xff]
        %v9620 = vld [vmem:[#allocation8 + $0x718] sm:$0xff]
        %v9621 = vld [vmem:[#allocation8 + $0x720] sm:$0xff]
        %v9622 = vld [vmem:[#allocation8 + $0x728] sm:$0xff]
        %v9623 = vld [vmem:[#allocation8 + $0x730] sm:$0xff]
        %v9624 = vld [vmem:[#allocation8 + $0x738] sm:$0xff]
        %v9625 = vld [vmem:[#allocation8 + $0x740] sm:$0xff]
        %v9626 = vld [vmem:[#allocation8 + $0x748] sm:$0xff]
        %v9627 = vld [vmem:[#allocation8 + $0x750] sm:$0xff]
        %v9628 = vld [vmem:[#allocation8 + $0x758] sm:$0xff]
        %v9629 = vld [vmem:[#allocation8 + $0x760] sm:$0xff]
        %v9630 = vld [vmem:[#allocation8 + $0x768] sm:$0xff]
        %v9631 = vld [vmem:[#allocation8 + $0x770] sm:$0xff]
        %v9632 = vld [vmem:[#allocation8 + $0x778] sm:$0xff]
        %v9633 = vld [vmem:[#allocation8 + $0x780] sm:$0xff]
        %v9634 = vld [vmem:[#allocation8 + $0x788] sm:$0xff]
        %v9635 = vld [vmem:[#allocation8 + $0x790] sm:$0xff]
        %v9636 = vld [vmem:[#allocation8 + $0x798] sm:$0xff]
        %v9637 = vld [vmem:[#allocation8 + $0x7a0] sm:$0xff]
        %v9638 = vld [vmem:[#allocation8 + $0x7a8] sm:$0xff]
        %v9639 = vld [vmem:[#allocation8 + $0x7b0] sm:$0xff]
        %v9640 = vld [vmem:[#allocation8 + $0x7b8] sm:$0xff]
        %v9641 = vld [vmem:[#allocation8 + $0x7c0] sm:$0xff]
        %v9642 = vld [vmem:[#allocation8 + $0x7c8] sm:$0xff]
        %v9643 = vld [vmem:[#allocation8 + $0x7d0] sm:$0xff]
        %v9644 = vld [vmem:[#allocation8 + $0x7d8] sm:$0xff]
        %v9645 = vld [vmem:[#allocation8 + $0x7e0] sm:$0xff]
        %v9646 = vld [vmem:[#allocation8 + $0x7e8] sm:$0xff]
        %v9647 = vld [vmem:[#allocation8 + $0x7f0] sm:$0xff]
        %v9648 = vld [vmem:[#allocation8 + $0x7f8] sm:$0xff]
        %v9649 = vld [vmem:[#allocation8 + $0x800] sm:$0xff]
        %v9650 = vld [vmem:[#allocation8 + $0x808] sm:$0xff]
        %v9651 = vld [vmem:[#allocation8 + $0x810] sm:$0xff]
        %v9652 = vld [vmem:[#allocation8 + $0x818] sm:$0xff]
        %v9653 = vld [vmem:[#allocation8 + $0x820] sm:$0xff]
        %v9654 = vld [vmem:[#allocation8 + $0x828] sm:$0xff]
        %v9655 = vld [vmem:[#allocation8 + $0x830] sm:$0xff]
        %v9656 = vld [vmem:[#allocation8 + $0x838] sm:$0xff]
        %v9657 = vld [vmem:[#allocation8 + $0x840] sm:$0xff]
        %v9658 = vld [vmem:[#allocation8 + $0x848] sm:$0xff]
        %v9659 = vld [vmem:[#allocation8 + $0x850] sm:$0xff]
        %v9660 = vld [vmem:[#allocation8 + $0x858] sm:$0xff]
        %v9661 = vld [vmem:[#allocation8 + $0x860] sm:$0xff]
        %v9662 = vld [vmem:[#allocation8 + $0x868] sm:$0xff]
        %v9663 = vld [vmem:[#allocation8 + $0x870] sm:$0xff]
        %v9664 = vld [vmem:[#allocation8 + $0x878] sm:$0xff]
        %v9665 = vld [vmem:[#allocation8 + $0x880] sm:$0xff]
        %v9666 = vld [vmem:[#allocation8 + $0x888] sm:$0xff]
        %v9667 = vld [vmem:[#allocation8 + $0x890] sm:$0xff]
        %v9668 = vld [vmem:[#allocation8 + $0x898] sm:$0xff]
        %v9669 = vld [vmem:[#allocation8 + $0x8a0] sm:$0xff]
        %v9670 = vld [vmem:[#allocation8 + $0x8a8] sm:$0xff]
        %v9671 = vld [vmem:[#allocation8 + $0x8b0] sm:$0xff]
        %v9672 = vld [vmem:[#allocation8 + $0x8b8] sm:$0xff]
        %v9673 = vld [vmem:[#allocation8 + $0x8c0] sm:$0xff]
        %v9674 = vld [vmem:[#allocation8 + $0x8c8] sm:$0xff]
        %v9675 = vld [vmem:[#allocation8 + $0x8d0] sm:$0xff]
        %v9676 = vld [vmem:[#allocation8 + $0x8d8] sm:$0xff]
        %v9677 = vld [vmem:[#allocation8 + $0x8e0] sm:$0xff]
        %v9678 = vld [vmem:[#allocation8 + $0x8e8] sm:$0xff]
        %v9679 = vld [vmem:[#allocation8 + $0x8f0] sm:$0xff]
        %v9680 = vld [vmem:[#allocation8 + $0x8f8] sm:$0xff]
        %v9681 = vld [vmem:[#allocation8 + $0x900] sm:$0xff]
        %v9682 = vld [vmem:[#allocation8 + $0x908] sm:$0xff]
        %v9683 = vld [vmem:[#allocation8 + $0x910] sm:$0xff]
        %v9684 = vld [vmem:[#allocation8 + $0x918] sm:$0xff]
        %v9685 = vld [vmem:[#allocation8 + $0x920] sm:$0xff]
        %v9686 = vld [vmem:[#allocation8 + $0x928] sm:$0xff]
        %v9687 = vld [vmem:[#allocation8 + $0x930] sm:$0xff]
        %v9688 = vld [vmem:[#allocation8 + $0x938] sm:$0xff]
        %v9689 = vld [vmem:[#allocation8 + $0x940] sm:$0xff]
        %v9690 = vld [vmem:[#allocation8 + $0x948] sm:$0xff]
        %v9691 = vld [vmem:[#allocation8 + $0x950] sm:$0xff]
        %v9692 = vld [vmem:[#allocation8 + $0x958] sm:$0xff]
        %v9693 = vld [vmem:[#allocation8 + $0x960] sm:$0xff]
        %v9694 = vld [vmem:[#allocation8 + $0x968] sm:$0xff]
        %v9695 = vld [vmem:[#allocation8 + $0x970] sm:$0xff]
        %v9696 = vld [vmem:[#allocation8 + $0x978] sm:$0xff]
        %v9697 = vld [vmem:[#allocation8 + $0x980] sm:$0xff]
        %v9698 = vld [vmem:[#allocation8 + $0x988] sm:$0xff]
        %v9699 = vld [vmem:[#allocation8 + $0x990] sm:$0xff]
        %v9700 = vld [vmem:[#allocation8 + $0x998] sm:$0xff]
        %v9701 = vld [vmem:[#allocation8 + $0x9a0] sm:$0xff]
        %v9702 = vld [vmem:[#allocation8 + $0x9a8] sm:$0xff]
        %v9703 = vld [vmem:[#allocation8 + $0x9b0] sm:$0xff]
        %v9704 = vld [vmem:[#allocation8 + $0x9b8] sm:$0xff]
        %v9705 = vld [vmem:[#allocation8 + $0x9c0] sm:$0xff]
        %v9706 = vld [vmem:[#allocation8 + $0x9c8] sm:$0xff]
        %v9707 = vld [vmem:[#allocation8 + $0x9d0] sm:$0xff]
        %v9708 = vld [vmem:[#allocation8 + $0x9d8] sm:$0xff]
        %v9709 = vld [vmem:[#allocation8 + $0x9e0] sm:$0xff]
        %v9710 = vld [vmem:[#allocation8 + $0x9e8] sm:$0xff]
        %v9711 = vld [vmem:[#allocation8 + $0x9f0] sm:$0xff]
        %v9712 = vld [vmem:[#allocation8 + $0x9f8] sm:$0xff]
        %v9713 = vld [vmem:[#allocation8 + $0xa00] sm:$0xff]
        %v9714 = vld [vmem:[#allocation8 + $0xa08] sm:$0xff]
        %v9715 = vld [vmem:[#allocation8 + $0xa10] sm:$0xff]
        %v9716 = vld [vmem:[#allocation8 + $0xa18] sm:$0xff]
        %v9717 = vld [vmem:[#allocation8 + $0xa20] sm:$0xff]
        %v9718 = vld [vmem:[#allocation8 + $0xa28] sm:$0xff]
        %v9719 = vld [vmem:[#allocation8 + $0xa30] sm:$0xff]
        %v9720 = vld [vmem:[#allocation8 + $0xa38] sm:$0xff]
        %v9721 = vld [vmem:[#allocation8 + $0xa40] sm:$0xff]
        %v9722 = vld [vmem:[#allocation8 + $0xa48] sm:$0xff]
        %v9723 = vld [vmem:[#allocation8 + $0xa50] sm:$0xff]
        %v9724 = vld [vmem:[#allocation8 + $0xa58] sm:$0xff]
        %v9725 = vld [vmem:[#allocation8 + $0xa60] sm:$0xff]
        %v9726 = vld [vmem:[#allocation8 + $0xa68] sm:$0xff]
        %v9727 = vld [vmem:[#allocation8 + $0xa70] sm:$0xff]
        %v9728 = vld [vmem:[#allocation8 + $0xa78] sm:$0xff]
        %v9729 = vld [vmem:[#allocation8 + $0xa80] sm:$0xff]
        %v9730 = vld [vmem:[#allocation8 + $0xa88] sm:$0xff]
        %v9731 = vld [vmem:[#allocation8 + $0xa90] sm:$0xff]
        %v9732 = vld [vmem:[#allocation8 + $0xa98] sm:$0xff]
        %v9733 = vld [vmem:[#allocation8 + $0xaa0] sm:$0xff]
        %v9734 = vld [vmem:[#allocation8 + $0xaa8] sm:$0xff]
        %v9735 = vld [vmem:[#allocation8 + $0xab0] sm:$0xff]
        %v9736 = vld [vmem:[#allocation8 + $0xab8] sm:$0xff]
        %v9737 = vld [vmem:[#allocation8 + $0xac0] sm:$0xff]
        %v9738 = vld [vmem:[#allocation8 + $0xac8] sm:$0xff]
        %v9739 = vld [vmem:[#allocation8 + $0xad0] sm:$0xff]
        %v9740 = vld [vmem:[#allocation8 + $0xad8] sm:$0xff]
        %v9741 = vld [vmem:[#allocation8 + $0xae0] sm:$0xff]
        %v9742 = vld [vmem:[#allocation8 + $0xae8] sm:$0xff]
        %v9743 = vld [vmem:[#allocation8 + $0xaf0] sm:$0xff]
        %v9744 = vld [vmem:[#allocation8 + $0xaf8] sm:$0xff]
        %v9745 = vld [vmem:[#allocation8 + $0xb00] sm:$0xff]
        %v9746 = vld [vmem:[#allocation8 + $0xb08] sm:$0xff]
        %v9747 = vld [vmem:[#allocation8 + $0xb10] sm:$0xff]
        %v9748 = vld [vmem:[#allocation8 + $0xb18] sm:$0xff]
        %v9749 = vld [vmem:[#allocation8 + $0xb20] sm:$0xff]
        %v9750 = vld [vmem:[#allocation8 + $0xb28] sm:$0xff]
        %v9751 = vld [vmem:[#allocation8 + $0xb30] sm:$0xff]
        %v9752 = vld [vmem:[#allocation8 + $0xb38] sm:$0xff]
        %v9753 = vld [vmem:[#allocation8 + $0xb40] sm:$0xff]
        %v9754 = vld [vmem:[#allocation8 + $0xb48] sm:$0xff]
        %v9755 = vld [vmem:[#allocation8 + $0xb50] sm:$0xff]
        %v9756 = vld [vmem:[#allocation8 + $0xb58] sm:$0xff]
        %v9757 = vld [vmem:[#allocation8 + $0xb60] sm:$0xff]
        %v9758 = vld [vmem:[#allocation8 + $0xb68] sm:$0xff]
        %v9759 = vld [vmem:[#allocation8 + $0xb70] sm:$0xff]
        %v9760 = vld [vmem:[#allocation8 + $0xb78] sm:$0xff]
        %v9761 = vld [vmem:[#allocation8 + $0xb80] sm:$0xff]
        %v9762 = vld [vmem:[#allocation8 + $0xb88] sm:$0xff]
        %v9763 = vld [vmem:[#allocation8 + $0xb90] sm:$0xff]
        %v9764 = vld [vmem:[#allocation8 + $0xb98] sm:$0xff]
        %v9765 = vld [vmem:[#allocation8 + $0xba0] sm:$0xff]
        %v9766 = vld [vmem:[#allocation8 + $0xba8] sm:$0xff]
        %v9767 = vld [vmem:[#allocation8 + $0xbb0] sm:$0xff]
        %v9768 = vld [vmem:[#allocation8 + $0xbb8] sm:$0xff]
        %v9769 = vld [vmem:[#allocation8 + $0xbc0] sm:$0xff]
        %v9770 = vld [vmem:[#allocation8 + $0xbc8] sm:$0xff]
        %v9771 = vld [vmem:[#allocation8 + $0xbd0] sm:$0xff]
        %v9772 = vld [vmem:[#allocation8 + $0xbd8] sm:$0xff]
        %v9773 = vld [vmem:[#allocation8 + $0xbe0] sm:$0xff]
        %v9774 = vld [vmem:[#allocation8 + $0xbe8] sm:$0xff]
        %v9775 = vld [vmem:[#allocation8 + $0xbf0] sm:$0xff]
        %v9776 = vld [vmem:[#allocation8 + $0xbf8] sm:$0xff]
        %v9777 = vld [vmem:[#allocation8 + $0xc00] sm:$0xff]
        %v9778 = vld [vmem:[#allocation8 + $0xc08] sm:$0xff]
        %v9779 = vld [vmem:[#allocation8 + $0xc10] sm:$0xff]
        %v9780 = vld [vmem:[#allocation8 + $0xc18] sm:$0xff]
        %v9781 = vld [vmem:[#allocation8 + $0xc20] sm:$0xff]
        %v9782 = vld [vmem:[#allocation8 + $0xc28] sm:$0xff]
        %v9783 = vld [vmem:[#allocation8 + $0xc30] sm:$0xff]
        %v9784 = vld [vmem:[#allocation8 + $0xc38] sm:$0xff]
        %v9785 = vld [vmem:[#allocation8 + $0xc40] sm:$0xff]
        %v9786 = vld [vmem:[#allocation8 + $0xc48] sm:$0xff]
        %v9787 = vld [vmem:[#allocation8 + $0xc50] sm:$0xff]
        %v9788 = vld [vmem:[#allocation8 + $0xc58] sm:$0xff]
        %v9789 = vld [vmem:[#allocation8 + $0xc60] sm:$0xff]
        %v9790 = vld [vmem:[#allocation8 + $0xc68] sm:$0xff]
        %v9791 = vld [vmem:[#allocation8 + $0xc70] sm:$0xff]
        %v9792 = vld [vmem:[#allocation8 + $0xc78] sm:$0xff]
        %v9793 = vld [vmem:[#allocation8 + $0xc80] sm:$0xff]
        %v9794 = vld [vmem:[#allocation8 + $0xc88] sm:$0xff]
        %v9795 = vld [vmem:[#allocation8 + $0xc90] sm:$0xff]
        %v9796 = vld [vmem:[#allocation8 + $0xc98] sm:$0xff]
        %v9797 = vld [vmem:[#allocation8 + $0xca0] sm:$0xff]
        %v9798 = vld [vmem:[#allocation8 + $0xca8] sm:$0xff]
        %v9799 = vld [vmem:[#allocation8 + $0xcb0] sm:$0xff]
        %v9800 = vld [vmem:[#allocation8 + $0xcb8] sm:$0xff]
        %v9801 = vld [vmem:[#allocation8 + $0xcc0] sm:$0xff]
        %v9802 = vld [vmem:[#allocation8 + $0xcc8] sm:$0xff]
        %v9803 = vld [vmem:[#allocation8 + $0xcd0] sm:$0xff]
        %v9804 = vld [vmem:[#allocation8 + $0xcd8] sm:$0xff]
        %v9805 = vld [vmem:[#allocation8 + $0xce0] sm:$0xff]
        %v9806 = vld [vmem:[#allocation8 + $0xce8] sm:$0xff]
        %v9807 = vld [vmem:[#allocation8 + $0xcf0] sm:$0xff]
        %v9808 = vld [vmem:[#allocation8 + $0xcf8] sm:$0xff]
        %v9809 = vld [vmem:[#allocation8 + $0xd00] sm:$0xff]
        %v9810 = vld [vmem:[#allocation8 + $0xd08] sm:$0xff]
        %v9811 = vld [vmem:[#allocation8 + $0xd10] sm:$0xff]
        %v9812 = vld [vmem:[#allocation8 + $0xd18] sm:$0xff]
        %v9813 = vld [vmem:[#allocation8 + $0xd20] sm:$0xff]
        %v9814 = vld [vmem:[#allocation8 + $0xd28] sm:$0xff]
        %v9815 = vld [vmem:[#allocation8 + $0xd30] sm:$0xff]
        %v9816 = vld [vmem:[#allocation8 + $0xd38] sm:$0xff]
        %v9817 = vld [vmem:[#allocation8 + $0xd40] sm:$0xff]
        %v9818 = vld [vmem:[#allocation8 + $0xd48] sm:$0xff]
        %v9819 = vld [vmem:[#allocation8 + $0xd50] sm:$0xff]
        %v9820 = vld [vmem:[#allocation8 + $0xd58] sm:$0xff]
        %v9821 = vld [vmem:[#allocation8 + $0xd60] sm:$0xff]
        %v9822 = vld [vmem:[#allocation8 + $0xd68] sm:$0xff]
        %v9823 = vld [vmem:[#allocation8 + $0xd70] sm:$0xff]
        %v9824 = vld [vmem:[#allocation8 + $0xd78] sm:$0xff]
        %v9825 = vld [vmem:[#allocation8 + $0xd80] sm:$0xff]
        %v9826 = vld [vmem:[#allocation8 + $0xd88] sm:$0xff]
        %v9827 = vld [vmem:[#allocation8 + $0xd90] sm:$0xff]
        %v9828 = vld [vmem:[#allocation8 + $0xd98] sm:$0xff]
        %v9829 = vld [vmem:[#allocation8 + $0xda0] sm:$0xff]
        %v9830 = vld [vmem:[#allocation8 + $0xda8] sm:$0xff]
        %v9831 = vld [vmem:[#allocation8 + $0xdb0] sm:$0xff]
        %v9832 = vld [vmem:[#allocation8 + $0xdb8] sm:$0xff]
        %v9833 = vld [vmem:[#allocation8 + $0xdc0] sm:$0xff]
        %v9834 = vld [vmem:[#allocation8 + $0xdc8] sm:$0xff]
        %v9835 = vld [vmem:[#allocation8 + $0xdd0] sm:$0xff]
        %v9836 = vld [vmem:[#allocation8 + $0xdd8] sm:$0xff]
        %v9837 = vld [vmem:[#allocation8 + $0xde0] sm:$0xff]
        %v9838 = vld [vmem:[#allocation8 + $0xde8] sm:$0xff]
        %v9839 = vld [vmem:[#allocation8 + $0xdf0] sm:$0xff]
        %v9840 = vld [vmem:[#allocation8 + $0xdf8] sm:$0xff]
        %v9841 = vld [vmem:[#allocation9] sm:$0x1]
        %9843 = vset.pattern.permute.xlu0 0
        %9844 = vperm.xlu0 %9843, %v9841
        %v9845 = vpop.permute.xlu0 %9844
        %v9847 = vlaneseq
        %v9848 = vshrl.u32 %v9847, 7
        %v9849 = vsub.s32 0, %v9848
        %v9850 = vrot.slane %v9845, %v9849
        %v9852 = vcombine.high %v9392, %v9392
        %v9854 = vunpack.c.l.s4 1966171168
        %v9855 = vunpack.c.0.s8 %v9854
        %v9856 = vlaneseq
        %v9857 = vshrl.u32 %v9856, 7
        %v9858 = vsub.s32 %v9855, %v9857
        %v9859 = vrot.slane %v9392, %v9858
        %v9861 = vunpack.c.l.s4 1966171168
        %v9862 = vunpack.c.0.s8 %v9861
        %v9863 = vlaneseq
        %v9864 = vshrl.u32 %v9863, 7
        %v9865 = vsub.s32 %v9862, %v9864
        %v9866 = vrot.slane %v9852, %v9865
        %v9867 = vcombine.high %v9859, %v9859
        %v9868 = vcombine.high %v9866, %v9866
        %v9870 = vunpack.c.l.s4 1966171168
        %v9871 = vunpack.c.0.s8 %v9870
        %v9872 = vlaneseq
        %v9873 = vshrl.u32 %v9872, 7
        %v9874 = vsub.s32 %v9871, %v9873
        %v9875 = vrot.slane %v9859, %v9874
        %v9877 = vunpack.c.l.s4 1966171168
        %v9878 = vunpack.c.0.s8 %v9877
        %v9879 = vlaneseq
        %v9880 = vshrl.u32 %v9879, 7
        %v9881 = vsub.s32 %v9878, %v9880
        %v9882 = vrot.slane %v9866, %v9881
        %v9884 = vunpack.c.l.s4 1966171168
        %v9885 = vunpack.c.0.s8 %v9884
        %v9886 = vlaneseq
        %v9887 = vshrl.u32 %v9886, 7
        %v9888 = vsub.s32 %v9885, %v9887
        %v9889 = vrot.slane %v9867, %v9888
        %v9891 = vunpack.c.l.s4 1966171168
        %v9892 = vunpack.c.0.s8 %v9891
        %v9893 = vlaneseq
        %v9894 = vshrl.u32 %v9893, 7
        %v9895 = vsub.s32 %v9892, %v9894
        %v9896 = vrot.slane %v9868, %v9895
        %v9897 = vcombine.high %v9875, %v9875
        %v9898 = vcombine.high %v9882, %v9882
        %v9899 = vcombine.high %v9889, %v9889
        %v9900 = vcombine.high %v9896, %v9896
        %9909 = vmatprep.subr.bf16.mxu0 %v9394
        %9910 = vmatpush1.bf16.msra.mxu0 %v9393
        %9911 = vmatprep.subr.bf16.mxu0 %v9401
        %9912 = vmatpush1.bf16.msra.mxu0 %v9400
        %9913 = vmatprep.subr.bf16.mxu0 %v9408
        %9914 = vmatpush1.bf16.msra.mxu0 %v9407
        %9915 = vmatprep.subr.bf16.mxu0 %v9415
        %9916 = vmatpush1.bf16.msra.mxu0 %v9414
        %9917 = vmatprep.subr.bf16.mxu0 %v9422
        %9918 = vmatpush1.bf16.msra.mxu0 %v9421
        %9919 = vmatprep.subr.bf16.mxu0 %v9429
        %9920 = vmatpush1.bf16.msra.mxu0 %v9428
        %9921 = vmatprep.subr.bf16.mxu0 %v9436
        %9922 = vmatpush1.bf16.msra.mxu0 %v9435
        %9923 = vmatprep.subr.bf16.mxu0 %v9443
        %9924 = vmatpush1.bf16.msra.mxu0 %v9442
        %9925 = vmatprep.subr.bf16.mxu0 %v9450
        %9926 = vmatpush1.bf16.msra.mxu0 %v9449
        %9927 = vmatprep.subr.bf16.mxu0 %v9457
        %9928 = vmatpush1.bf16.msra.mxu0 %v9456
        %9929 = vmatprep.subr.bf16.mxu0 %v9464
        %9930 = vmatpush1.bf16.msra.mxu0 %v9463
        %9931 = vmatprep.subr.bf16.mxu0 %v9471
        %9932 = vmatpush1.bf16.msra.mxu0 %v9470
        %9933 = vmatprep.subr.bf16.mxu0 %v9478
        %9934 = vmatpush1.bf16.msra.mxu0 %v9477
        %9935 = vmatprep.subr.bf16.mxu0 %v9485
        %9936 = vmatpush1.bf16.msra.mxu0 %v9484
        %9937 = vmatprep.subr.bf16.mxu0 %v9492
        %9938 = vmatpush1.bf16.msra.mxu0 %v9491
        %9939 = vmatprep.subr.bf16.mxu0 %v9499
        %9940 = vmatpush1.bf16.msra.mxu0 %v9498
        %9941 = vmatprep.mubr.bf16.mxu0 %v9889
        %9942 = vmatmul.mubr.bf16.gmra.mrb[0].mxu0 %v9875
        %v9943 = vpop.f32.mrb[0].mxu0
        %v9944 = vadd.f32 %v9850, %v9943
        %v9945 = vpop.f32.mrb[0].mxu0
        %v9946 = vadd.f32 %v9850, %v9945
        %v9947 = vpop.f32.mrb[0].mxu0
        %v9948 = vpop.f32.mrb[0].mxu0
        %9949 = vdwg.mxu0
        %9950 = vmatprep.subr.bf16.mxu0 %v9506
        %9951 = vmatpush1.bf16.msra.mxu0 %v9505
        %9952 = vmatprep.subr.bf16.mxu0 %v9513
        %9953 = vmatpush1.bf16.msra.mxu0 %v9512
        %9954 = vmatprep.subr.bf16.mxu0 %v9520
        %9955 = vmatpush1.bf16.msra.mxu0 %v9519
        %9956 = vmatprep.subr.bf16.mxu0 %v9527
        %9957 = vmatpush1.bf16.msra.mxu0 %v9526
        %9958 = vmatprep.subr.bf16.mxu0 %v9534
        %9959 = vmatpush1.bf16.msra.mxu0 %v9533
        %9960 = vmatprep.subr.bf16.mxu0 %v9541
        %9961 = vmatpush1.bf16.msra.mxu0 %v9540
        %9962 = vmatprep.subr.bf16.mxu0 %v9548
        %9963 = vmatpush1.bf16.msra.mxu0 %v9547
        %9964 = vmatprep.subr.bf16.mxu0 %v9555
        %9965 = vmatpush1.bf16.msra.mxu0 %v9554
        %9966 = vmatprep.subr.bf16.mxu0 %v9562
        %9967 = vmatpush1.bf16.msra.mxu0 %v9561
        %9968 = vmatprep.subr.bf16.mxu0 %v9569
        %9969 = vmatpush1.bf16.msra.mxu0 %v9568
        %9970 = vmatprep.subr.bf16.mxu0 %v9576
        %9971 = vmatpush1.bf16.msra.mxu0 %v9575
        %9972 = vmatprep.subr.bf16.mxu0 %v9583
        %9973 = vmatpush1.bf16.msra.mxu0 %v9582
        %9974 = vmatprep.subr.bf16.mxu0 %v9590
        %9975 = vmatpush1.bf16.msra.mxu0 %v9589
        %9976 = vmatprep.subr.bf16.mxu0 %v9597
        %9977 = vmatpush1.bf16.msra.mxu0 %v9596
        %9978 = vmatprep.subr.bf16.mxu0 %v9604
        %9979 = vmatpush1.bf16.msra.mxu0 %v9603
        %9980 = vmatprep.subr.bf16.mxu0 %v9611
        %9981 = vmatpush1.bf16.msra.mxu0 %v9610
        %9982 = vmatprep.mubr.bf16.mxu0 %v9899
        %9983 = vmatmul.mubr.bf16.gmra.mrb[0].mxu0 %v9897
        %v9984 = vpop.f32.mrb[0].mxu0
        %v9985 = vadd.f32 %v9944, %v9984
        %v9986 = vpop.f32.mrb[0].mxu0
        %v9987 = vadd.f32 %v9946, %v9986
        %v9988 = vpop.f32.mrb[0].mxu0
        %v9989 = vpop.f32.mrb[0].mxu0
        %9990 = vdwg.mxu0
        %9991 = vmatprep.subr.bf16.mxu0 %v9618
        %9992 = vmatpush1.bf16.msra.mxu0 %v9617
        %9993 = vmatprep.subr.bf16.mxu0 %v9625
        %9994 = vmatpush1.bf16.msra.mxu0 %v9624
        %9995 = vmatprep.subr.bf16.mxu0 %v9632
        %9996 = vmatpush1.bf16.msra.mxu0 %v9631
        %9997 = vmatprep.subr.bf16.mxu0 %v9639
        %9998 = vmatpush1.bf16.msra.mxu0 %v9638
        %9999 = vmatprep.subr.bf16.mxu0 %v9646
        %10000 = vmatpush1.bf16.msra.mxu0 %v9645
        %10001 = vmatprep.subr.bf16.mxu0 %v9653
        %10002 = vmatpush1.bf16.msra.mxu0 %v9652
        %10003 = vmatprep.subr.bf16.mxu0 %v9660
        %10004 = vmatpush1.bf16.msra.mxu0 %v9659
        %10005 = vmatprep.subr.bf16.mxu0 %v9667
        %10006 = vmatpush1.bf16.msra.mxu0 %v9666
        %10007 = vmatprep.subr.bf16.mxu0 %v9674
        %10008 = vmatpush1.bf16.msra.mxu0 %v9673
        %10009 = vmatprep.subr.bf16.mxu0 %v9681
        %10010 = vmatpush1.bf16.msra.mxu0 %v9680
        %10011 = vmatprep.subr.bf16.mxu0 %v9688
        %10012 = vmatpush1.bf16.msra.mxu0 %v9687
        %10013 = vmatprep.subr.bf16.mxu0 %v9695
        %10014 = vmatpush1.bf16.msra.mxu0 %v9694
        %10015 = vmatprep.subr.bf16.mxu0 %v9702
        %10016 = vmatpush1.bf16.msra.mxu0 %v9701
        %10017 = vmatprep.subr.bf16.mxu0 %v9709
        %10018 = vmatpush1.bf16.msra.mxu0 %v9708
        %10019 = vmatprep.subr.bf16.mxu0 %v9716
        %10020 = vmatpush1.bf16.msra.mxu0 %v9715
        %10021 = vmatprep.subr.bf16.mxu0 %v9723
        %10022 = vmatpush1.bf16.msra.mxu0 %v9722
        %10023 = vmatprep.mubr.bf16.mxu0 %v9896
        %10024 = vmatmul.mubr.bf16.gmra.mrb[0].mxu0 %v9882
        %v10025 = vpop.f32.mrb[0].mxu0
        %v10026 = vadd.f32 %v9985, %v10025
        %v10027 = vpop.f32.mrb[0].mxu0
        %v10028 = vadd.f32 %v9987, %v10027
        %v10029 = vpop.f32.mrb[0].mxu0
        %v10030 = vpop.f32.mrb[0].mxu0
        %10031 = vdwg.mxu0
        %10032 = vmatprep.subr.bf16.mxu0 %v9730
        %10033 = vmatpush1.bf16.msra.mxu0 %v9729
        %10034 = vmatprep.subr.bf16.mxu0 %v9737
        %10035 = vmatpush1.bf16.msra.mxu0 %v9736
        %10036 = vmatprep.subr.bf16.mxu0 %v9744
        %10037 = vmatpush1.bf16.msra.mxu0 %v9743
        %10038 = vmatprep.subr.bf16.mxu0 %v9751
        %10039 = vmatpush1.bf16.msra.mxu0 %v9750
        %10040 = vmatprep.subr.bf16.mxu0 %v9758
        %10041 = vmatpush1.bf16.msra.mxu0 %v9757
        %10042 = vmatprep.subr.bf16.mxu0 %v9765
        %10043 = vmatpush1.bf16.msra.mxu0 %v9764
        %10044 = vmatprep.subr.bf16.mxu0 %v9772
        %10045 = vmatpush1.bf16.msra.mxu0 %v9771
        %10046 = vmatprep.subr.bf16.mxu0 %v9779
        %10047 = vmatpush1.bf16.msra.mxu0 %v9778
        %10048 = vmatprep.subr.bf16.mxu0 %v9786
        %10049 = vmatpush1.bf16.msra.mxu0 %v9785
        %10050 = vmatprep.subr.bf16.mxu0 %v9793
        %10051 = vmatpush1.bf16.msra.mxu0 %v9792
        %10052 = vmatprep.subr.bf16.mxu0 %v9800
        %10053 = vmatpush1.bf16.msra.mxu0 %v9799
        %10054 = vmatprep.subr.bf16.mxu0 %v9807
        %10055 = vmatpush1.bf16.msra.mxu0 %v9806
        %10056 = vmatprep.subr.bf16.mxu0 %v9814
        %10057 = vmatpush1.bf16.msra.mxu0 %v9813
        %10058 = vmatprep.subr.bf16.mxu0 %v9821
        %10059 = vmatpush1.bf16.msra.mxu0 %v9820
        %10060 = vmatprep.subr.bf16.mxu0 %v9828
        %10061 = vmatpush1.bf16.msra.mxu0 %v9827
        %10062 = vmatprep.subr.bf16.mxu0 %v9835
        %10063 = vmatpush1.bf16.msra.mxu0 %v9834
        %10064 = vmatprep.mubr.bf16.mxu0 %v9900
        %10065 = vmatmul.mubr.bf16.gmra.mrb[0].mxu0 %v9898
        %v10066 = vpop.f32.mrb[0].mxu0
        %v10067 = vadd.f32 %v10026, %v10066
        %v10068 = vpop.f32.mrb[0].mxu0
        %v10069 = vadd.f32 %v10028, %v10068
        %v10070 = vpop.f32.mrb[0].mxu0
        %v10071 = vpop.f32.mrb[0].mxu0
        %10072 = vdwg.mxu0
        %10073 = vmatprep.subr.bf16.mxu0 %v9396
        %10074 = vmatpush1.bf16.msra.mxu0 %v9395
        %10075 = vmatprep.subr.bf16.mxu0 %v9403
        %10076 = vmatpush1.bf16.msra.mxu0 %v9402
        %10077 = vmatprep.subr.bf16.mxu0 %v9410
        %10078 = vmatpush1.bf16.msra.mxu0 %v9409
        %10079 = vmatprep.subr.bf16.mxu0 %v9417
        %10080 = vmatpush1.bf16.msra.mxu0 %v9416
        %10081 = vmatprep.subr.bf16.mxu0 %v9424
        %10082 = vmatpush1.bf16.msra.mxu0 %v9423
        %10083 = vmatprep.subr.bf16.mxu0 %v9431
        %10084 = vmatpush1.bf16.msra.mxu0 %v9430
        %10085 = vmatprep.subr.bf16.mxu0 %v9438
        %10086 = vmatpush1.bf16.msra.mxu0 %v9437
        %10087 = vmatprep.subr.bf16.mxu0 %v9445
        %10088 = vmatpush1.bf16.msra.mxu0 %v9444
        %10089 = vmatprep.subr.bf16.mxu0 %v9452
        %10090 = vmatpush1.bf16.msra.mxu0 %v9451
        %10091 = vmatprep.subr.bf16.mxu0 %v9459
        %10092 = vmatpush1.bf16.msra.mxu0 %v9458
        %10093 = vmatprep.subr.bf16.mxu0 %v9466
        %10094 = vmatpush1.bf16.msra.mxu0 %v9465
        %10095 = vmatprep.subr.bf16.mxu0 %v9473
        %10096 = vmatpush1.bf16.msra.mxu0 %v9472
        %10097 = vmatprep.subr.bf16.mxu0 %v9480
        %10098 = vmatpush1.bf16.msra.mxu0 %v9479
        %10099 = vmatprep.subr.bf16.mxu0 %v9487
        %10100 = vmatpush1.bf16.msra.mxu0 %v9486
        %10101 = vmatprep.subr.bf16.mxu0 %v9494
        %10102 = vmatpush1.bf16.msra.mxu0 %v9493
        %10103 = vmatprep.subr.bf16.mxu0 %v9501
        %10104 = vmatpush1.bf16.msra.mxu0 %v9500
        %10105 = vmatprep.mubr.bf16.mxu0 %v9889
        %10106 = vmatmul.mubr.bf16.gmra.mrb[0].mxu0 %v9875
        %v10107 = vpop.f32.mrb[0].mxu0
        %v10108 = vadd.f32 %v9850, %v10107
        %v10109 = vpop.f32.mrb[0].mxu0
        %v10110 = vadd.f32 %v9850, %v10109
        %v10111 = vpop.f32.mrb[0].mxu0
        %v10112 = vpop.f32.mrb[0].mxu0
        %10113 = vdwg.mxu0
        %10114 = vmatprep.subr.bf16.mxu0 %v9508
        %10115 = vmatpush1.bf16.msra.mxu0 %v9507
        %10116 = vmatprep.subr.bf16.mxu0 %v9515
        %10117 = vmatpush1.bf16.msra.mxu0 %v9514
        %10118 = vmatprep.subr.bf16.mxu0 %v9522
        %10119 = vmatpush1.bf16.msra.mxu0 %v9521
        %10120 = vmatprep.subr.bf16.mxu0 %v9529
        %10121 = vmatpush1.bf16.msra.mxu0 %v9528
        %10122 = vmatprep.subr.bf16.mxu0 %v9536
        %10123 = vmatpush1.bf16.msra.mxu0 %v9535
        %10124 = vmatprep.subr.bf16.mxu0 %v9543
        %10125 = vmatpush1.bf16.msra.mxu0 %v9542
        %10126 = vmatprep.subr.bf16.mxu0 %v9550
        %10127 = vmatpush1.bf16.msra.mxu0 %v9549
        %10128 = vmatprep.subr.bf16.mxu0 %v9557
        %10129 = vmatpush1.bf16.msra.mxu0 %v9556
        %10130 = vmatprep.subr.bf16.mxu0 %v9564
        %10131 = vmatpush1.bf16.msra.mxu0 %v9563
        %10132 = vmatprep.subr.bf16.mxu0 %v9571
        %10133 = vmatpush1.bf16.msra.mxu0 %v9570
        %10134 = vmatprep.subr.bf16.mxu0 %v9578
        %10135 = vmatpush1.bf16.msra.mxu0 %v9577
        %10136 = vmatprep.subr.bf16.mxu0 %v9585
        %10137 = vmatpush1.bf16.msra.mxu0 %v9584
        %10138 = vmatprep.subr.bf16.mxu0 %v9592
        %10139 = vmatpush1.bf16.msra.mxu0 %v9591
        %10140 = vmatprep.subr.bf16.mxu0 %v9599
        %10141 = vmatpush1.bf16.msra.mxu0 %v9598
        %10142 = vmatprep.subr.bf16.mxu0 %v9606
        %10143 = vmatpush1.bf16.msra.mxu0 %v9605
        %10144 = vmatprep.subr.bf16.mxu0 %v9613
        %10145 = vmatpush1.bf16.msra.mxu0 %v9612
        %10146 = vmatprep.mubr.bf16.mxu0 %v9899
        %10147 = vmatmul.mubr.bf16.gmra.mrb[0].mxu0 %v9897
        %v10148 = vpop.f32.mrb[0].mxu0
        %v10149 = vadd.f32 %v10108, %v10148
        %v10150 = vpop.f32.mrb[0].mxu0
        %v10151 = vadd.f32 %v10110, %v10150
        %v10152 = vpop.f32.mrb[0].mxu0
        %v10153 = vpop.f32.mrb[0].mxu0
        %10154 = vdwg.mxu0
        %10155 = vmatprep.subr.bf16.mxu0 %v9620
        %10156 = vmatpush1.bf16.msra.mxu0 %v9619
        %10157 = vmatprep.subr.bf16.mxu0 %v9627
        %10158 = vmatpush1.bf16.msra.mxu0 %v9626
        %10159 = vmatprep.subr.bf16.mxu0 %v9634
        %10160 = vmatpush1.bf16.msra.mxu0 %v9633
        %10161 = vmatprep.subr.bf16.mxu0 %v9641
        %10162 = vmatpush1.bf16.msra.mxu0 %v9640
        %10163 = vmatprep.subr.bf16.mxu0 %v9648
        %10164 = vmatpush1.bf16.msra.mxu0 %v9647
        %10165 = vmatprep.subr.bf16.mxu0 %v9655
        %10166 = vmatpush1.bf16.msra.mxu0 %v9654
        %10167 = vmatprep.subr.bf16.mxu0 %v9662
        %10168 = vmatpush1.bf16.msra.mxu0 %v9661
        %10169 = vmatprep.subr.bf16.mxu0 %v9669
        %10170 = vmatpush1.bf16.msra.mxu0 %v9668
        %10171 = vmatprep.subr.bf16.mxu0 %v9676
        %10172 = vmatpush1.bf16.msra.mxu0 %v9675
        %10173 = vmatprep.subr.bf16.mxu0 %v9683
        %10174 = vmatpush1.bf16.msra.mxu0 %v9682
        %10175 = vmatprep.subr.bf16.mxu0 %v9690
        %10176 = vmatpush1.bf16.msra.mxu0 %v9689
        %10177 = vmatprep.subr.bf16.mxu0 %v9697
        %10178 = vmatpush1.bf16.msra.mxu0 %v9696
        %10179 = vmatprep.subr.bf16.mxu0 %v9704
        %10180 = vmatpush1.bf16.msra.mxu0 %v9703
        %10181 = vmatprep.subr.bf16.mxu0 %v9711
        %10182 = vmatpush1.bf16.msra.mxu0 %v9710
        %10183 = vmatprep.subr.bf16.mxu0 %v9718
        %10184 = vmatpush1.bf16.msra.mxu0 %v9717
        %10185 = vmatprep.subr.bf16.mxu0 %v9725
        %10186 = vmatpush1.bf16.msra.mxu0 %v9724
        %10187 = vmatprep.mubr.bf16.mxu0 %v9896
        %10188 = vmatmul.mubr.bf16.gmra.mrb[0].mxu0 %v9882
        %v10189 = vpop.f32.mrb[0].mxu0
        %v10190 = vadd.f32 %v10149, %v10189
        %v10191 = vpop.f32.mrb[0].mxu0
        %v10192 = vadd.f32 %v10151, %v10191
        %v10193 = vpop.f32.mrb[0].mxu0
        %v10194 = vpop.f32.mrb[0].mxu0
        %10195 = vdwg.mxu0
        %10196 = vmatprep.subr.bf16.mxu0 %v9732
        %10197 = vmatpush1.bf16.msra.mxu0 %v9731
        %10198 = vmatprep.subr.bf16.mxu0 %v9739
        %10199 = vmatpush1.bf16.msra.mxu0 %v9738
        %10200 = vmatprep.subr.bf16.mxu0 %v9746
        %10201 = vmatpush1.bf16.msra.mxu0 %v9745
        %10202 = vmatprep.subr.bf16.mxu0 %v9753
        %10203 = vmatpush1.bf16.msra.mxu0 %v9752
        %10204 = vmatprep.subr.bf16.mxu0 %v9760
        %10205 = vmatpush1.bf16.msra.mxu0 %v9759
        %10206 = vmatprep.subr.bf16.mxu0 %v9767
        %10207 = vmatpush1.bf16.msra.mxu0 %v9766
        %10208 = vmatprep.subr.bf16.mxu0 %v9774
        %10209 = vmatpush1.bf16.msra.mxu0 %v9773
        %10210 = vmatprep.subr.bf16.mxu0 %v9781
        %10211 = vmatpush1.bf16.msra.mxu0 %v9780
        %10212 = vmatprep.subr.bf16.mxu0 %v9788
        %10213 = vmatpush1.bf16.msra.mxu0 %v9787
        %10214 = vmatprep.subr.bf16.mxu0 %v9795
        %10215 = vmatpush1.bf16.msra.mxu0 %v9794
        %10216 = vmatprep.subr.bf16.mxu0 %v9802
        %10217 = vmatpush1.bf16.msra.mxu0 %v9801
        %10218 = vmatprep.subr.bf16.mxu0 %v9809
        %10219 = vmatpush1.bf16.msra.mxu0 %v9808
        %10220 = vmatprep.subr.bf16.mxu0 %v9816
        %10221 = vmatpush1.bf16.msra.mxu0 %v9815
        %10222 = vmatprep.subr.bf16.mxu0 %v9823
        %10223 = vmatpush1.bf16.msra.mxu0 %v9822
        %10224 = vmatprep.subr.bf16.mxu0 %v9830
        %10225 = vmatpush1.bf16.msra.mxu0 %v9829
        %10226 = vmatprep.subr.bf16.mxu0 %v9837
        %10227 = vmatpush1.bf16.msra.mxu0 %v9836
        %10228 = vmatprep.mubr.bf16.mxu0 %v9900
        %10229 = vmatmul.mubr.bf16.gmra.mrb[0].mxu0 %v9898
        %v10230 = vpop.f32.mrb[0].mxu0
        %v10231 = vadd.f32 %v10190, %v10230
        %v10232 = vpop.f32.mrb[0].mxu0
        %v10233 = vadd.f32 %v10192, %v10232
        %v10234 = vpop.f32.mrb[0].mxu0
        %v10235 = vpop.f32.mrb[0].mxu0
        %10236 = vdwg.mxu0
        %10237 = vmatprep.subr.bf16.mxu0 %v9398
        %10238 = vmatpush1.bf16.msra.mxu0 %v9397
        %10239 = vmatprep.subr.bf16.mxu0 %v9405
        %10240 = vmatpush1.bf16.msra.mxu0 %v9404
        %10241 = vmatprep.subr.bf16.mxu0 %v9412
        %10242 = vmatpush1.bf16.msra.mxu0 %v9411
        %10243 = vmatprep.subr.bf16.mxu0 %v9419
        %10244 = vmatpush1.bf16.msra.mxu0 %v9418
        %10245 = vmatprep.subr.bf16.mxu0 %v9426
        %10246 = vmatpush1.bf16.msra.mxu0 %v9425
        %10247 = vmatprep.subr.bf16.mxu0 %v9433
        %10248 = vmatpush1.bf16.msra.mxu0 %v9432
        %10249 = vmatprep.subr.bf16.mxu0 %v9440
        %10250 = vmatpush1.bf16.msra.mxu0 %v9439
        %10251 = vmatprep.subr.bf16.mxu0 %v9447
        %10252 = vmatpush1.bf16.msra.mxu0 %v9446
        %10253 = vmatprep.subr.bf16.mxu0 %v9454
        %10254 = vmatpush1.bf16.msra.mxu0 %v9453
        %10255 = vmatprep.subr.bf16.mxu0 %v9461
        %10256 = vmatpush1.bf16.msra.mxu0 %v9460
        %10257 = vmatprep.subr.bf16.mxu0 %v9468
        %10258 = vmatpush1.bf16.msra.mxu0 %v9467
        %10259 = vmatprep.subr.bf16.mxu0 %v9475
        %10260 = vmatpush1.bf16.msra.mxu0 %v9474
        %10261 = vmatprep.subr.bf16.mxu0 %v9482
        %10262 = vmatpush1.bf16.msra.mxu0 %v9481
        %10263 = vmatprep.subr.bf16.mxu0 %v9489
        %10264 = vmatpush1.bf16.msra.mxu0 %v9488
        %10265 = vmatprep.subr.bf16.mxu0 %v9496
        %10266 = vmatpush1.bf16.msra.mxu0 %v9495
        %10267 = vmatprep.subr.bf16.mxu0 %v9503
        %10268 = vmatpush1.bf16.msra.mxu0 %v9502
        %10269 = vmatprep.mubr.bf16.mxu0 %v9889
        %10270 = vmatmul.mubr.bf16.gmra.mrb[0].mxu0 %v9875
        %v10271 = vpop.f32.mrb[0].mxu0
        %v10272 = vadd.f32 %v9850, %v10271
        %v10273 = vpop.f32.mrb[0].mxu0
        %v10274 = vadd.f32 %v9850, %v10273
        %v10275 = vpop.f32.mrb[0].mxu0
        %v10276 = vpop.f32.mrb[0].mxu0
        %10277 = vdwg.mxu0
        %10278 = vmatprep.subr.bf16.mxu0 %v9510
        %10279 = vmatpush1.bf16.msra.mxu0 %v9509
        %10280 = vmatprep.subr.bf16.mxu0 %v9517
        %10281 = vmatpush1.bf16.msra.mxu0 %v9516
        %10282 = vmatprep.subr.bf16.mxu0 %v9524
        %10283 = vmatpush1.bf16.msra.mxu0 %v9523
        %10284 = vmatprep.subr.bf16.mxu0 %v9531
        %10285 = vmatpush1.bf16.msra.mxu0 %v9530
        %10286 = vmatprep.subr.bf16.mxu0 %v9538
        %10287 = vmatpush1.bf16.msra.mxu0 %v9537
        %10288 = vmatprep.subr.bf16.mxu0 %v9545
        %10289 = vmatpush1.bf16.msra.mxu0 %v9544
        %10290 = vmatprep.subr.bf16.mxu0 %v9552
        %10291 = vmatpush1.bf16.msra.mxu0 %v9551
        %10292 = vmatprep.subr.bf16.mxu0 %v9559
        %10293 = vmatpush1.bf16.msra.mxu0 %v9558
        %10294 = vmatprep.subr.bf16.mxu0 %v9566
        %10295 = vmatpush1.bf16.msra.mxu0 %v9565
        %10296 = vmatprep.subr.bf16.mxu0 %v9573
        %10297 = vmatpush1.bf16.msra.mxu0 %v9572
        %10298 = vmatprep.subr.bf16.mxu0 %v9580
        %10299 = vmatpush1.bf16.msra.mxu0 %v9579
        %10300 = vmatprep.subr.bf16.mxu0 %v9587
        %10301 = vmatpush1.bf16.msra.mxu0 %v9586
        %10302 = vmatprep.subr.bf16.mxu0 %v9594
        %10303 = vmatpush1.bf16.msra.mxu0 %v9593
        %10304 = vmatprep.subr.bf16.mxu0 %v9601
        %10305 = vmatpush1.bf16.msra.mxu0 %v9600
        %10306 = vmatprep.subr.bf16.mxu0 %v9608
        %10307 = vmatpush1.bf16.msra.mxu0 %v9607
        %10308 = vmatprep.subr.bf16.mxu0 %v9615
        %10309 = vmatpush1.bf16.msra.mxu0 %v9614
        %10310 = vmatprep.mubr.bf16.mxu0 %v9899
        %10311 = vmatmul.mubr.bf16.gmra.mrb[0].mxu0 %v9897
        %v10312 = vpop.f32.mrb[0].mxu0
        %v10313 = vadd.f32 %v10272, %v10312
        %v10314 = vpop.f32.mrb[0].mxu0
        %v10315 = vadd.f32 %v10274, %v10314
        %v10316 = vpop.f32.mrb[0].mxu0
        %v10317 = vpop.f32.mrb[0].mxu0
        %10318 = vdwg.mxu0
        %10319 = vmatprep.subr.bf16.mxu0 %v9622
        %10320 = vmatpush1.bf16.msra.mxu0 %v9621
        %10321 = vmatprep.subr.bf16.mxu0 %v9629
        %10322 = vmatpush1.bf16.msra.mxu0 %v9628
        %10323 = vmatprep.subr.bf16.mxu0 %v9636
        %10324 = vmatpush1.bf16.msra.mxu0 %v9635
        %10325 = vmatprep.subr.bf16.mxu0 %v9643
        %10326 = vmatpush1.bf16.msra.mxu0 %v9642
        %10327 = vmatprep.subr.bf16.mxu0 %v9650
        %10328 = vmatpush1.bf16.msra.mxu0 %v9649
        %10329 = vmatprep.subr.bf16.mxu0 %v9657
        %10330 = vmatpush1.bf16.msra.mxu0 %v9656
        %10331 = vmatprep.subr.bf16.mxu0 %v9664
        %10332 = vmatpush1.bf16.msra.mxu0 %v9663
        %10333 = vmatprep.subr.bf16.mxu0 %v9671
        %10334 = vmatpush1.bf16.msra.mxu0 %v9670
        %10335 = vmatprep.subr.bf16.mxu0 %v9678
        %10336 = vmatpush1.bf16.msra.mxu0 %v9677
        %10337 = vmatprep.subr.bf16.mxu0 %v9685
        %10338 = vmatpush1.bf16.msra.mxu0 %v9684
        %10339 = vmatprep.subr.bf16.mxu0 %v9692
        %10340 = vmatpush1.bf16.msra.mxu0 %v9691
        %10341 = vmatprep.subr.bf16.mxu0 %v9699
        %10342 = vmatpush1.bf16.msra.mxu0 %v9698
        %10343 = vmatprep.subr.bf16.mxu0 %v9706
        %10344 = vmatpush1.bf16.msra.mxu0 %v9705
        %10345 = vmatprep.subr.bf16.mxu0 %v9713
        %10346 = vmatpush1.bf16.msra.mxu0 %v9712
        %10347 = vmatprep.subr.bf16.mxu0 %v9720
        %10348 = vmatpush1.bf16.msra.mxu0 %v9719
        %10349 = vmatprep.subr.bf16.mxu0 %v9727
        %10350 = vmatpush1.bf16.msra.mxu0 %v9726
        %10351 = vmatprep.mubr.bf16.mxu0 %v9896
        %10352 = vmatmul.mubr.bf16.gmra.mrb[0].mxu0 %v9882
        %v10353 = vpop.f32.mrb[0].mxu0
        %v10354 = vadd.f32 %v10313, %v10353
        %v10355 = vpop.f32.mrb[0].mxu0
        %v10356 = vadd.f32 %v10315, %v10355
        %v10357 = vpop.f32.mrb[0].mxu0
        %v10358 = vpop.f32.mrb[0].mxu0
        %10359 = vdwg.mxu0
        %10360 = vmatprep.subr.bf16.mxu0 %v9734
        %10361 = vmatpush1.bf16.msra.mxu0 %v9733
        %10362 = vmatprep.subr.bf16.mxu0 %v9741
        %10363 = vmatpush1.bf16.msra.mxu0 %v9740
        %10364 = vmatprep.subr.bf16.mxu0 %v9748
        %10365 = vmatpush1.bf16.msra.mxu0 %v9747
        %10366 = vmatprep.subr.bf16.mxu0 %v9755
        %10367 = vmatpush1.bf16.msra.mxu0 %v9754
        %10368 = vmatprep.subr.bf16.mxu0 %v9762
        %10369 = vmatpush1.bf16.msra.mxu0 %v9761
        %10370 = vmatprep.subr.bf16.mxu0 %v9769
        %10371 = vmatpush1.bf16.msra.mxu0 %v9768
        %10372 = vmatprep.subr.bf16.mxu0 %v9776
        %10373 = vmatpush1.bf16.msra.mxu0 %v9775
        %10374 = vmatprep.subr.bf16.mxu0 %v9783
        %10375 = vmatpush1.bf16.msra.mxu0 %v9782
        %10376 = vmatprep.subr.bf16.mxu0 %v9790
        %10377 = vmatpush1.bf16.msra.mxu0 %v9789
        %10378 = vmatprep.subr.bf16.mxu0 %v9797
        %10379 = vmatpush1.bf16.msra.mxu0 %v9796
        %10380 = vmatprep.subr.bf16.mxu0 %v9804
        %10381 = vmatpush1.bf16.msra.mxu0 %v9803
        %10382 = vmatprep.subr.bf16.mxu0 %v9811
        %10383 = vmatpush1.bf16.msra.mxu0 %v9810
        %10384 = vmatprep.subr.bf16.mxu0 %v9818
        %10385 = vmatpush1.bf16.msra.mxu0 %v9817
        %10386 = vmatprep.subr.bf16.mxu0 %v9825
        %10387 = vmatpush1.bf16.msra.mxu0 %v9824
        %10388 = vmatprep.subr.bf16.mxu0 %v9832
        %10389 = vmatpush1.bf16.msra.mxu0 %v9831
        %10390 = vmatprep.subr.bf16.mxu0 %v9839
        %10391 = vmatpush1.bf16.msra.mxu0 %v9838
        %10392 = vmatprep.mubr.bf16.mxu0 %v9900
        %10393 = vmatmul.mubr.bf16.gmra.mrb[0].mxu0 %v9898
        %v10394 = vpop.f32.mrb[0].mxu0
        %v10395 = vadd.f32 %v10354, %v10394
        %v10396 = vpop.f32.mrb[0].mxu0
        %v10397 = vadd.f32 %v10356, %v10396
        %v10398 = vpop.f32.mrb[0].mxu0
        %v10399 = vpop.f32.mrb[0].mxu0
        %10400 = vdwg.mxu0
        %10401 = vmatprep.subr.bf16.mxu0 0
        %10402 = vmatpush1.bf16.msra.mxu0 %v9399
        %10403 = vmatprep.subr.bf16.mxu0 0
        %10404 = vmatpush1.bf16.msra.mxu0 %v9406
        %10405 = vmatprep.subr.bf16.mxu0 0
        %10406 = vmatpush1.bf16.msra.mxu0 %v9413
        %10407 = vmatprep.subr.bf16.mxu0 0
        %10408 = vmatpush1.bf16.msra.mxu0 %v9420
        %10409 = vmatprep.subr.bf16.mxu0 0
        %10410 = vmatpush1.bf16.msra.mxu0 %v9427
        %10411 = vmatprep.subr.bf16.mxu0 0
        %10412 = vmatpush1.bf16.msra.mxu0 %v9434
        %10413 = vmatprep.subr.bf16.mxu0 0
        %10414 = vmatpush1.bf16.msra.mxu0 %v9441
        %10415 = vmatprep.subr.bf16.mxu0 0
        %10416 = vmatpush1.bf16.msra.mxu0 %v9448
        %10417 = vmatprep.subr.bf16.mxu0 0
        %10418 = vmatpush1.bf16.msra.mxu0 %v9455
        %10419 = vmatprep.subr.bf16.mxu0 0
        %10420 = vmatpush1.bf16.msra.mxu0 %v9462
        %10421 = vmatprep.subr.bf16.mxu0 0
        %10422 = vmatpush1.bf16.msra.mxu0 %v9469
        %10423 = vmatprep.subr.bf16.mxu0 0
        %10424 = vmatpush1.bf16.msra.mxu0 %v9476
        %10425 = vmatprep.subr.bf16.mxu0 0
        %10426 = vmatpush1.bf16.msra.mxu0 %v9483
        %10427 = vmatprep.subr.bf16.mxu0 0
        %10428 = vmatpush1.bf16.msra.mxu0 %v9490
        %10429 = vmatprep.subr.bf16.mxu0 0
        %10430 = vmatpush1.bf16.msra.mxu0 %v9497
        %10431 = vmatprep.subr.bf16.mxu0 0
        %10432 = vmatpush1.bf16.msra.mxu0 %v9504
        %10433 = vmatprep.mubr.bf16.mxu0 %v9889
        %10434 = vmatmul.mubr.bf16.gmra.mrb[0].mxu0 %v9875
        %v10435 = vpop.f32.mrb[0].mxu0
        %v10436 = vadd.f32 %v9850, %v10435
        %v10437 = vpop.f32.mrb[0].mxu0
        %v10438 = vpop.f32.mrb[0].mxu0
        %v10439 = vpop.f32.mrb[0].mxu0
        %10440 = vdwg.mxu0
        %10441 = vmatprep.subr.bf16.mxu0 0
        %10442 = vmatpush1.bf16.msra.mxu0 %v9511
        %10443 = vmatprep.subr.bf16.mxu0 0
        %10444 = vmatpush1.bf16.msra.mxu0 %v9518
        %10445 = vmatprep.subr.bf16.mxu0 0
        %10446 = vmatpush1.bf16.msra.mxu0 %v9525
        %10447 = vmatprep.subr.bf16.mxu0 0
        %10448 = vmatpush1.bf16.msra.mxu0 %v9532
        %10449 = vmatprep.subr.bf16.mxu0 0
        %10450 = vmatpush1.bf16.msra.mxu0 %v9539
        %10451 = vmatprep.subr.bf16.mxu0 0
        %10452 = vmatpush1.bf16.msra.mxu0 %v9546
        %10453 = vmatprep.subr.bf16.mxu0 0
        %10454 = vmatpush1.bf16.msra.mxu0 %v9553
        %10455 = vmatprep.subr.bf16.mxu0 0
        %10456 = vmatpush1.bf16.msra.mxu0 %v9560
        %10457 = vmatprep.subr.bf16.mxu0 0
        %10458 = vmatpush1.bf16.msra.mxu0 %v9567
        %10459 = vmatprep.subr.bf16.mxu0 0
        %10460 = vmatpush1.bf16.msra.mxu0 %v9574
        %10461 = vmatprep.subr.bf16.mxu0 0
        %10462 = vmatpush1.bf16.msra.mxu0 %v9581
        %10463 = vmatprep.subr.bf16.mxu0 0
        %10464 = vmatpush1.bf16.msra.mxu0 %v9588
        %10465 = vmatprep.subr.bf16.mxu0 0
        %10466 = vmatpush1.bf16.msra.mxu0 %v9595
        %10467 = vmatprep.subr.bf16.mxu0 0
        %10468 = vmatpush1.bf16.msra.mxu0 %v9602
        %10469 = vmatprep.subr.bf16.mxu0 0
        %10470 = vmatpush1.bf16.msra.mxu0 %v9609
        %10471 = vmatprep.subr.bf16.mxu0 0
        %10472 = vmatpush1.bf16.msra.mxu0 %v9616
        %10473 = vmatprep.mubr.bf16.mxu0 %v9899
        %10474 = vmatmul.mubr.bf16.gmra.mrb[0].mxu0 %v9897
        %v10475 = vpop.f32.mrb[0].mxu0
        %v10476 = vadd.f32 %v10436, %v10475
        %v10477 = vpop.f32.mrb[0].mxu0
        %v10478 = vpop.f32.mrb[0].mxu0
        %v10479 = vpop.f32.mrb[0].mxu0
        %10480 = vdwg.mxu0
        %10481 = vmatprep.subr.bf16.mxu0 0
        %10482 = vmatpush1.bf16.msra.mxu0 %v9623
        %10483 = vmatprep.subr.bf16.mxu0 0
        %10484 = vmatpush1.bf16.msra.mxu0 %v9630
        %10485 = vmatprep.subr.bf16.mxu0 0
        %10486 = vmatpush1.bf16.msra.mxu0 %v9637
        %10487 = vmatprep.subr.bf16.mxu0 0
        %10488 = vmatpush1.bf16.msra.mxu0 %v9644
        %10489 = vmatprep.subr.bf16.mxu0 0
        %10490 = vmatpush1.bf16.msra.mxu0 %v9651
        %10491 = vmatprep.subr.bf16.mxu0 0
        %10492 = vmatpush1.bf16.msra.mxu0 %v9658
        %10493 = vmatprep.subr.bf16.mxu0 0
        %10494 = vmatpush1.bf16.msra.mxu0 %v9665
        %10495 = vmatprep.subr.bf16.mxu0 0
        %10496 = vmatpush1.bf16.msra.mxu0 %v9672
        %10497 = vmatprep.subr.bf16.mxu0 0
        %10498 = vmatpush1.bf16.msra.mxu0 %v9679
        %10499 = vmatprep.subr.bf16.mxu0 0
        %10500 = vmatpush1.bf16.msra.mxu0 %v9686
        %10501 = vmatprep.subr.bf16.mxu0 0
        %10502 = vmatpush1.bf16.msra.mxu0 %v9693
        %10503 = vmatprep.subr.bf16.mxu0 0
        %10504 = vmatpush1.bf16.msra.mxu0 %v9700
        %10505 = vmatprep.subr.bf16.mxu0 0
        %10506 = vmatpush1.bf16.msra.mxu0 %v9707
        %10507 = vmatprep.subr.bf16.mxu0 0
        %10508 = vmatpush1.bf16.msra.mxu0 %v9714
        %10509 = vmatprep.subr.bf16.mxu0 0
        %10510 = vmatpush1.bf16.msra.mxu0 %v9721
        %10511 = vmatprep.subr.bf16.mxu0 0
        %10512 = vmatpush1.bf16.msra.mxu0 %v9728
        %10513 = vmatprep.mubr.bf16.mxu0 %v9896
        %10514 = vmatmul.mubr.bf16.gmra.mrb[0].mxu0 %v9882
        %v10515 = vpop.f32.mrb[0].mxu0
        %v10516 = vadd.f32 %v10476, %v10515
        %v10517 = vpop.f32.mrb[0].mxu0
        %v10518 = vpop.f32.mrb[0].mxu0
        %v10519 = vpop.f32.mrb[0].mxu0
        %10520 = vdwg.mxu0
        %10521 = vmatprep.subr.bf16.mxu0 0
        %10522 = vmatpush1.bf16.msra.mxu0 %v9735
        %10523 = vmatprep.subr.bf16.mxu0 0
        %10524 = vmatpush1.bf16.msra.mxu0 %v9742
        %10525 = vmatprep.subr.bf16.mxu0 0
        %10526 = vmatpush1.bf16.msra.mxu0 %v9749
        %10527 = vmatprep.subr.bf16.mxu0 0
        %10528 = vmatpush1.bf16.msra.mxu0 %v9756
        %10529 = vmatprep.subr.bf16.mxu0 0
        %10530 = vmatpush1.bf16.msra.mxu0 %v9763
        %10531 = vmatprep.subr.bf16.mxu0 0
        %10532 = vmatpush1.bf16.msra.mxu0 %v9770
        %10533 = vmatprep.subr.bf16.mxu0 0
        %10534 = vmatpush1.bf16.msra.mxu0 %v9777
        %10535 = vmatprep.subr.bf16.mxu0 0
        %10536 = vmatpush1.bf16.msra.mxu0 %v9784
        %10537 = vmatprep.subr.bf16.mxu0 0
        %10538 = vmatpush1.bf16.msra.mxu0 %v9791
        %10539 = vmatprep.subr.bf16.mxu0 0
        %10540 = vmatpush1.bf16.msra.mxu0 %v9798
        %10541 = vmatprep.subr.bf16.mxu0 0
        %10542 = vmatpush1.bf16.msra.mxu0 %v9805
        %10543 = vmatprep.subr.bf16.mxu0 0
        %10544 = vmatpush1.bf16.msra.mxu0 %v9812
        %10545 = vmatprep.subr.bf16.mxu0 0
        %10546 = vmatpush1.bf16.msra.mxu0 %v9819
        %10547 = vmatprep.subr.bf16.mxu0 0
        %10548 = vmatpush1.bf16.msra.mxu0 %v9826
        %10549 = vmatprep.subr.bf16.mxu0 0
        %10550 = vmatpush1.bf16.msra.mxu0 %v9833
        %10551 = vmatprep.subr.bf16.mxu0 0
        %10552 = vmatpush1.bf16.msra.mxu0 %v9840
        %10553 = vmatprep.mubr.bf16.mxu0 %v9900
        %10554 = vmatmul.mubr.bf16.gmra.mrb[0].mxu0 %v9898
        %v10555 = vpop.f32.mrb[0].mxu0
        %v10556 = vadd.f32 %v10516, %v10555
        %v10557 = vpop.f32.mrb[0].mxu0
        %v10558 = vpop.f32.mrb[0].mxu0
        %v10559 = vpop.f32.mrb[0].mxu0
        %10560 = vdwg.mxu0
        %v10561 = vmax.f32 %v10067, 0.0
        %v10562 = vmax.f32 %v10069, 0.0
        %v10563 = vmax.f32 %v10231, 0.0
        %v10564 = vmax.f32 %v10233, 0.0
        %v10565 = vmax.f32 %v10395, 0.0
        %v10566 = vmax.f32 %v10397, 0.0
        %v10567 = vmax.f32 %v10556, 0.0
        %v10575 = vcombine.low %v10561, %v10562
        %v10576 = vcombine.low %v10563, %v10564
        %v10577 = vcombine.low %v10565, %v10566
        %v10579 = vunpack.c.l.s4 1966171168
        %v10580 = vunpack.c.0.s8 %v10579
        %v10581 = vlaneseq
        %v10582 = vshrl.u32 %v10581, 7
        %v10583 = vsub.s32 %v10580, %v10582
        %v10584 = vrot.slane %v10575, %v10583
        %v10586 = vunpack.c.l.s4 1966171168
        %v10587 = vunpack.c.0.s8 %v10586
        %v10588 = vlaneseq
        %v10589 = vshrl.u32 %v10588, 7
        %v10590 = vsub.s32 %v10587, %v10589
        %v10591 = vrot.slane %v10576, %v10590
        %v10593 = vunpack.c.l.s4 1966171168
        %v10594 = vunpack.c.0.s8 %v10593
        %v10595 = vlaneseq
        %v10596 = vshrl.u32 %v10595, 7
        %v10597 = vsub.s32 %v10594, %v10596
        %v10598 = vrot.slane %v10577, %v10597
        %v10600 = vunpack.c.l.s4 1966171168
        %v10601 = vunpack.c.0.s8 %v10600
        %v10602 = vlaneseq
        %v10603 = vshrl.u32 %v10602, 7
        %v10604 = vsub.s32 %v10601, %v10603
        %v10605 = vrot.slane %v10567, %v10604
        %v10606 = vcombine.low %v10584, %v10591
        %v10607 = vcombine.low %v10598, %v10605
        %v10609 = vunpack.c.l.s4 1966171168
        %v10610 = vunpack.c.0.s8 %v10609
        %v10611 = vlaneseq
        %v10612 = vshrl.u32 %v10611, 7
        %v10613 = vsub.s32 %v10610, %v10612
        %v10614 = vrot.slane %v10606, %v10613
        %v10616 = vunpack.c.l.s4 1966171168
        %v10617 = vunpack.c.0.s8 %v10616
        %v10618 = vlaneseq
        %v10619 = vshrl.u32 %v10618, 7
        %v10620 = vsub.s32 %v10617, %v10619
        %v10621 = vrot.slane %v10607, %v10620
        %v10622 = vcombine.low %v10614, %v10621
        %v10624 = vlaneseq
        %vm10625 = vcmp.ge.s32.totalorder %v10624, 0
        %vm10626 = vcmp.lt.s32.totalorder %v10624, 865
        %vm10627 = vmand %vm10625, %vm10626
        %10628 = vst.msk [vmem:[%s472] sm:$0x7f] %vm10627, %v10622
        %p10629 = scmp.lt.s32.totalorder %s28, 1
        %s10630 = scalar_select %p10629, %s28, 1
        %s10631 = smul.addr %s10630, 7
        %s10632 = scalar_lea.vmem %s12, %s10631
        // Predicated region
        $region85: #{_lambda_.1} parent=67 // pred_check
          %p10633 = pneg %p303
        $region86: #{_lambda_.1} parent=67 // pred_check_branch
          %10635 = sbr.rel (%p10633) target = $region88
        $region87: #{_lambda_.1} parent=67 // pred_region
          _
        $region88: #{_lambda_.1} parent=67 // pred_fallthru
          _
      $region68: #{_lambda_.1} parent=5 // pred_fallthru
        _
      %p10636 = scmp.le.s32.totalorder 2, %s23
      // Predicated region
      $region89: #{_lambda_.1} parent=5 // pred_check
        %p10637 = pneg %p10636
      $region90: #{_lambda_.1} parent=5 // pred_check_branch
        %10639 = sbr.rel (%p10637) target = $region92
      $region91: #{_lambda_.1} parent=5 // pred_region
        %s10640 = ssub.s32 %s23, 2
        // Predicated region
        $region93: #{_lambda_.1} parent=91 // pred_check
          %p10641 = pneg %p309
        $region94: #{_lambda_.1} parent=91 // pred_check_branch
          %10643 = sbr.rel (%p10641) target = $region96
        $region95: #{_lambda_.1} parent=91 // pred_region
          %p10644 = scmp.lt.s32.totalorder %s29, 1
          %s10645 = scalar_select %p10644, %s29, 1
          %s10646 = smul.addr %s10645, 7
          %s10647 = scalar_lea.vmem %s12, %s10646
        $region96: #{_lambda_.1} parent=91 // pred_fallthru
          _
      $region92: #{_lambda_.1} parent=5 // pred_fallthru
        _
    $region6: #{_lambda_.1} parent=1 // loop_footer
      %s27 = sadd.s32 1, %s23
    $region7: #{_lambda_.1} parent=1 // loop_footer_branch
      %22 = sbr.rel target = $region3
    $region8: #{_lambda_.1} parent=1 // loop_exit
      _
    %10648 = vsyncpa [#allocation11], 1
    %s10649 = scalar_lea.sflag [#allocation11], 1
    %10650 = vsyncpa %s10649, 1
    %10651 = vsyncpa [#allocation13], 1
    %10652 = vsyncpa [#allocation16], 1

</llo_original>
